<compile_context>
chip_gen: v7x
topology: tpu7x:2x2x1
jax: 0.10.0
libtpu: 0.0.40
codegen_flags: <defaults>
</compile_context>

<pallas_src>
import functools

import jax
import jax.numpy as jnp
from jax import lax
from jax.experimental import pallas as pl
from jax.experimental.pallas import tpu as pltpu


def inception_kernel(x_ref, wstem_ref, bstem_ref, wbig_ref, bbig_ref, out_ref,
                     pad2_ref, pad3_ref, pool_ref, col_ref):
    B, H, W, Cin = x_ref.shape
    HW = H * W
    M = B * HW
    c2a = pad2_ref.shape[-1]
    c3a = pad3_ref.shape[-1]
    ktot = col_ref.shape[-1]
    cdt = col_ref.dtype

    # ---- one-time init of the constant halos (scratch persists across steps)
    # Gate on the inner ("arbitrary") axis, not the flat step, so the init runs
    # on every TensorCore even when the outer "parallel" axis is megacore-split.
    @pl.when(pl.program_id(1) == 0)
    def _init():
        pad2_ref[...] = jnp.zeros(pad2_ref.shape, cdt)
        pad3_ref[...] = jnp.zeros(pad3_ref.shape, cdt)
        pool_ref[...] = jnp.full(pool_ref.shape, -jnp.inf, cdt)

    x = x_ref[...]                                    # (B, H, W, Cin)
    x2 = x.reshape(M, Cin)

    # ---- fused 1x1 "stem" convs feeding the 3x3 / 5x5 paths -----------------
    stem = jnp.dot(x2, wstem_ref[...], preferred_element_type=jnp.float32)
    stem = jnp.maximum(stem + bstem_ref[...], 0.0)    # (M, c2a + c3a), f32
    r2 = stem[:, 0:c2a].astype(cdt).reshape(B, H, W, c2a)
    r3 = stem[:, c2a:c2a + c3a].astype(cdt).reshape(B, H, W, c3a)

    # Interior writes only -- the halo ring stays zero / -inf forever.
    pad2_ref[:, 1:H + 1, 1:W + 1, :] = r2
    pad3_ref[:, 2:H + 2, 2:W + 2, :] = r3
    pool_ref[:, 1:H + 1, 1:W + 1, :] = x

    # ---- fused im2col slab: [ x | 3x3 taps | 5x5 taps | maxpool3x3(x) ] ------
    # Plain slice stores only; no per-tap reshape relayouts.
    col_ref[:, :, :, 0:Cin] = x
    off = Cin
    for dy in range(3):
        for dx in range(3):
            col_ref[:, :, :, off:off + c2a] = pad2_ref[:, dy:dy + H, dx:dx + W, :]
            off += c2a
    for dy in range(5):
        for dx in range(5):
            col_ref[:, :, :, off:off + c3a] = pad3_ref[:, dy:dy + H, dx:dx + W, :]
            off += c3a

    # 3x3 stride-1 max-pool: max of 9 shifted windows accumulated in registers
    # (one interior store above + 9 loads; no RMW passes through VMEM).
    pooled = pool_ref[:, 0:H, 0:W, :]
    for dy in range(3):
        for dx in range(3):
            if dy == 0 and dx == 0:
                continue
            pooled = jnp.maximum(pooled, pool_ref[:, dy:dy + H, dx:dx + W, :])
    col_ref[:, :, :, off:off + Cin] = pooled

    # ---- one block-diagonal matmul -> all four paths, one dense store -------
    cols = col_ref[...].reshape(M, ktot)              # ONE reshape, not one/tap
    acc = jnp.dot(cols, wbig_ref[...], preferred_element_type=jnp.float32)
    out_ref[...] = jnp.maximum(acc + bbig_ref[...], 0.0).astype(out_ref.dtype)


def _physical_vmem_bytes():
    try:
        info = pltpu.get_tpu_info()
        return int(getattr(info, "vmem_capacity_bytes", 128 * 1024 * 1024))
    except Exception:
        return 128 * 1024 * 1024


def _vmem_tile_bytes(shape, dtype):
    """(8,128)-padded VMEM footprint of an array (last dim -> lanes)."""
    isz = jnp.dtype(dtype).itemsize
    sub_mult = 8 * max(1, 4 // isz)
    lead = 1
    for d in shape[:-2]:
        lead *= int(d)
    sub = -(-int(shape[-2]) // sub_mult) * sub_mult
    lane = -(-int(shape[-1]) // 128) * 128
    return lead * sub * lane * isz


@functools.partial(jax.jit, static_argnames=("use_bf16",))
def inception_block(x_nchw, params, *, use_bf16=False):
    """Matches PyTorch `inception_block.forward` (NCHW in / NCHW out)."""
    (w1, b1, w2a, b2a, w2b, b2b, w3a, b3a, w3b, b3b, w4, b4) = params
    N, Cin, H, W = x_nchw.shape
    HW = H * W

    c1 = w1.shape[1]
    c2a, c2b = w2b.shape[2], w2b.shape[3]
    c3a, c3b = w3b.shape[2], w3b.shape[3]
    c4 = w4.shape[1]
    c_out = c1 + c2b + c3b + c4
    ktot = Cin + 9 * c2a + 25 * c3a + Cin

    cdt = jnp.bfloat16 if use_bf16 else jnp.float32   # matmul-operand dtype

    x = jnp.transpose(x_nchw, (0, 2, 3, 1)).astype(cdt)                 # NHWC

    # Stem = the two 1x1 convs that feed the 3x3 / 5x5 paths.
    wstem = jnp.concatenate([w2a, w3a], axis=1).astype(cdt)             # (Cin, c2a+c3a)
    bstem = jnp.concatenate([b2a, b3a], axis=1).astype(jnp.float32)

    # Block-diagonal fused weight slab: one matmul emits the concatenated
    # (c1 | c2b | c3b | c4) output directly -> single dense store + one epilogue.
    # TODO(synk): for large production channel counts, split back into per-path
    # matmuls with 128-padded output widths (the zero blocks waste MXU flops).
    o2 = Cin + 9 * c2a
    o3 = o2 + 25 * c3a
    wbig = jnp.zeros((ktot, c_out), jnp.float32)
    wbig = wbig.at[0:Cin, 0:c1].set(w1)
    wbig = wbig.at[Cin:o2, c1:c1 + c2b].set(w2b.reshape(9 * c2a, c2b))
    wbig = wbig.at[o2:o3, c1 + c2b:c1 + c2b + c3b].set(w3b.reshape(25 * c3a, c3b))
    wbig = wbig.at[o3:ktot, c1 + c2b + c3b:c_out].set(w4)
    wbig = wbig.astype(cdt)
    bbig = jnp.concatenate([b1, b2b, b3b, b4], axis=1).astype(jnp.float32)

    # ---------------- VMEM budgeting / batch-tile selection ------------------
    phys = _physical_vmem_bytes()
    ceiling = (phys * 3) // 4            # ~48 MiB on v7x, ~96 MiB on v5e/v6e

    def footprint(bt):
        t = _vmem_tile_bytes
        return (2 * t((bt, H, W, Cin), cdt)                 # x block (double-buffered)
                + 2 * t((bt * HW, c_out), jnp.float32)      # out block
                + 2 * (t((Cin, c2a + c3a), cdt) + t((1, c2a + c3a), jnp.float32)
                       + t((ktot, c_out), cdt) + t((1, c_out), jnp.float32))
                + t((bt, H + 2, W + 2, c2a), cdt)           # pad2 scratch
                + t((bt, H + 4, W + 4, c3a), cdt)           # pad3 scratch
                + t((bt, H + 2, W + 2, Cin), cdt)           # pool scratch
                + t((bt, H, W, ktot), cdt))                 # im2col slab

    divisors = [d for d in range(N, 0, -1) if N % d == 0]
    fit = [d for d in divisors if footprint(d) <= (ceiling * 3) // 5]
    multi = [d for d in fit if N // d >= 2]   # >=2 blocks -> megacore usable on v7x
    b_tile = multi[0] if multi else (fit[0] if fit else 1)

    num_blocks = N // b_tile
    P = 2 if (num_blocks % 2 == 0 and num_blocks >= 2) else 1
    Q = num_blocks // P

    vmem_limit = int(min(ceiling, max(32 * 1024 * 1024,
                                      2 * footprint(b_tile) + 8 * 1024 * 1024)))

    def resident(a):  # full-array block, constant index_map -> stays in VMEM
        return pl.BlockSpec(a.shape, lambda p, q: (0,) * a.ndim)

    isz = jnp.dtype(cdt).itemsize
    flops = 2 * N * HW * (Cin * (c2a + c3a) + ktot * c_out)
    bytes_accessed = (int(x.size) * isz + N * HW * c_out * 4
                      + isz * (int(wstem.size) + int(wbig.size))
                      + 4 * (int(bstem.size) + int(bbig.size)))

    out_flat = pl.pallas_call(
        inception_kernel,
        out_shape=jax.ShapeDtypeStruct((N * HW, c_out), jnp.float32),
        grid=(P, Q),
        in_specs=[
            pl.BlockSpec((b_tile, H, W, Cin), lambda p, q: (p * Q + q, 0, 0, 0)),
            resident(wstem), resident(bstem),
            resident(wbig), resident(bbig),
        ],
        out_specs=pl.BlockSpec((b_tile * HW, c_out), lambda p, q: (p * Q + q, 0)),
        scratch_shapes=[
            pltpu.VMEM((b_tile, H + 2, W + 2, c2a), cdt),   # 3x3-path padded acts
            pltpu.VMEM((b_tile, H + 4, W + 4, c3a), cdt),   # 5x5-path padded acts
            pltpu.VMEM((b_tile, H + 2, W + 2, Cin), cdt),   # (-inf)-halo pool pad
            pltpu.VMEM((b_tile, H, W, ktot), cdt),          # fused im2col slab
        ],
        compiler_params=pltpu.CompilerParams(
            dimension_semantics=("parallel", "arbitrary"),
            vmem_limit_bytes=vmem_limit,
        ),
        cost_estimate=pl.CostEstimate(flops=flops, transcendentals=0,
                                      bytes_accessed=bytes_accessed),
    )(x, wstem, bstem, wbig, bbig)

    out = out_flat.reshape(N, H, W, c_out)
    return jnp.transpose(out, (0, 3, 1, 2))                              # NCHW


def init_params(key, in_channels, c):
    """Deterministic synthetic parameters (shapes from the module's __init__)."""
    c1 = c[0]
    c2a, c2b = c[1]
    c3a, c3b = c[2]
    c4 = c[3]
    ks = jax.random.split(key, 12)
    w = lambda k, shape: jax.random.normal(k, shape, jnp.float32) * 0.1
    b = lambda k, n: jax.random.normal(k, (1, n), jnp.float32) * 0.1
    return (w(ks[0], (in_channels, c1)),   b(ks[1], c1),
            w(ks[2], (in_channels, c2a)),  b(ks[3], c2a),
            w(ks[4], (3, 3, c2a, c2b)),    b(ks[5], c2b),
            w(ks[6], (in_channels, c3a)),  b(ks[7], c3a),
            w(ks[8], (5, 5, c3a, c3b)),    b(ks[9], c3b),
            w(ks[10], (in_channels, c4)),  b(ks[11], c4))


def reference(x_nchw, params):
    """Pure-JAX reference (lax.conv / reduce_window) for correctness check."""
    (w1, b1, w2a, b2a, w2b, b2b, w3a, b3a, w3b, b3b, w4, b4) = params
    x = jnp.transpose(x_nchw, (0, 2, 3, 1))

    def conv(inp, w_hwio, bias, pad):
        y = lax.conv_general_dilated(inp, w_hwio, (1, 1), [(pad, pad), (pad, pad)],
                                     dimension_numbers=('NHWC', 'HWIO', 'NHWC'))
        return jax.nn.relu(y + bias.reshape(1, 1, 1, -1))

    as11 = lambda w: w.reshape(1, 1, *w.shape)
    p1 = conv(x, as11(w1), b1, 0)
    p2 = conv(conv(x, as11(w2a), b2a, 0), w2b, b2b, 1)
    p3 = conv(conv(x, as11(w3a), b3a, 0), w3b, b3b, 2)
    pooled = lax.reduce_window(x, -jnp.inf, lax.max, (1, 3, 3, 1), (1, 1, 1, 1),
                               [(0, 0), (1, 1), (1, 1), (0, 0)])
    p4 = conv(pooled, as11(w4), b4, 0)
    out = jnp.concatenate([p1, p2, p3, p4], axis=-1)
    return jnp.transpose(out, (0, 3, 1, 2))


if __name__ == "__main__":
    key = jax.random.PRNGKey(0)
    kx, kp = jax.random.split(key)

    in_channels = 4
    c = (4, (4, 8), (2, 4), 4)          # -> output channels 4 + 8 + 4 + 4 = 20
    x = jax.random.normal(kx, (2, in_channels, 16, 16), jnp.float32)
    params = init_params(kp, in_channels, c)

    out = inception_block(x, params)    # f32 operands (use_bf16=True on v6e/v7x)
    out = jax.block_until_ready(out)

    assert out.shape == (2, 20, 16, 16), out.shape
    ref = reference(x, params)
    max_err = float(jnp.max(jnp.abs(out - ref)))
    assert jnp.allclose(out, ref, atol=1e-4, rtol=1e-4), max_err
    print("KERNEL_OK")
</pallas_src>

<mosaic_0001>
module attributes {stable_mosaic.version = 11 : i64} {
  func.func @inception_kernel(%arg0: i32, %arg1: i32, %arg2: memref<1x16x16x4xf32, #tpu.memory_space<vmem>>, %arg3: memref<4x6xf32, #tpu.memory_space<vmem>>, %arg4: memref<1x6xf32, #tpu.memory_space<vmem>>, %arg5: memref<94x20xf32, #tpu.memory_space<vmem>>, %arg6: memref<1x20xf32, #tpu.memory_space<vmem>>, %arg7: memref<256x20xf32, #tpu.memory_space<vmem>>, %arg8: memref<1x18x18x4xf32, #tpu.memory_space<vmem>>, %arg9: memref<1x20x20x2xf32, #tpu.memory_space<vmem>>, %arg10: memref<1x18x18x4xf32, #tpu.memory_space<vmem>>, %arg11: memref<1x16x16x94xf32, #tpu.memory_space<vmem>>) attributes {dimension_semantics = [#tpu.dimension_semantics<parallel>, #tpu.dimension_semantics<arbitrary>], iteration_bounds = array<i64: 2, 1>, scalar_prefetch = 0 : i64, scratch_operands = 4 : i64, tpu.core_type = #tpu.core_type<tc>, window_params = [{transform_indices = @transform_0, window_bounds = array<i64: 1, 16, 16, 4>}, {pipeline_mode = #tpu.pipeline_mode<synchronous>, transform_indices = @transform_1, window_bounds = array<i64: 4, 6>}, {pipeline_mode = #tpu.pipeline_mode<synchronous>, transform_indices = @transform_2, window_bounds = array<i64: 1, 6>}, {pipeline_mode = #tpu.pipeline_mode<synchronous>, transform_indices = @transform_3, window_bounds = array<i64: 94, 20>}, {pipeline_mode = #tpu.pipeline_mode<synchronous>, transform_indices = @transform_4, window_bounds = array<i64: 1, 20>}, {transform_indices = @transform_5, window_bounds = array<i64: 256, 20>}]} {
    %c0_i32 = arith.constant 0 : i32
    %0 = arith.cmpi eq, %arg1, %c0_i32 : i32
    %1 = arith.extui %0 : i1 to i32
    %c0_i32_0 = arith.constant 0 : i32
    %2 = arith.cmpi ne, %1, %c0_i32_0 : i32
    scf.if %2 {
      %cst_311 = arith.constant 0.000000e+00 : f32
      %116 = vector.broadcast %cst_311 : f32 to vector<1x18x18x4xf32>
      %c0_312 = arith.constant 0 : index
      %c0_313 = arith.constant 0 : index
      %c0_314 = arith.constant 0 : index
      %c0_315 = arith.constant 0 : index
      %117 = vector.load %arg8[%c0_312, %c0_313, %c0_314, %c0_315] : memref<1x18x18x4xf32, #tpu.memory_space<vmem>>, vector<1x18x18x4xf32>
      tpu.vector_store %arg8[%c0_312, %c0_313, %c0_314, %c0_315], %116 {strides = array<i32>} : memref<1x18x18x4xf32, #tpu.memory_space<vmem>>, vector<1x18x18x4xf32>,
      %cst_316 = arith.constant 0.000000e+00 : f32
      %118 = vector.broadcast %cst_316 : f32 to vector<1x20x20x2xf32>
      %c0_317 = arith.constant 0 : index
      %c0_318 = arith.constant 0 : index
      %c0_319 = arith.constant 0 : index
      %c0_320 = arith.constant 0 : index
      %119 = vector.load %arg9[%c0_317, %c0_318, %c0_319, %c0_320] : memref<1x20x20x2xf32, #tpu.memory_space<vmem>>, vector<1x20x20x2xf32>
      tpu.vector_store %arg9[%c0_317, %c0_318, %c0_319, %c0_320], %118 {strides = array<i32>} : memref<1x20x20x2xf32, #tpu.memory_space<vmem>>, vector<1x20x20x2xf32>,
      %cst_321 = arith.constant 0xFF800000 : f32
      %120 = vector.broadcast %cst_321 : f32 to vector<1x18x18x4xf32>
      %c0_322 = arith.constant 0 : index
      %c0_323 = arith.constant 0 : index
      %c0_324 = arith.constant 0 : index
      %c0_325 = arith.constant 0 : index
      %121 = vector.load %arg10[%c0_322, %c0_323, %c0_324, %c0_325] : memref<1x18x18x4xf32, #tpu.memory_space<vmem>>, vector<1x18x18x4xf32>
      tpu.vector_store %arg10[%c0_322, %c0_323, %c0_324, %c0_325], %120 {strides = array<i32>} : memref<1x18x18x4xf32, #tpu.memory_space<vmem>>, vector<1x18x18x4xf32>,
    } else {
    }
    %c0 = arith.constant 0 : index
    %c0_1 = arith.constant 0 : index
    %c0_2 = arith.constant 0 : index
    %c0_3 = arith.constant 0 : index
    %3 = vector.load %arg2[%c0, %c0_1, %c0_2, %c0_3] : memref<1x16x16x4xf32, #tpu.memory_space<vmem>>, vector<1x16x16x4xf32>
    %4 = vector.shape_cast %3 : vector<1x16x16x4xf32> to vector<256x4xf32>
    %c0_4 = arith.constant 0 : index
    %c0_5 = arith.constant 0 : index
    %5 = vector.load %arg3[%c0_4, %c0_5] : memref<4x6xf32, #tpu.memory_space<vmem>>, vector<4x6xf32>
    %cst = arith.constant dense<0.000000e+00> : vector<256x6xf32>
    %6 = tpu.matmul %4, %5, %cst {dimension_numbers = #tpu.dot_dimension_numbers<[1], [0], [0], [1], [0, 0, 1, 1], [], []>} : vector<256x4xf32>, vector<4x6xf32>, vector<256x6xf32> -> vector<256x6xf32>
    %c0_6 = arith.constant 0 : index
    %c0_7 = arith.constant 0 : index
    %7 = vector.load %arg4[%c0_6, %c0_7] : memref<1x6xf32, #tpu.memory_space<vmem>>, vector<1x6xf32>
    %8 = vector.broadcast %7 : vector<1x6xf32> to vector<256x6xf32>
    %9 = arith.addf %6, %8 : vector<256x6xf32>
    %cst_8 = arith.constant 0.000000e+00 : f32
    %10 = vector.broadcast %cst_8 : f32 to vector<256x6xf32>
    %11 = arith.maximumf %9, %10 : vector<256x6xf32>
    %12 = vector.extract_strided_slice %11 {offsets = [0, 0], sizes = [256, 4], strides = [1, 1]} : vector<256x6xf32> to vector<256x4xf32>
    %13 = vector.shape_cast %12 : vector<256x4xf32> to vector<1x16x16x4xf32>
    %14 = vector.extract_strided_slice %11 {offsets = [0, 4], sizes = [256, 2], strides = [1, 1]} : vector<256x6xf32> to vector<256x2xf32>
    %15 = vector.shape_cast %14 : vector<256x2xf32> to vector<1x16x16x2xf32>
    %c0_9 = arith.constant 0 : index
    %c1 = arith.constant 1 : index
    %c1_10 = arith.constant 1 : index
    %c0_11 = arith.constant 0 : index
    %16 = vector.load %arg8[%c0_9, %c1, %c1_10, %c0_11] : memref<1x18x18x4xf32, #tpu.memory_space<vmem>>, vector<1x16x16x4xf32>
    tpu.vector_store %arg8[%c0_9, %c1, %c1_10, %c0_11], %13 {strides = array<i32>} : memref<1x18x18x4xf32, #tpu.memory_space<vmem>>, vector<1x16x16x4xf32>,
    %c0_12 = arith.constant 0 : index
    %c2 = arith.constant 2 : index
    %c2_13 = arith.constant 2 : index
    %c0_14 = arith.constant 0 : index
    %17 = vector.load %arg9[%c0_12, %c2, %c2_13, %c0_14] : memref<1x20x20x2xf32, #tpu.memory_space<vmem>>, vector<1x16x16x2xf32>
    tpu.vector_store %arg9[%c0_12, %c2, %c2_13, %c0_14], %15 {strides = array<i32>} : memref<1x20x20x2xf32, #tpu.memory_space<vmem>>, vector<1x16x16x2xf32>,
    %c0_15 = arith.constant 0 : index
    %c1_16 = arith.constant 1 : index
    %c1_17 = arith.constant 1 : index
    %c0_18 = arith.constant 0 : index
    %18 = vector.load %arg10[%c0_15, %c1_16, %c1_17, %c0_18] : memref<1x18x18x4xf32, #tpu.memory_space<vmem>>, vector<1x16x16x4xf32>
    tpu.vector_store %arg10[%c0_15, %c1_16, %c1_17, %c0_18], %3 {strides = array<i32>} : memref<1x18x18x4xf32, #tpu.memory_space<vmem>>, vector<1x16x16x4xf32>,
    %c0_19 = arith.constant 0 : index
    %c0_20 = arith.constant 0 : index
    %c0_21 = arith.constant 0 : index
    %c0_22 = arith.constant 0 : index
    %19 = vector.load %arg11[%c0_19, %c0_20, %c0_21, %c0_22] : memref<1x16x16x94xf32, #tpu.memory_space<vmem>>, vector<1x16x16x4xf32>
    tpu.vector_store %arg11[%c0_19, %c0_20, %c0_21, %c0_22], %3 {strides = array<i32>} : memref<1x16x16x94xf32, #tpu.memory_space<vmem>>, vector<1x16x16x4xf32>,
    %c0_23 = arith.constant 0 : index
    %c0_24 = arith.constant 0 : index
    %c0_25 = arith.constant 0 : index
    %c0_26 = arith.constant 0 : index
    %20 = vector.load %arg8[%c0_23, %c0_24, %c0_25, %c0_26] : memref<1x18x18x4xf32, #tpu.memory_space<vmem>>, vector<1x16x16x4xf32>
    %c0_27 = arith.constant 0 : index
    %c0_28 = arith.constant 0 : index
    %c0_29 = arith.constant 0 : index
    %c4 = arith.constant 4 : index
    %21 = vector.load %arg11[%c0_27, %c0_28, %c0_29, %c4] : memref<1x16x16x94xf32, #tpu.memory_space<vmem>>, vector<1x16x16x4xf32>
    tpu.vector_store %arg11[%c0_27, %c0_28, %c0_29, %c4], %20 {strides = array<i32>} : memref<1x16x16x94xf32, #tpu.memory_space<vmem>>, vector<1x16x16x4xf32>,
    %c0_30 = arith.constant 0 : index
    %c0_31 = arith.constant 0 : index
    %c1_32 = arith.constant 1 : index
    %c0_33 = arith.constant 0 : index
    %22 = vector.load %arg8[%c0_30, %c0_31, %c1_32, %c0_33] : memref<1x18x18x4xf32, #tpu.memory_space<vmem>>, vector<1x16x16x4xf32>
    %c0_34 = arith.constant 0 : index
    %c0_35 = arith.constant 0 : index
    %c0_36 = arith.constant 0 : index
    %c8 = arith.constant 8 : index
    %23 = vector.load %arg11[%c0_34, %c0_35, %c0_36, %c8] : memref<1x16x16x94xf32, #tpu.memory_space<vmem>>, vector<1x16x16x4xf32>
    tpu.vector_store %arg11[%c0_34, %c0_35, %c0_36, %c8], %22 {strides = array<i32>} : memref<1x16x16x94xf32, #tpu.memory_space<vmem>>, vector<1x16x16x4xf32>,
    %c0_37 = arith.constant 0 : index
    %c0_38 = arith.constant 0 : index
    %c2_39 = arith.constant 2 : index
    %c0_40 = arith.constant 0 : index
    %24 = vector.load %arg8[%c0_37, %c0_38, %c2_39, %c0_40] : memref<1x18x18x4xf32, #tpu.memory_space<vmem>>, vector<1x16x16x4xf32>
    %c0_41 = arith.constant 0 : index
    %c0_42 = arith.constant 0 : index
    %c0_43 = arith.constant 0 : index
    %c12 = arith.constant 12 : index
    %25 = vector.load %arg11[%c0_41, %c0_42, %c0_43, %c12] : memref<1x16x16x94xf32, #tpu.memory_space<vmem>>, vector<1x16x16x4xf32>
    tpu.vector_store %arg11[%c0_41, %c0_42, %c0_43, %c12], %24 {strides = array<i32>} : memref<1x16x16x94xf32, #tpu.memory_space<vmem>>, vector<1x16x16x4xf32>,
    %c0_44 = arith.constant 0 : index
    %c1_45 = arith.constant 1 : index
    %c0_46 = arith.constant 0 : index
    %c0_47 = arith.constant 0 : index
    %26 = vector.load %arg8[%c0_44, %c1_45, %c0_46, %c0_47] : memref<1x18x18x4xf32, #tpu.memory_space<vmem>>, vector<1x16x16x4xf32>
    %c0_48 = arith.constant 0 : index
    %c0_49 = arith.constant 0 : index
    %c0_50 = arith.constant 0 : index
    %c16 = arith.constant 16 : index
    %27 = vector.load %arg11[%c0_48, %c0_49, %c0_50, %c16] : memref<1x16x16x94xf32, #tpu.memory_space<vmem>>, vector<1x16x16x4xf32>
    tpu.vector_store %arg11[%c0_48, %c0_49, %c0_50, %c16], %26 {strides = array<i32>} : memref<1x16x16x94xf32, #tpu.memory_space<vmem>>, vector<1x16x16x4xf32>,
    %c0_51 = arith.constant 0 : index
    %c1_52 = arith.constant 1 : index
    %c1_53 = arith.constant 1 : index
    %c0_54 = arith.constant 0 : index
    %28 = vector.load %arg8[%c0_51, %c1_52, %c1_53, %c0_54] : memref<1x18x18x4xf32, #tpu.memory_space<vmem>>, vector<1x16x16x4xf32>
    %c0_55 = arith.constant 0 : index
    %c0_56 = arith.constant 0 : index
    %c0_57 = arith.constant 0 : index
    %c20 = arith.constant 20 : index
    %29 = vector.load %arg11[%c0_55, %c0_56, %c0_57, %c20] : memref<1x16x16x94xf32, #tpu.memory_space<vmem>>, vector<1x16x16x4xf32>
    tpu.vector_store %arg11[%c0_55, %c0_56, %c0_57, %c20], %28 {strides = array<i32>} : memref<1x16x16x94xf32, #tpu.memory_space<vmem>>, vector<1x16x16x4xf32>,
    %c0_58 = arith.constant 0 : index
    %c1_59 = arith.constant 1 : index
    %c2_60 = arith.constant 2 : index
    %c0_61 = arith.constant 0 : index
    %30 = vector.load %arg8[%c0_58, %c1_59, %c2_60, %c0_61] : memref<1x18x18x4xf32, #tpu.memory_space<vmem>>, vector<1x16x16x4xf32>
    %c0_62 = arith.constant 0 : index
    %c0_63 = arith.constant 0 : index
    %c0_64 = arith.constant 0 : index
    %c24 = arith.constant 24 : index
    %31 = vector.load %arg11[%c0_62, %c0_63, %c0_64, %c24] : memref<1x16x16x94xf32, #tpu.memory_space<vmem>>, vector<1x16x16x4xf32>
    tpu.vector_store %arg11[%c0_62, %c0_63, %c0_64, %c24], %30 {strides = array<i32>} : memref<1x16x16x94xf32, #tpu.memory_space<vmem>>, vector<1x16x16x4xf32>,
    %c0_65 = arith.constant 0 : index
    %c2_66 = arith.constant 2 : index
    %c0_67 = arith.constant 0 : index
    %c0_68 = arith.constant 0 : index
    %32 = vector.load %arg8[%c0_65, %c2_66, %c0_67, %c0_68] : memref<1x18x18x4xf32, #tpu.memory_space<vmem>>, vector<1x16x16x4xf32>
    %c0_69 = arith.constant 0 : index
    %c0_70 = arith.constant 0 : index
    %c0_71 = arith.constant 0 : index
    %c28 = arith.constant 28 : index
    %33 = vector.load %arg11[%c0_69, %c0_70, %c0_71, %c28] : memref<1x16x16x94xf32, #tpu.memory_space<vmem>>, vector<1x16x16x4xf32>
    tpu.vector_store %arg11[%c0_69, %c0_70, %c0_71, %c28], %32 {strides = array<i32>} : memref<1x16x16x94xf32, #tpu.memory_space<vmem>>, vector<1x16x16x4xf32>,
    %c0_72 = arith.constant 0 : index
    %c2_73 = arith.constant 2 : index
    %c1_74 = arith.constant 1 : index
    %c0_75 = arith.constant 0 : index
    %34 = vector.load %arg8[%c0_72, %c2_73, %c1_74, %c0_75] : memref<1x18x18x4xf32, #tpu.memory_space<vmem>>, vector<1x16x16x4xf32>
    %c0_76 = arith.constant 0 : index
    %c0_77 = arith.constant 0 : index
    %c0_78 = arith.constant 0 : index
    %c32 = arith.constant 32 : index
    %35 = vector.load %arg11[%c0_76, %c0_77, %c0_78, %c32] : memref<1x16x16x94xf32, #tpu.memory_space<vmem>>, vector<1x16x16x4xf32>
    tpu.vector_store %arg11[%c0_76, %c0_77, %c0_78, %c32], %34 {strides = array<i32>} : memref<1x16x16x94xf32, #tpu.memory_space<vmem>>, vector<1x16x16x4xf32>,
    %c0_79 = arith.constant 0 : index
    %c2_80 = arith.constant 2 : index
    %c2_81 = arith.constant 2 : index
    %c0_82 = arith.constant 0 : index
    %36 = vector.load %arg8[%c0_79, %c2_80, %c2_81, %c0_82] : memref<1x18x18x4xf32, #tpu.memory_space<vmem>>, vector<1x16x16x4xf32>
    %c0_83 = arith.constant 0 : index
    %c0_84 = arith.constant 0 : index
    %c0_85 = arith.constant 0 : index
    %c36 = arith.constant 36 : index
    %37 = vector.load %arg11[%c0_83, %c0_84, %c0_85, %c36] : memref<1x16x16x94xf32, #tpu.memory_space<vmem>>, vector<1x16x16x4xf32>
    tpu.vector_store %arg11[%c0_83, %c0_84, %c0_85, %c36], %36 {strides = array<i32>} : memref<1x16x16x94xf32, #tpu.memory_space<vmem>>, vector<1x16x16x4xf32>,
    %c0_86 = arith.constant 0 : index
    %c0_87 = arith.constant 0 : index
    %c0_88 = arith.constant 0 : index
    %c0_89 = arith.constant 0 : index
    %38 = vector.load %arg9[%c0_86, %c0_87, %c0_88, %c0_89] : memref<1x20x20x2xf32, #tpu.memory_space<vmem>>, vector<1x16x16x2xf32>
    %c0_90 = arith.constant 0 : index
    %c0_91 = arith.constant 0 : index
    %c0_92 = arith.constant 0 : index
    %c40 = arith.constant 40 : index
    %39 = vector.load %arg11[%c0_90, %c0_91, %c0_92, %c40] : memref<1x16x16x94xf32, #tpu.memory_space<vmem>>, vector<1x16x16x2xf32>
    tpu.vector_store %arg11[%c0_90, %c0_91, %c0_92, %c40], %38 {strides = array<i32>} : memref<1x16x16x94xf32, #tpu.memory_space<vmem>>, vector<1x16x16x2xf32>,
    %c0_93 = arith.constant 0 : index
    %c0_94 = arith.constant 0 : index
    %c1_95 = arith.constant 1 : index
    %c0_96 = arith.constant 0 : index
    %40 = vector.load %arg9[%c0_93, %c0_94, %c1_95, %c0_96] : memref<1x20x20x2xf32, #tpu.memory_space<vmem>>, vector<1x16x16x2xf32>
    %c0_97 = arith.constant 0 : index
    %c0_98 = arith.constant 0 : index
    %c0_99 = arith.constant 0 : index
    %c42 = arith.constant 42 : index
    %41 = vector.load %arg11[%c0_97, %c0_98, %c0_99, %c42] : memref<1x16x16x94xf32, #tpu.memory_space<vmem>>, vector<1x16x16x2xf32>
    tpu.vector_store %arg11[%c0_97, %c0_98, %c0_99, %c42], %40 {strides = array<i32>} : memref<1x16x16x94xf32, #tpu.memory_space<vmem>>, vector<1x16x16x2xf32>,
    %c0_100 = arith.constant 0 : index
    %c0_101 = arith.constant 0 : index
    %c2_102 = arith.constant 2 : index
    %c0_103 = arith.constant 0 : index
    %42 = vector.load %arg9[%c0_100, %c0_101, %c2_102, %c0_103] : memref<1x20x20x2xf32, #tpu.memory_space<vmem>>, vector<1x16x16x2xf32>
    %c0_104 = arith.constant 0 : index
    %c0_105 = arith.constant 0 : index
    %c0_106 = arith.constant 0 : index
    %c44 = arith.constant 44 : index
    %43 = vector.load %arg11[%c0_104, %c0_105, %c0_106, %c44] : memref<1x16x16x94xf32, #tpu.memory_space<vmem>>, vector<1x16x16x2xf32>
    tpu.vector_store %arg11[%c0_104, %c0_105, %c0_106, %c44], %42 {strides = array<i32>} : memref<1x16x16x94xf32, #tpu.memory_space<vmem>>, vector<1x16x16x2xf32>,
    %c0_107 = arith.constant 0 : index
    %c0_108 = arith.constant 0 : index
    %c3 = arith.constant 3 : index
    %c0_109 = arith.constant 0 : index
    %44 = vector.load %arg9[%c0_107, %c0_108, %c3, %c0_109] : memref<1x20x20x2xf32, #tpu.memory_space<vmem>>, vector<1x16x16x2xf32>
    %c0_110 = arith.constant 0 : index
    %c0_111 = arith.constant 0 : index
    %c0_112 = arith.constant 0 : index
    %c46 = arith.constant 46 : index
    %45 = vector.load %arg11[%c0_110, %c0_111, %c0_112, %c46] : memref<1x16x16x94xf32, #tpu.memory_space<vmem>>, vector<1x16x16x2xf32>
    tpu.vector_store %arg11[%c0_110, %c0_111, %c0_112, %c46], %44 {strides = array<i32>} : memref<1x16x16x94xf32, #tpu.memory_space<vmem>>, vector<1x16x16x2xf32>,
    %c0_113 = arith.constant 0 : index
    %c0_114 = arith.constant 0 : index
    %c4_115 = arith.constant 4 : index
    %c0_116 = arith.constant 0 : index
    %46 = vector.load %arg9[%c0_113, %c0_114, %c4_115, %c0_116] : memref<1x20x20x2xf32, #tpu.memory_space<vmem>>, vector<1x16x16x2xf32>
    %c0_117 = arith.constant 0 : index
    %c0_118 = arith.constant 0 : index
    %c0_119 = arith.constant 0 : index
    %c48 = arith.constant 48 : index
    %47 = vector.load %arg11[%c0_117, %c0_118, %c0_119, %c48] : memref<1x16x16x94xf32, #tpu.memory_space<vmem>>, vector<1x16x16x2xf32>
    tpu.vector_store %arg11[%c0_117, %c0_118, %c0_119, %c48], %46 {strides = array<i32>} : memref<1x16x16x94xf32, #tpu.memory_space<vmem>>, vector<1x16x16x2xf32>,
    %c0_120 = arith.constant 0 : index
    %c1_121 = arith.constant 1 : index
    %c0_122 = arith.constant 0 : index
    %c0_123 = arith.constant 0 : index
    %48 = vector.load %arg9[%c0_120, %c1_121, %c0_122, %c0_123] : memref<1x20x20x2xf32, #tpu.memory_space<vmem>>, vector<1x16x16x2xf32>
    %c0_124 = arith.constant 0 : index
    %c0_125 = arith.constant 0 : index
    %c0_126 = arith.constant 0 : index
    %c50 = arith.constant 50 : index
    %49 = vector.load %arg11[%c0_124, %c0_125, %c0_126, %c50] : memref<1x16x16x94xf32, #tpu.memory_space<vmem>>, vector<1x16x16x2xf32>
    tpu.vector_store %arg11[%c0_124, %c0_125, %c0_126, %c50], %48 {strides = array<i32>} : memref<1x16x16x94xf32, #tpu.memory_space<vmem>>, vector<1x16x16x2xf32>,
    %c0_127 = arith.constant 0 : index
    %c1_128 = arith.constant 1 : index
    %c1_129 = arith.constant 1 : index
    %c0_130 = arith.constant 0 : index
    %50 = vector.load %arg9[%c0_127, %c1_128, %c1_129, %c0_130] : memref<1x20x20x2xf32, #tpu.memory_space<vmem>>, vector<1x16x16x2xf32>
    %c0_131 = arith.constant 0 : index
    %c0_132 = arith.constant 0 : index
    %c0_133 = arith.constant 0 : index
    %c52 = arith.constant 52 : index
    %51 = vector.load %arg11[%c0_131, %c0_132, %c0_133, %c52] : memref<1x16x16x94xf32, #tpu.memory_space<vmem>>, vector<1x16x16x2xf32>
    tpu.vector_store %arg11[%c0_131, %c0_132, %c0_133, %c52], %50 {strides = array<i32>} : memref<1x16x16x94xf32, #tpu.memory_space<vmem>>, vector<1x16x16x2xf32>,
    %c0_134 = arith.constant 0 : index
    %c1_135 = arith.constant 1 : index
    %c2_136 = arith.constant 2 : index
    %c0_137 = arith.constant 0 : index
    %52 = vector.load %arg9[%c0_134, %c1_135, %c2_136, %c0_137] : memref<1x20x20x2xf32, #tpu.memory_space<vmem>>, vector<1x16x16x2xf32>
    %c0_138 = arith.constant 0 : index
    %c0_139 = arith.constant 0 : index
    %c0_140 = arith.constant 0 : index
    %c54 = arith.constant 54 : index
    %53 = vector.load %arg11[%c0_138, %c0_139, %c0_140, %c54] : memref<1x16x16x94xf32, #tpu.memory_space<vmem>>, vector<1x16x16x2xf32>
    tpu.vector_store %arg11[%c0_138, %c0_139, %c0_140, %c54], %52 {strides = array<i32>} : memref<1x16x16x94xf32, #tpu.memory_space<vmem>>, vector<1x16x16x2xf32>,
    %c0_141 = arith.constant 0 : index
    %c1_142 = arith.constant 1 : index
    %c3_143 = arith.constant 3 : index
    %c0_144 = arith.constant 0 : index
    %54 = vector.load %arg9[%c0_141, %c1_142, %c3_143, %c0_144] : memref<1x20x20x2xf32, #tpu.memory_space<vmem>>, vector<1x16x16x2xf32>
    %c0_145 = arith.constant 0 : index
    %c0_146 = arith.constant 0 : index
    %c0_147 = arith.constant 0 : index
    %c56 = arith.constant 56 : index
    %55 = vector.load %arg11[%c0_145, %c0_146, %c0_147, %c56] : memref<1x16x16x94xf32, #tpu.memory_space<vmem>>, vector<1x16x16x2xf32>
    tpu.vector_store %arg11[%c0_145, %c0_146, %c0_147, %c56], %54 {strides = array<i32>} : memref<1x16x16x94xf32, #tpu.memory_space<vmem>>, vector<1x16x16x2xf32>,
    %c0_148 = arith.constant 0 : index
    %c1_149 = arith.constant 1 : index
    %c4_150 = arith.constant 4 : index
    %c0_151 = arith.constant 0 : index
    %56 = vector.load %arg9[%c0_148, %c1_149, %c4_150, %c0_151] : memref<1x20x20x2xf32, #tpu.memory_space<vmem>>, vector<1x16x16x2xf32>
    %c0_152 = arith.constant 0 : index
    %c0_153 = arith.constant 0 : index
    %c0_154 = arith.constant 0 : index
    %c58 = arith.constant 58 : index
    %57 = vector.load %arg11[%c0_152, %c0_153, %c0_154, %c58] : memref<1x16x16x94xf32, #tpu.memory_space<vmem>>, vector<1x16x16x2xf32>
    tpu.vector_store %arg11[%c0_152, %c0_153, %c0_154, %c58], %56 {strides = array<i32>} : memref<1x16x16x94xf32, #tpu.memory_space<vmem>>, vector<1x16x16x2xf32>,
    %c0_155 = arith.constant 0 : index
    %c2_156 = arith.constant 2 : index
    %c0_157 = arith.constant 0 : index
    %c0_158 = arith.constant 0 : index
    %58 = vector.load %arg9[%c0_155, %c2_156, %c0_157, %c0_158] : memref<1x20x20x2xf32, #tpu.memory_space<vmem>>, vector<1x16x16x2xf32>
    %c0_159 = arith.constant 0 : index
    %c0_160 = arith.constant 0 : index
    %c0_161 = arith.constant 0 : index
    %c60 = arith.constant 60 : index
    %59 = vector.load %arg11[%c0_159, %c0_160, %c0_161, %c60] : memref<1x16x16x94xf32, #tpu.memory_space<vmem>>, vector<1x16x16x2xf32>
    tpu.vector_store %arg11[%c0_159, %c0_160, %c0_161, %c60], %58 {strides = array<i32>} : memref<1x16x16x94xf32, #tpu.memory_space<vmem>>, vector<1x16x16x2xf32>,
    %c0_162 = arith.constant 0 : index
    %c2_163 = arith.constant 2 : index
    %c1_164 = arith.constant 1 : index
    %c0_165 = arith.constant 0 : index
    %60 = vector.load %arg9[%c0_162, %c2_163, %c1_164, %c0_165] : memref<1x20x20x2xf32, #tpu.memory_space<vmem>>, vector<1x16x16x2xf32>
    %c0_166 = arith.constant 0 : index
    %c0_167 = arith.constant 0 : index
    %c0_168 = arith.constant 0 : index
    %c62 = arith.constant 62 : index
    %61 = vector.load %arg11[%c0_166, %c0_167, %c0_168, %c62] : memref<1x16x16x94xf32, #tpu.memory_space<vmem>>, vector<1x16x16x2xf32>
    tpu.vector_store %arg11[%c0_166, %c0_167, %c0_168, %c62], %60 {strides = array<i32>} : memref<1x16x16x94xf32, #tpu.memory_space<vmem>>, vector<1x16x16x2xf32>,
    %c0_169 = arith.constant 0 : index
    %c2_170 = arith.constant 2 : index
    %c2_171 = arith.constant 2 : index
    %c0_172 = arith.constant 0 : index
    %62 = vector.load %arg9[%c0_169, %c2_170, %c2_171, %c0_172] : memref<1x20x20x2xf32, #tpu.memory_space<vmem>>, vector<1x16x16x2xf32>
    %c0_173 = arith.constant 0 : index
    %c0_174 = arith.constant 0 : index
    %c0_175 = arith.constant 0 : index
    %c64 = arith.constant 64 : index
    %63 = vector.load %arg11[%c0_173, %c0_174, %c0_175, %c64] : memref<1x16x16x94xf32, #tpu.memory_space<vmem>>, vector<1x16x16x2xf32>
    tpu.vector_store %arg11[%c0_173, %c0_174, %c0_175, %c64], %62 {strides = array<i32>} : memref<1x16x16x94xf32, #tpu.memory_space<vmem>>, vector<1x16x16x2xf32>,
    %c0_176 = arith.constant 0 : index
    %c2_177 = arith.constant 2 : index
    %c3_178 = arith.constant 3 : index
    %c0_179 = arith.constant 0 : index
    %64 = vector.load %arg9[%c0_176, %c2_177, %c3_178, %c0_179] : memref<1x20x20x2xf32, #tpu.memory_space<vmem>>, vector<1x16x16x2xf32>
    %c0_180 = arith.constant 0 : index
    %c0_181 = arith.constant 0 : index
    %c0_182 = arith.constant 0 : index
    %c66 = arith.constant 66 : index
    %65 = vector.load %arg11[%c0_180, %c0_181, %c0_182, %c66] : memref<1x16x16x94xf32, #tpu.memory_space<vmem>>, vector<1x16x16x2xf32>
    tpu.vector_store %arg11[%c0_180, %c0_181, %c0_182, %c66], %64 {strides = array<i32>} : memref<1x16x16x94xf32, #tpu.memory_space<vmem>>, vector<1x16x16x2xf32>,
    %c0_183 = arith.constant 0 : index
    %c2_184 = arith.constant 2 : index
    %c4_185 = arith.constant 4 : index
    %c0_186 = arith.constant 0 : index
    %66 = vector.load %arg9[%c0_183, %c2_184, %c4_185, %c0_186] : memref<1x20x20x2xf32, #tpu.memory_space<vmem>>, vector<1x16x16x2xf32>
    %c0_187 = arith.constant 0 : index
    %c0_188 = arith.constant 0 : index
    %c0_189 = arith.constant 0 : index
    %c68 = arith.constant 68 : index
    %67 = vector.load %arg11[%c0_187, %c0_188, %c0_189, %c68] : memref<1x16x16x94xf32, #tpu.memory_space<vmem>>, vector<1x16x16x2xf32>
    tpu.vector_store %arg11[%c0_187, %c0_188, %c0_189, %c68], %66 {strides = array<i32>} : memref<1x16x16x94xf32, #tpu.memory_space<vmem>>, vector<1x16x16x2xf32>,
    %c0_190 = arith.constant 0 : index
    %c3_191 = arith.constant 3 : index
    %c0_192 = arith.constant 0 : index
    %c0_193 = arith.constant 0 : index
    %68 = vector.load %arg9[%c0_190, %c3_191, %c0_192, %c0_193] : memref<1x20x20x2xf32, #tpu.memory_space<vmem>>, vector<1x16x16x2xf32>
    %c0_194 = arith.constant 0 : index
    %c0_195 = arith.constant 0 : index
    %c0_196 = arith.constant 0 : index
    %c70 = arith.constant 70 : index
    %69 = vector.load %arg11[%c0_194, %c0_195, %c0_196, %c70] : memref<1x16x16x94xf32, #tpu.memory_space<vmem>>, vector<1x16x16x2xf32>
    tpu.vector_store %arg11[%c0_194, %c0_195, %c0_196, %c70], %68 {strides = array<i32>} : memref<1x16x16x94xf32, #tpu.memory_space<vmem>>, vector<1x16x16x2xf32>,
    %c0_197 = arith.constant 0 : index
    %c3_198 = arith.constant 3 : index
    %c1_199 = arith.constant 1 : index
    %c0_200 = arith.constant 0 : index
    %70 = vector.load %arg9[%c0_197, %c3_198, %c1_199, %c0_200] : memref<1x20x20x2xf32, #tpu.memory_space<vmem>>, vector<1x16x16x2xf32>
    %c0_201 = arith.constant 0 : index
    %c0_202 = arith.constant 0 : index
    %c0_203 = arith.constant 0 : index
    %c72 = arith.constant 72 : index
    %71 = vector.load %arg11[%c0_201, %c0_202, %c0_203, %c72] : memref<1x16x16x94xf32, #tpu.memory_space<vmem>>, vector<1x16x16x2xf32>
    tpu.vector_store %arg11[%c0_201, %c0_202, %c0_203, %c72], %70 {strides = array<i32>} : memref<1x16x16x94xf32, #tpu.memory_space<vmem>>, vector<1x16x16x2xf32>,
    %c0_204 = arith.constant 0 : index
    %c3_205 = arith.constant 3 : index
    %c2_206 = arith.constant 2 : index
    %c0_207 = arith.constant 0 : index
    %72 = vector.load %arg9[%c0_204, %c3_205, %c2_206, %c0_207] : memref<1x20x20x2xf32, #tpu.memory_space<vmem>>, vector<1x16x16x2xf32>
    %c0_208 = arith.constant 0 : index
    %c0_209 = arith.constant 0 : index
    %c0_210 = arith.constant 0 : index
    %c74 = arith.constant 74 : index
    %73 = vector.load %arg11[%c0_208, %c0_209, %c0_210, %c74] : memref<1x16x16x94xf32, #tpu.memory_space<vmem>>, vector<1x16x16x2xf32>
    tpu.vector_store %arg11[%c0_208, %c0_209, %c0_210, %c74], %72 {strides = array<i32>} : memref<1x16x16x94xf32, #tpu.memory_space<vmem>>, vector<1x16x16x2xf32>,
    %c0_211 = arith.constant 0 : index
    %c3_212 = arith.constant 3 : index
    %c3_213 = arith.constant 3 : index
    %c0_214 = arith.constant 0 : index
    %74 = vector.load %arg9[%c0_211, %c3_212, %c3_213, %c0_214] : memref<1x20x20x2xf32, #tpu.memory_space<vmem>>, vector<1x16x16x2xf32>
    %c0_215 = arith.constant 0 : index
    %c0_216 = arith.constant 0 : index
    %c0_217 = arith.constant 0 : index
    %c76 = arith.constant 76 : index
    %75 = vector.load %arg11[%c0_215, %c0_216, %c0_217, %c76] : memref<1x16x16x94xf32, #tpu.memory_space<vmem>>, vector<1x16x16x2xf32>
    tpu.vector_store %arg11[%c0_215, %c0_216, %c0_217, %c76], %74 {strides = array<i32>} : memref<1x16x16x94xf32, #tpu.memory_space<vmem>>, vector<1x16x16x2xf32>,
    %c0_218 = arith.constant 0 : index
    %c3_219 = arith.constant 3 : index
    %c4_220 = arith.constant 4 : index
    %c0_221 = arith.constant 0 : index
    %76 = vector.load %arg9[%c0_218, %c3_219, %c4_220, %c0_221] : memref<1x20x20x2xf32, #tpu.memory_space<vmem>>, vector<1x16x16x2xf32>
    %c0_222 = arith.constant 0 : index
    %c0_223 = arith.constant 0 : index
    %c0_224 = arith.constant 0 : index
    %c78 = arith.constant 78 : index
    %77 = vector.load %arg11[%c0_222, %c0_223, %c0_224, %c78] : memref<1x16x16x94xf32, #tpu.memory_space<vmem>>, vector<1x16x16x2xf32>
    tpu.vector_store %arg11[%c0_222, %c0_223, %c0_224, %c78], %76 {strides = array<i32>} : memref<1x16x16x94xf32, #tpu.memory_space<vmem>>, vector<1x16x16x2xf32>,
    %c0_225 = arith.constant 0 : index
    %c4_226 = arith.constant 4 : index
    %c0_227 = arith.constant 0 : index
    %c0_228 = arith.constant 0 : index
    %78 = vector.load %arg9[%c0_225, %c4_226, %c0_227, %c0_228] : memref<1x20x20x2xf32, #tpu.memory_space<vmem>>, vector<1x16x16x2xf32>
    %c0_229 = arith.constant 0 : index
    %c0_230 = arith.constant 0 : index
    %c0_231 = arith.constant 0 : index
    %c80 = arith.constant 80 : index
    %79 = vector.load %arg11[%c0_229, %c0_230, %c0_231, %c80] : memref<1x16x16x94xf32, #tpu.memory_space<vmem>>, vector<1x16x16x2xf32>
    tpu.vector_store %arg11[%c0_229, %c0_230, %c0_231, %c80], %78 {strides = array<i32>} : memref<1x16x16x94xf32, #tpu.memory_space<vmem>>, vector<1x16x16x2xf32>,
    %c0_232 = arith.constant 0 : index
    %c4_233 = arith.constant 4 : index
    %c1_234 = arith.constant 1 : index
    %c0_235 = arith.constant 0 : index
    %80 = vector.load %arg9[%c0_232, %c4_233, %c1_234, %c0_235] : memref<1x20x20x2xf32, #tpu.memory_space<vmem>>, vector<1x16x16x2xf32>
    %c0_236 = arith.constant 0 : index
    %c0_237 = arith.constant 0 : index
    %c0_238 = arith.constant 0 : index
    %c82 = arith.constant 82 : index
    %81 = vector.load %arg11[%c0_236, %c0_237, %c0_238, %c82] : memref<1x16x16x94xf32, #tpu.memory_space<vmem>>, vector<1x16x16x2xf32>
    tpu.vector_store %arg11[%c0_236, %c0_237, %c0_238, %c82], %80 {strides = array<i32>} : memref<1x16x16x94xf32, #tpu.memory_space<vmem>>, vector<1x16x16x2xf32>,
    %c0_239 = arith.constant 0 : index
    %c4_240 = arith.constant 4 : index
    %c2_241 = arith.constant 2 : index
    %c0_242 = arith.constant 0 : index
    %82 = vector.load %arg9[%c0_239, %c4_240, %c2_241, %c0_242] : memref<1x20x20x2xf32, #tpu.memory_space<vmem>>, vector<1x16x16x2xf32>
    %c0_243 = arith.constant 0 : index
    %c0_244 = arith.constant 0 : index
    %c0_245 = arith.constant 0 : index
    %c84 = arith.constant 84 : index
    %83 = vector.load %arg11[%c0_243, %c0_244, %c0_245, %c84] : memref<1x16x16x94xf32, #tpu.memory_space<vmem>>, vector<1x16x16x2xf32>
    tpu.vector_store %arg11[%c0_243, %c0_244, %c0_245, %c84], %82 {strides = array<i32>} : memref<1x16x16x94xf32, #tpu.memory_space<vmem>>, vector<1x16x16x2xf32>,
    %c0_246 = arith.constant 0 : index
    %c4_247 = arith.constant 4 : index
    %c3_248 = arith.constant 3 : index
    %c0_249 = arith.constant 0 : index
    %84 = vector.load %arg9[%c0_246, %c4_247, %c3_248, %c0_249] : memref<1x20x20x2xf32, #tpu.memory_space<vmem>>, vector<1x16x16x2xf32>
    %c0_250 = arith.constant 0 : index
    %c0_251 = arith.constant 0 : index
    %c0_252 = arith.constant 0 : index
    %c86 = arith.constant 86 : index
    %85 = vector.load %arg11[%c0_250, %c0_251, %c0_252, %c86] : memref<1x16x16x94xf32, #tpu.memory_space<vmem>>, vector<1x16x16x2xf32>
    tpu.vector_store %arg11[%c0_250, %c0_251, %c0_252, %c86], %84 {strides = array<i32>} : memref<1x16x16x94xf32, #tpu.memory_space<vmem>>, vector<1x16x16x2xf32>,
    %c0_253 = arith.constant 0 : index
    %c4_254 = arith.constant 4 : index
    %c4_255 = arith.constant 4 : index
    %c0_256 = arith.constant 0 : index
    %86 = vector.load %arg9[%c0_253, %c4_254, %c4_255, %c0_256] : memref<1x20x20x2xf32, #tpu.memory_space<vmem>>, vector<1x16x16x2xf32>
    %c0_257 = arith.constant 0 : index
    %c0_258 = arith.constant 0 : index
    %c0_259 = arith.constant 0 : index
    %c88 = arith.constant 88 : index
    %87 = vector.load %arg11[%c0_257, %c0_258, %c0_259, %c88] : memref<1x16x16x94xf32, #tpu.memory_space<vmem>>, vector<1x16x16x2xf32>
    tpu.vector_store %arg11[%c0_257, %c0_258, %c0_259, %c88], %86 {strides = array<i32>} : memref<1x16x16x94xf32, #tpu.memory_space<vmem>>, vector<1x16x16x2xf32>,
    %c0_260 = arith.constant 0 : index
    %c0_261 = arith.constant 0 : index
    %c0_262 = arith.constant 0 : index
    %c0_263 = arith.constant 0 : index
    %88 = vector.load %arg10[%c0_260, %c0_261, %c0_262, %c0_263] : memref<1x18x18x4xf32, #tpu.memory_space<vmem>>, vector<1x16x16x4xf32>
    %c0_264 = arith.constant 0 : index
    %c0_265 = arith.constant 0 : index
    %c1_266 = arith.constant 1 : index
    %c0_267 = arith.constant 0 : index
    %89 = vector.load %arg10[%c0_264, %c0_265, %c1_266, %c0_267] : memref<1x18x18x4xf32, #tpu.memory_space<vmem>>, vector<1x16x16x4xf32>
    %90 = arith.maximumf %88, %89 : vector<1x16x16x4xf32>
    %c0_268 = arith.constant 0 : index
    %c0_269 = arith.constant 0 : index
    %c2_270 = arith.constant 2 : index
    %c0_271 = arith.constant 0 : index
    %91 = vector.load %arg10[%c0_268, %c0_269, %c2_270, %c0_271] : memref<1x18x18x4xf32, #tpu.memory_space<vmem>>, vector<1x16x16x4xf32>
    %92 = arith.maximumf %90, %91 : vector<1x16x16x4xf32>
    %c0_272 = arith.constant 0 : index
    %c1_273 = arith.constant 1 : index
    %c0_274 = arith.constant 0 : index
    %c0_275 = arith.constant 0 : index
    %93 = vector.load %arg10[%c0_272, %c1_273, %c0_274, %c0_275] : memref<1x18x18x4xf32, #tpu.memory_space<vmem>>, vector<1x16x16x4xf32>
    %94 = arith.maximumf %92, %93 : vector<1x16x16x4xf32>
    %c0_276 = arith.constant 0 : index
    %c1_277 = arith.constant 1 : index
    %c1_278 = arith.constant 1 : index
    %c0_279 = arith.constant 0 : index
    %95 = vector.load %arg10[%c0_276, %c1_277, %c1_278, %c0_279] : memref<1x18x18x4xf32, #tpu.memory_space<vmem>>, vector<1x16x16x4xf32>
    %96 = arith.maximumf %94, %95 : vector<1x16x16x4xf32>
    %c0_280 = arith.constant 0 : index
    %c1_281 = arith.constant 1 : index
    %c2_282 = arith.constant 2 : index
    %c0_283 = arith.constant 0 : index
    %97 = vector.load %arg10[%c0_280, %c1_281, %c2_282, %c0_283] : memref<1x18x18x4xf32, #tpu.memory_space<vmem>>, vector<1x16x16x4xf32>
    %98 = arith.maximumf %96, %97 : vector<1x16x16x4xf32>
    %c0_284 = arith.constant 0 : index
    %c2_285 = arith.constant 2 : index
    %c0_286 = arith.constant 0 : index
    %c0_287 = arith.constant 0 : index
    %99 = vector.load %arg10[%c0_284, %c2_285, %c0_286, %c0_287] : memref<1x18x18x4xf32, #tpu.memory_space<vmem>>, vector<1x16x16x4xf32>
    %100 = arith.maximumf %98, %99 : vector<1x16x16x4xf32>
    %c0_288 = arith.constant 0 : index
    %c2_289 = arith.constant 2 : index
    %c1_290 = arith.constant 1 : index
    %c0_291 = arith.constant 0 : index
    %101 = vector.load %arg10[%c0_288, %c2_289, %c1_290, %c0_291] : memref<1x18x18x4xf32, #tpu.memory_space<vmem>>, vector<1x16x16x4xf32>
    %102 = arith.maximumf %100, %101 : vector<1x16x16x4xf32>
    %c0_292 = arith.constant 0 : index
    %c2_293 = arith.constant 2 : index
    %c2_294 = arith.constant 2 : index
    %c0_295 = arith.constant 0 : index
    %103 = vector.load %arg10[%c0_292, %c2_293, %c2_294, %c0_295] : memref<1x18x18x4xf32, #tpu.memory_space<vmem>>, vector<1x16x16x4xf32>
    %104 = arith.maximumf %102, %103 : vector<1x16x16x4xf32>
    %c0_296 = arith.constant 0 : index
    %c0_297 = arith.constant 0 : index
    %c0_298 = arith.constant 0 : index
    %c90 = arith.constant 90 : index
    %105 = vector.load %arg11[%c0_296, %c0_297, %c0_298, %c90] : memref<1x16x16x94xf32, #tpu.memory_space<vmem>>, vector<1x16x16x4xf32>
    tpu.vector_store %arg11[%c0_296, %c0_297, %c0_298, %c90], %104 {strides = array<i32>} : memref<1x16x16x94xf32, #tpu.memory_space<vmem>>, vector<1x16x16x4xf32>,
    %c0_299 = arith.constant 0 : index
    %c0_300 = arith.constant 0 : index
    %c0_301 = arith.constant 0 : index
    %c0_302 = arith.constant 0 : index
    %106 = vector.load %arg11[%c0_299, %c0_300, %c0_301, %c0_302] : memref<1x16x16x94xf32, #tpu.memory_space<vmem>>, vector<1x16x16x94xf32>
    %107 = vector.shape_cast %106 : vector<1x16x16x94xf32> to vector<256x94xf32>
    %c0_303 = arith.constant 0 : index
    %c0_304 = arith.constant 0 : index
    %108 = vector.load %arg5[%c0_303, %c0_304] : memref<94x20xf32, #tpu.memory_space<vmem>>, vector<94x20xf32>
    %cst_305 = arith.constant dense<0.000000e+00> : vector<256x20xf32>
    %109 = tpu.matmul %107, %108, %cst_305 {dimension_numbers = #tpu.dot_dimension_numbers<[1], [0], [0], [1], [0, 0, 1, 1], [], []>} : vector<256x94xf32>, vector<94x20xf32>, vector<256x20xf32> -> vector<256x20xf32>
    %c0_306 = arith.constant 0 : index
    %c0_307 = arith.constant 0 : index
    %110 = vector.load %arg6[%c0_306, %c0_307] : memref<1x20xf32, #tpu.memory_space<vmem>>, vector<1x20xf32>
    %111 = vector.broadcast %110 : vector<1x20xf32> to vector<256x20xf32>
    %112 = arith.addf %109, %111 : vector<256x20xf32>
    %cst_308 = arith.constant 0.000000e+00 : f32
    %113 = vector.broadcast %cst_308 : f32 to vector<256x20xf32>
    %114 = arith.maximumf %112, %113 : vector<256x20xf32>
    %c0_309 = arith.constant 0 : index
    %c0_310 = arith.constant 0 : index
    %115 = vector.load %arg7[%c0_309, %c0_310] : memref<256x20xf32, #tpu.memory_space<vmem>>, vector<256x20xf32>
    tpu.vector_store %arg7[%c0_309, %c0_310], %114 {strides = array<i32>} : memref<256x20xf32, #tpu.memory_space<vmem>>, vector<256x20xf32>,
    return
  }
  func.func @transform_0(%arg0: i32, %arg1: i32) -> (i32, i32, i32, i32) {
    %c1_i32 = arith.constant 1 : i32
    %0 = arith.muli %arg0, %c1_i32 : i32
    %1 = arith.addi %0, %arg1 : i32
    %c0_i32 = arith.constant 0 : i32
    %c0_i32_0 = arith.constant 0 : i32
    %c0_i32_1 = arith.constant 0 : i32
    %c0_i32_2 = arith.constant 0 : i32
    return %1, %c0_i32, %c0_i32_0, %c0_i32_1 : i32, i32, i32, i32
  }
  func.func @transform_1(%arg0: i32, %arg1: i32) -> (i32, i32) {
    %c0_i32 = arith.constant 0 : i32
    %c0_i32_0 = arith.constant 0 : i32
    %c0_i32_1 = arith.constant 0 : i32
    return %c0_i32, %c0_i32_0 : i32, i32
  }
  func.func @transform_2(%arg0: i32, %arg1: i32) -> (i32, i32) {
    %c0_i32 = arith.constant 0 : i32
    %c0_i32_0 = arith.constant 0 : i32
    %c0_i32_1 = arith.constant 0 : i32
    return %c0_i32, %c0_i32_0 : i32, i32
  }
  func.func @transform_3(%arg0: i32, %arg1: i32) -> (i32, i32) {
    %c0_i32 = arith.constant 0 : i32
    %c0_i32_0 = arith.constant 0 : i32
    %c0_i32_1 = arith.constant 0 : i32
    return %c0_i32, %c0_i32_0 : i32, i32
  }
  func.func @transform_4(%arg0: i32, %arg1: i32) -> (i32, i32) {
    %c0_i32 = arith.constant 0 : i32
    %c0_i32_0 = arith.constant 0 : i32
    %c0_i32_1 = arith.constant 0 : i32
    return %c0_i32, %c0_i32_0 : i32, i32
  }
  func.func @transform_5(%arg0: i32, %arg1: i32) -> (i32, i32) {
    %c1_i32 = arith.constant 1 : i32
    %0 = arith.muli %arg0, %c1_i32 : i32
    %1 = arith.addi %0, %arg1 : i32
    %c0_i32 = arith.constant 0 : i32
    %c0_i32_0 = arith.constant 0 : i32
    return %1, %c0_i32 : i32, i32
  }
}

</mosaic_0001>

<llo_original>
// kernel: inception_block.1
$region0: #{inception_block.1}
  #allocation0 [shape = 'u32[]', space=smem, size = 0x4, offset = 0x4, fixed_abs, tag = 'smem constant byte address 0x4 - core index']
  #allocation1 [shape = 'u32[144,128]{1,0:T(1,128)}', space=vmem, size = 0x12000, scoped, tag = 'internal scratch']
  #allocation2 [shape = 'f32[1,18,18,4]{3,2,1,0:T(8,128)}', space=vmem, size = 0x36000, scoped, tag = 'scratch operand']
  #allocation3 [shape = 'f32[1,20,20,2]{3,2,1,0:T(8,128)}', space=vmem, size = 0x3c000, scoped, tag = 'scratch operand']
  #allocation4 [shape = 'f32[1,18,18,4]{3,2,1,0:T(8,128)}', space=vmem, size = 0x36000, scoped, tag = 'scratch operand']
  #allocation5 [shape = 'f32[1,16,16,94]{3,2,1,0:T(8,128)}', space=vmem, size = 0x20000, scoped, tag = 'scratch operand']
  %s0 = inlined_call_operand.vmem [shape: f32[2,16,16,4], index: 0, kind: input, shape index: {}]
  %s1 = inlined_call_operand.vmem [shape: f32[4,6], index: 1, kind: input, shape index: {}]
  %s2 = inlined_call_operand.vmem [shape: f32[1,6], index: 2, kind: input, shape index: {}]
  %s3 = inlined_call_operand.vmem [shape: f32[94,20], index: 3, kind: input, shape index: {}]
  %s4 = inlined_call_operand.vmem [shape: f32[1,20], index: 4, kind: input, shape index: {}]
  %s5 = inlined_call_operand.hbm [shape: f32[512,20], index: 5, kind: output, shape index: {}]
  %s6 = sld [smem:[#allocation0]]
  $region57: #{inception_block.1} parent=0
    _
  %s8 = ssub.s32 1, %s6
  %s9 = scalar_select 0, %s8, %s6
  $region1: #{inception_block.1} parent=0
    #allocation6 [shape = 'u8[262144]{0}', space=vmem, size = 0x40000, scoped, tag = 'output window, operand 0']
    #allocation7 [shape = 's32[2]{0}', space=sflag, size = 0x8, scoped, tag = 'scoped memory for inception_block.1']
    %10 = vsyncpa [#allocation7], 0
    %s11 = scalar_lea.sflag [#allocation7], 1
    %12 = vsyncpa %s11, 0
    loop: start=0, step=1, limit=4
    $region2: #{inception_block.1} parent=1 // loop_pre_header
      _
    $region3: #{inception_block.1} parent=1 // loop_header
      %s14 = sphi 0, %s18
      %p15 = scmp.ge.s32.totalorder %s14, 4
      %s21 = sphi 0, %s33
      %s22 = sphi 0, %s29
      %s23 = sphi 0, %s21
      %s24 = sphi 0, %s22
      %s25 = sphi 0, %s23
      %s26 = sphi 0, %s24
      %s38 = sphi 0, %s40
      %s41 = sphi 0, %s38
      %s42 = sphi 0, %s41
      %s58 = sphi 0, %s42
      %s62 = sphi 0, %s62
      %s64 = sphi 0, %s62
      %s65 = sphi 0, %s64
      %s79 = sphi 0, %s65
      %s83 = sphi 0, %s83
      %s85 = sphi 0, %s83
      %s86 = sphi 0, %s85
      %s100 = sphi 0, %s86
      %s104 = sphi 0, %s104
      %s106 = sphi 0, %s104
      %s107 = sphi 0, %s106
      %s121 = sphi 0, %s107
      %s125 = sphi 0, %s125
      %s127 = sphi 0, %s125
      %s128 = sphi 0, %s127
      %s142 = sphi 0, %s128
      %s150 = sphi 0, %s152
      %s153 = sphi 0, %s150
      %s154 = sphi 0, %s153
      %s170 = sphi 0, %s154
    $region4: #{inception_block.1} parent=1 // loop_header_branch
      %17 = sbr.rel (%p15) target = $region8
    $region5: #{inception_block.1} parent=1 // loop_body
      %s19 = ssub.s32 %s14, 1
      %s20 = ssub.s32 %s14, 2
      %s27 = sadd.s32 1, %s22
      %p28 = scmp.ge.s32.totalorder %s27, 1
      %s29 = scalar_select %p28, 0, %s27
      %s30 = sadd.s32 1, %s21
      %s31 = scalar_select %p28, %s30, %s21
      %p32 = scmp.ge.s32.totalorder %s31, 2
      %s33 = scalar_select %p32, 0, %s31
      %s34 = sadd.s32 %s21, %s22
      %s35 = sadd.s32 %s33, %s29
      %s36 = ssub.s32 %s34, %s35
      %p37 = scmp.eq.s32.totalorder %s36, 0
      %s39 = sadd.s32 %s38, 1
      %s40 = scalar_select %p37, %s38, %s39
      %p43 = pneg %p37
      %p44 = scmp.eq.s32.totalorder %s14, 1
      %p45 = por %p43, %p44
      %p46 = scmp.ne.s32.totalorder %s38, %s41
      %p47 = scmp.eq.s32.totalorder %s14, 0
      %p48 = por %p46, %p47
      %p49 = scmp.ne.s32.totalorder %s38, %s41
      %p50 = scmp.eq.s32.totalorder %s19, 1
      %p51 = por %p49, %p50
      %p52 = scmp.ne.s32.totalorder %s41, %s42
      %p53 = scmp.eq.s32.totalorder %s19, 0
      %p54 = por %p52, %p53
      %p55 = scmp.ne.s32.totalorder %s41, %s42
      %p56 = scmp.eq.s32.totalorder %s20, 1
      %p57 = por %p55, %p56
      %p59 = scmp.ne.s32.totalorder %s42, %s58
      %p60 = scmp.eq.s32.totalorder %s20, 0
      %p61 = por %p59, %p60
      %s63 = sadd.s32 %s62, 1
      %p66 = scmp.eq.s32.totalorder %s14, 1
      %p67 = scmp.ne.s32.totalorder %s62, %s64
      %p68 = scmp.eq.s32.totalorder %s14, 0
      %p69 = por %p67, %p68
      %p70 = scmp.ne.s32.totalorder %s62, %s64
      %p71 = scmp.eq.s32.totalorder %s19, 1
      %p72 = por %p70, %p71
      %p73 = scmp.ne.s32.totalorder %s64, %s65
      %p74 = scmp.eq.s32.totalorder %s19, 0
      %p75 = por %p73, %p74
      %p76 = scmp.ne.s32.totalorder %s64, %s65
      %p77 = scmp.eq.s32.totalorder %s20, 1
      %p78 = por %p76, %p77
      %p80 = scmp.ne.s32.totalorder %s65, %s79
      %p81 = scmp.eq.s32.totalorder %s20, 0
      %p82 = por %p80, %p81
      %s84 = sadd.s32 %s83, 1
      %p87 = scmp.eq.s32.totalorder %s14, 1
      %p88 = scmp.ne.s32.totalorder %s83, %s85
      %p89 = scmp.eq.s32.totalorder %s14, 0
      %p90 = por %p88, %p89
      %p91 = scmp.ne.s32.totalorder %s83, %s85
      %p92 = scmp.eq.s32.totalorder %s19, 1
      %p93 = por %p91, %p92
      %p94 = scmp.ne.s32.totalorder %s85, %s86
      %p95 = scmp.eq.s32.totalorder %s19, 0
      %p96 = por %p94, %p95
      %p97 = scmp.ne.s32.totalorder %s85, %s86
      %p98 = scmp.eq.s32.totalorder %s20, 1
      %p99 = por %p97, %p98
      %p101 = scmp.ne.s32.totalorder %s86, %s100
      %p102 = scmp.eq.s32.totalorder %s20, 0
      %p103 = por %p101, %p102
      %s105 = sadd.s32 %s104, 1
      %p108 = scmp.eq.s32.totalorder %s14, 1
      %p109 = scmp.ne.s32.totalorder %s104, %s106
      %p110 = scmp.eq.s32.totalorder %s14, 0
      %p111 = por %p109, %p110
      %p112 = scmp.ne.s32.totalorder %s104, %s106
      %p113 = scmp.eq.s32.totalorder %s19, 1
      %p114 = por %p112, %p113
      %p115 = scmp.ne.s32.totalorder %s106, %s107
      %p116 = scmp.eq.s32.totalorder %s19, 0
      %p117 = por %p115, %p116
      %p118 = scmp.ne.s32.totalorder %s106, %s107
      %p119 = scmp.eq.s32.totalorder %s20, 1
      %p120 = por %p118, %p119
      %p122 = scmp.ne.s32.totalorder %s107, %s121
      %p123 = scmp.eq.s32.totalorder %s20, 0
      %p124 = por %p122, %p123
      %s126 = sadd.s32 %s125, 1
      %p129 = scmp.eq.s32.totalorder %s14, 1
      %p130 = scmp.ne.s32.totalorder %s125, %s127
      %p131 = scmp.eq.s32.totalorder %s14, 0
      %p132 = por %p130, %p131
      %p133 = scmp.ne.s32.totalorder %s125, %s127
      %p134 = scmp.eq.s32.totalorder %s19, 1
      %p135 = por %p133, %p134
      %p136 = scmp.ne.s32.totalorder %s127, %s128
      %p137 = scmp.eq.s32.totalorder %s19, 0
      %p138 = por %p136, %p137
      %p139 = scmp.ne.s32.totalorder %s127, %s128
      %p140 = scmp.eq.s32.totalorder %s20, 1
      %p141 = por %p139, %p140
      %p143 = scmp.ne.s32.totalorder %s128, %s142
      %p144 = scmp.eq.s32.totalorder %s20, 0
      %p145 = por %p143, %p144
      %s146 = sadd.s32 %s21, %s22
      %s147 = sadd.s32 %s33, %s29
      %s148 = ssub.s32 %s146, %s147
      %p149 = scmp.eq.s32.totalorder %s148, 0
      %s151 = sadd.s32 %s150, 1
      %s152 = scalar_select %p149, %s150, %s151
      %p155 = pneg %p149
      %p156 = scmp.eq.s32.totalorder %s14, 1
      %p157 = por %p155, %p156
      %p158 = scmp.ne.s32.totalorder %s150, %s153
      %p159 = scmp.eq.s32.totalorder %s14, 0
      %p160 = por %p158, %p159
      %p161 = scmp.ne.s32.totalorder %s150, %s153
      %p162 = scmp.eq.s32.totalorder %s19, 1
      %p163 = por %p161, %p162
      %p164 = scmp.ne.s32.totalorder %s153, %s154
      %p165 = scmp.eq.s32.totalorder %s19, 0
      %p166 = por %p164, %p165
      %p167 = scmp.ne.s32.totalorder %s153, %s154
      %p168 = scmp.eq.s32.totalorder %s20, 1
      %p169 = por %p167, %p168
      %p171 = scmp.ne.s32.totalorder %s154, %s170
      %p172 = scmp.eq.s32.totalorder %s20, 0
      %p173 = por %p171, %p172
      %p174 = scmp.le.s32.totalorder 1, %s14
      %p175 = scmp.lt.s32.totalorder %s14, 3
      %p176 = pnand %p174, %p175
      %p177 = pneg %p176
      // Predicated region
      $region9: #{inception_block.1} parent=5 // pred_check
        _
      $region10: #{inception_block.1} parent=5 // pred_check_branch
        %179 = sbr.rel (%p176) target = $region12
      $region11: #{inception_block.1} parent=5 // pred_region
        %s180 = ssub.s32 %s14, 1
        // Predicated region
        $region13: #{inception_block.1} parent=11 // pred_check
          %p181 = pneg %p75
        $region14: #{inception_block.1} parent=11 // pred_check_branch
          %183 = sbr.rel (%p181) target = $region16
        $region15: #{inception_block.1} parent=11 // pred_region
          _
        $region16: #{inception_block.1} parent=11 // pred_fallthru
          _
        // Predicated region
        $region17: #{inception_block.1} parent=11 // pred_check
          %p184 = pneg %p96
        $region18: #{inception_block.1} parent=11 // pred_check_branch
          %186 = sbr.rel (%p184) target = $region20
        $region19: #{inception_block.1} parent=11 // pred_region
          _
        $region20: #{inception_block.1} parent=11 // pred_fallthru
          _
        // Predicated region
        $region21: #{inception_block.1} parent=11 // pred_check
          %p187 = pneg %p117
        $region22: #{inception_block.1} parent=11 // pred_check_branch
          %189 = sbr.rel (%p187) target = $region24
        $region23: #{inception_block.1} parent=11 // pred_region
          _
        $region24: #{inception_block.1} parent=11 // pred_fallthru
          _
        // Predicated region
        $region25: #{inception_block.1} parent=11 // pred_check
          %p190 = pneg %p138
        $region26: #{inception_block.1} parent=11 // pred_check_branch
          %192 = sbr.rel (%p190) target = $region28
        $region27: #{inception_block.1} parent=11 // pred_region
          _
        $region28: #{inception_block.1} parent=11 // pred_fallthru
          _
      $region12: #{inception_block.1} parent=5 // pred_fallthru
        _
      %p193 = scmp.lt.s32.totalorder %s14, 2
      // Predicated region
      $region29: #{inception_block.1} parent=5 // pred_check
        %p194 = pneg %p193
      $region30: #{inception_block.1} parent=5 // pred_check_branch
        %196 = sbr.rel (%p194) target = $region32
      $region31: #{inception_block.1} parent=5 // pred_region
        // Predicated region
        $region33: #{inception_block.1} parent=31 // pred_check
          %p197 = pneg %p48
        $region34: #{inception_block.1} parent=31 // pred_check_branch
          %199 = sbr.rel (%p197) target = $region36
        $region35: #{inception_block.1} parent=31 // pred_region
          %s200 = sadd.s32 %s21, %s22
          %p201 = scmp.lt.s32.totalorder %s200, 1
          %s202 = scalar_select %p201, %s200, 1
          %s203 = smul.addr %s202, 32
          %s204 = smul.addr %s203, 8
          %s205 = scalar_lea.vmem %s0, %s204
          %s206 = sadd.s32 %s21, %s22
        $region36: #{inception_block.1} parent=31 // pred_fallthru
          _
      $region32: #{inception_block.1} parent=5 // pred_fallthru
        _
      %p207 = scmp.le.s32.totalorder 1, %s14
      %p208 = scmp.lt.s32.totalorder %s14, 3
      %p209 = pnand %p207, %p208
      %p210 = pneg %p209
      // Predicated region
      $region37: #{inception_block.1} parent=5 // pred_check
        _
      $region38: #{inception_block.1} parent=5 // pred_check_branch
        %212 = sbr.rel (%p209) target = $region40
      $region39: #{inception_block.1} parent=5 // pred_region
        %s213 = ssub.s32 %s14, 1
        %s214 = sadd.s32 %s23, %s24
        %p215 = scmp.lt.s32.totalorder %s214, 1
        %s216 = scalar_select %p215, %s214, 1
        %s217 = smul.addr %s216, 32
        %s218 = smul.addr %s217, 8
        %s219 = scalar_lea.vmem %s0, %s218
        %p220 = pneg %p54
        %p221 = pneg %p51
        %p222 = pneg %p75
        %p223 = pneg %p72
        %p224 = pneg %p96
        %p225 = pneg %p93
        %p226 = pneg %p117
        %p227 = pneg %p114
        %p228 = pneg %p138
        %p229 = pneg %p135
        %p230 = pneg %p166
        %p231 = pneg %p163
        %s232 = sand.u32 %s153, 1
        %s233 = scalar_lea.sflag [#allocation7], %s232
        %s234 = sand.u32 %s153, 1
        %s235 = smul.addr %s234, 256
        %s236 = scalar_lea.vmem [#allocation6], %s235
        %s237 = sadd.s32 %s23, %s24
        %p238 = scmp.lt.s32.totalorder %s237, 1
        %s239 = scalar_select %p238, %s237, 1
        %s240 = smul.addr %s239, 32
        %s241 = smul.addr %s240, 8
        %s242 = scalar_lea.vmem %s0, %s241
        %s243 = sadd.s32 %s23, %s24
        %s244 = sadd.s32 %s23, %s24
        %s245 = smul.u32 32, %s244
        %p246 = scmp.eq.s32.totalorder %s24, 0
        // Predicated region
        $region41: #{inception_block.1} parent=39 // pred_check
          %p247 = pneg %p246
        $region42: #{inception_block.1} parent=39 // pred_check_branch
          %249 = sbr.rel (%p247) target = $region44
        $region43: #{inception_block.1} parent=39 // pred_region
          %vm250 = vcmask 31744
          %251 = vst.msk [vmem:[#allocation2] sm:$0xff] %vm250, 0.0
          %252 = vst.msk [vmem:[#allocation2 + $0x8] sm:$0xff] %vm250, 0.0
          %vm253 = vcmask 25600
          %254 = vst.msk [vmem:[#allocation2 + $0x10] sm:$0x3] %vm253, 0.0
          %255 = vst.msk [vmem:[#allocation2 + $0x18] sm:$0xff] %vm250, 0.0
          %256 = vst.msk [vmem:[#allocation2 + $0x20] sm:$0xff] %vm250, 0.0
          %257 = vst.msk [vmem:[#allocation2 + $0x28] sm:$0x3] %vm253, 0.0
          %258 = vst.msk [vmem:[#allocation2 + $0x30] sm:$0xff] %vm250, 0.0
          %259 = vst.msk [vmem:[#allocation2 + $0x38] sm:$0xff] %vm250, 0.0
          %260 = vst.msk [vmem:[#allocation2 + $0x40] sm:$0x3] %vm253, 0.0
          %261 = vst.msk [vmem:[#allocation2 + $0x48] sm:$0xff] %vm250, 0.0
          %262 = vst.msk [vmem:[#allocation2 + $0x50] sm:$0xff] %vm250, 0.0
          %263 = vst.msk [vmem:[#allocation2 + $0x58] sm:$0x3] %vm253, 0.0
          %264 = vst.msk [vmem:[#allocation2 + $0x60] sm:$0xff] %vm250, 0.0
          %265 = vst.msk [vmem:[#allocation2 + $0x68] sm:$0xff] %vm250, 0.0
          %266 = vst.msk [vmem:[#allocation2 + $0x70] sm:$0x3] %vm253, 0.0
          %267 = vst.msk [vmem:[#allocation2 + $0x78] sm:$0xff] %vm250, 0.0
          %268 = vst.msk [vmem:[#allocation2 + $0x80] sm:$0xff] %vm250, 0.0
          %269 = vst.msk [vmem:[#allocation2 + $0x88] sm:$0x3] %vm253, 0.0
          %270 = vst.msk [vmem:[#allocation2 + $0x90] sm:$0xff] %vm250, 0.0
          %271 = vst.msk [vmem:[#allocation2 + $0x98] sm:$0xff] %vm250, 0.0
          %272 = vst.msk [vmem:[#allocation2 + $0xa0] sm:$0x3] %vm253, 0.0
          %273 = vst.msk [vmem:[#allocation2 + $0xa8] sm:$0xff] %vm250, 0.0
          %274 = vst.msk [vmem:[#allocation2 + $0xb0] sm:$0xff] %vm250, 0.0
          %275 = vst.msk [vmem:[#allocation2 + $0xb8] sm:$0x3] %vm253, 0.0
          %276 = vst.msk [vmem:[#allocation2 + $0xc0] sm:$0xff] %vm250, 0.0
          %277 = vst.msk [vmem:[#allocation2 + $0xc8] sm:$0xff] %vm250, 0.0
          %278 = vst.msk [vmem:[#allocation2 + $0xd0] sm:$0x3] %vm253, 0.0
          %279 = vst.msk [vmem:[#allocation2 + $0xd8] sm:$0xff] %vm250, 0.0
          %280 = vst.msk [vmem:[#allocation2 + $0xe0] sm:$0xff] %vm250, 0.0
          %281 = vst.msk [vmem:[#allocation2 + $0xe8] sm:$0x3] %vm253, 0.0
          %282 = vst.msk [vmem:[#allocation2 + $0xf0] sm:$0xff] %vm250, 0.0
          %283 = vst.msk [vmem:[#allocation2 + $0xf8] sm:$0xff] %vm250, 0.0
          %284 = vst.msk [vmem:[#allocation2 + $0x100] sm:$0x3] %vm253, 0.0
          %285 = vst.msk [vmem:[#allocation2 + $0x108] sm:$0xff] %vm250, 0.0
          %286 = vst.msk [vmem:[#allocation2 + $0x110] sm:$0xff] %vm250, 0.0
          %287 = vst.msk [vmem:[#allocation2 + $0x118] sm:$0x3] %vm253, 0.0
          %288 = vst.msk [vmem:[#allocation2 + $0x120] sm:$0xff] %vm250, 0.0
          %289 = vst.msk [vmem:[#allocation2 + $0x128] sm:$0xff] %vm250, 0.0
          %290 = vst.msk [vmem:[#allocation2 + $0x130] sm:$0x3] %vm253, 0.0
          %291 = vst.msk [vmem:[#allocation2 + $0x138] sm:$0xff] %vm250, 0.0
          %292 = vst.msk [vmem:[#allocation2 + $0x140] sm:$0xff] %vm250, 0.0
          %293 = vst.msk [vmem:[#allocation2 + $0x148] sm:$0x3] %vm253, 0.0
          %294 = vst.msk [vmem:[#allocation2 + $0x150] sm:$0xff] %vm250, 0.0
          %295 = vst.msk [vmem:[#allocation2 + $0x158] sm:$0xff] %vm250, 0.0
          %296 = vst.msk [vmem:[#allocation2 + $0x160] sm:$0x3] %vm253, 0.0
          %297 = vst.msk [vmem:[#allocation2 + $0x168] sm:$0xff] %vm250, 0.0
          %298 = vst.msk [vmem:[#allocation2 + $0x170] sm:$0xff] %vm250, 0.0
          %299 = vst.msk [vmem:[#allocation2 + $0x178] sm:$0x3] %vm253, 0.0
          %300 = vst.msk [vmem:[#allocation2 + $0x180] sm:$0xff] %vm250, 0.0
          %301 = vst.msk [vmem:[#allocation2 + $0x188] sm:$0xff] %vm250, 0.0
          %302 = vst.msk [vmem:[#allocation2 + $0x190] sm:$0x3] %vm253, 0.0
          %303 = vst.msk [vmem:[#allocation2 + $0x198] sm:$0xff] %vm250, 0.0
          %304 = vst.msk [vmem:[#allocation2 + $0x1a0] sm:$0xff] %vm250, 0.0
          %305 = vst.msk [vmem:[#allocation2 + $0x1a8] sm:$0x3] %vm253, 0.0
          %vm306 = vcmask 15360
          %307 = vst.msk [vmem:[#allocation3] sm:$0xff] %vm306, 0.0
          %308 = vst.msk [vmem:[#allocation3 + $0x8] sm:$0xff] %vm306, 0.0
          %vm309 = vcmask 11264
          %310 = vst.msk [vmem:[#allocation3 + $0x10] sm:$0xf] %vm309, 0.0
          %311 = vst.msk [vmem:[#allocation3 + $0x18] sm:$0xff] %vm306, 0.0
          %312 = vst.msk [vmem:[#allocation3 + $0x20] sm:$0xff] %vm306, 0.0
          %313 = vst.msk [vmem:[#allocation3 + $0x28] sm:$0xf] %vm309, 0.0
          %314 = vst.msk [vmem:[#allocation3 + $0x30] sm:$0xff] %vm306, 0.0
          %315 = vst.msk [vmem:[#allocation3 + $0x38] sm:$0xff] %vm306, 0.0
          %316 = vst.msk [vmem:[#allocation3 + $0x40] sm:$0xf] %vm309, 0.0
          %317 = vst.msk [vmem:[#allocation3 + $0x48] sm:$0xff] %vm306, 0.0
          %318 = vst.msk [vmem:[#allocation3 + $0x50] sm:$0xff] %vm306, 0.0
          %319 = vst.msk [vmem:[#allocation3 + $0x58] sm:$0xf] %vm309, 0.0
          %320 = vst.msk [vmem:[#allocation3 + $0x60] sm:$0xff] %vm306, 0.0
          %321 = vst.msk [vmem:[#allocation3 + $0x68] sm:$0xff] %vm306, 0.0
          %322 = vst.msk [vmem:[#allocation3 + $0x70] sm:$0xf] %vm309, 0.0
          %323 = vst.msk [vmem:[#allocation3 + $0x78] sm:$0xff] %vm306, 0.0
          %324 = vst.msk [vmem:[#allocation3 + $0x80] sm:$0xff] %vm306, 0.0
          %325 = vst.msk [vmem:[#allocation3 + $0x88] sm:$0xf] %vm309, 0.0
          %326 = vst.msk [vmem:[#allocation3 + $0x90] sm:$0xff] %vm306, 0.0
          %327 = vst.msk [vmem:[#allocation3 + $0x98] sm:$0xff] %vm306, 0.0
          %328 = vst.msk [vmem:[#allocation3 + $0xa0] sm:$0xf] %vm309, 0.0
          %329 = vst.msk [vmem:[#allocation3 + $0xa8] sm:$0xff] %vm306, 0.0
          %330 = vst.msk [vmem:[#allocation3 + $0xb0] sm:$0xff] %vm306, 0.0
          %331 = vst.msk [vmem:[#allocation3 + $0xb8] sm:$0xf] %vm309, 0.0
          %332 = vst.msk [vmem:[#allocation3 + $0xc0] sm:$0xff] %vm306, 0.0
          %333 = vst.msk [vmem:[#allocation3 + $0xc8] sm:$0xff] %vm306, 0.0
          %334 = vst.msk [vmem:[#allocation3 + $0xd0] sm:$0xf] %vm309, 0.0
          %335 = vst.msk [vmem:[#allocation3 + $0xd8] sm:$0xff] %vm306, 0.0
          %336 = vst.msk [vmem:[#allocation3 + $0xe0] sm:$0xff] %vm306, 0.0
          %337 = vst.msk [vmem:[#allocation3 + $0xe8] sm:$0xf] %vm309, 0.0
          %338 = vst.msk [vmem:[#allocation3 + $0xf0] sm:$0xff] %vm306, 0.0
          %339 = vst.msk [vmem:[#allocation3 + $0xf8] sm:$0xff] %vm306, 0.0
          %340 = vst.msk [vmem:[#allocation3 + $0x100] sm:$0xf] %vm309, 0.0
          %341 = vst.msk [vmem:[#allocation3 + $0x108] sm:$0xff] %vm306, 0.0
          %342 = vst.msk [vmem:[#allocation3 + $0x110] sm:$0xff] %vm306, 0.0
          %343 = vst.msk [vmem:[#allocation3 + $0x118] sm:$0xf] %vm309, 0.0
          %344 = vst.msk [vmem:[#allocation3 + $0x120] sm:$0xff] %vm306, 0.0
          %345 = vst.msk [vmem:[#allocation3 + $0x128] sm:$0xff] %vm306, 0.0
          %346 = vst.msk [vmem:[#allocation3 + $0x130] sm:$0xf] %vm309, 0.0
          %347 = vst.msk [vmem:[#allocation3 + $0x138] sm:$0xff] %vm306, 0.0
          %348 = vst.msk [vmem:[#allocation3 + $0x140] sm:$0xff] %vm306, 0.0
          %349 = vst.msk [vmem:[#allocation3 + $0x148] sm:$0xf] %vm309, 0.0
          %350 = vst.msk [vmem:[#allocation3 + $0x150] sm:$0xff] %vm306, 0.0
          %351 = vst.msk [vmem:[#allocation3 + $0x158] sm:$0xff] %vm306, 0.0
          %352 = vst.msk [vmem:[#allocation3 + $0x160] sm:$0xf] %vm309, 0.0
          %353 = vst.msk [vmem:[#allocation3 + $0x168] sm:$0xff] %vm306, 0.0
          %354 = vst.msk [vmem:[#allocation3 + $0x170] sm:$0xff] %vm306, 0.0
          %355 = vst.msk [vmem:[#allocation3 + $0x178] sm:$0xf] %vm309, 0.0
          %356 = vst.msk [vmem:[#allocation3 + $0x180] sm:$0xff] %vm306, 0.0
          %357 = vst.msk [vmem:[#allocation3 + $0x188] sm:$0xff] %vm306, 0.0
          %358 = vst.msk [vmem:[#allocation3 + $0x190] sm:$0xf] %vm309, 0.0
          %359 = vst.msk [vmem:[#allocation3 + $0x198] sm:$0xff] %vm306, 0.0
          %360 = vst.msk [vmem:[#allocation3 + $0x1a0] sm:$0xff] %vm306, 0.0
          %361 = vst.msk [vmem:[#allocation3 + $0x1a8] sm:$0xf] %vm309, 0.0
          %362 = vst.msk [vmem:[#allocation3 + $0x1b0] sm:$0xff] %vm306, 0.0
          %363 = vst.msk [vmem:[#allocation3 + $0x1b8] sm:$0xff] %vm306, 0.0
          %364 = vst.msk [vmem:[#allocation3 + $0x1c0] sm:$0xf] %vm309, 0.0
          %365 = vst.msk [vmem:[#allocation3 + $0x1c8] sm:$0xff] %vm306, 0.0
          %366 = vst.msk [vmem:[#allocation3 + $0x1d0] sm:$0xff] %vm306, 0.0
          %367 = vst.msk [vmem:[#allocation3 + $0x1d8] sm:$0xf] %vm309, 0.0
          %368 = vst.msk [vmem:[#allocation4] sm:$0xff] %vm250, -inf
          %369 = vst.msk [vmem:[#allocation4 + $0x8] sm:$0xff] %vm250, -inf
          %370 = vst.msk [vmem:[#allocation4 + $0x10] sm:$0x3] %vm253, -inf
          %371 = vst.msk [vmem:[#allocation4 + $0x18] sm:$0xff] %vm250, -inf
          %372 = vst.msk [vmem:[#allocation4 + $0x20] sm:$0xff] %vm250, -inf
          %373 = vst.msk [vmem:[#allocation4 + $0x28] sm:$0x3] %vm253, -inf
          %374 = vst.msk [vmem:[#allocation4 + $0x30] sm:$0xff] %vm250, -inf
          %375 = vst.msk [vmem:[#allocation4 + $0x38] sm:$0xff] %vm250, -inf
          %376 = vst.msk [vmem:[#allocation4 + $0x40] sm:$0x3] %vm253, -inf
          %377 = vst.msk [vmem:[#allocation4 + $0x48] sm:$0xff] %vm250, -inf
          %378 = vst.msk [vmem:[#allocation4 + $0x50] sm:$0xff] %vm250, -inf
          %379 = vst.msk [vmem:[#allocation4 + $0x58] sm:$0x3] %vm253, -inf
          %380 = vst.msk [vmem:[#allocation4 + $0x60] sm:$0xff] %vm250, -inf
          %381 = vst.msk [vmem:[#allocation4 + $0x68] sm:$0xff] %vm250, -inf
          %382 = vst.msk [vmem:[#allocation4 + $0x70] sm:$0x3] %vm253, -inf
          %383 = vst.msk [vmem:[#allocation4 + $0x78] sm:$0xff] %vm250, -inf
          %384 = vst.msk [vmem:[#allocation4 + $0x80] sm:$0xff] %vm250, -inf
          %385 = vst.msk [vmem:[#allocation4 + $0x88] sm:$0x3] %vm253, -inf
          %386 = vst.msk [vmem:[#allocation4 + $0x90] sm:$0xff] %vm250, -inf
          %387 = vst.msk [vmem:[#allocation4 + $0x98] sm:$0xff] %vm250, -inf
          %388 = vst.msk [vmem:[#allocation4 + $0xa0] sm:$0x3] %vm253, -inf
          %389 = vst.msk [vmem:[#allocation4 + $0xa8] sm:$0xff] %vm250, -inf
          %390 = vst.msk [vmem:[#allocation4 + $0xb0] sm:$0xff] %vm250, -inf
          %391 = vst.msk [vmem:[#allocation4 + $0xb8] sm:$0x3] %vm253, -inf
          %392 = vst.msk [vmem:[#allocation4 + $0xc0] sm:$0xff] %vm250, -inf
          %393 = vst.msk [vmem:[#allocation4 + $0xc8] sm:$0xff] %vm250, -inf
          %394 = vst.msk [vmem:[#allocation4 + $0xd0] sm:$0x3] %vm253, -inf
          %395 = vst.msk [vmem:[#allocation4 + $0xd8] sm:$0xff] %vm250, -inf
          %396 = vst.msk [vmem:[#allocation4 + $0xe0] sm:$0xff] %vm250, -inf
          %397 = vst.msk [vmem:[#allocation4 + $0xe8] sm:$0x3] %vm253, -inf
          %398 = vst.msk [vmem:[#allocation4 + $0xf0] sm:$0xff] %vm250, -inf
          %399 = vst.msk [vmem:[#allocation4 + $0xf8] sm:$0xff] %vm250, -inf
          %400 = vst.msk [vmem:[#allocation4 + $0x100] sm:$0x3] %vm253, -inf
          %401 = vst.msk [vmem:[#allocation4 + $0x108] sm:$0xff] %vm250, -inf
          %402 = vst.msk [vmem:[#allocation4 + $0x110] sm:$0xff] %vm250, -inf
          %403 = vst.msk [vmem:[#allocation4 + $0x118] sm:$0x3] %vm253, -inf
          %404 = vst.msk [vmem:[#allocation4 + $0x120] sm:$0xff] %vm250, -inf
          %405 = vst.msk [vmem:[#allocation4 + $0x128] sm:$0xff] %vm250, -inf
          %406 = vst.msk [vmem:[#allocation4 + $0x130] sm:$0x3] %vm253, -inf
          %407 = vst.msk [vmem:[#allocation4 + $0x138] sm:$0xff] %vm250, -inf
          %408 = vst.msk [vmem:[#allocation4 + $0x140] sm:$0xff] %vm250, -inf
          %409 = vst.msk [vmem:[#allocation4 + $0x148] sm:$0x3] %vm253, -inf
          %410 = vst.msk [vmem:[#allocation4 + $0x150] sm:$0xff] %vm250, -inf
          %411 = vst.msk [vmem:[#allocation4 + $0x158] sm:$0xff] %vm250, -inf
          %412 = vst.msk [vmem:[#allocation4 + $0x160] sm:$0x3] %vm253, -inf
          %413 = vst.msk [vmem:[#allocation4 + $0x168] sm:$0xff] %vm250, -inf
          %414 = vst.msk [vmem:[#allocation4 + $0x170] sm:$0xff] %vm250, -inf
          %415 = vst.msk [vmem:[#allocation4 + $0x178] sm:$0x3] %vm253, -inf
          %416 = vst.msk [vmem:[#allocation4 + $0x180] sm:$0xff] %vm250, -inf
          %417 = vst.msk [vmem:[#allocation4 + $0x188] sm:$0xff] %vm250, -inf
          %418 = vst.msk [vmem:[#allocation4 + $0x190] sm:$0x3] %vm253, -inf
          %419 = vst.msk [vmem:[#allocation4 + $0x198] sm:$0xff] %vm250, -inf
          %420 = vst.msk [vmem:[#allocation4 + $0x1a0] sm:$0xff] %vm250, -inf
          %421 = vst.msk [vmem:[#allocation4 + $0x1a8] sm:$0x3] %vm253, -inf
        $region44: #{inception_block.1} parent=39 // pred_fallthru
          _
        %v422 = vld [vmem:[%s242] sm:$0xff]
        %v423 = vld [vmem:[%s242 + $0x8] sm:$0xff]
        %v424 = vld [vmem:[%s242 + $0x10] sm:$0xff]
        %v425 = vld [vmem:[%s242 + $0x18] sm:$0xff]
        %v426 = vld [vmem:[%s242 + $0x20] sm:$0xff]
        %v427 = vld [vmem:[%s242 + $0x28] sm:$0xff]
        %v428 = vld [vmem:[%s242 + $0x30] sm:$0xff]
        %v429 = vld [vmem:[%s242 + $0x38] sm:$0xff]
        %v430 = vld [vmem:[%s242 + $0x40] sm:$0xff]
        %v431 = vld [vmem:[%s242 + $0x48] sm:$0xff]
        %v432 = vld [vmem:[%s242 + $0x50] sm:$0xff]
        %v433 = vld [vmem:[%s242 + $0x58] sm:$0xff]
        %v434 = vld [vmem:[%s242 + $0x60] sm:$0xff]
        %v435 = vld [vmem:[%s242 + $0x68] sm:$0xff]
        %v436 = vld [vmem:[%s242 + $0x70] sm:$0xff]
        %v437 = vld [vmem:[%s242 + $0x78] sm:$0xff]
        %v438 = vld [vmem:[%s242 + $0x80] sm:$0xff]
        %v439 = vld [vmem:[%s242 + $0x88] sm:$0xff]
        %v440 = vld [vmem:[%s242 + $0x90] sm:$0xff]
        %v441 = vld [vmem:[%s242 + $0x98] sm:$0xff]
        %v442 = vld [vmem:[%s242 + $0xa0] sm:$0xff]
        %v443 = vld [vmem:[%s242 + $0xa8] sm:$0xff]
        %v444 = vld [vmem:[%s242 + $0xb0] sm:$0xff]
        %v445 = vld [vmem:[%s242 + $0xb8] sm:$0xff]
        %v446 = vld [vmem:[%s242 + $0xc0] sm:$0xff]
        %v447 = vld [vmem:[%s242 + $0xc8] sm:$0xff]
        %v448 = vld [vmem:[%s242 + $0xd0] sm:$0xff]
        %v449 = vld [vmem:[%s242 + $0xd8] sm:$0xff]
        %v450 = vld [vmem:[%s242 + $0xe0] sm:$0xff]
        %v451 = vld [vmem:[%s242 + $0xe8] sm:$0xff]
        %v452 = vld [vmem:[%s242 + $0xf0] sm:$0xff]
        %v453 = vld [vmem:[%s242 + $0xf8] sm:$0xff]
        %v454 = vld [vmem:[%s1] sm:$0xf]
        %v455 = vld [vmem:[%s2] sm:$0x1]
        %v457 = vlaneseq
        %v458 = vshrl.u32 %v457, 7
        %v459 = vsub.s32 0, %v458
        %v460 = vrot.slane %v455, %v459
        %vm462 = vcmask 31744
        %v464 = vsel %vm462, %v422, 0
        %v467 = vsel %vm462, %v423, 0
        %v470 = vsel %vm462, %v424, 0
        %v473 = vsel %vm462, %v425, 0
        %v476 = vsel %vm462, %v426, 0
        %v479 = vsel %vm462, %v427, 0
        %v482 = vsel %vm462, %v428, 0
        %v485 = vsel %vm462, %v429, 0
        %v488 = vsel %vm462, %v430, 0
        %v491 = vsel %vm462, %v431, 0
        %v494 = vsel %vm462, %v432, 0
        %v497 = vsel %vm462, %v433, 0
        %v500 = vsel %vm462, %v434, 0
        %v503 = vsel %vm462, %v435, 0
        %v506 = vsel %vm462, %v436, 0
        %v509 = vsel %vm462, %v437, 0
        %v512 = vsel %vm462, %v438, 0
        %v515 = vsel %vm462, %v439, 0
        %v518 = vsel %vm462, %v440, 0
        %v521 = vsel %vm462, %v441, 0
        %v524 = vsel %vm462, %v442, 0
        %v527 = vsel %vm462, %v443, 0
        %v530 = vsel %vm462, %v444, 0
        %v533 = vsel %vm462, %v445, 0
        %v536 = vsel %vm462, %v446, 0
        %v539 = vsel %vm462, %v447, 0
        %v542 = vsel %vm462, %v448, 0
        %v545 = vsel %vm462, %v449, 0
        %v548 = vsel %vm462, %v450, 0
        %v551 = vsel %vm462, %v451, 0
        %v554 = vsel %vm462, %v452, 0
        %v557 = vsel %vm462, %v453, 0
        %vm559 = vcmask 1043456
        %v561 = vsel %vm559, %v454, 0
        %563 = vmatprep.subr.mxu0 0.0
        %564 = vmatpush1.msra.mxu0 %v561
        %565 = vmatprep.subr.mxu0 0.0
        %566 = vmatpush1.msra.mxu0 0.0
        %567 = vmatprep.subr.mxu0 0.0
        %568 = vmatpush1.msra.mxu0 0.0
        %569 = vmatprep.subr.mxu0 0.0
        %570 = vmatpush1.msra.mxu0 0.0
        %571 = vmatprep.subr.mxu0 0.0
        %572 = vmatpush1.msra.mxu0 0.0
        %573 = vmatprep.subr.mxu0 0.0
        %574 = vmatpush1.msra.mxu0 0.0
        %575 = vmatprep.subr.mxu0 0.0
        %576 = vmatpush1.msra.mxu0 0.0
        %577 = vmatprep.subr.mxu0 0.0
        %578 = vmatpush1.msra.mxu0 0.0
        %579 = vmatprep.subr.mxu0 0.0
        %580 = vmatpush1.msra.mxu0 0.0
        %581 = vmatprep.subr.mxu0 0.0
        %582 = vmatpush1.msra.mxu0 0.0
        %583 = vmatprep.subr.mxu0 0.0
        %584 = vmatpush1.msra.mxu0 0.0
        %585 = vmatprep.subr.mxu0 0.0
        %586 = vmatpush1.msra.mxu0 0.0
        %587 = vmatprep.subr.mxu0 0.0
        %588 = vmatpush1.msra.mxu0 0.0
        %589 = vmatprep.subr.mxu0 0.0
        %590 = vmatpush1.msra.mxu0 0.0
        %591 = vmatprep.subr.mxu0 0.0
        %592 = vmatpush1.msra.mxu0 0.0
        %593 = vmatprep.subr.mxu0 0.0
        %594 = vmatpush1.msra.mxu0 0.0
        %595 = vmatprep.subr.mxu0 0.0
        %596 = vmatpush1.msra.mxu0 0.0
        %597 = vmatprep.subr.mxu0 0.0
        %598 = vmatpush1.msra.mxu0 0.0
        %599 = vmatprep.subr.mxu0 0.0
        %600 = vmatpush1.msra.mxu0 0.0
        %601 = vmatprep.subr.mxu0 0.0
        %602 = vmatpush1.msra.mxu0 0.0
        %603 = vmatprep.subr.mxu0 0.0
        %604 = vmatpush1.msra.mxu0 0.0
        %605 = vmatprep.subr.mxu0 0.0
        %606 = vmatpush1.msra.mxu0 0.0
        %607 = vmatprep.subr.mxu0 0.0
        %608 = vmatpush1.msra.mxu0 0.0
        %609 = vmatprep.subr.mxu0 0.0
        %610 = vmatpush1.msra.mxu0 0.0
        %611 = vmatprep.subr.mxu0 0.0
        %612 = vmatpush1.msra.mxu0 0.0
        %613 = vmatprep.subr.mxu0 0.0
        %614 = vmatpush1.msra.mxu0 0.0
        %615 = vmatprep.subr.mxu0 0.0
        %616 = vmatpush1.msra.mxu0 0.0
        %617 = vmatprep.subr.mxu0 0.0
        %618 = vmatpush1.msra.mxu0 0.0
        %619 = vmatprep.subr.mxu0 0.0
        %620 = vmatpush1.msra.mxu0 0.0
        %621 = vmatprep.subr.mxu0 0.0
        %622 = vmatpush1.msra.mxu0 0.0
        %623 = vmatprep.subr.mxu0 0.0
        %624 = vmatpush1.msra.mxu0 0.0
        %625 = vmatprep.subr.mxu0 0.0
        %626 = vmatpush1.msra.mxu0 0.0
        %627 = vmatprep.mubr.f32.mxu0 0.0
        %628 = vmatmul.mubr.f32.gmra.mrb[0].mxu0 %v464
        %v629 = vpop.f32.mrb[0].mxu0
        %v630 = vadd.f32 %v460, %v629
        %v631 = vpop.f32.mrb[0].mxu0
        %632 = vmatprep.mubr.f32.mxu0 0.0
        %633 = vmatmul.mubr.f32.gmra.mrb[0].mxu0 %v467
        %v634 = vpop.f32.mrb[0].mxu0
        %v635 = vadd.f32 %v460, %v634
        %v636 = vpop.f32.mrb[0].mxu0
        %637 = vmatprep.mubr.f32.mxu0 0.0
        %638 = vmatmul.mubr.f32.gmra.mrb[0].mxu0 %v470
        %v639 = vpop.f32.mrb[0].mxu0
        %v640 = vadd.f32 %v460, %v639
        %v641 = vpop.f32.mrb[0].mxu0
        %642 = vmatprep.mubr.f32.mxu0 0.0
        %643 = vmatmul.mubr.f32.gmra.mrb[0].mxu0 %v473
        %v644 = vpop.f32.mrb[0].mxu0
        %v645 = vadd.f32 %v460, %v644
        %v646 = vpop.f32.mrb[0].mxu0
        %647 = vmatprep.mubr.f32.mxu0 0.0
        %648 = vmatmul.mubr.f32.gmra.mrb[0].mxu0 %v476
        %v649 = vpop.f32.mrb[0].mxu0
        %v650 = vadd.f32 %v460, %v649
        %v651 = vpop.f32.mrb[0].mxu0
        %652 = vmatprep.mubr.f32.mxu0 0.0
        %653 = vmatmul.mubr.f32.gmra.mrb[0].mxu0 %v479
        %v654 = vpop.f32.mrb[0].mxu0
        %v655 = vadd.f32 %v460, %v654
        %v656 = vpop.f32.mrb[0].mxu0
        %657 = vmatprep.mubr.f32.mxu0 0.0
        %658 = vmatmul.mubr.f32.gmra.mrb[0].mxu0 %v482
        %v659 = vpop.f32.mrb[0].mxu0
        %v660 = vadd.f32 %v460, %v659
        %v661 = vpop.f32.mrb[0].mxu0
        %662 = vmatprep.mubr.f32.mxu0 0.0
        %663 = vmatmul.mubr.f32.gmra.mrb[0].mxu0 %v485
        %v664 = vpop.f32.mrb[0].mxu0
        %v665 = vadd.f32 %v460, %v664
        %v666 = vpop.f32.mrb[0].mxu0
        %667 = vmatprep.mubr.f32.mxu0 0.0
        %668 = vmatmul.mubr.f32.gmra.mrb[0].mxu0 %v488
        %v669 = vpop.f32.mrb[0].mxu0
        %v670 = vadd.f32 %v460, %v669
        %v671 = vpop.f32.mrb[0].mxu0
        %672 = vmatprep.mubr.f32.mxu0 0.0
        %673 = vmatmul.mubr.f32.gmra.mrb[0].mxu0 %v491
        %v674 = vpop.f32.mrb[0].mxu0
        %v675 = vadd.f32 %v460, %v674
        %v676 = vpop.f32.mrb[0].mxu0
        %677 = vmatprep.mubr.f32.mxu0 0.0
        %678 = vmatmul.mubr.f32.gmra.mrb[0].mxu0 %v494
        %v679 = vpop.f32.mrb[0].mxu0
        %v680 = vadd.f32 %v460, %v679
        %v681 = vpop.f32.mrb[0].mxu0
        %682 = vmatprep.mubr.f32.mxu0 0.0
        %683 = vmatmul.mubr.f32.gmra.mrb[0].mxu0 %v497
        %v684 = vpop.f32.mrb[0].mxu0
        %v685 = vadd.f32 %v460, %v684
        %v686 = vpop.f32.mrb[0].mxu0
        %687 = vmatprep.mubr.f32.mxu0 0.0
        %688 = vmatmul.mubr.f32.gmra.mrb[0].mxu0 %v500
        %v689 = vpop.f32.mrb[0].mxu0
        %v690 = vadd.f32 %v460, %v689
        %v691 = vpop.f32.mrb[0].mxu0
        %692 = vmatprep.mubr.f32.mxu0 0.0
        %693 = vmatmul.mubr.f32.gmra.mrb[0].mxu0 %v503
        %v694 = vpop.f32.mrb[0].mxu0
        %v695 = vadd.f32 %v460, %v694
        %v696 = vpop.f32.mrb[0].mxu0
        %697 = vmatprep.mubr.f32.mxu0 0.0
        %698 = vmatmul.mubr.f32.gmra.mrb[0].mxu0 %v506
        %v699 = vpop.f32.mrb[0].mxu0
        %v700 = vadd.f32 %v460, %v699
        %v701 = vpop.f32.mrb[0].mxu0
        %702 = vmatprep.mubr.f32.mxu0 0.0
        %703 = vmatmul.mubr.f32.gmra.mrb[0].mxu0 %v509
        %v704 = vpop.f32.mrb[0].mxu0
        %v705 = vadd.f32 %v460, %v704
        %v706 = vpop.f32.mrb[0].mxu0
        %707 = vmatprep.mubr.f32.mxu0 0.0
        %708 = vmatmul.mubr.f32.gmra.mrb[0].mxu0 %v512
        %v709 = vpop.f32.mrb[0].mxu0
        %v710 = vadd.f32 %v460, %v709
        %v711 = vpop.f32.mrb[0].mxu0
        %712 = vmatprep.mubr.f32.mxu0 0.0
        %713 = vmatmul.mubr.f32.gmra.mrb[0].mxu0 %v515
        %v714 = vpop.f32.mrb[0].mxu0
        %v715 = vadd.f32 %v460, %v714
        %v716 = vpop.f32.mrb[0].mxu0
        %717 = vmatprep.mubr.f32.mxu0 0.0
        %718 = vmatmul.mubr.f32.gmra.mrb[0].mxu0 %v518
        %v719 = vpop.f32.mrb[0].mxu0
        %v720 = vadd.f32 %v460, %v719
        %v721 = vpop.f32.mrb[0].mxu0
        %722 = vmatprep.mubr.f32.mxu0 0.0
        %723 = vmatmul.mubr.f32.gmra.mrb[0].mxu0 %v521
        %v724 = vpop.f32.mrb[0].mxu0
        %v725 = vadd.f32 %v460, %v724
        %v726 = vpop.f32.mrb[0].mxu0
        %727 = vmatprep.mubr.f32.mxu0 0.0
        %728 = vmatmul.mubr.f32.gmra.mrb[0].mxu0 %v524
        %v729 = vpop.f32.mrb[0].mxu0
        %v730 = vadd.f32 %v460, %v729
        %v731 = vpop.f32.mrb[0].mxu0
        %732 = vmatprep.mubr.f32.mxu0 0.0
        %733 = vmatmul.mubr.f32.gmra.mrb[0].mxu0 %v527
        %v734 = vpop.f32.mrb[0].mxu0
        %v735 = vadd.f32 %v460, %v734
        %v736 = vpop.f32.mrb[0].mxu0
        %737 = vmatprep.mubr.f32.mxu0 0.0
        %738 = vmatmul.mubr.f32.gmra.mrb[0].mxu0 %v530
        %v739 = vpop.f32.mrb[0].mxu0
        %v740 = vadd.f32 %v460, %v739
        %v741 = vpop.f32.mrb[0].mxu0
        %742 = vmatprep.mubr.f32.mxu0 0.0
        %743 = vmatmul.mubr.f32.gmra.mrb[0].mxu0 %v533
        %v744 = vpop.f32.mrb[0].mxu0
        %v745 = vadd.f32 %v460, %v744
        %v746 = vpop.f32.mrb[0].mxu0
        %747 = vmatprep.mubr.f32.mxu0 0.0
        %748 = vmatmul.mubr.f32.gmra.mrb[0].mxu0 %v536
        %v749 = vpop.f32.mrb[0].mxu0
        %v750 = vadd.f32 %v460, %v749
        %v751 = vpop.f32.mrb[0].mxu0
        %752 = vmatprep.mubr.f32.mxu0 0.0
        %753 = vmatmul.mubr.f32.gmra.mrb[0].mxu0 %v539
        %v754 = vpop.f32.mrb[0].mxu0
        %v755 = vadd.f32 %v460, %v754
        %v756 = vpop.f32.mrb[0].mxu0
        %757 = vmatprep.mubr.f32.mxu0 0.0
        %758 = vmatmul.mubr.f32.gmra.mrb[0].mxu0 %v542
        %v759 = vpop.f32.mrb[0].mxu0
        %v760 = vadd.f32 %v460, %v759
        %v761 = vpop.f32.mrb[0].mxu0
        %762 = vmatprep.mubr.f32.mxu0 0.0
        %763 = vmatmul.mubr.f32.gmra.mrb[0].mxu0 %v545
        %v764 = vpop.f32.mrb[0].mxu0
        %v765 = vadd.f32 %v460, %v764
        %v766 = vpop.f32.mrb[0].mxu0
        %767 = vmatprep.mubr.f32.mxu0 0.0
        %768 = vmatmul.mubr.f32.gmra.mrb[0].mxu0 %v548
        %v769 = vpop.f32.mrb[0].mxu0
        %v770 = vadd.f32 %v460, %v769
        %v771 = vpop.f32.mrb[0].mxu0
        %772 = vmatprep.mubr.f32.mxu0 0.0
        %773 = vmatmul.mubr.f32.gmra.mrb[0].mxu0 %v551
        %v774 = vpop.f32.mrb[0].mxu0
        %v775 = vadd.f32 %v460, %v774
        %v776 = vpop.f32.mrb[0].mxu0
        %777 = vmatprep.mubr.f32.mxu0 0.0
        %778 = vmatmul.mubr.f32.gmra.mrb[0].mxu0 %v554
        %v779 = vpop.f32.mrb[0].mxu0
        %v780 = vadd.f32 %v460, %v779
        %v781 = vpop.f32.mrb[0].mxu0
        %782 = vmatprep.mubr.f32.mxu0 0.0
        %783 = vmatmul.mubr.f32.gmra.mrb[0].mxu0 %v557
        %v784 = vpop.f32.mrb[0].mxu0
        %v785 = vadd.f32 %v460, %v784
        %v786 = vpop.f32.mrb[0].mxu0
        %787 = vdwg.mxu0
        %v788 = vmax.f32 %v630, 0.0
        %v789 = vmax.f32 %v635, 0.0
        %v790 = vmax.f32 %v640, 0.0
        %v791 = vmax.f32 %v645, 0.0
        %v792 = vmax.f32 %v650, 0.0
        %v793 = vmax.f32 %v655, 0.0
        %v794 = vmax.f32 %v660, 0.0
        %v795 = vmax.f32 %v665, 0.0
        %v796 = vmax.f32 %v670, 0.0
        %v797 = vmax.f32 %v675, 0.0
        %v798 = vmax.f32 %v680, 0.0
        %v799 = vmax.f32 %v685, 0.0
        %v800 = vmax.f32 %v690, 0.0
        %v801 = vmax.f32 %v695, 0.0
        %v802 = vmax.f32 %v700, 0.0
        %v803 = vmax.f32 %v705, 0.0
        %v804 = vmax.f32 %v710, 0.0
        %v805 = vmax.f32 %v715, 0.0
        %v806 = vmax.f32 %v720, 0.0
        %v807 = vmax.f32 %v725, 0.0
        %v808 = vmax.f32 %v730, 0.0
        %v809 = vmax.f32 %v735, 0.0
        %v810 = vmax.f32 %v740, 0.0
        %v811 = vmax.f32 %v745, 0.0
        %v812 = vmax.f32 %v750, 0.0
        %v813 = vmax.f32 %v755, 0.0
        %v814 = vmax.f32 %v760, 0.0
        %v815 = vmax.f32 %v765, 0.0
        %v816 = vmax.f32 %v770, 0.0
        %v817 = vmax.f32 %v775, 0.0
        %v818 = vmax.f32 %v780, 0.0
        %v819 = vmax.f32 %v785, 0.0
        %s820 = scalar_lea.vmem [#allocation2], 24
        %821 = vst.msk [vmem:[%s820 + $0x1] sm:$0xff] %vm462, %v788
        %822 = vst.msk [vmem:[%s820 + $0x9] sm:$0xff] %vm462, %v789
        %823 = vst.msk [vmem:[%s820 + $0x19] sm:$0xff] %vm462, %v790
        %824 = vst.msk [vmem:[%s820 + $0x21] sm:$0xff] %vm462, %v791
        %825 = vst.msk [vmem:[%s820 + $0x31] sm:$0xff] %vm462, %v792
        %826 = vst.msk [vmem:[%s820 + $0x39] sm:$0xff] %vm462, %v793
        %827 = vst.msk [vmem:[%s820 + $0x49] sm:$0xff] %vm462, %v794
        %828 = vst.msk [vmem:[%s820 + $0x51] sm:$0xff] %vm462, %v795
        %829 = vst.msk [vmem:[%s820 + $0x61] sm:$0xff] %vm462, %v796
        %830 = vst.msk [vmem:[%s820 + $0x69] sm:$0xff] %vm462, %v797
        %831 = vst.msk [vmem:[%s820 + $0x79] sm:$0xff] %vm462, %v798
        %832 = vst.msk [vmem:[%s820 + $0x81] sm:$0xff] %vm462, %v799
        %833 = vst.msk [vmem:[%s820 + $0x91] sm:$0xff] %vm462, %v800
        %834 = vst.msk [vmem:[%s820 + $0x99] sm:$0xff] %vm462, %v801
        %835 = vst.msk [vmem:[%s820 + $0xa9] sm:$0xff] %vm462, %v802
        %836 = vst.msk [vmem:[%s820 + $0xb1] sm:$0xff] %vm462, %v803
        %837 = vst.msk [vmem:[%s820 + $0xc1] sm:$0xff] %vm462, %v804
        %838 = vst.msk [vmem:[%s820 + $0xc9] sm:$0xff] %vm462, %v805
        %839 = vst.msk [vmem:[%s820 + $0xd9] sm:$0xff] %vm462, %v806
        %840 = vst.msk [vmem:[%s820 + $0xe1] sm:$0xff] %vm462, %v807
        %841 = vst.msk [vmem:[%s820 + $0xf1] sm:$0xff] %vm462, %v808
        %842 = vst.msk [vmem:[%s820 + $0xf9] sm:$0xff] %vm462, %v809
        %843 = vst.msk [vmem:[%s820 + $0x109] sm:$0xff] %vm462, %v810
        %844 = vst.msk [vmem:[%s820 + $0x111] sm:$0xff] %vm462, %v811
        %845 = vst.msk [vmem:[%s820 + $0x121] sm:$0xff] %vm462, %v812
        %846 = vst.msk [vmem:[%s820 + $0x129] sm:$0xff] %vm462, %v813
        %847 = vst.msk [vmem:[%s820 + $0x139] sm:$0xff] %vm462, %v814
        %848 = vst.msk [vmem:[%s820 + $0x141] sm:$0xff] %vm462, %v815
        %849 = vst.msk [vmem:[%s820 + $0x151] sm:$0xff] %vm462, %v816
        %850 = vst.msk [vmem:[%s820 + $0x159] sm:$0xff] %vm462, %v817
        %851 = vst.msk [vmem:[%s820 + $0x169] sm:$0xff] %vm462, %v818
        %852 = vst.msk [vmem:[%s820 + $0x171] sm:$0xff] %vm462, %v819
        %885 = vrot.lane.b32.xlu0 %v788, 124
        %v886 = vpop.permute.xlu0 %885
        %887 = vrot.lane.b32.xlu0 %v789, 124
        %v888 = vpop.permute.xlu0 %887
        %889 = vrot.lane.b32.xlu0 %v790, 124
        %v890 = vpop.permute.xlu0 %889
        %891 = vrot.lane.b32.xlu0 %v791, 124
        %v892 = vpop.permute.xlu0 %891
        %893 = vrot.lane.b32.xlu0 %v792, 124
        %v894 = vpop.permute.xlu0 %893
        %895 = vrot.lane.b32.xlu0 %v793, 124
        %v896 = vpop.permute.xlu0 %895
        %897 = vrot.lane.b32.xlu0 %v794, 124
        %v898 = vpop.permute.xlu0 %897
        %899 = vrot.lane.b32.xlu0 %v795, 124
        %v900 = vpop.permute.xlu0 %899
        %901 = vrot.lane.b32.xlu0 %v796, 124
        %v902 = vpop.permute.xlu0 %901
        %903 = vrot.lane.b32.xlu0 %v797, 124
        %v904 = vpop.permute.xlu0 %903
        %905 = vrot.lane.b32.xlu0 %v798, 124
        %v906 = vpop.permute.xlu0 %905
        %907 = vrot.lane.b32.xlu0 %v799, 124
        %v908 = vpop.permute.xlu0 %907
        %909 = vrot.lane.b32.xlu0 %v800, 124
        %v910 = vpop.permute.xlu0 %909
        %911 = vrot.lane.b32.xlu0 %v801, 124
        %v912 = vpop.permute.xlu0 %911
        %913 = vrot.lane.b32.xlu0 %v802, 124
        %v914 = vpop.permute.xlu0 %913
        %915 = vrot.lane.b32.xlu0 %v803, 124
        %v916 = vpop.permute.xlu0 %915
        %917 = vrot.lane.b32.xlu0 %v804, 124
        %v918 = vpop.permute.xlu0 %917
        %919 = vrot.lane.b32.xlu0 %v805, 124
        %v920 = vpop.permute.xlu0 %919
        %921 = vrot.lane.b32.xlu0 %v806, 124
        %v922 = vpop.permute.xlu0 %921
        %923 = vrot.lane.b32.xlu0 %v807, 124
        %v924 = vpop.permute.xlu0 %923
        %925 = vrot.lane.b32.xlu0 %v808, 124
        %v926 = vpop.permute.xlu0 %925
        %927 = vrot.lane.b32.xlu0 %v809, 124
        %v928 = vpop.permute.xlu0 %927
        %929 = vrot.lane.b32.xlu0 %v810, 124
        %v930 = vpop.permute.xlu0 %929
        %931 = vrot.lane.b32.xlu0 %v811, 124
        %v932 = vpop.permute.xlu0 %931
        %933 = vrot.lane.b32.xlu0 %v812, 124
        %v934 = vpop.permute.xlu0 %933
        %935 = vrot.lane.b32.xlu0 %v813, 124
        %v936 = vpop.permute.xlu0 %935
        %937 = vrot.lane.b32.xlu0 %v814, 124
        %v938 = vpop.permute.xlu0 %937
        %939 = vrot.lane.b32.xlu0 %v815, 124
        %v940 = vpop.permute.xlu0 %939
        %941 = vrot.lane.b32.xlu0 %v816, 124
        %v942 = vpop.permute.xlu0 %941
        %943 = vrot.lane.b32.xlu0 %v817, 124
        %v944 = vpop.permute.xlu0 %943
        %945 = vrot.lane.b32.xlu0 %v818, 124
        %v946 = vpop.permute.xlu0 %945
        %947 = vrot.lane.b32.xlu0 %v819, 124
        %v948 = vpop.permute.xlu0 %947
        %s981 = scalar_lea.vmem [#allocation3], 48
        %vm982 = vcmask 15360
        %983 = vst.msk [vmem:[%s981 + $0x2] sm:$0xff] %vm982, %v886
        %984 = vst.msk [vmem:[%s981 + $0xa] sm:$0xff] %vm982, %v888
        %985 = vst.msk [vmem:[%s981 + $0x1a] sm:$0xff] %vm982, %v890
        %986 = vst.msk [vmem:[%s981 + $0x22] sm:$0xff] %vm982, %v892
        %987 = vst.msk [vmem:[%s981 + $0x32] sm:$0xff] %vm982, %v894
        %988 = vst.msk [vmem:[%s981 + $0x3a] sm:$0xff] %vm982, %v896
        %989 = vst.msk [vmem:[%s981 + $0x4a] sm:$0xff] %vm982, %v898
        %990 = vst.msk [vmem:[%s981 + $0x52] sm:$0xff] %vm982, %v900
        %991 = vst.msk [vmem:[%s981 + $0x62] sm:$0xff] %vm982, %v902
        %992 = vst.msk [vmem:[%s981 + $0x6a] sm:$0xff] %vm982, %v904
        %993 = vst.msk [vmem:[%s981 + $0x7a] sm:$0xff] %vm982, %v906
        %994 = vst.msk [vmem:[%s981 + $0x82] sm:$0xff] %vm982, %v908
        %995 = vst.msk [vmem:[%s981 + $0x92] sm:$0xff] %vm982, %v910
        %996 = vst.msk [vmem:[%s981 + $0x9a] sm:$0xff] %vm982, %v912
        %997 = vst.msk [vmem:[%s981 + $0xaa] sm:$0xff] %vm982, %v914
        %998 = vst.msk [vmem:[%s981 + $0xb2] sm:$0xff] %vm982, %v916
        %999 = vst.msk [vmem:[%s981 + $0xc2] sm:$0xff] %vm982, %v918
        %1000 = vst.msk [vmem:[%s981 + $0xca] sm:$0xff] %vm982, %v920
        %1001 = vst.msk [vmem:[%s981 + $0xda] sm:$0xff] %vm982, %v922
        %1002 = vst.msk [vmem:[%s981 + $0xe2] sm:$0xff] %vm982, %v924
        %1003 = vst.msk [vmem:[%s981 + $0xf2] sm:$0xff] %vm982, %v926
        %1004 = vst.msk [vmem:[%s981 + $0xfa] sm:$0xff] %vm982, %v928
        %1005 = vst.msk [vmem:[%s981 + $0x10a] sm:$0xff] %vm982, %v930
        %1006 = vst.msk [vmem:[%s981 + $0x112] sm:$0xff] %vm982, %v932
        %1007 = vst.msk [vmem:[%s981 + $0x122] sm:$0xff] %vm982, %v934
        %1008 = vst.msk [vmem:[%s981 + $0x12a] sm:$0xff] %vm982, %v936
        %1009 = vst.msk [vmem:[%s981 + $0x13a] sm:$0xff] %vm982, %v938
        %1010 = vst.msk [vmem:[%s981 + $0x142] sm:$0xff] %vm982, %v940
        %1011 = vst.msk [vmem:[%s981 + $0x152] sm:$0xff] %vm982, %v942
        %1012 = vst.msk [vmem:[%s981 + $0x15a] sm:$0xff] %vm982, %v944
        %1013 = vst.msk [vmem:[%s981 + $0x16a] sm:$0xff] %vm982, %v946
        %1014 = vst.msk [vmem:[%s981 + $0x172] sm:$0xff] %vm982, %v948
        %s1015 = scalar_lea.vmem [#allocation4], 24
        %1016 = vst.msk [vmem:[%s1015 + $0x1] sm:$0xff] %vm462, %v422
        %1017 = vst.msk [vmem:[%s1015 + $0x9] sm:$0xff] %vm462, %v423
        %1018 = vst.msk [vmem:[%s1015 + $0x19] sm:$0xff] %vm462, %v424
        %1019 = vst.msk [vmem:[%s1015 + $0x21] sm:$0xff] %vm462, %v425
        %1020 = vst.msk [vmem:[%s1015 + $0x31] sm:$0xff] %vm462, %v426
        %1021 = vst.msk [vmem:[%s1015 + $0x39] sm:$0xff] %vm462, %v427
        %1022 = vst.msk [vmem:[%s1015 + $0x49] sm:$0xff] %vm462, %v428
        %1023 = vst.msk [vmem:[%s1015 + $0x51] sm:$0xff] %vm462, %v429
        %1024 = vst.msk [vmem:[%s1015 + $0x61] sm:$0xff] %vm462, %v430
        %1025 = vst.msk [vmem:[%s1015 + $0x69] sm:$0xff] %vm462, %v431
        %1026 = vst.msk [vmem:[%s1015 + $0x79] sm:$0xff] %vm462, %v432
        %1027 = vst.msk [vmem:[%s1015 + $0x81] sm:$0xff] %vm462, %v433
        %1028 = vst.msk [vmem:[%s1015 + $0x91] sm:$0xff] %vm462, %v434
        %1029 = vst.msk [vmem:[%s1015 + $0x99] sm:$0xff] %vm462, %v435
        %1030 = vst.msk [vmem:[%s1015 + $0xa9] sm:$0xff] %vm462, %v436
        %1031 = vst.msk [vmem:[%s1015 + $0xb1] sm:$0xff] %vm462, %v437
        %1032 = vst.msk [vmem:[%s1015 + $0xc1] sm:$0xff] %vm462, %v438
        %1033 = vst.msk [vmem:[%s1015 + $0xc9] sm:$0xff] %vm462, %v439
        %1034 = vst.msk [vmem:[%s1015 + $0xd9] sm:$0xff] %vm462, %v440
        %1035 = vst.msk [vmem:[%s1015 + $0xe1] sm:$0xff] %vm462, %v441
        %1036 = vst.msk [vmem:[%s1015 + $0xf1] sm:$0xff] %vm462, %v442
        %1037 = vst.msk [vmem:[%s1015 + $0xf9] sm:$0xff] %vm462, %v443
        %1038 = vst.msk [vmem:[%s1015 + $0x109] sm:$0xff] %vm462, %v444
        %1039 = vst.msk [vmem:[%s1015 + $0x111] sm:$0xff] %vm462, %v445
        %1040 = vst.msk [vmem:[%s1015 + $0x121] sm:$0xff] %vm462, %v446
        %1041 = vst.msk [vmem:[%s1015 + $0x129] sm:$0xff] %vm462, %v447
        %1042 = vst.msk [vmem:[%s1015 + $0x139] sm:$0xff] %vm462, %v448
        %1043 = vst.msk [vmem:[%s1015 + $0x141] sm:$0xff] %vm462, %v449
        %1044 = vst.msk [vmem:[%s1015 + $0x151] sm:$0xff] %vm462, %v450
        %1045 = vst.msk [vmem:[%s1015 + $0x159] sm:$0xff] %vm462, %v451
        %1046 = vst.msk [vmem:[%s1015 + $0x169] sm:$0xff] %vm462, %v452
        %1047 = vst.msk [vmem:[%s1015 + $0x171] sm:$0xff] %vm462, %v453
        %1048 = vst.msk [vmem:[#allocation5] sm:$0xff] %vm462, %v422
        %1049 = vst.msk [vmem:[#allocation5 + $0x8] sm:$0xff] %vm462, %v423
        %1050 = vst.msk [vmem:[#allocation5 + $0x10] sm:$0xff] %vm462, %v424
        %1051 = vst.msk [vmem:[#allocation5 + $0x18] sm:$0xff] %vm462, %v425
        %1052 = vst.msk [vmem:[#allocation5 + $0x20] sm:$0xff] %vm462, %v426
        %1053 = vst.msk [vmem:[#allocation5 + $0x28] sm:$0xff] %vm462, %v427
        %1054 = vst.msk [vmem:[#allocation5 + $0x30] sm:$0xff] %vm462, %v428
        %1055 = vst.msk [vmem:[#allocation5 + $0x38] sm:$0xff] %vm462, %v429
        %1056 = vst.msk [vmem:[#allocation5 + $0x40] sm:$0xff] %vm462, %v430
        %1057 = vst.msk [vmem:[#allocation5 + $0x48] sm:$0xff] %vm462, %v431
        %1058 = vst.msk [vmem:[#allocation5 + $0x50] sm:$0xff] %vm462, %v432
        %1059 = vst.msk [vmem:[#allocation5 + $0x58] sm:$0xff] %vm462, %v433
        %1060 = vst.msk [vmem:[#allocation5 + $0x60] sm:$0xff] %vm462, %v434
        %1061 = vst.msk [vmem:[#allocation5 + $0x68] sm:$0xff] %vm462, %v435
        %1062 = vst.msk [vmem:[#allocation5 + $0x70] sm:$0xff] %vm462, %v436
        %1063 = vst.msk [vmem:[#allocation5 + $0x78] sm:$0xff] %vm462, %v437
        %1064 = vst.msk [vmem:[#allocation5 + $0x80] sm:$0xff] %vm462, %v438
        %1065 = vst.msk [vmem:[#allocation5 + $0x88] sm:$0xff] %vm462, %v439
        %1066 = vst.msk [vmem:[#allocation5 + $0x90] sm:$0xff] %vm462, %v440
        %1067 = vst.msk [vmem:[#allocation5 + $0x98] sm:$0xff] %vm462, %v441
        %1068 = vst.msk [vmem:[#allocation5 + $0xa0] sm:$0xff] %vm462, %v442
        %1069 = vst.msk [vmem:[#allocation5 + $0xa8] sm:$0xff] %vm462, %v443
        %1070 = vst.msk [vmem:[#allocation5 + $0xb0] sm:$0xff] %vm462, %v444
        %1071 = vst.msk [vmem:[#allocation5 + $0xb8] sm:$0xff] %vm462, %v445
        %1072 = vst.msk [vmem:[#allocation5 + $0xc0] sm:$0xff] %vm462, %v446
        %1073 = vst.msk [vmem:[#allocation5 + $0xc8] sm:$0xff] %vm462, %v447
        %1074 = vst.msk [vmem:[#allocation5 + $0xd0] sm:$0xff] %vm462, %v448
        %1075 = vst.msk [vmem:[#allocation5 + $0xd8] sm:$0xff] %vm462, %v449
        %1076 = vst.msk [vmem:[#allocation5 + $0xe0] sm:$0xff] %vm462, %v450
        %1077 = vst.msk [vmem:[#allocation5 + $0xe8] sm:$0xff] %vm462, %v451
        %1078 = vst.msk [vmem:[#allocation5 + $0xf0] sm:$0xff] %vm462, %v452
        %1079 = vst.msk [vmem:[#allocation5 + $0xf8] sm:$0xff] %vm462, %v453
        %v1080 = vld [vmem:[#allocation2] sm:$0xff]
        %v1081 = vld [vmem:[#allocation2 + $0x8] sm:$0xff]
        %v1082 = vld [vmem:[#allocation2 + $0x18] sm:$0xff]
        %v1083 = vld [vmem:[#allocation2 + $0x20] sm:$0xff]
        %v1084 = vld [vmem:[#allocation2 + $0x30] sm:$0xff]
        %v1085 = vld [vmem:[#allocation2 + $0x38] sm:$0xff]
        %v1086 = vld [vmem:[#allocation2 + $0x48] sm:$0xff]
        %v1087 = vld [vmem:[#allocation2 + $0x50] sm:$0xff]
        %v1088 = vld [vmem:[#allocation2 + $0x60] sm:$0xff]
        %v1089 = vld [vmem:[#allocation2 + $0x68] sm:$0xff]
        %v1090 = vld [vmem:[#allocation2 + $0x78] sm:$0xff]
        %v1091 = vld [vmem:[#allocation2 + $0x80] sm:$0xff]
        %v1092 = vld [vmem:[#allocation2 + $0x90] sm:$0xff]
        %v1093 = vld [vmem:[#allocation2 + $0x98] sm:$0xff]
        %v1094 = vld [vmem:[#allocation2 + $0xa8] sm:$0xff]
        %v1095 = vld [vmem:[#allocation2 + $0xb0] sm:$0xff]
        %v1096 = vld [vmem:[#allocation2 + $0xc0] sm:$0xff]
        %v1097 = vld [vmem:[#allocation2 + $0xc8] sm:$0xff]
        %v1098 = vld [vmem:[#allocation2 + $0xd8] sm:$0xff]
        %v1099 = vld [vmem:[#allocation2 + $0xe0] sm:$0xff]
        %v1100 = vld [vmem:[#allocation2 + $0xf0] sm:$0xff]
        %v1101 = vld [vmem:[#allocation2 + $0xf8] sm:$0xff]
        %v1102 = vld [vmem:[#allocation2 + $0x108] sm:$0xff]
        %v1103 = vld [vmem:[#allocation2 + $0x110] sm:$0xff]
        %v1104 = vld [vmem:[#allocation2 + $0x120] sm:$0xff]
        %v1105 = vld [vmem:[#allocation2 + $0x128] sm:$0xff]
        %v1106 = vld [vmem:[#allocation2 + $0x138] sm:$0xff]
        %v1107 = vld [vmem:[#allocation2 + $0x140] sm:$0xff]
        %v1108 = vld [vmem:[#allocation2 + $0x150] sm:$0xff]
        %v1109 = vld [vmem:[#allocation2 + $0x158] sm:$0xff]
        %v1110 = vld [vmem:[#allocation2 + $0x168] sm:$0xff]
        %v1111 = vld [vmem:[#allocation2 + $0x170] sm:$0xff]
        %1144 = vrot.lane.b32.xlu0 %v1080, 4
        %v1145 = vpop.permute.xlu0 %1144
        %1146 = vrot.lane.b32.xlu0 %v1081, 4
        %v1147 = vpop.permute.xlu0 %1146
        %1148 = vrot.lane.b32.xlu0 %v1082, 4
        %v1149 = vpop.permute.xlu0 %1148
        %1150 = vrot.lane.b32.xlu0 %v1083, 4
        %v1151 = vpop.permute.xlu0 %1150
        %1152 = vrot.lane.b32.xlu0 %v1084, 4
        %v1153 = vpop.permute.xlu0 %1152
        %1154 = vrot.lane.b32.xlu0 %v1085, 4
        %v1155 = vpop.permute.xlu0 %1154
        %1156 = vrot.lane.b32.xlu0 %v1086, 4
        %v1157 = vpop.permute.xlu0 %1156
        %1158 = vrot.lane.b32.xlu0 %v1087, 4
        %v1159 = vpop.permute.xlu0 %1158
        %1160 = vrot.lane.b32.xlu0 %v1088, 4
        %v1161 = vpop.permute.xlu0 %1160
        %1162 = vrot.lane.b32.xlu0 %v1089, 4
        %v1163 = vpop.permute.xlu0 %1162
        %1164 = vrot.lane.b32.xlu0 %v1090, 4
        %v1165 = vpop.permute.xlu0 %1164
        %1166 = vrot.lane.b32.xlu0 %v1091, 4
        %v1167 = vpop.permute.xlu0 %1166
        %1168 = vrot.lane.b32.xlu0 %v1092, 4
        %v1169 = vpop.permute.xlu0 %1168
        %1170 = vrot.lane.b32.xlu0 %v1093, 4
        %v1171 = vpop.permute.xlu0 %1170
        %1172 = vrot.lane.b32.xlu0 %v1094, 4
        %v1173 = vpop.permute.xlu0 %1172
        %1174 = vrot.lane.b32.xlu0 %v1095, 4
        %v1175 = vpop.permute.xlu0 %1174
        %1176 = vrot.lane.b32.xlu0 %v1096, 4
        %v1177 = vpop.permute.xlu0 %1176
        %1178 = vrot.lane.b32.xlu0 %v1097, 4
        %v1179 = vpop.permute.xlu0 %1178
        %1180 = vrot.lane.b32.xlu0 %v1098, 4
        %v1181 = vpop.permute.xlu0 %1180
        %1182 = vrot.lane.b32.xlu0 %v1099, 4
        %v1183 = vpop.permute.xlu0 %1182
        %1184 = vrot.lane.b32.xlu0 %v1100, 4
        %v1185 = vpop.permute.xlu0 %1184
        %1186 = vrot.lane.b32.xlu0 %v1101, 4
        %v1187 = vpop.permute.xlu0 %1186
        %1188 = vrot.lane.b32.xlu0 %v1102, 4
        %v1189 = vpop.permute.xlu0 %1188
        %1190 = vrot.lane.b32.xlu0 %v1103, 4
        %v1191 = vpop.permute.xlu0 %1190
        %1192 = vrot.lane.b32.xlu0 %v1104, 4
        %v1193 = vpop.permute.xlu0 %1192
        %1194 = vrot.lane.b32.xlu0 %v1105, 4
        %v1195 = vpop.permute.xlu0 %1194
        %1196 = vrot.lane.b32.xlu0 %v1106, 4
        %v1197 = vpop.permute.xlu0 %1196
        %1198 = vrot.lane.b32.xlu0 %v1107, 4
        %v1199 = vpop.permute.xlu0 %1198
        %1200 = vrot.lane.b32.xlu0 %v1108, 4
        %v1201 = vpop.permute.xlu0 %1200
        %1202 = vrot.lane.b32.xlu0 %v1109, 4
        %v1203 = vpop.permute.xlu0 %1202
        %1204 = vrot.lane.b32.xlu0 %v1110, 4
        %v1205 = vpop.permute.xlu0 %1204
        %1206 = vrot.lane.b32.xlu0 %v1111, 4
        %v1207 = vpop.permute.xlu0 %1206
        %vm1240 = vcmask 64544
        %1241 = vst.msk [vmem:[#allocation5] sm:$0xff] %vm1240, %v1145
        %1242 = vst.msk [vmem:[#allocation5 + $0x8] sm:$0xff] %vm1240, %v1147
        %1243 = vst.msk [vmem:[#allocation5 + $0x10] sm:$0xff] %vm1240, %v1149
        %1244 = vst.msk [vmem:[#allocation5 + $0x18] sm:$0xff] %vm1240, %v1151
        %1245 = vst.msk [vmem:[#allocation5 + $0x20] sm:$0xff] %vm1240, %v1153
        %1246 = vst.msk [vmem:[#allocation5 + $0x28] sm:$0xff] %vm1240, %v1155
        %1247 = vst.msk [vmem:[#allocation5 + $0x30] sm:$0xff] %vm1240, %v1157
        %1248 = vst.msk [vmem:[#allocation5 + $0x38] sm:$0xff] %vm1240, %v1159
        %1249 = vst.msk [vmem:[#allocation5 + $0x40] sm:$0xff] %vm1240, %v1161
        %1250 = vst.msk [vmem:[#allocation5 + $0x48] sm:$0xff] %vm1240, %v1163
        %1251 = vst.msk [vmem:[#allocation5 + $0x50] sm:$0xff] %vm1240, %v1165
        %1252 = vst.msk [vmem:[#allocation5 + $0x58] sm:$0xff] %vm1240, %v1167
        %1253 = vst.msk [vmem:[#allocation5 + $0x60] sm:$0xff] %vm1240, %v1169
        %1254 = vst.msk [vmem:[#allocation5 + $0x68] sm:$0xff] %vm1240, %v1171
        %1255 = vst.msk [vmem:[#allocation5 + $0x70] sm:$0xff] %vm1240, %v1173
        %1256 = vst.msk [vmem:[#allocation5 + $0x78] sm:$0xff] %vm1240, %v1175
        %1257 = vst.msk [vmem:[#allocation5 + $0x80] sm:$0xff] %vm1240, %v1177
        %1258 = vst.msk [vmem:[#allocation5 + $0x88] sm:$0xff] %vm1240, %v1179
        %1259 = vst.msk [vmem:[#allocation5 + $0x90] sm:$0xff] %vm1240, %v1181
        %1260 = vst.msk [vmem:[#allocation5 + $0x98] sm:$0xff] %vm1240, %v1183
        %1261 = vst.msk [vmem:[#allocation5 + $0xa0] sm:$0xff] %vm1240, %v1185
        %1262 = vst.msk [vmem:[#allocation5 + $0xa8] sm:$0xff] %vm1240, %v1187
        %1263 = vst.msk [vmem:[#allocation5 + $0xb0] sm:$0xff] %vm1240, %v1189
        %1264 = vst.msk [vmem:[#allocation5 + $0xb8] sm:$0xff] %vm1240, %v1191
        %1265 = vst.msk [vmem:[#allocation5 + $0xc0] sm:$0xff] %vm1240, %v1193
        %1266 = vst.msk [vmem:[#allocation5 + $0xc8] sm:$0xff] %vm1240, %v1195
        %1267 = vst.msk [vmem:[#allocation5 + $0xd0] sm:$0xff] %vm1240, %v1197
        %1268 = vst.msk [vmem:[#allocation5 + $0xd8] sm:$0xff] %vm1240, %v1199
        %1269 = vst.msk [vmem:[#allocation5 + $0xe0] sm:$0xff] %vm1240, %v1201
        %1270 = vst.msk [vmem:[#allocation5 + $0xe8] sm:$0xff] %vm1240, %v1203
        %1271 = vst.msk [vmem:[#allocation5 + $0xf0] sm:$0xff] %vm1240, %v1205
        %1272 = vst.msk [vmem:[#allocation5 + $0xf8] sm:$0xff] %vm1240, %v1207
        %v1273 = vld [vmem:[#allocation2 + $0x1] sm:$0xff]
        %v1274 = vld [vmem:[#allocation2 + $0x9] sm:$0xff]
        %v1275 = vld [vmem:[#allocation2 + $0x19] sm:$0xff]
        %v1276 = vld [vmem:[#allocation2 + $0x21] sm:$0xff]
        %v1277 = vld [vmem:[#allocation2 + $0x31] sm:$0xff]
        %v1278 = vld [vmem:[#allocation2 + $0x39] sm:$0xff]
        %v1279 = vld [vmem:[#allocation2 + $0x49] sm:$0xff]
        %v1280 = vld [vmem:[#allocation2 + $0x51] sm:$0xff]
        %v1281 = vld [vmem:[#allocation2 + $0x61] sm:$0xff]
        %v1282 = vld [vmem:[#allocation2 + $0x69] sm:$0xff]
        %v1283 = vld [vmem:[#allocation2 + $0x79] sm:$0xff]
        %v1284 = vld [vmem:[#allocation2 + $0x81] sm:$0xff]
        %v1285 = vld [vmem:[#allocation2 + $0x91] sm:$0xff]
        %v1286 = vld [vmem:[#allocation2 + $0x99] sm:$0xff]
        %v1287 = vld [vmem:[#allocation2 + $0xa9] sm:$0xff]
        %v1288 = vld [vmem:[#allocation2 + $0xb1] sm:$0xff]
        %v1289 = vld [vmem:[#allocation2 + $0xc1] sm:$0xff]
        %v1290 = vld [vmem:[#allocation2 + $0xc9] sm:$0xff]
        %v1291 = vld [vmem:[#allocation2 + $0xd9] sm:$0xff]
        %v1292 = vld [vmem:[#allocation2 + $0xe1] sm:$0xff]
        %v1293 = vld [vmem:[#allocation2 + $0xf1] sm:$0xff]
        %v1294 = vld [vmem:[#allocation2 + $0xf9] sm:$0xff]
        %v1295 = vld [vmem:[#allocation2 + $0x109] sm:$0xff]
        %v1296 = vld [vmem:[#allocation2 + $0x111] sm:$0xff]
        %v1297 = vld [vmem:[#allocation2 + $0x121] sm:$0xff]
        %v1298 = vld [vmem:[#allocation2 + $0x129] sm:$0xff]
        %v1299 = vld [vmem:[#allocation2 + $0x139] sm:$0xff]
        %v1300 = vld [vmem:[#allocation2 + $0x141] sm:$0xff]
        %v1301 = vld [vmem:[#allocation2 + $0x151] sm:$0xff]
        %v1302 = vld [vmem:[#allocation2 + $0x159] sm:$0xff]
        %v1303 = vld [vmem:[#allocation2 + $0x169] sm:$0xff]
        %v1304 = vld [vmem:[#allocation2 + $0x171] sm:$0xff]
        %1337 = vrot.lane.b32.xlu0 %v1273, 8
        %v1338 = vpop.permute.xlu0 %1337
        %1339 = vrot.lane.b32.xlu0 %v1274, 8
        %v1340 = vpop.permute.xlu0 %1339
        %1341 = vrot.lane.b32.xlu0 %v1275, 8
        %v1342 = vpop.permute.xlu0 %1341
        %1343 = vrot.lane.b32.xlu0 %v1276, 8
        %v1344 = vpop.permute.xlu0 %1343
        %1345 = vrot.lane.b32.xlu0 %v1277, 8
        %v1346 = vpop.permute.xlu0 %1345
        %1347 = vrot.lane.b32.xlu0 %v1278, 8
        %v1348 = vpop.permute.xlu0 %1347
        %1349 = vrot.lane.b32.xlu0 %v1279, 8
        %v1350 = vpop.permute.xlu0 %1349
        %1351 = vrot.lane.b32.xlu0 %v1280, 8
        %v1352 = vpop.permute.xlu0 %1351
        %1353 = vrot.lane.b32.xlu0 %v1281, 8
        %v1354 = vpop.permute.xlu0 %1353
        %1355 = vrot.lane.b32.xlu0 %v1282, 8
        %v1356 = vpop.permute.xlu0 %1355
        %1357 = vrot.lane.b32.xlu0 %v1283, 8
        %v1358 = vpop.permute.xlu0 %1357
        %1359 = vrot.lane.b32.xlu0 %v1284, 8
        %v1360 = vpop.permute.xlu0 %1359
        %1361 = vrot.lane.b32.xlu0 %v1285, 8
        %v1362 = vpop.permute.xlu0 %1361
        %1363 = vrot.lane.b32.xlu0 %v1286, 8
        %v1364 = vpop.permute.xlu0 %1363
        %1365 = vrot.lane.b32.xlu0 %v1287, 8
        %v1366 = vpop.permute.xlu0 %1365
        %1367 = vrot.lane.b32.xlu0 %v1288, 8
        %v1368 = vpop.permute.xlu0 %1367
        %1369 = vrot.lane.b32.xlu0 %v1289, 8
        %v1370 = vpop.permute.xlu0 %1369
        %1371 = vrot.lane.b32.xlu0 %v1290, 8
        %v1372 = vpop.permute.xlu0 %1371
        %1373 = vrot.lane.b32.xlu0 %v1291, 8
        %v1374 = vpop.permute.xlu0 %1373
        %1375 = vrot.lane.b32.xlu0 %v1292, 8
        %v1376 = vpop.permute.xlu0 %1375
        %1377 = vrot.lane.b32.xlu0 %v1293, 8
        %v1378 = vpop.permute.xlu0 %1377
        %1379 = vrot.lane.b32.xlu0 %v1294, 8
        %v1380 = vpop.permute.xlu0 %1379
        %1381 = vrot.lane.b32.xlu0 %v1295, 8
        %v1382 = vpop.permute.xlu0 %1381
        %1383 = vrot.lane.b32.xlu0 %v1296, 8
        %v1384 = vpop.permute.xlu0 %1383
        %1385 = vrot.lane.b32.xlu0 %v1297, 8
        %v1386 = vpop.permute.xlu0 %1385
        %1387 = vrot.lane.b32.xlu0 %v1298, 8
        %v1388 = vpop.permute.xlu0 %1387
        %1389 = vrot.lane.b32.xlu0 %v1299, 8
        %v1390 = vpop.permute.xlu0 %1389
        %1391 = vrot.lane.b32.xlu0 %v1300, 8
        %v1392 = vpop.permute.xlu0 %1391
        %1393 = vrot.lane.b32.xlu0 %v1301, 8
        %v1394 = vpop.permute.xlu0 %1393
        %1395 = vrot.lane.b32.xlu0 %v1302, 8
        %v1396 = vpop.permute.xlu0 %1395
        %1397 = vrot.lane.b32.xlu0 %v1303, 8
        %v1398 = vpop.permute.xlu0 %1397
        %1399 = vrot.lane.b32.xlu0 %v1304, 8
        %v1400 = vpop.permute.xlu0 %1399
        %vm1433 = vcmask 97344
        %1434 = vst.msk [vmem:[#allocation5] sm:$0xff] %vm1433, %v1338
        %1435 = vst.msk [vmem:[#allocation5 + $0x8] sm:$0xff] %vm1433, %v1340
        %1436 = vst.msk [vmem:[#allocation5 + $0x10] sm:$0xff] %vm1433, %v1342
        %1437 = vst.msk [vmem:[#allocation5 + $0x18] sm:$0xff] %vm1433, %v1344
        %1438 = vst.msk [vmem:[#allocation5 + $0x20] sm:$0xff] %vm1433, %v1346
        %1439 = vst.msk [vmem:[#allocation5 + $0x28] sm:$0xff] %vm1433, %v1348
        %1440 = vst.msk [vmem:[#allocation5 + $0x30] sm:$0xff] %vm1433, %v1350
        %1441 = vst.msk [vmem:[#allocation5 + $0x38] sm:$0xff] %vm1433, %v1352
        %1442 = vst.msk [vmem:[#allocation5 + $0x40] sm:$0xff] %vm1433, %v1354
        %1443 = vst.msk [vmem:[#allocation5 + $0x48] sm:$0xff] %vm1433, %v1356
        %1444 = vst.msk [vmem:[#allocation5 + $0x50] sm:$0xff] %vm1433, %v1358
        %1445 = vst.msk [vmem:[#allocation5 + $0x58] sm:$0xff] %vm1433, %v1360
        %1446 = vst.msk [vmem:[#allocation5 + $0x60] sm:$0xff] %vm1433, %v1362
        %1447 = vst.msk [vmem:[#allocation5 + $0x68] sm:$0xff] %vm1433, %v1364
        %1448 = vst.msk [vmem:[#allocation5 + $0x70] sm:$0xff] %vm1433, %v1366
        %1449 = vst.msk [vmem:[#allocation5 + $0x78] sm:$0xff] %vm1433, %v1368
        %1450 = vst.msk [vmem:[#allocation5 + $0x80] sm:$0xff] %vm1433, %v1370
        %1451 = vst.msk [vmem:[#allocation5 + $0x88] sm:$0xff] %vm1433, %v1372
        %1452 = vst.msk [vmem:[#allocation5 + $0x90] sm:$0xff] %vm1433, %v1374
        %1453 = vst.msk [vmem:[#allocation5 + $0x98] sm:$0xff] %vm1433, %v1376
        %1454 = vst.msk [vmem:[#allocation5 + $0xa0] sm:$0xff] %vm1433, %v1378
        %1455 = vst.msk [vmem:[#allocation5 + $0xa8] sm:$0xff] %vm1433, %v1380
        %1456 = vst.msk [vmem:[#allocation5 + $0xb0] sm:$0xff] %vm1433, %v1382
        %1457 = vst.msk [vmem:[#allocation5 + $0xb8] sm:$0xff] %vm1433, %v1384
        %1458 = vst.msk [vmem:[#allocation5 + $0xc0] sm:$0xff] %vm1433, %v1386
        %1459 = vst.msk [vmem:[#allocation5 + $0xc8] sm:$0xff] %vm1433, %v1388
        %1460 = vst.msk [vmem:[#allocation5 + $0xd0] sm:$0xff] %vm1433, %v1390
        %1461 = vst.msk [vmem:[#allocation5 + $0xd8] sm:$0xff] %vm1433, %v1392
        %1462 = vst.msk [vmem:[#allocation5 + $0xe0] sm:$0xff] %vm1433, %v1394
        %1463 = vst.msk [vmem:[#allocation5 + $0xe8] sm:$0xff] %vm1433, %v1396
        %1464 = vst.msk [vmem:[#allocation5 + $0xf0] sm:$0xff] %vm1433, %v1398
        %1465 = vst.msk [vmem:[#allocation5 + $0xf8] sm:$0xff] %vm1433, %v1400
        %v1466 = vld [vmem:[#allocation2 + $0x2] sm:$0xff]
        %v1467 = vld [vmem:[#allocation2 + $0xa] sm:$0xff]
        %v1468 = vld [vmem:[#allocation2 + $0x1a] sm:$0xff]
        %v1469 = vld [vmem:[#allocation2 + $0x22] sm:$0xff]
        %v1470 = vld [vmem:[#allocation2 + $0x32] sm:$0xff]
        %v1471 = vld [vmem:[#allocation2 + $0x3a] sm:$0xff]
        %v1472 = vld [vmem:[#allocation2 + $0x4a] sm:$0xff]
        %v1473 = vld [vmem:[#allocation2 + $0x52] sm:$0xff]
        %v1474 = vld [vmem:[#allocation2 + $0x62] sm:$0xff]
        %v1475 = vld [vmem:[#allocation2 + $0x6a] sm:$0xff]
        %v1476 = vld [vmem:[#allocation2 + $0x7a] sm:$0xff]
        %v1477 = vld [vmem:[#allocation2 + $0x82] sm:$0xff]
        %v1478 = vld [vmem:[#allocation2 + $0x92] sm:$0xff]
        %v1479 = vld [vmem:[#allocation2 + $0x9a] sm:$0xff]
        %v1480 = vld [vmem:[#allocation2 + $0xaa] sm:$0xff]
        %v1481 = vld [vmem:[#allocation2 + $0xb2] sm:$0xff]
        %v1482 = vld [vmem:[#allocation2 + $0xc2] sm:$0xff]
        %v1483 = vld [vmem:[#allocation2 + $0xca] sm:$0xff]
        %v1484 = vld [vmem:[#allocation2 + $0xda] sm:$0xff]
        %v1485 = vld [vmem:[#allocation2 + $0xe2] sm:$0xff]
        %v1486 = vld [vmem:[#allocation2 + $0xf2] sm:$0xff]
        %v1487 = vld [vmem:[#allocation2 + $0xfa] sm:$0xff]
        %v1488 = vld [vmem:[#allocation2 + $0x10a] sm:$0xff]
        %v1489 = vld [vmem:[#allocation2 + $0x112] sm:$0xff]
        %v1490 = vld [vmem:[#allocation2 + $0x122] sm:$0xff]
        %v1491 = vld [vmem:[#allocation2 + $0x12a] sm:$0xff]
        %v1492 = vld [vmem:[#allocation2 + $0x13a] sm:$0xff]
        %v1493 = vld [vmem:[#allocation2 + $0x142] sm:$0xff]
        %v1494 = vld [vmem:[#allocation2 + $0x152] sm:$0xff]
        %v1495 = vld [vmem:[#allocation2 + $0x15a] sm:$0xff]
        %v1496 = vld [vmem:[#allocation2 + $0x16a] sm:$0xff]
        %v1497 = vld [vmem:[#allocation2 + $0x172] sm:$0xff]
        %1530 = vrot.lane.b32.xlu0 %v1466, 12
        %v1531 = vpop.permute.xlu0 %1530
        %1532 = vrot.lane.b32.xlu0 %v1467, 12
        %v1533 = vpop.permute.xlu0 %1532
        %1534 = vrot.lane.b32.xlu0 %v1468, 12
        %v1535 = vpop.permute.xlu0 %1534
        %1536 = vrot.lane.b32.xlu0 %v1469, 12
        %v1537 = vpop.permute.xlu0 %1536
        %1538 = vrot.lane.b32.xlu0 %v1470, 12
        %v1539 = vpop.permute.xlu0 %1538
        %1540 = vrot.lane.b32.xlu0 %v1471, 12
        %v1541 = vpop.permute.xlu0 %1540
        %1542 = vrot.lane.b32.xlu0 %v1472, 12
        %v1543 = vpop.permute.xlu0 %1542
        %1544 = vrot.lane.b32.xlu0 %v1473, 12
        %v1545 = vpop.permute.xlu0 %1544
        %1546 = vrot.lane.b32.xlu0 %v1474, 12
        %v1547 = vpop.permute.xlu0 %1546
        %1548 = vrot.lane.b32.xlu0 %v1475, 12
        %v1549 = vpop.permute.xlu0 %1548
        %1550 = vrot.lane.b32.xlu0 %v1476, 12
        %v1551 = vpop.permute.xlu0 %1550
        %1552 = vrot.lane.b32.xlu0 %v1477, 12
        %v1553 = vpop.permute.xlu0 %1552
        %1554 = vrot.lane.b32.xlu0 %v1478, 12
        %v1555 = vpop.permute.xlu0 %1554
        %1556 = vrot.lane.b32.xlu0 %v1479, 12
        %v1557 = vpop.permute.xlu0 %1556
        %1558 = vrot.lane.b32.xlu0 %v1480, 12
        %v1559 = vpop.permute.xlu0 %1558
        %1560 = vrot.lane.b32.xlu0 %v1481, 12
        %v1561 = vpop.permute.xlu0 %1560
        %1562 = vrot.lane.b32.xlu0 %v1482, 12
        %v1563 = vpop.permute.xlu0 %1562
        %1564 = vrot.lane.b32.xlu0 %v1483, 12
        %v1565 = vpop.permute.xlu0 %1564
        %1566 = vrot.lane.b32.xlu0 %v1484, 12
        %v1567 = vpop.permute.xlu0 %1566
        %1568 = vrot.lane.b32.xlu0 %v1485, 12
        %v1569 = vpop.permute.xlu0 %1568
        %1570 = vrot.lane.b32.xlu0 %v1486, 12
        %v1571 = vpop.permute.xlu0 %1570
        %1572 = vrot.lane.b32.xlu0 %v1487, 12
        %v1573 = vpop.permute.xlu0 %1572
        %1574 = vrot.lane.b32.xlu0 %v1488, 12
        %v1575 = vpop.permute.xlu0 %1574
        %1576 = vrot.lane.b32.xlu0 %v1489, 12
        %v1577 = vpop.permute.xlu0 %1576
        %1578 = vrot.lane.b32.xlu0 %v1490, 12
        %v1579 = vpop.permute.xlu0 %1578
        %1580 = vrot.lane.b32.xlu0 %v1491, 12
        %v1581 = vpop.permute.xlu0 %1580
        %1582 = vrot.lane.b32.xlu0 %v1492, 12
        %v1583 = vpop.permute.xlu0 %1582
        %1584 = vrot.lane.b32.xlu0 %v1493, 12
        %v1585 = vpop.permute.xlu0 %1584
        %1586 = vrot.lane.b32.xlu0 %v1494, 12
        %v1587 = vpop.permute.xlu0 %1586
        %1588 = vrot.lane.b32.xlu0 %v1495, 12
        %v1589 = vpop.permute.xlu0 %1588
        %1590 = vrot.lane.b32.xlu0 %v1496, 12
        %v1591 = vpop.permute.xlu0 %1590
        %1592 = vrot.lane.b32.xlu0 %v1497, 12
        %v1593 = vpop.permute.xlu0 %1592
        %vm1626 = vcmask 130144
        %1627 = vst.msk [vmem:[#allocation5] sm:$0xff] %vm1626, %v1531
        %1628 = vst.msk [vmem:[#allocation5 + $0x8] sm:$0xff] %vm1626, %v1533
        %1629 = vst.msk [vmem:[#allocation5 + $0x10] sm:$0xff] %vm1626, %v1535
        %1630 = vst.msk [vmem:[#allocation5 + $0x18] sm:$0xff] %vm1626, %v1537
        %1631 = vst.msk [vmem:[#allocation5 + $0x20] sm:$0xff] %vm1626, %v1539
        %1632 = vst.msk [vmem:[#allocation5 + $0x28] sm:$0xff] %vm1626, %v1541
        %1633 = vst.msk [vmem:[#allocation5 + $0x30] sm:$0xff] %vm1626, %v1543
        %1634 = vst.msk [vmem:[#allocation5 + $0x38] sm:$0xff] %vm1626, %v1545
        %1635 = vst.msk [vmem:[#allocation5 + $0x40] sm:$0xff] %vm1626, %v1547
        %1636 = vst.msk [vmem:[#allocation5 + $0x48] sm:$0xff] %vm1626, %v1549
        %1637 = vst.msk [vmem:[#allocation5 + $0x50] sm:$0xff] %vm1626, %v1551
        %1638 = vst.msk [vmem:[#allocation5 + $0x58] sm:$0xff] %vm1626, %v1553
        %1639 = vst.msk [vmem:[#allocation5 + $0x60] sm:$0xff] %vm1626, %v1555
        %1640 = vst.msk [vmem:[#allocation5 + $0x68] sm:$0xff] %vm1626, %v1557
        %1641 = vst.msk [vmem:[#allocation5 + $0x70] sm:$0xff] %vm1626, %v1559
        %1642 = vst.msk [vmem:[#allocation5 + $0x78] sm:$0xff] %vm1626, %v1561
        %1643 = vst.msk [vmem:[#allocation5 + $0x80] sm:$0xff] %vm1626, %v1563
        %1644 = vst.msk [vmem:[#allocation5 + $0x88] sm:$0xff] %vm1626, %v1565
        %1645 = vst.msk [vmem:[#allocation5 + $0x90] sm:$0xff] %vm1626, %v1567
        %1646 = vst.msk [vmem:[#allocation5 + $0x98] sm:$0xff] %vm1626, %v1569
        %1647 = vst.msk [vmem:[#allocation5 + $0xa0] sm:$0xff] %vm1626, %v1571
        %1648 = vst.msk [vmem:[#allocation5 + $0xa8] sm:$0xff] %vm1626, %v1573
        %1649 = vst.msk [vmem:[#allocation5 + $0xb0] sm:$0xff] %vm1626, %v1575
        %1650 = vst.msk [vmem:[#allocation5 + $0xb8] sm:$0xff] %vm1626, %v1577
        %1651 = vst.msk [vmem:[#allocation5 + $0xc0] sm:$0xff] %vm1626, %v1579
        %1652 = vst.msk [vmem:[#allocation5 + $0xc8] sm:$0xff] %vm1626, %v1581
        %1653 = vst.msk [vmem:[#allocation5 + $0xd0] sm:$0xff] %vm1626, %v1583
        %1654 = vst.msk [vmem:[#allocation5 + $0xd8] sm:$0xff] %vm1626, %v1585
        %1655 = vst.msk [vmem:[#allocation5 + $0xe0] sm:$0xff] %vm1626, %v1587
        %1656 = vst.msk [vmem:[#allocation5 + $0xe8] sm:$0xff] %vm1626, %v1589
        %1657 = vst.msk [vmem:[#allocation5 + $0xf0] sm:$0xff] %vm1626, %v1591
        %1658 = vst.msk [vmem:[#allocation5 + $0xf8] sm:$0xff] %vm1626, %v1593
        %v1659 = vld [vmem:[%s820] sm:$0xff]
        %v1660 = vld [vmem:[%s820 + $0x8] sm:$0xff]
        %v1661 = vld [vmem:[%s820 + $0x18] sm:$0xff]
        %v1662 = vld [vmem:[%s820 + $0x20] sm:$0xff]
        %v1663 = vld [vmem:[%s820 + $0x30] sm:$0xff]
        %v1664 = vld [vmem:[%s820 + $0x38] sm:$0xff]
        %v1665 = vld [vmem:[%s820 + $0x48] sm:$0xff]
        %v1666 = vld [vmem:[%s820 + $0x50] sm:$0xff]
        %v1667 = vld [vmem:[%s820 + $0x60] sm:$0xff]
        %v1668 = vld [vmem:[%s820 + $0x68] sm:$0xff]
        %v1669 = vld [vmem:[%s820 + $0x78] sm:$0xff]
        %v1670 = vld [vmem:[%s820 + $0x80] sm:$0xff]
        %v1671 = vld [vmem:[%s820 + $0x90] sm:$0xff]
        %v1672 = vld [vmem:[%s820 + $0x98] sm:$0xff]
        %v1673 = vld [vmem:[%s820 + $0xa8] sm:$0xff]
        %v1674 = vld [vmem:[%s820 + $0xb0] sm:$0xff]
        %v1675 = vld [vmem:[%s820 + $0xc0] sm:$0xff]
        %v1676 = vld [vmem:[%s820 + $0xc8] sm:$0xff]
        %v1677 = vld [vmem:[%s820 + $0xd8] sm:$0xff]
        %v1678 = vld [vmem:[%s820 + $0xe0] sm:$0xff]
        %v1679 = vld [vmem:[%s820 + $0xf0] sm:$0xff]
        %v1680 = vld [vmem:[%s820 + $0xf8] sm:$0xff]
        %v1681 = vld [vmem:[%s820 + $0x108] sm:$0xff]
        %v1682 = vld [vmem:[%s820 + $0x110] sm:$0xff]
        %v1683 = vld [vmem:[%s820 + $0x120] sm:$0xff]
        %v1684 = vld [vmem:[%s820 + $0x128] sm:$0xff]
        %v1685 = vld [vmem:[%s820 + $0x138] sm:$0xff]
        %v1686 = vld [vmem:[%s820 + $0x140] sm:$0xff]
        %v1687 = vld [vmem:[%s820 + $0x150] sm:$0xff]
        %v1688 = vld [vmem:[%s820 + $0x158] sm:$0xff]
        %v1689 = vld [vmem:[%s820 + $0x168] sm:$0xff]
        %v1690 = vld [vmem:[%s820 + $0x170] sm:$0xff]
        %1723 = vrot.lane.b32.xlu0 %v1659, 16
        %v1724 = vpop.permute.xlu0 %1723
        %1725 = vrot.lane.b32.xlu0 %v1660, 16
        %v1726 = vpop.permute.xlu0 %1725
        %1727 = vrot.lane.b32.xlu0 %v1661, 16
        %v1728 = vpop.permute.xlu0 %1727
        %1729 = vrot.lane.b32.xlu0 %v1662, 16
        %v1730 = vpop.permute.xlu0 %1729
        %1731 = vrot.lane.b32.xlu0 %v1663, 16
        %v1732 = vpop.permute.xlu0 %1731
        %1733 = vrot.lane.b32.xlu0 %v1664, 16
        %v1734 = vpop.permute.xlu0 %1733
        %1735 = vrot.lane.b32.xlu0 %v1665, 16
        %v1736 = vpop.permute.xlu0 %1735
        %1737 = vrot.lane.b32.xlu0 %v1666, 16
        %v1738 = vpop.permute.xlu0 %1737
        %1739 = vrot.lane.b32.xlu0 %v1667, 16
        %v1740 = vpop.permute.xlu0 %1739
        %1741 = vrot.lane.b32.xlu0 %v1668, 16
        %v1742 = vpop.permute.xlu0 %1741
        %1743 = vrot.lane.b32.xlu0 %v1669, 16
        %v1744 = vpop.permute.xlu0 %1743
        %1745 = vrot.lane.b32.xlu0 %v1670, 16
        %v1746 = vpop.permute.xlu0 %1745
        %1747 = vrot.lane.b32.xlu0 %v1671, 16
        %v1748 = vpop.permute.xlu0 %1747
        %1749 = vrot.lane.b32.xlu0 %v1672, 16
        %v1750 = vpop.permute.xlu0 %1749
        %1751 = vrot.lane.b32.xlu0 %v1673, 16
        %v1752 = vpop.permute.xlu0 %1751
        %1753 = vrot.lane.b32.xlu0 %v1674, 16
        %v1754 = vpop.permute.xlu0 %1753
        %1755 = vrot.lane.b32.xlu0 %v1675, 16
        %v1756 = vpop.permute.xlu0 %1755
        %1757 = vrot.lane.b32.xlu0 %v1676, 16
        %v1758 = vpop.permute.xlu0 %1757
        %1759 = vrot.lane.b32.xlu0 %v1677, 16
        %v1760 = vpop.permute.xlu0 %1759
        %1761 = vrot.lane.b32.xlu0 %v1678, 16
        %v1762 = vpop.permute.xlu0 %1761
        %1763 = vrot.lane.b32.xlu0 %v1679, 16
        %v1764 = vpop.permute.xlu0 %1763
        %1765 = vrot.lane.b32.xlu0 %v1680, 16
        %v1766 = vpop.permute.xlu0 %1765
        %1767 = vrot.lane.b32.xlu0 %v1681, 16
        %v1768 = vpop.permute.xlu0 %1767
        %1769 = vrot.lane.b32.xlu0 %v1682, 16
        %v1770 = vpop.permute.xlu0 %1769
        %1771 = vrot.lane.b32.xlu0 %v1683, 16
        %v1772 = vpop.permute.xlu0 %1771
        %1773 = vrot.lane.b32.xlu0 %v1684, 16
        %v1774 = vpop.permute.xlu0 %1773
        %1775 = vrot.lane.b32.xlu0 %v1685, 16
        %v1776 = vpop.permute.xlu0 %1775
        %1777 = vrot.lane.b32.xlu0 %v1686, 16
        %v1778 = vpop.permute.xlu0 %1777
        %1779 = vrot.lane.b32.xlu0 %v1687, 16
        %v1780 = vpop.permute.xlu0 %1779
        %1781 = vrot.lane.b32.xlu0 %v1688, 16
        %v1782 = vpop.permute.xlu0 %1781
        %1783 = vrot.lane.b32.xlu0 %v1689, 16
        %v1784 = vpop.permute.xlu0 %1783
        %1785 = vrot.lane.b32.xlu0 %v1690, 16
        %v1786 = vpop.permute.xlu0 %1785
        %vm1819 = vcmask 162944
        %1820 = vst.msk [vmem:[#allocation5] sm:$0xff] %vm1819, %v1724
        %1821 = vst.msk [vmem:[#allocation5 + $0x8] sm:$0xff] %vm1819, %v1726
        %1822 = vst.msk [vmem:[#allocation5 + $0x10] sm:$0xff] %vm1819, %v1728
        %1823 = vst.msk [vmem:[#allocation5 + $0x18] sm:$0xff] %vm1819, %v1730
        %1824 = vst.msk [vmem:[#allocation5 + $0x20] sm:$0xff] %vm1819, %v1732
        %1825 = vst.msk [vmem:[#allocation5 + $0x28] sm:$0xff] %vm1819, %v1734
        %1826 = vst.msk [vmem:[#allocation5 + $0x30] sm:$0xff] %vm1819, %v1736
        %1827 = vst.msk [vmem:[#allocation5 + $0x38] sm:$0xff] %vm1819, %v1738
        %1828 = vst.msk [vmem:[#allocation5 + $0x40] sm:$0xff] %vm1819, %v1740
        %1829 = vst.msk [vmem:[#allocation5 + $0x48] sm:$0xff] %vm1819, %v1742
        %1830 = vst.msk [vmem:[#allocation5 + $0x50] sm:$0xff] %vm1819, %v1744
        %1831 = vst.msk [vmem:[#allocation5 + $0x58] sm:$0xff] %vm1819, %v1746
        %1832 = vst.msk [vmem:[#allocation5 + $0x60] sm:$0xff] %vm1819, %v1748
        %1833 = vst.msk [vmem:[#allocation5 + $0x68] sm:$0xff] %vm1819, %v1750
        %1834 = vst.msk [vmem:[#allocation5 + $0x70] sm:$0xff] %vm1819, %v1752
        %1835 = vst.msk [vmem:[#allocation5 + $0x78] sm:$0xff] %vm1819, %v1754
        %1836 = vst.msk [vmem:[#allocation5 + $0x80] sm:$0xff] %vm1819, %v1756
        %1837 = vst.msk [vmem:[#allocation5 + $0x88] sm:$0xff] %vm1819, %v1758
        %1838 = vst.msk [vmem:[#allocation5 + $0x90] sm:$0xff] %vm1819, %v1760
        %1839 = vst.msk [vmem:[#allocation5 + $0x98] sm:$0xff] %vm1819, %v1762
        %1840 = vst.msk [vmem:[#allocation5 + $0xa0] sm:$0xff] %vm1819, %v1764
        %1841 = vst.msk [vmem:[#allocation5 + $0xa8] sm:$0xff] %vm1819, %v1766
        %1842 = vst.msk [vmem:[#allocation5 + $0xb0] sm:$0xff] %vm1819, %v1768
        %1843 = vst.msk [vmem:[#allocation5 + $0xb8] sm:$0xff] %vm1819, %v1770
        %1844 = vst.msk [vmem:[#allocation5 + $0xc0] sm:$0xff] %vm1819, %v1772
        %1845 = vst.msk [vmem:[#allocation5 + $0xc8] sm:$0xff] %vm1819, %v1774
        %1846 = vst.msk [vmem:[#allocation5 + $0xd0] sm:$0xff] %vm1819, %v1776
        %1847 = vst.msk [vmem:[#allocation5 + $0xd8] sm:$0xff] %vm1819, %v1778
        %1848 = vst.msk [vmem:[#allocation5 + $0xe0] sm:$0xff] %vm1819, %v1780
        %1849 = vst.msk [vmem:[#allocation5 + $0xe8] sm:$0xff] %vm1819, %v1782
        %1850 = vst.msk [vmem:[#allocation5 + $0xf0] sm:$0xff] %vm1819, %v1784
        %1851 = vst.msk [vmem:[#allocation5 + $0xf8] sm:$0xff] %vm1819, %v1786
        %v1852 = vld [vmem:[%s820 + $0x1] sm:$0xff]
        %v1853 = vld [vmem:[%s820 + $0x9] sm:$0xff]
        %v1854 = vld [vmem:[%s820 + $0x19] sm:$0xff]
        %v1855 = vld [vmem:[%s820 + $0x21] sm:$0xff]
        %v1856 = vld [vmem:[%s820 + $0x31] sm:$0xff]
        %v1857 = vld [vmem:[%s820 + $0x39] sm:$0xff]
        %v1858 = vld [vmem:[%s820 + $0x49] sm:$0xff]
        %v1859 = vld [vmem:[%s820 + $0x51] sm:$0xff]
        %v1860 = vld [vmem:[%s820 + $0x61] sm:$0xff]
        %v1861 = vld [vmem:[%s820 + $0x69] sm:$0xff]
        %v1862 = vld [vmem:[%s820 + $0x79] sm:$0xff]
        %v1863 = vld [vmem:[%s820 + $0x81] sm:$0xff]
        %v1864 = vld [vmem:[%s820 + $0x91] sm:$0xff]
        %v1865 = vld [vmem:[%s820 + $0x99] sm:$0xff]
        %v1866 = vld [vmem:[%s820 + $0xa9] sm:$0xff]
        %v1867 = vld [vmem:[%s820 + $0xb1] sm:$0xff]
        %v1868 = vld [vmem:[%s820 + $0xc1] sm:$0xff]
        %v1869 = vld [vmem:[%s820 + $0xc9] sm:$0xff]
        %v1870 = vld [vmem:[%s820 + $0xd9] sm:$0xff]
        %v1871 = vld [vmem:[%s820 + $0xe1] sm:$0xff]
        %v1872 = vld [vmem:[%s820 + $0xf1] sm:$0xff]
        %v1873 = vld [vmem:[%s820 + $0xf9] sm:$0xff]
        %v1874 = vld [vmem:[%s820 + $0x109] sm:$0xff]
        %v1875 = vld [vmem:[%s820 + $0x111] sm:$0xff]
        %v1876 = vld [vmem:[%s820 + $0x121] sm:$0xff]
        %v1877 = vld [vmem:[%s820 + $0x129] sm:$0xff]
        %v1878 = vld [vmem:[%s820 + $0x139] sm:$0xff]
        %v1879 = vld [vmem:[%s820 + $0x141] sm:$0xff]
        %v1880 = vld [vmem:[%s820 + $0x151] sm:$0xff]
        %v1881 = vld [vmem:[%s820 + $0x159] sm:$0xff]
        %v1882 = vld [vmem:[%s820 + $0x169] sm:$0xff]
        %v1883 = vld [vmem:[%s820 + $0x171] sm:$0xff]
        %1916 = vrot.lane.b32.xlu0 %v1852, 20
        %v1917 = vpop.permute.xlu0 %1916
        %1918 = vrot.lane.b32.xlu0 %v1853, 20
        %v1919 = vpop.permute.xlu0 %1918
        %1920 = vrot.lane.b32.xlu0 %v1854, 20
        %v1921 = vpop.permute.xlu0 %1920
        %1922 = vrot.lane.b32.xlu0 %v1855, 20
        %v1923 = vpop.permute.xlu0 %1922
        %1924 = vrot.lane.b32.xlu0 %v1856, 20
        %v1925 = vpop.permute.xlu0 %1924
        %1926 = vrot.lane.b32.xlu0 %v1857, 20
        %v1927 = vpop.permute.xlu0 %1926
        %1928 = vrot.lane.b32.xlu0 %v1858, 20
        %v1929 = vpop.permute.xlu0 %1928
        %1930 = vrot.lane.b32.xlu0 %v1859, 20
        %v1931 = vpop.permute.xlu0 %1930
        %1932 = vrot.lane.b32.xlu0 %v1860, 20
        %v1933 = vpop.permute.xlu0 %1932
        %1934 = vrot.lane.b32.xlu0 %v1861, 20
        %v1935 = vpop.permute.xlu0 %1934
        %1936 = vrot.lane.b32.xlu0 %v1862, 20
        %v1937 = vpop.permute.xlu0 %1936
        %1938 = vrot.lane.b32.xlu0 %v1863, 20
        %v1939 = vpop.permute.xlu0 %1938
        %1940 = vrot.lane.b32.xlu0 %v1864, 20
        %v1941 = vpop.permute.xlu0 %1940
        %1942 = vrot.lane.b32.xlu0 %v1865, 20
        %v1943 = vpop.permute.xlu0 %1942
        %1944 = vrot.lane.b32.xlu0 %v1866, 20
        %v1945 = vpop.permute.xlu0 %1944
        %1946 = vrot.lane.b32.xlu0 %v1867, 20
        %v1947 = vpop.permute.xlu0 %1946
        %1948 = vrot.lane.b32.xlu0 %v1868, 20
        %v1949 = vpop.permute.xlu0 %1948
        %1950 = vrot.lane.b32.xlu0 %v1869, 20
        %v1951 = vpop.permute.xlu0 %1950
        %1952 = vrot.lane.b32.xlu0 %v1870, 20
        %v1953 = vpop.permute.xlu0 %1952
        %1954 = vrot.lane.b32.xlu0 %v1871, 20
        %v1955 = vpop.permute.xlu0 %1954
        %1956 = vrot.lane.b32.xlu0 %v1872, 20
        %v1957 = vpop.permute.xlu0 %1956
        %1958 = vrot.lane.b32.xlu0 %v1873, 20
        %v1959 = vpop.permute.xlu0 %1958
        %1960 = vrot.lane.b32.xlu0 %v1874, 20
        %v1961 = vpop.permute.xlu0 %1960
        %1962 = vrot.lane.b32.xlu0 %v1875, 20
        %v1963 = vpop.permute.xlu0 %1962
        %1964 = vrot.lane.b32.xlu0 %v1876, 20
        %v1965 = vpop.permute.xlu0 %1964
        %1966 = vrot.lane.b32.xlu0 %v1877, 20
        %v1967 = vpop.permute.xlu0 %1966
        %1968 = vrot.lane.b32.xlu0 %v1878, 20
        %v1969 = vpop.permute.xlu0 %1968
        %1970 = vrot.lane.b32.xlu0 %v1879, 20
        %v1971 = vpop.permute.xlu0 %1970
        %1972 = vrot.lane.b32.xlu0 %v1880, 20
        %v1973 = vpop.permute.xlu0 %1972
        %1974 = vrot.lane.b32.xlu0 %v1881, 20
        %v1975 = vpop.permute.xlu0 %1974
        %1976 = vrot.lane.b32.xlu0 %v1882, 20
        %v1977 = vpop.permute.xlu0 %1976
        %1978 = vrot.lane.b32.xlu0 %v1883, 20
        %v1979 = vpop.permute.xlu0 %1978
        %vm2012 = vcmask 195744
        %2013 = vst.msk [vmem:[#allocation5] sm:$0xff] %vm2012, %v1917
        %2014 = vst.msk [vmem:[#allocation5 + $0x8] sm:$0xff] %vm2012, %v1919
        %2015 = vst.msk [vmem:[#allocation5 + $0x10] sm:$0xff] %vm2012, %v1921
        %2016 = vst.msk [vmem:[#allocation5 + $0x18] sm:$0xff] %vm2012, %v1923
        %2017 = vst.msk [vmem:[#allocation5 + $0x20] sm:$0xff] %vm2012, %v1925
        %2018 = vst.msk [vmem:[#allocation5 + $0x28] sm:$0xff] %vm2012, %v1927
        %2019 = vst.msk [vmem:[#allocation5 + $0x30] sm:$0xff] %vm2012, %v1929
        %2020 = vst.msk [vmem:[#allocation5 + $0x38] sm:$0xff] %vm2012, %v1931
        %2021 = vst.msk [vmem:[#allocation5 + $0x40] sm:$0xff] %vm2012, %v1933
        %2022 = vst.msk [vmem:[#allocation5 + $0x48] sm:$0xff] %vm2012, %v1935
        %2023 = vst.msk [vmem:[#allocation5 + $0x50] sm:$0xff] %vm2012, %v1937
        %2024 = vst.msk [vmem:[#allocation5 + $0x58] sm:$0xff] %vm2012, %v1939
        %2025 = vst.msk [vmem:[#allocation5 + $0x60] sm:$0xff] %vm2012, %v1941
        %2026 = vst.msk [vmem:[#allocation5 + $0x68] sm:$0xff] %vm2012, %v1943
        %2027 = vst.msk [vmem:[#allocation5 + $0x70] sm:$0xff] %vm2012, %v1945
        %2028 = vst.msk [vmem:[#allocation5 + $0x78] sm:$0xff] %vm2012, %v1947
        %2029 = vst.msk [vmem:[#allocation5 + $0x80] sm:$0xff] %vm2012, %v1949
        %2030 = vst.msk [vmem:[#allocation5 + $0x88] sm:$0xff] %vm2012, %v1951
        %2031 = vst.msk [vmem:[#allocation5 + $0x90] sm:$0xff] %vm2012, %v1953
        %2032 = vst.msk [vmem:[#allocation5 + $0x98] sm:$0xff] %vm2012, %v1955
        %2033 = vst.msk [vmem:[#allocation5 + $0xa0] sm:$0xff] %vm2012, %v1957
        %2034 = vst.msk [vmem:[#allocation5 + $0xa8] sm:$0xff] %vm2012, %v1959
        %2035 = vst.msk [vmem:[#allocation5 + $0xb0] sm:$0xff] %vm2012, %v1961
        %2036 = vst.msk [vmem:[#allocation5 + $0xb8] sm:$0xff] %vm2012, %v1963
        %2037 = vst.msk [vmem:[#allocation5 + $0xc0] sm:$0xff] %vm2012, %v1965
        %2038 = vst.msk [vmem:[#allocation5 + $0xc8] sm:$0xff] %vm2012, %v1967
        %2039 = vst.msk [vmem:[#allocation5 + $0xd0] sm:$0xff] %vm2012, %v1969
        %2040 = vst.msk [vmem:[#allocation5 + $0xd8] sm:$0xff] %vm2012, %v1971
        %2041 = vst.msk [vmem:[#allocation5 + $0xe0] sm:$0xff] %vm2012, %v1973
        %2042 = vst.msk [vmem:[#allocation5 + $0xe8] sm:$0xff] %vm2012, %v1975
        %2043 = vst.msk [vmem:[#allocation5 + $0xf0] sm:$0xff] %vm2012, %v1977
        %2044 = vst.msk [vmem:[#allocation5 + $0xf8] sm:$0xff] %vm2012, %v1979
        %v2045 = vld [vmem:[%s820 + $0x2] sm:$0xff]
        %v2046 = vld [vmem:[%s820 + $0xa] sm:$0xff]
        %v2047 = vld [vmem:[%s820 + $0x1a] sm:$0xff]
        %v2048 = vld [vmem:[%s820 + $0x22] sm:$0xff]
        %v2049 = vld [vmem:[%s820 + $0x32] sm:$0xff]
        %v2050 = vld [vmem:[%s820 + $0x3a] sm:$0xff]
        %v2051 = vld [vmem:[%s820 + $0x4a] sm:$0xff]
        %v2052 = vld [vmem:[%s820 + $0x52] sm:$0xff]
        %v2053 = vld [vmem:[%s820 + $0x62] sm:$0xff]
        %v2054 = vld [vmem:[%s820 + $0x6a] sm:$0xff]
        %v2055 = vld [vmem:[%s820 + $0x7a] sm:$0xff]
        %v2056 = vld [vmem:[%s820 + $0x82] sm:$0xff]
        %v2057 = vld [vmem:[%s820 + $0x92] sm:$0xff]
        %v2058 = vld [vmem:[%s820 + $0x9a] sm:$0xff]
        %v2059 = vld [vmem:[%s820 + $0xaa] sm:$0xff]
        %v2060 = vld [vmem:[%s820 + $0xb2] sm:$0xff]
        %v2061 = vld [vmem:[%s820 + $0xc2] sm:$0xff]
        %v2062 = vld [vmem:[%s820 + $0xca] sm:$0xff]
        %v2063 = vld [vmem:[%s820 + $0xda] sm:$0xff]
        %v2064 = vld [vmem:[%s820 + $0xe2] sm:$0xff]
        %v2065 = vld [vmem:[%s820 + $0xf2] sm:$0xff]
        %v2066 = vld [vmem:[%s820 + $0xfa] sm:$0xff]
        %v2067 = vld [vmem:[%s820 + $0x10a] sm:$0xff]
        %v2068 = vld [vmem:[%s820 + $0x112] sm:$0xff]
        %v2069 = vld [vmem:[%s820 + $0x122] sm:$0xff]
        %v2070 = vld [vmem:[%s820 + $0x12a] sm:$0xff]
        %v2071 = vld [vmem:[%s820 + $0x13a] sm:$0xff]
        %v2072 = vld [vmem:[%s820 + $0x142] sm:$0xff]
        %v2073 = vld [vmem:[%s820 + $0x152] sm:$0xff]
        %v2074 = vld [vmem:[%s820 + $0x15a] sm:$0xff]
        %v2075 = vld [vmem:[%s820 + $0x16a] sm:$0xff]
        %v2076 = vld [vmem:[%s820 + $0x172] sm:$0xff]
        %2109 = vrot.lane.b32.xlu0 %v2045, 24
        %v2110 = vpop.permute.xlu0 %2109
        %2111 = vrot.lane.b32.xlu0 %v2046, 24
        %v2112 = vpop.permute.xlu0 %2111
        %2113 = vrot.lane.b32.xlu0 %v2047, 24
        %v2114 = vpop.permute.xlu0 %2113
        %2115 = vrot.lane.b32.xlu0 %v2048, 24
        %v2116 = vpop.permute.xlu0 %2115
        %2117 = vrot.lane.b32.xlu0 %v2049, 24
        %v2118 = vpop.permute.xlu0 %2117
        %2119 = vrot.lane.b32.xlu0 %v2050, 24
        %v2120 = vpop.permute.xlu0 %2119
        %2121 = vrot.lane.b32.xlu0 %v2051, 24
        %v2122 = vpop.permute.xlu0 %2121
        %2123 = vrot.lane.b32.xlu0 %v2052, 24
        %v2124 = vpop.permute.xlu0 %2123
        %2125 = vrot.lane.b32.xlu0 %v2053, 24
        %v2126 = vpop.permute.xlu0 %2125
        %2127 = vrot.lane.b32.xlu0 %v2054, 24
        %v2128 = vpop.permute.xlu0 %2127
        %2129 = vrot.lane.b32.xlu0 %v2055, 24
        %v2130 = vpop.permute.xlu0 %2129
        %2131 = vrot.lane.b32.xlu0 %v2056, 24
        %v2132 = vpop.permute.xlu0 %2131
        %2133 = vrot.lane.b32.xlu0 %v2057, 24
        %v2134 = vpop.permute.xlu0 %2133
        %2135 = vrot.lane.b32.xlu0 %v2058, 24
        %v2136 = vpop.permute.xlu0 %2135
        %2137 = vrot.lane.b32.xlu0 %v2059, 24
        %v2138 = vpop.permute.xlu0 %2137
        %2139 = vrot.lane.b32.xlu0 %v2060, 24
        %v2140 = vpop.permute.xlu0 %2139
        %2141 = vrot.lane.b32.xlu0 %v2061, 24
        %v2142 = vpop.permute.xlu0 %2141
        %2143 = vrot.lane.b32.xlu0 %v2062, 24
        %v2144 = vpop.permute.xlu0 %2143
        %2145 = vrot.lane.b32.xlu0 %v2063, 24
        %v2146 = vpop.permute.xlu0 %2145
        %2147 = vrot.lane.b32.xlu0 %v2064, 24
        %v2148 = vpop.permute.xlu0 %2147
        %2149 = vrot.lane.b32.xlu0 %v2065, 24
        %v2150 = vpop.permute.xlu0 %2149
        %2151 = vrot.lane.b32.xlu0 %v2066, 24
        %v2152 = vpop.permute.xlu0 %2151
        %2153 = vrot.lane.b32.xlu0 %v2067, 24
        %v2154 = vpop.permute.xlu0 %2153
        %2155 = vrot.lane.b32.xlu0 %v2068, 24
        %v2156 = vpop.permute.xlu0 %2155
        %2157 = vrot.lane.b32.xlu0 %v2069, 24
        %v2158 = vpop.permute.xlu0 %2157
        %2159 = vrot.lane.b32.xlu0 %v2070, 24
        %v2160 = vpop.permute.xlu0 %2159
        %2161 = vrot.lane.b32.xlu0 %v2071, 24
        %v2162 = vpop.permute.xlu0 %2161
        %2163 = vrot.lane.b32.xlu0 %v2072, 24
        %v2164 = vpop.permute.xlu0 %2163
        %2165 = vrot.lane.b32.xlu0 %v2073, 24
        %v2166 = vpop.permute.xlu0 %2165
        %2167 = vrot.lane.b32.xlu0 %v2074, 24
        %v2168 = vpop.permute.xlu0 %2167
        %2169 = vrot.lane.b32.xlu0 %v2075, 24
        %v2170 = vpop.permute.xlu0 %2169
        %2171 = vrot.lane.b32.xlu0 %v2076, 24
        %v2172 = vpop.permute.xlu0 %2171
        %vm2205 = vcmask 228544
        %2206 = vst.msk [vmem:[#allocation5] sm:$0xff] %vm2205, %v2110
        %2207 = vst.msk [vmem:[#allocation5 + $0x8] sm:$0xff] %vm2205, %v2112
        %2208 = vst.msk [vmem:[#allocation5 + $0x10] sm:$0xff] %vm2205, %v2114
        %2209 = vst.msk [vmem:[#allocation5 + $0x18] sm:$0xff] %vm2205, %v2116
        %2210 = vst.msk [vmem:[#allocation5 + $0x20] sm:$0xff] %vm2205, %v2118
        %2211 = vst.msk [vmem:[#allocation5 + $0x28] sm:$0xff] %vm2205, %v2120
        %2212 = vst.msk [vmem:[#allocation5 + $0x30] sm:$0xff] %vm2205, %v2122
        %2213 = vst.msk [vmem:[#allocation5 + $0x38] sm:$0xff] %vm2205, %v2124
        %2214 = vst.msk [vmem:[#allocation5 + $0x40] sm:$0xff] %vm2205, %v2126
        %2215 = vst.msk [vmem:[#allocation5 + $0x48] sm:$0xff] %vm2205, %v2128
        %2216 = vst.msk [vmem:[#allocation5 + $0x50] sm:$0xff] %vm2205, %v2130
        %2217 = vst.msk [vmem:[#allocation5 + $0x58] sm:$0xff] %vm2205, %v2132
        %2218 = vst.msk [vmem:[#allocation5 + $0x60] sm:$0xff] %vm2205, %v2134
        %2219 = vst.msk [vmem:[#allocation5 + $0x68] sm:$0xff] %vm2205, %v2136
        %2220 = vst.msk [vmem:[#allocation5 + $0x70] sm:$0xff] %vm2205, %v2138
        %2221 = vst.msk [vmem:[#allocation5 + $0x78] sm:$0xff] %vm2205, %v2140
        %2222 = vst.msk [vmem:[#allocation5 + $0x80] sm:$0xff] %vm2205, %v2142
        %2223 = vst.msk [vmem:[#allocation5 + $0x88] sm:$0xff] %vm2205, %v2144
        %2224 = vst.msk [vmem:[#allocation5 + $0x90] sm:$0xff] %vm2205, %v2146
        %2225 = vst.msk [vmem:[#allocation5 + $0x98] sm:$0xff] %vm2205, %v2148
        %2226 = vst.msk [vmem:[#allocation5 + $0xa0] sm:$0xff] %vm2205, %v2150
        %2227 = vst.msk [vmem:[#allocation5 + $0xa8] sm:$0xff] %vm2205, %v2152
        %2228 = vst.msk [vmem:[#allocation5 + $0xb0] sm:$0xff] %vm2205, %v2154
        %2229 = vst.msk [vmem:[#allocation5 + $0xb8] sm:$0xff] %vm2205, %v2156
        %2230 = vst.msk [vmem:[#allocation5 + $0xc0] sm:$0xff] %vm2205, %v2158
        %2231 = vst.msk [vmem:[#allocation5 + $0xc8] sm:$0xff] %vm2205, %v2160
        %2232 = vst.msk [vmem:[#allocation5 + $0xd0] sm:$0xff] %vm2205, %v2162
        %2233 = vst.msk [vmem:[#allocation5 + $0xd8] sm:$0xff] %vm2205, %v2164
        %2234 = vst.msk [vmem:[#allocation5 + $0xe0] sm:$0xff] %vm2205, %v2166
        %2235 = vst.msk [vmem:[#allocation5 + $0xe8] sm:$0xff] %vm2205, %v2168
        %2236 = vst.msk [vmem:[#allocation5 + $0xf0] sm:$0xff] %vm2205, %v2170
        %2237 = vst.msk [vmem:[#allocation5 + $0xf8] sm:$0xff] %vm2205, %v2172
        %s2238 = scalar_lea.vmem [#allocation2], 48
        %v2239 = vld [vmem:[%s2238] sm:$0xff]
        %v2240 = vld [vmem:[%s2238 + $0x8] sm:$0xff]
        %v2241 = vld [vmem:[%s2238 + $0x18] sm:$0xff]
        %v2242 = vld [vmem:[%s2238 + $0x20] sm:$0xff]
        %v2243 = vld [vmem:[%s2238 + $0x30] sm:$0xff]
        %v2244 = vld [vmem:[%s2238 + $0x38] sm:$0xff]
        %v2245 = vld [vmem:[%s2238 + $0x48] sm:$0xff]
        %v2246 = vld [vmem:[%s2238 + $0x50] sm:$0xff]
        %v2247 = vld [vmem:[%s2238 + $0x60] sm:$0xff]
        %v2248 = vld [vmem:[%s2238 + $0x68] sm:$0xff]
        %v2249 = vld [vmem:[%s2238 + $0x78] sm:$0xff]
        %v2250 = vld [vmem:[%s2238 + $0x80] sm:$0xff]
        %v2251 = vld [vmem:[%s2238 + $0x90] sm:$0xff]
        %v2252 = vld [vmem:[%s2238 + $0x98] sm:$0xff]
        %v2253 = vld [vmem:[%s2238 + $0xa8] sm:$0xff]
        %v2254 = vld [vmem:[%s2238 + $0xb0] sm:$0xff]
        %v2255 = vld [vmem:[%s2238 + $0xc0] sm:$0xff]
        %v2256 = vld [vmem:[%s2238 + $0xc8] sm:$0xff]
        %v2257 = vld [vmem:[%s2238 + $0xd8] sm:$0xff]
        %v2258 = vld [vmem:[%s2238 + $0xe0] sm:$0xff]
        %v2259 = vld [vmem:[%s2238 + $0xf0] sm:$0xff]
        %v2260 = vld [vmem:[%s2238 + $0xf8] sm:$0xff]
        %v2261 = vld [vmem:[%s2238 + $0x108] sm:$0xff]
        %v2262 = vld [vmem:[%s2238 + $0x110] sm:$0xff]
        %v2263 = vld [vmem:[%s2238 + $0x120] sm:$0xff]
        %v2264 = vld [vmem:[%s2238 + $0x128] sm:$0xff]
        %v2265 = vld [vmem:[%s2238 + $0x138] sm:$0xff]
        %v2266 = vld [vmem:[%s2238 + $0x140] sm:$0xff]
        %v2267 = vld [vmem:[%s2238 + $0x150] sm:$0xff]
        %v2268 = vld [vmem:[%s2238 + $0x158] sm:$0xff]
        %v2269 = vld [vmem:[%s2238 + $0x168] sm:$0xff]
        %v2270 = vld [vmem:[%s2238 + $0x170] sm:$0xff]
        %2303 = vrot.lane.b32.xlu0 %v2239, 28
        %v2304 = vpop.permute.xlu0 %2303
        %2305 = vrot.lane.b32.xlu0 %v2240, 28
        %v2306 = vpop.permute.xlu0 %2305
        %2307 = vrot.lane.b32.xlu0 %v2241, 28
        %v2308 = vpop.permute.xlu0 %2307
        %2309 = vrot.lane.b32.xlu0 %v2242, 28
        %v2310 = vpop.permute.xlu0 %2309
        %2311 = vrot.lane.b32.xlu0 %v2243, 28
        %v2312 = vpop.permute.xlu0 %2311
        %2313 = vrot.lane.b32.xlu0 %v2244, 28
        %v2314 = vpop.permute.xlu0 %2313
        %2315 = vrot.lane.b32.xlu0 %v2245, 28
        %v2316 = vpop.permute.xlu0 %2315
        %2317 = vrot.lane.b32.xlu0 %v2246, 28
        %v2318 = vpop.permute.xlu0 %2317
        %2319 = vrot.lane.b32.xlu0 %v2247, 28
        %v2320 = vpop.permute.xlu0 %2319
        %2321 = vrot.lane.b32.xlu0 %v2248, 28
        %v2322 = vpop.permute.xlu0 %2321
        %2323 = vrot.lane.b32.xlu0 %v2249, 28
        %v2324 = vpop.permute.xlu0 %2323
        %2325 = vrot.lane.b32.xlu0 %v2250, 28
        %v2326 = vpop.permute.xlu0 %2325
        %2327 = vrot.lane.b32.xlu0 %v2251, 28
        %v2328 = vpop.permute.xlu0 %2327
        %2329 = vrot.lane.b32.xlu0 %v2252, 28
        %v2330 = vpop.permute.xlu0 %2329
        %2331 = vrot.lane.b32.xlu0 %v2253, 28
        %v2332 = vpop.permute.xlu0 %2331
        %2333 = vrot.lane.b32.xlu0 %v2254, 28
        %v2334 = vpop.permute.xlu0 %2333
        %2335 = vrot.lane.b32.xlu0 %v2255, 28
        %v2336 = vpop.permute.xlu0 %2335
        %2337 = vrot.lane.b32.xlu0 %v2256, 28
        %v2338 = vpop.permute.xlu0 %2337
        %2339 = vrot.lane.b32.xlu0 %v2257, 28
        %v2340 = vpop.permute.xlu0 %2339
        %2341 = vrot.lane.b32.xlu0 %v2258, 28
        %v2342 = vpop.permute.xlu0 %2341
        %2343 = vrot.lane.b32.xlu0 %v2259, 28
        %v2344 = vpop.permute.xlu0 %2343
        %2345 = vrot.lane.b32.xlu0 %v2260, 28
        %v2346 = vpop.permute.xlu0 %2345
        %2347 = vrot.lane.b32.xlu0 %v2261, 28
        %v2348 = vpop.permute.xlu0 %2347
        %2349 = vrot.lane.b32.xlu0 %v2262, 28
        %v2350 = vpop.permute.xlu0 %2349
        %2351 = vrot.lane.b32.xlu0 %v2263, 28
        %v2352 = vpop.permute.xlu0 %2351
        %2353 = vrot.lane.b32.xlu0 %v2264, 28
        %v2354 = vpop.permute.xlu0 %2353
        %2355 = vrot.lane.b32.xlu0 %v2265, 28
        %v2356 = vpop.permute.xlu0 %2355
        %2357 = vrot.lane.b32.xlu0 %v2266, 28
        %v2358 = vpop.permute.xlu0 %2357
        %2359 = vrot.lane.b32.xlu0 %v2267, 28
        %v2360 = vpop.permute.xlu0 %2359
        %2361 = vrot.lane.b32.xlu0 %v2268, 28
        %v2362 = vpop.permute.xlu0 %2361
        %2363 = vrot.lane.b32.xlu0 %v2269, 28
        %v2364 = vpop.permute.xlu0 %2363
        %2365 = vrot.lane.b32.xlu0 %v2270, 28
        %v2366 = vpop.permute.xlu0 %2365
        %vm2399 = vcmask 261344
        %2400 = vst.msk [vmem:[#allocation5] sm:$0xff] %vm2399, %v2304
        %2401 = vst.msk [vmem:[#allocation5 + $0x8] sm:$0xff] %vm2399, %v2306
        %2402 = vst.msk [vmem:[#allocation5 + $0x10] sm:$0xff] %vm2399, %v2308
        %2403 = vst.msk [vmem:[#allocation5 + $0x18] sm:$0xff] %vm2399, %v2310
        %2404 = vst.msk [vmem:[#allocation5 + $0x20] sm:$0xff] %vm2399, %v2312
        %2405 = vst.msk [vmem:[#allocation5 + $0x28] sm:$0xff] %vm2399, %v2314
        %2406 = vst.msk [vmem:[#allocation5 + $0x30] sm:$0xff] %vm2399, %v2316
        %2407 = vst.msk [vmem:[#allocation5 + $0x38] sm:$0xff] %vm2399, %v2318
        %2408 = vst.msk [vmem:[#allocation5 + $0x40] sm:$0xff] %vm2399, %v2320
        %2409 = vst.msk [vmem:[#allocation5 + $0x48] sm:$0xff] %vm2399, %v2322
        %2410 = vst.msk [vmem:[#allocation5 + $0x50] sm:$0xff] %vm2399, %v2324
        %2411 = vst.msk [vmem:[#allocation5 + $0x58] sm:$0xff] %vm2399, %v2326
        %2412 = vst.msk [vmem:[#allocation5 + $0x60] sm:$0xff] %vm2399, %v2328
        %2413 = vst.msk [vmem:[#allocation5 + $0x68] sm:$0xff] %vm2399, %v2330
        %2414 = vst.msk [vmem:[#allocation5 + $0x70] sm:$0xff] %vm2399, %v2332
        %2415 = vst.msk [vmem:[#allocation5 + $0x78] sm:$0xff] %vm2399, %v2334
        %2416 = vst.msk [vmem:[#allocation5 + $0x80] sm:$0xff] %vm2399, %v2336
        %2417 = vst.msk [vmem:[#allocation5 + $0x88] sm:$0xff] %vm2399, %v2338
        %2418 = vst.msk [vmem:[#allocation5 + $0x90] sm:$0xff] %vm2399, %v2340
        %2419 = vst.msk [vmem:[#allocation5 + $0x98] sm:$0xff] %vm2399, %v2342
        %2420 = vst.msk [vmem:[#allocation5 + $0xa0] sm:$0xff] %vm2399, %v2344
        %2421 = vst.msk [vmem:[#allocation5 + $0xa8] sm:$0xff] %vm2399, %v2346
        %2422 = vst.msk [vmem:[#allocation5 + $0xb0] sm:$0xff] %vm2399, %v2348
        %2423 = vst.msk [vmem:[#allocation5 + $0xb8] sm:$0xff] %vm2399, %v2350
        %2424 = vst.msk [vmem:[#allocation5 + $0xc0] sm:$0xff] %vm2399, %v2352
        %2425 = vst.msk [vmem:[#allocation5 + $0xc8] sm:$0xff] %vm2399, %v2354
        %2426 = vst.msk [vmem:[#allocation5 + $0xd0] sm:$0xff] %vm2399, %v2356
        %2427 = vst.msk [vmem:[#allocation5 + $0xd8] sm:$0xff] %vm2399, %v2358
        %2428 = vst.msk [vmem:[#allocation5 + $0xe0] sm:$0xff] %vm2399, %v2360
        %2429 = vst.msk [vmem:[#allocation5 + $0xe8] sm:$0xff] %vm2399, %v2362
        %2430 = vst.msk [vmem:[#allocation5 + $0xf0] sm:$0xff] %vm2399, %v2364
        %2431 = vst.msk [vmem:[#allocation5 + $0xf8] sm:$0xff] %vm2399, %v2366
        %v2432 = vld [vmem:[%s2238 + $0x1] sm:$0xff]
        %v2433 = vld [vmem:[%s2238 + $0x9] sm:$0xff]
        %v2434 = vld [vmem:[%s2238 + $0x19] sm:$0xff]
        %v2435 = vld [vmem:[%s2238 + $0x21] sm:$0xff]
        %v2436 = vld [vmem:[%s2238 + $0x31] sm:$0xff]
        %v2437 = vld [vmem:[%s2238 + $0x39] sm:$0xff]
        %v2438 = vld [vmem:[%s2238 + $0x49] sm:$0xff]
        %v2439 = vld [vmem:[%s2238 + $0x51] sm:$0xff]
        %v2440 = vld [vmem:[%s2238 + $0x61] sm:$0xff]
        %v2441 = vld [vmem:[%s2238 + $0x69] sm:$0xff]
        %v2442 = vld [vmem:[%s2238 + $0x79] sm:$0xff]
        %v2443 = vld [vmem:[%s2238 + $0x81] sm:$0xff]
        %v2444 = vld [vmem:[%s2238 + $0x91] sm:$0xff]
        %v2445 = vld [vmem:[%s2238 + $0x99] sm:$0xff]
        %v2446 = vld [vmem:[%s2238 + $0xa9] sm:$0xff]
        %v2447 = vld [vmem:[%s2238 + $0xb1] sm:$0xff]
        %v2448 = vld [vmem:[%s2238 + $0xc1] sm:$0xff]
        %v2449 = vld [vmem:[%s2238 + $0xc9] sm:$0xff]
        %v2450 = vld [vmem:[%s2238 + $0xd9] sm:$0xff]
        %v2451 = vld [vmem:[%s2238 + $0xe1] sm:$0xff]
        %v2452 = vld [vmem:[%s2238 + $0xf1] sm:$0xff]
        %v2453 = vld [vmem:[%s2238 + $0xf9] sm:$0xff]
        %v2454 = vld [vmem:[%s2238 + $0x109] sm:$0xff]
        %v2455 = vld [vmem:[%s2238 + $0x111] sm:$0xff]
        %v2456 = vld [vmem:[%s2238 + $0x121] sm:$0xff]
        %v2457 = vld [vmem:[%s2238 + $0x129] sm:$0xff]
        %v2458 = vld [vmem:[%s2238 + $0x139] sm:$0xff]
        %v2459 = vld [vmem:[%s2238 + $0x141] sm:$0xff]
        %v2460 = vld [vmem:[%s2238 + $0x151] sm:$0xff]
        %v2461 = vld [vmem:[%s2238 + $0x159] sm:$0xff]
        %v2462 = vld [vmem:[%s2238 + $0x169] sm:$0xff]
        %v2463 = vld [vmem:[%s2238 + $0x171] sm:$0xff]
        %2496 = vrot.lane.b32.xlu0 %v2432, 32
        %v2497 = vpop.permute.xlu0 %2496
        %2498 = vrot.lane.b32.xlu0 %v2433, 32
        %v2499 = vpop.permute.xlu0 %2498
        %2500 = vrot.lane.b32.xlu0 %v2434, 32
        %v2501 = vpop.permute.xlu0 %2500
        %2502 = vrot.lane.b32.xlu0 %v2435, 32
        %v2503 = vpop.permute.xlu0 %2502
        %2504 = vrot.lane.b32.xlu0 %v2436, 32
        %v2505 = vpop.permute.xlu0 %2504
        %2506 = vrot.lane.b32.xlu0 %v2437, 32
        %v2507 = vpop.permute.xlu0 %2506
        %2508 = vrot.lane.b32.xlu0 %v2438, 32
        %v2509 = vpop.permute.xlu0 %2508
        %2510 = vrot.lane.b32.xlu0 %v2439, 32
        %v2511 = vpop.permute.xlu0 %2510
        %2512 = vrot.lane.b32.xlu0 %v2440, 32
        %v2513 = vpop.permute.xlu0 %2512
        %2514 = vrot.lane.b32.xlu0 %v2441, 32
        %v2515 = vpop.permute.xlu0 %2514
        %2516 = vrot.lane.b32.xlu0 %v2442, 32
        %v2517 = vpop.permute.xlu0 %2516
        %2518 = vrot.lane.b32.xlu0 %v2443, 32
        %v2519 = vpop.permute.xlu0 %2518
        %2520 = vrot.lane.b32.xlu0 %v2444, 32
        %v2521 = vpop.permute.xlu0 %2520
        %2522 = vrot.lane.b32.xlu0 %v2445, 32
        %v2523 = vpop.permute.xlu0 %2522
        %2524 = vrot.lane.b32.xlu0 %v2446, 32
        %v2525 = vpop.permute.xlu0 %2524
        %2526 = vrot.lane.b32.xlu0 %v2447, 32
        %v2527 = vpop.permute.xlu0 %2526
        %2528 = vrot.lane.b32.xlu0 %v2448, 32
        %v2529 = vpop.permute.xlu0 %2528
        %2530 = vrot.lane.b32.xlu0 %v2449, 32
        %v2531 = vpop.permute.xlu0 %2530
        %2532 = vrot.lane.b32.xlu0 %v2450, 32
        %v2533 = vpop.permute.xlu0 %2532
        %2534 = vrot.lane.b32.xlu0 %v2451, 32
        %v2535 = vpop.permute.xlu0 %2534
        %2536 = vrot.lane.b32.xlu0 %v2452, 32
        %v2537 = vpop.permute.xlu0 %2536
        %2538 = vrot.lane.b32.xlu0 %v2453, 32
        %v2539 = vpop.permute.xlu0 %2538
        %2540 = vrot.lane.b32.xlu0 %v2454, 32
        %v2541 = vpop.permute.xlu0 %2540
        %2542 = vrot.lane.b32.xlu0 %v2455, 32
        %v2543 = vpop.permute.xlu0 %2542
        %2544 = vrot.lane.b32.xlu0 %v2456, 32
        %v2545 = vpop.permute.xlu0 %2544
        %2546 = vrot.lane.b32.xlu0 %v2457, 32
        %v2547 = vpop.permute.xlu0 %2546
        %2548 = vrot.lane.b32.xlu0 %v2458, 32
        %v2549 = vpop.permute.xlu0 %2548
        %2550 = vrot.lane.b32.xlu0 %v2459, 32
        %v2551 = vpop.permute.xlu0 %2550
        %2552 = vrot.lane.b32.xlu0 %v2460, 32
        %v2553 = vpop.permute.xlu0 %2552
        %2554 = vrot.lane.b32.xlu0 %v2461, 32
        %v2555 = vpop.permute.xlu0 %2554
        %2556 = vrot.lane.b32.xlu0 %v2462, 32
        %v2557 = vpop.permute.xlu0 %2556
        %2558 = vrot.lane.b32.xlu0 %v2463, 32
        %v2559 = vpop.permute.xlu0 %2558
        %vm2592 = vcmask 294144
        %2593 = vst.msk [vmem:[#allocation5] sm:$0xff] %vm2592, %v2497
        %2594 = vst.msk [vmem:[#allocation5 + $0x8] sm:$0xff] %vm2592, %v2499
        %2595 = vst.msk [vmem:[#allocation5 + $0x10] sm:$0xff] %vm2592, %v2501
        %2596 = vst.msk [vmem:[#allocation5 + $0x18] sm:$0xff] %vm2592, %v2503
        %2597 = vst.msk [vmem:[#allocation5 + $0x20] sm:$0xff] %vm2592, %v2505
        %2598 = vst.msk [vmem:[#allocation5 + $0x28] sm:$0xff] %vm2592, %v2507
        %2599 = vst.msk [vmem:[#allocation5 + $0x30] sm:$0xff] %vm2592, %v2509
        %2600 = vst.msk [vmem:[#allocation5 + $0x38] sm:$0xff] %vm2592, %v2511
        %2601 = vst.msk [vmem:[#allocation5 + $0x40] sm:$0xff] %vm2592, %v2513
        %2602 = vst.msk [vmem:[#allocation5 + $0x48] sm:$0xff] %vm2592, %v2515
        %2603 = vst.msk [vmem:[#allocation5 + $0x50] sm:$0xff] %vm2592, %v2517
        %2604 = vst.msk [vmem:[#allocation5 + $0x58] sm:$0xff] %vm2592, %v2519
        %2605 = vst.msk [vmem:[#allocation5 + $0x60] sm:$0xff] %vm2592, %v2521
        %2606 = vst.msk [vmem:[#allocation5 + $0x68] sm:$0xff] %vm2592, %v2523
        %2607 = vst.msk [vmem:[#allocation5 + $0x70] sm:$0xff] %vm2592, %v2525
        %2608 = vst.msk [vmem:[#allocation5 + $0x78] sm:$0xff] %vm2592, %v2527
        %2609 = vst.msk [vmem:[#allocation5 + $0x80] sm:$0xff] %vm2592, %v2529
        %2610 = vst.msk [vmem:[#allocation5 + $0x88] sm:$0xff] %vm2592, %v2531
        %2611 = vst.msk [vmem:[#allocation5 + $0x90] sm:$0xff] %vm2592, %v2533
        %2612 = vst.msk [vmem:[#allocation5 + $0x98] sm:$0xff] %vm2592, %v2535
        %2613 = vst.msk [vmem:[#allocation5 + $0xa0] sm:$0xff] %vm2592, %v2537
        %2614 = vst.msk [vmem:[#allocation5 + $0xa8] sm:$0xff] %vm2592, %v2539
        %2615 = vst.msk [vmem:[#allocation5 + $0xb0] sm:$0xff] %vm2592, %v2541
        %2616 = vst.msk [vmem:[#allocation5 + $0xb8] sm:$0xff] %vm2592, %v2543
        %2617 = vst.msk [vmem:[#allocation5 + $0xc0] sm:$0xff] %vm2592, %v2545
        %2618 = vst.msk [vmem:[#allocation5 + $0xc8] sm:$0xff] %vm2592, %v2547
        %2619 = vst.msk [vmem:[#allocation5 + $0xd0] sm:$0xff] %vm2592, %v2549
        %2620 = vst.msk [vmem:[#allocation5 + $0xd8] sm:$0xff] %vm2592, %v2551
        %2621 = vst.msk [vmem:[#allocation5 + $0xe0] sm:$0xff] %vm2592, %v2553
        %2622 = vst.msk [vmem:[#allocation5 + $0xe8] sm:$0xff] %vm2592, %v2555
        %2623 = vst.msk [vmem:[#allocation5 + $0xf0] sm:$0xff] %vm2592, %v2557
        %2624 = vst.msk [vmem:[#allocation5 + $0xf8] sm:$0xff] %vm2592, %v2559
        %v2625 = vld [vmem:[%s2238 + $0x2] sm:$0xff]
        %v2626 = vld [vmem:[%s2238 + $0xa] sm:$0xff]
        %v2627 = vld [vmem:[%s2238 + $0x1a] sm:$0xff]
        %v2628 = vld [vmem:[%s2238 + $0x22] sm:$0xff]
        %v2629 = vld [vmem:[%s2238 + $0x32] sm:$0xff]
        %v2630 = vld [vmem:[%s2238 + $0x3a] sm:$0xff]
        %v2631 = vld [vmem:[%s2238 + $0x4a] sm:$0xff]
        %v2632 = vld [vmem:[%s2238 + $0x52] sm:$0xff]
        %v2633 = vld [vmem:[%s2238 + $0x62] sm:$0xff]
        %v2634 = vld [vmem:[%s2238 + $0x6a] sm:$0xff]
        %v2635 = vld [vmem:[%s2238 + $0x7a] sm:$0xff]
        %v2636 = vld [vmem:[%s2238 + $0x82] sm:$0xff]
        %v2637 = vld [vmem:[%s2238 + $0x92] sm:$0xff]
        %v2638 = vld [vmem:[%s2238 + $0x9a] sm:$0xff]
        %v2639 = vld [vmem:[%s2238 + $0xaa] sm:$0xff]
        %v2640 = vld [vmem:[%s2238 + $0xb2] sm:$0xff]
        %v2641 = vld [vmem:[%s2238 + $0xc2] sm:$0xff]
        %v2642 = vld [vmem:[%s2238 + $0xca] sm:$0xff]
        %v2643 = vld [vmem:[%s2238 + $0xda] sm:$0xff]
        %v2644 = vld [vmem:[%s2238 + $0xe2] sm:$0xff]
        %v2645 = vld [vmem:[%s2238 + $0xf2] sm:$0xff]
        %v2646 = vld [vmem:[%s2238 + $0xfa] sm:$0xff]
        %v2647 = vld [vmem:[%s2238 + $0x10a] sm:$0xff]
        %v2648 = vld [vmem:[%s2238 + $0x112] sm:$0xff]
        %v2649 = vld [vmem:[%s2238 + $0x122] sm:$0xff]
        %v2650 = vld [vmem:[%s2238 + $0x12a] sm:$0xff]
        %v2651 = vld [vmem:[%s2238 + $0x13a] sm:$0xff]
        %v2652 = vld [vmem:[%s2238 + $0x142] sm:$0xff]
        %v2653 = vld [vmem:[%s2238 + $0x152] sm:$0xff]
        %v2654 = vld [vmem:[%s2238 + $0x15a] sm:$0xff]
        %v2655 = vld [vmem:[%s2238 + $0x16a] sm:$0xff]
        %v2656 = vld [vmem:[%s2238 + $0x172] sm:$0xff]
        %2689 = vrot.lane.b32.xlu0 %v2625, 36
        %v2690 = vpop.permute.xlu0 %2689
        %2691 = vrot.lane.b32.xlu0 %v2626, 36
        %v2692 = vpop.permute.xlu0 %2691
        %2693 = vrot.lane.b32.xlu0 %v2627, 36
        %v2694 = vpop.permute.xlu0 %2693
        %2695 = vrot.lane.b32.xlu0 %v2628, 36
        %v2696 = vpop.permute.xlu0 %2695
        %2697 = vrot.lane.b32.xlu0 %v2629, 36
        %v2698 = vpop.permute.xlu0 %2697
        %2699 = vrot.lane.b32.xlu0 %v2630, 36
        %v2700 = vpop.permute.xlu0 %2699
        %2701 = vrot.lane.b32.xlu0 %v2631, 36
        %v2702 = vpop.permute.xlu0 %2701
        %2703 = vrot.lane.b32.xlu0 %v2632, 36
        %v2704 = vpop.permute.xlu0 %2703
        %2705 = vrot.lane.b32.xlu0 %v2633, 36
        %v2706 = vpop.permute.xlu0 %2705
        %2707 = vrot.lane.b32.xlu0 %v2634, 36
        %v2708 = vpop.permute.xlu0 %2707
        %2709 = vrot.lane.b32.xlu0 %v2635, 36
        %v2710 = vpop.permute.xlu0 %2709
        %2711 = vrot.lane.b32.xlu0 %v2636, 36
        %v2712 = vpop.permute.xlu0 %2711
        %2713 = vrot.lane.b32.xlu0 %v2637, 36
        %v2714 = vpop.permute.xlu0 %2713
        %2715 = vrot.lane.b32.xlu0 %v2638, 36
        %v2716 = vpop.permute.xlu0 %2715
        %2717 = vrot.lane.b32.xlu0 %v2639, 36
        %v2718 = vpop.permute.xlu0 %2717
        %2719 = vrot.lane.b32.xlu0 %v2640, 36
        %v2720 = vpop.permute.xlu0 %2719
        %2721 = vrot.lane.b32.xlu0 %v2641, 36
        %v2722 = vpop.permute.xlu0 %2721
        %2723 = vrot.lane.b32.xlu0 %v2642, 36
        %v2724 = vpop.permute.xlu0 %2723
        %2725 = vrot.lane.b32.xlu0 %v2643, 36
        %v2726 = vpop.permute.xlu0 %2725
        %2727 = vrot.lane.b32.xlu0 %v2644, 36
        %v2728 = vpop.permute.xlu0 %2727
        %2729 = vrot.lane.b32.xlu0 %v2645, 36
        %v2730 = vpop.permute.xlu0 %2729
        %2731 = vrot.lane.b32.xlu0 %v2646, 36
        %v2732 = vpop.permute.xlu0 %2731
        %2733 = vrot.lane.b32.xlu0 %v2647, 36
        %v2734 = vpop.permute.xlu0 %2733
        %2735 = vrot.lane.b32.xlu0 %v2648, 36
        %v2736 = vpop.permute.xlu0 %2735
        %2737 = vrot.lane.b32.xlu0 %v2649, 36
        %v2738 = vpop.permute.xlu0 %2737
        %2739 = vrot.lane.b32.xlu0 %v2650, 36
        %v2740 = vpop.permute.xlu0 %2739
        %2741 = vrot.lane.b32.xlu0 %v2651, 36
        %v2742 = vpop.permute.xlu0 %2741
        %2743 = vrot.lane.b32.xlu0 %v2652, 36
        %v2744 = vpop.permute.xlu0 %2743
        %2745 = vrot.lane.b32.xlu0 %v2653, 36
        %v2746 = vpop.permute.xlu0 %2745
        %2747 = vrot.lane.b32.xlu0 %v2654, 36
        %v2748 = vpop.permute.xlu0 %2747
        %2749 = vrot.lane.b32.xlu0 %v2655, 36
        %v2750 = vpop.permute.xlu0 %2749
        %2751 = vrot.lane.b32.xlu0 %v2656, 36
        %v2752 = vpop.permute.xlu0 %2751
        %vm2785 = vcmask 326944
        %2786 = vst.msk [vmem:[#allocation5] sm:$0xff] %vm2785, %v2690
        %2787 = vst.msk [vmem:[#allocation5 + $0x8] sm:$0xff] %vm2785, %v2692
        %2788 = vst.msk [vmem:[#allocation5 + $0x10] sm:$0xff] %vm2785, %v2694
        %2789 = vst.msk [vmem:[#allocation5 + $0x18] sm:$0xff] %vm2785, %v2696
        %2790 = vst.msk [vmem:[#allocation5 + $0x20] sm:$0xff] %vm2785, %v2698
        %2791 = vst.msk [vmem:[#allocation5 + $0x28] sm:$0xff] %vm2785, %v2700
        %2792 = vst.msk [vmem:[#allocation5 + $0x30] sm:$0xff] %vm2785, %v2702
        %2793 = vst.msk [vmem:[#allocation5 + $0x38] sm:$0xff] %vm2785, %v2704
        %2794 = vst.msk [vmem:[#allocation5 + $0x40] sm:$0xff] %vm2785, %v2706
        %2795 = vst.msk [vmem:[#allocation5 + $0x48] sm:$0xff] %vm2785, %v2708
        %2796 = vst.msk [vmem:[#allocation5 + $0x50] sm:$0xff] %vm2785, %v2710
        %2797 = vst.msk [vmem:[#allocation5 + $0x58] sm:$0xff] %vm2785, %v2712
        %2798 = vst.msk [vmem:[#allocation5 + $0x60] sm:$0xff] %vm2785, %v2714
        %2799 = vst.msk [vmem:[#allocation5 + $0x68] sm:$0xff] %vm2785, %v2716
        %2800 = vst.msk [vmem:[#allocation5 + $0x70] sm:$0xff] %vm2785, %v2718
        %2801 = vst.msk [vmem:[#allocation5 + $0x78] sm:$0xff] %vm2785, %v2720
        %2802 = vst.msk [vmem:[#allocation5 + $0x80] sm:$0xff] %vm2785, %v2722
        %2803 = vst.msk [vmem:[#allocation5 + $0x88] sm:$0xff] %vm2785, %v2724
        %2804 = vst.msk [vmem:[#allocation5 + $0x90] sm:$0xff] %vm2785, %v2726
        %2805 = vst.msk [vmem:[#allocation5 + $0x98] sm:$0xff] %vm2785, %v2728
        %2806 = vst.msk [vmem:[#allocation5 + $0xa0] sm:$0xff] %vm2785, %v2730
        %2807 = vst.msk [vmem:[#allocation5 + $0xa8] sm:$0xff] %vm2785, %v2732
        %2808 = vst.msk [vmem:[#allocation5 + $0xb0] sm:$0xff] %vm2785, %v2734
        %2809 = vst.msk [vmem:[#allocation5 + $0xb8] sm:$0xff] %vm2785, %v2736
        %2810 = vst.msk [vmem:[#allocation5 + $0xc0] sm:$0xff] %vm2785, %v2738
        %2811 = vst.msk [vmem:[#allocation5 + $0xc8] sm:$0xff] %vm2785, %v2740
        %2812 = vst.msk [vmem:[#allocation5 + $0xd0] sm:$0xff] %vm2785, %v2742
        %2813 = vst.msk [vmem:[#allocation5 + $0xd8] sm:$0xff] %vm2785, %v2744
        %2814 = vst.msk [vmem:[#allocation5 + $0xe0] sm:$0xff] %vm2785, %v2746
        %2815 = vst.msk [vmem:[#allocation5 + $0xe8] sm:$0xff] %vm2785, %v2748
        %2816 = vst.msk [vmem:[#allocation5 + $0xf0] sm:$0xff] %vm2785, %v2750
        %2817 = vst.msk [vmem:[#allocation5 + $0xf8] sm:$0xff] %vm2785, %v2752
        %v2818 = vld [vmem:[#allocation3] sm:$0xff]
        %v2819 = vld [vmem:[#allocation3 + $0x8] sm:$0xff]
        %v2820 = vld [vmem:[#allocation3 + $0x18] sm:$0xff]
        %v2821 = vld [vmem:[#allocation3 + $0x20] sm:$0xff]
        %v2822 = vld [vmem:[#allocation3 + $0x30] sm:$0xff]
        %v2823 = vld [vmem:[#allocation3 + $0x38] sm:$0xff]
        %v2824 = vld [vmem:[#allocation3 + $0x48] sm:$0xff]
        %v2825 = vld [vmem:[#allocation3 + $0x50] sm:$0xff]
        %v2826 = vld [vmem:[#allocation3 + $0x60] sm:$0xff]
        %v2827 = vld [vmem:[#allocation3 + $0x68] sm:$0xff]
        %v2828 = vld [vmem:[#allocation3 + $0x78] sm:$0xff]
        %v2829 = vld [vmem:[#allocation3 + $0x80] sm:$0xff]
        %v2830 = vld [vmem:[#allocation3 + $0x90] sm:$0xff]
        %v2831 = vld [vmem:[#allocation3 + $0x98] sm:$0xff]
        %v2832 = vld [vmem:[#allocation3 + $0xa8] sm:$0xff]
        %v2833 = vld [vmem:[#allocation3 + $0xb0] sm:$0xff]
        %v2834 = vld [vmem:[#allocation3 + $0xc0] sm:$0xff]
        %v2835 = vld [vmem:[#allocation3 + $0xc8] sm:$0xff]
        %v2836 = vld [vmem:[#allocation3 + $0xd8] sm:$0xff]
        %v2837 = vld [vmem:[#allocation3 + $0xe0] sm:$0xff]
        %v2838 = vld [vmem:[#allocation3 + $0xf0] sm:$0xff]
        %v2839 = vld [vmem:[#allocation3 + $0xf8] sm:$0xff]
        %v2840 = vld [vmem:[#allocation3 + $0x108] sm:$0xff]
        %v2841 = vld [vmem:[#allocation3 + $0x110] sm:$0xff]
        %v2842 = vld [vmem:[#allocation3 + $0x120] sm:$0xff]
        %v2843 = vld [vmem:[#allocation3 + $0x128] sm:$0xff]
        %v2844 = vld [vmem:[#allocation3 + $0x138] sm:$0xff]
        %v2845 = vld [vmem:[#allocation3 + $0x140] sm:$0xff]
        %v2846 = vld [vmem:[#allocation3 + $0x150] sm:$0xff]
        %v2847 = vld [vmem:[#allocation3 + $0x158] sm:$0xff]
        %v2848 = vld [vmem:[#allocation3 + $0x168] sm:$0xff]
        %v2849 = vld [vmem:[#allocation3 + $0x170] sm:$0xff]
        %2882 = vrot.lane.b32.xlu0 %v2818, 40
        %v2883 = vpop.permute.xlu0 %2882
        %2884 = vrot.lane.b32.xlu0 %v2819, 40
        %v2885 = vpop.permute.xlu0 %2884
        %2886 = vrot.lane.b32.xlu0 %v2820, 40
        %v2887 = vpop.permute.xlu0 %2886
        %2888 = vrot.lane.b32.xlu0 %v2821, 40
        %v2889 = vpop.permute.xlu0 %2888
        %2890 = vrot.lane.b32.xlu0 %v2822, 40
        %v2891 = vpop.permute.xlu0 %2890
        %2892 = vrot.lane.b32.xlu0 %v2823, 40
        %v2893 = vpop.permute.xlu0 %2892
        %2894 = vrot.lane.b32.xlu0 %v2824, 40
        %v2895 = vpop.permute.xlu0 %2894
        %2896 = vrot.lane.b32.xlu0 %v2825, 40
        %v2897 = vpop.permute.xlu0 %2896
        %2898 = vrot.lane.b32.xlu0 %v2826, 40
        %v2899 = vpop.permute.xlu0 %2898
        %2900 = vrot.lane.b32.xlu0 %v2827, 40
        %v2901 = vpop.permute.xlu0 %2900
        %2902 = vrot.lane.b32.xlu0 %v2828, 40
        %v2903 = vpop.permute.xlu0 %2902
        %2904 = vrot.lane.b32.xlu0 %v2829, 40
        %v2905 = vpop.permute.xlu0 %2904
        %2906 = vrot.lane.b32.xlu0 %v2830, 40
        %v2907 = vpop.permute.xlu0 %2906
        %2908 = vrot.lane.b32.xlu0 %v2831, 40
        %v2909 = vpop.permute.xlu0 %2908
        %2910 = vrot.lane.b32.xlu0 %v2832, 40
        %v2911 = vpop.permute.xlu0 %2910
        %2912 = vrot.lane.b32.xlu0 %v2833, 40
        %v2913 = vpop.permute.xlu0 %2912
        %2914 = vrot.lane.b32.xlu0 %v2834, 40
        %v2915 = vpop.permute.xlu0 %2914
        %2916 = vrot.lane.b32.xlu0 %v2835, 40
        %v2917 = vpop.permute.xlu0 %2916
        %2918 = vrot.lane.b32.xlu0 %v2836, 40
        %v2919 = vpop.permute.xlu0 %2918
        %2920 = vrot.lane.b32.xlu0 %v2837, 40
        %v2921 = vpop.permute.xlu0 %2920
        %2922 = vrot.lane.b32.xlu0 %v2838, 40
        %v2923 = vpop.permute.xlu0 %2922
        %2924 = vrot.lane.b32.xlu0 %v2839, 40
        %v2925 = vpop.permute.xlu0 %2924
        %2926 = vrot.lane.b32.xlu0 %v2840, 40
        %v2927 = vpop.permute.xlu0 %2926
        %2928 = vrot.lane.b32.xlu0 %v2841, 40
        %v2929 = vpop.permute.xlu0 %2928
        %2930 = vrot.lane.b32.xlu0 %v2842, 40
        %v2931 = vpop.permute.xlu0 %2930
        %2932 = vrot.lane.b32.xlu0 %v2843, 40
        %v2933 = vpop.permute.xlu0 %2932
        %2934 = vrot.lane.b32.xlu0 %v2844, 40
        %v2935 = vpop.permute.xlu0 %2934
        %2936 = vrot.lane.b32.xlu0 %v2845, 40
        %v2937 = vpop.permute.xlu0 %2936
        %2938 = vrot.lane.b32.xlu0 %v2846, 40
        %v2939 = vpop.permute.xlu0 %2938
        %2940 = vrot.lane.b32.xlu0 %v2847, 40
        %v2941 = vpop.permute.xlu0 %2940
        %2942 = vrot.lane.b32.xlu0 %v2848, 40
        %v2943 = vpop.permute.xlu0 %2942
        %2944 = vrot.lane.b32.xlu0 %v2849, 40
        %v2945 = vpop.permute.xlu0 %2944
        %vm2978 = vcmask 343360
        %2979 = vst.msk [vmem:[#allocation5] sm:$0xff] %vm2978, %v2883
        %2980 = vst.msk [vmem:[#allocation5 + $0x8] sm:$0xff] %vm2978, %v2885
        %2981 = vst.msk [vmem:[#allocation5 + $0x10] sm:$0xff] %vm2978, %v2887
        %2982 = vst.msk [vmem:[#allocation5 + $0x18] sm:$0xff] %vm2978, %v2889
        %2983 = vst.msk [vmem:[#allocation5 + $0x20] sm:$0xff] %vm2978, %v2891
        %2984 = vst.msk [vmem:[#allocation5 + $0x28] sm:$0xff] %vm2978, %v2893
        %2985 = vst.msk [vmem:[#allocation5 + $0x30] sm:$0xff] %vm2978, %v2895
        %2986 = vst.msk [vmem:[#allocation5 + $0x38] sm:$0xff] %vm2978, %v2897
        %2987 = vst.msk [vmem:[#allocation5 + $0x40] sm:$0xff] %vm2978, %v2899
        %2988 = vst.msk [vmem:[#allocation5 + $0x48] sm:$0xff] %vm2978, %v2901
        %2989 = vst.msk [vmem:[#allocation5 + $0x50] sm:$0xff] %vm2978, %v2903
        %2990 = vst.msk [vmem:[#allocation5 + $0x58] sm:$0xff] %vm2978, %v2905
        %2991 = vst.msk [vmem:[#allocation5 + $0x60] sm:$0xff] %vm2978, %v2907
        %2992 = vst.msk [vmem:[#allocation5 + $0x68] sm:$0xff] %vm2978, %v2909
        %2993 = vst.msk [vmem:[#allocation5 + $0x70] sm:$0xff] %vm2978, %v2911
        %2994 = vst.msk [vmem:[#allocation5 + $0x78] sm:$0xff] %vm2978, %v2913
        %2995 = vst.msk [vmem:[#allocation5 + $0x80] sm:$0xff] %vm2978, %v2915
        %2996 = vst.msk [vmem:[#allocation5 + $0x88] sm:$0xff] %vm2978, %v2917
        %2997 = vst.msk [vmem:[#allocation5 + $0x90] sm:$0xff] %vm2978, %v2919
        %2998 = vst.msk [vmem:[#allocation5 + $0x98] sm:$0xff] %vm2978, %v2921
        %2999 = vst.msk [vmem:[#allocation5 + $0xa0] sm:$0xff] %vm2978, %v2923
        %3000 = vst.msk [vmem:[#allocation5 + $0xa8] sm:$0xff] %vm2978, %v2925
        %3001 = vst.msk [vmem:[#allocation5 + $0xb0] sm:$0xff] %vm2978, %v2927
        %3002 = vst.msk [vmem:[#allocation5 + $0xb8] sm:$0xff] %vm2978, %v2929
        %3003 = vst.msk [vmem:[#allocation5 + $0xc0] sm:$0xff] %vm2978, %v2931
        %3004 = vst.msk [vmem:[#allocation5 + $0xc8] sm:$0xff] %vm2978, %v2933
        %3005 = vst.msk [vmem:[#allocation5 + $0xd0] sm:$0xff] %vm2978, %v2935
        %3006 = vst.msk [vmem:[#allocation5 + $0xd8] sm:$0xff] %vm2978, %v2937
        %3007 = vst.msk [vmem:[#allocation5 + $0xe0] sm:$0xff] %vm2978, %v2939
        %3008 = vst.msk [vmem:[#allocation5 + $0xe8] sm:$0xff] %vm2978, %v2941
        %3009 = vst.msk [vmem:[#allocation5 + $0xf0] sm:$0xff] %vm2978, %v2943
        %3010 = vst.msk [vmem:[#allocation5 + $0xf8] sm:$0xff] %vm2978, %v2945
        %v3011 = vld [vmem:[#allocation3 + $0x1] sm:$0xff]
        %v3012 = vld [vmem:[#allocation3 + $0x9] sm:$0xff]
        %v3013 = vld [vmem:[#allocation3 + $0x19] sm:$0xff]
        %v3014 = vld [vmem:[#allocation3 + $0x21] sm:$0xff]
        %v3015 = vld [vmem:[#allocation3 + $0x31] sm:$0xff]
        %v3016 = vld [vmem:[#allocation3 + $0x39] sm:$0xff]
        %v3017 = vld [vmem:[#allocation3 + $0x49] sm:$0xff]
        %v3018 = vld [vmem:[#allocation3 + $0x51] sm:$0xff]
        %v3019 = vld [vmem:[#allocation3 + $0x61] sm:$0xff]
        %v3020 = vld [vmem:[#allocation3 + $0x69] sm:$0xff]
        %v3021 = vld [vmem:[#allocation3 + $0x79] sm:$0xff]
        %v3022 = vld [vmem:[#allocation3 + $0x81] sm:$0xff]
        %v3023 = vld [vmem:[#allocation3 + $0x91] sm:$0xff]
        %v3024 = vld [vmem:[#allocation3 + $0x99] sm:$0xff]
        %v3025 = vld [vmem:[#allocation3 + $0xa9] sm:$0xff]
        %v3026 = vld [vmem:[#allocation3 + $0xb1] sm:$0xff]
        %v3027 = vld [vmem:[#allocation3 + $0xc1] sm:$0xff]
        %v3028 = vld [vmem:[#allocation3 + $0xc9] sm:$0xff]
        %v3029 = vld [vmem:[#allocation3 + $0xd9] sm:$0xff]
        %v3030 = vld [vmem:[#allocation3 + $0xe1] sm:$0xff]
        %v3031 = vld [vmem:[#allocation3 + $0xf1] sm:$0xff]
        %v3032 = vld [vmem:[#allocation3 + $0xf9] sm:$0xff]
        %v3033 = vld [vmem:[#allocation3 + $0x109] sm:$0xff]
        %v3034 = vld [vmem:[#allocation3 + $0x111] sm:$0xff]
        %v3035 = vld [vmem:[#allocation3 + $0x121] sm:$0xff]
        %v3036 = vld [vmem:[#allocation3 + $0x129] sm:$0xff]
        %v3037 = vld [vmem:[#allocation3 + $0x139] sm:$0xff]
        %v3038 = vld [vmem:[#allocation3 + $0x141] sm:$0xff]
        %v3039 = vld [vmem:[#allocation3 + $0x151] sm:$0xff]
        %v3040 = vld [vmem:[#allocation3 + $0x159] sm:$0xff]
        %v3041 = vld [vmem:[#allocation3 + $0x169] sm:$0xff]
        %v3042 = vld [vmem:[#allocation3 + $0x171] sm:$0xff]
        %3075 = vrot.lane.b32.xlu0 %v3011, 42
        %v3076 = vpop.permute.xlu0 %3075
        %3077 = vrot.lane.b32.xlu0 %v3012, 42
        %v3078 = vpop.permute.xlu0 %3077
        %3079 = vrot.lane.b32.xlu0 %v3013, 42
        %v3080 = vpop.permute.xlu0 %3079
        %3081 = vrot.lane.b32.xlu0 %v3014, 42
        %v3082 = vpop.permute.xlu0 %3081
        %3083 = vrot.lane.b32.xlu0 %v3015, 42
        %v3084 = vpop.permute.xlu0 %3083
        %3085 = vrot.lane.b32.xlu0 %v3016, 42
        %v3086 = vpop.permute.xlu0 %3085
        %3087 = vrot.lane.b32.xlu0 %v3017, 42
        %v3088 = vpop.permute.xlu0 %3087
        %3089 = vrot.lane.b32.xlu0 %v3018, 42
        %v3090 = vpop.permute.xlu0 %3089
        %3091 = vrot.lane.b32.xlu0 %v3019, 42
        %v3092 = vpop.permute.xlu0 %3091
        %3093 = vrot.lane.b32.xlu0 %v3020, 42
        %v3094 = vpop.permute.xlu0 %3093
        %3095 = vrot.lane.b32.xlu0 %v3021, 42
        %v3096 = vpop.permute.xlu0 %3095
        %3097 = vrot.lane.b32.xlu0 %v3022, 42
        %v3098 = vpop.permute.xlu0 %3097
        %3099 = vrot.lane.b32.xlu0 %v3023, 42
        %v3100 = vpop.permute.xlu0 %3099
        %3101 = vrot.lane.b32.xlu0 %v3024, 42
        %v3102 = vpop.permute.xlu0 %3101
        %3103 = vrot.lane.b32.xlu0 %v3025, 42
        %v3104 = vpop.permute.xlu0 %3103
        %3105 = vrot.lane.b32.xlu0 %v3026, 42
        %v3106 = vpop.permute.xlu0 %3105
        %3107 = vrot.lane.b32.xlu0 %v3027, 42
        %v3108 = vpop.permute.xlu0 %3107
        %3109 = vrot.lane.b32.xlu0 %v3028, 42
        %v3110 = vpop.permute.xlu0 %3109
        %3111 = vrot.lane.b32.xlu0 %v3029, 42
        %v3112 = vpop.permute.xlu0 %3111
        %3113 = vrot.lane.b32.xlu0 %v3030, 42
        %v3114 = vpop.permute.xlu0 %3113
        %3115 = vrot.lane.b32.xlu0 %v3031, 42
        %v3116 = vpop.permute.xlu0 %3115
        %3117 = vrot.lane.b32.xlu0 %v3032, 42
        %v3118 = vpop.permute.xlu0 %3117
        %3119 = vrot.lane.b32.xlu0 %v3033, 42
        %v3120 = vpop.permute.xlu0 %3119
        %3121 = vrot.lane.b32.xlu0 %v3034, 42
        %v3122 = vpop.permute.xlu0 %3121
        %3123 = vrot.lane.b32.xlu0 %v3035, 42
        %v3124 = vpop.permute.xlu0 %3123
        %3125 = vrot.lane.b32.xlu0 %v3036, 42
        %v3126 = vpop.permute.xlu0 %3125
        %3127 = vrot.lane.b32.xlu0 %v3037, 42
        %v3128 = vpop.permute.xlu0 %3127
        %3129 = vrot.lane.b32.xlu0 %v3038, 42
        %v3130 = vpop.permute.xlu0 %3129
        %3131 = vrot.lane.b32.xlu0 %v3039, 42
        %v3132 = vpop.permute.xlu0 %3131
        %3133 = vrot.lane.b32.xlu0 %v3040, 42
        %v3134 = vpop.permute.xlu0 %3133
        %3135 = vrot.lane.b32.xlu0 %v3041, 42
        %v3136 = vpop.permute.xlu0 %3135
        %3137 = vrot.lane.b32.xlu0 %v3042, 42
        %v3138 = vpop.permute.xlu0 %3137
        %vm3171 = vcmask 359760
        %3172 = vst.msk [vmem:[#allocation5] sm:$0xff] %vm3171, %v3076
        %3173 = vst.msk [vmem:[#allocation5 + $0x8] sm:$0xff] %vm3171, %v3078
        %3174 = vst.msk [vmem:[#allocation5 + $0x10] sm:$0xff] %vm3171, %v3080
        %3175 = vst.msk [vmem:[#allocation5 + $0x18] sm:$0xff] %vm3171, %v3082
        %3176 = vst.msk [vmem:[#allocation5 + $0x20] sm:$0xff] %vm3171, %v3084
        %3177 = vst.msk [vmem:[#allocation5 + $0x28] sm:$0xff] %vm3171, %v3086
        %3178 = vst.msk [vmem:[#allocation5 + $0x30] sm:$0xff] %vm3171, %v3088
        %3179 = vst.msk [vmem:[#allocation5 + $0x38] sm:$0xff] %vm3171, %v3090
        %3180 = vst.msk [vmem:[#allocation5 + $0x40] sm:$0xff] %vm3171, %v3092
        %3181 = vst.msk [vmem:[#allocation5 + $0x48] sm:$0xff] %vm3171, %v3094
        %3182 = vst.msk [vmem:[#allocation5 + $0x50] sm:$0xff] %vm3171, %v3096
        %3183 = vst.msk [vmem:[#allocation5 + $0x58] sm:$0xff] %vm3171, %v3098
        %3184 = vst.msk [vmem:[#allocation5 + $0x60] sm:$0xff] %vm3171, %v3100
        %3185 = vst.msk [vmem:[#allocation5 + $0x68] sm:$0xff] %vm3171, %v3102
        %3186 = vst.msk [vmem:[#allocation5 + $0x70] sm:$0xff] %vm3171, %v3104
        %3187 = vst.msk [vmem:[#allocation5 + $0x78] sm:$0xff] %vm3171, %v3106
        %3188 = vst.msk [vmem:[#allocation5 + $0x80] sm:$0xff] %vm3171, %v3108
        %3189 = vst.msk [vmem:[#allocation5 + $0x88] sm:$0xff] %vm3171, %v3110
        %3190 = vst.msk [vmem:[#allocation5 + $0x90] sm:$0xff] %vm3171, %v3112
        %3191 = vst.msk [vmem:[#allocation5 + $0x98] sm:$0xff] %vm3171, %v3114
        %3192 = vst.msk [vmem:[#allocation5 + $0xa0] sm:$0xff] %vm3171, %v3116
        %3193 = vst.msk [vmem:[#allocation5 + $0xa8] sm:$0xff] %vm3171, %v3118
        %3194 = vst.msk [vmem:[#allocation5 + $0xb0] sm:$0xff] %vm3171, %v3120
        %3195 = vst.msk [vmem:[#allocation5 + $0xb8] sm:$0xff] %vm3171, %v3122
        %3196 = vst.msk [vmem:[#allocation5 + $0xc0] sm:$0xff] %vm3171, %v3124
        %3197 = vst.msk [vmem:[#allocation5 + $0xc8] sm:$0xff] %vm3171, %v3126
        %3198 = vst.msk [vmem:[#allocation5 + $0xd0] sm:$0xff] %vm3171, %v3128
        %3199 = vst.msk [vmem:[#allocation5 + $0xd8] sm:$0xff] %vm3171, %v3130
        %3200 = vst.msk [vmem:[#allocation5 + $0xe0] sm:$0xff] %vm3171, %v3132
        %3201 = vst.msk [vmem:[#allocation5 + $0xe8] sm:$0xff] %vm3171, %v3134
        %3202 = vst.msk [vmem:[#allocation5 + $0xf0] sm:$0xff] %vm3171, %v3136
        %3203 = vst.msk [vmem:[#allocation5 + $0xf8] sm:$0xff] %vm3171, %v3138
        %v3204 = vld [vmem:[#allocation3 + $0x2] sm:$0xff]
        %v3205 = vld [vmem:[#allocation3 + $0xa] sm:$0xff]
        %v3206 = vld [vmem:[#allocation3 + $0x1a] sm:$0xff]
        %v3207 = vld [vmem:[#allocation3 + $0x22] sm:$0xff]
        %v3208 = vld [vmem:[#allocation3 + $0x32] sm:$0xff]
        %v3209 = vld [vmem:[#allocation3 + $0x3a] sm:$0xff]
        %v3210 = vld [vmem:[#allocation3 + $0x4a] sm:$0xff]
        %v3211 = vld [vmem:[#allocation3 + $0x52] sm:$0xff]
        %v3212 = vld [vmem:[#allocation3 + $0x62] sm:$0xff]
        %v3213 = vld [vmem:[#allocation3 + $0x6a] sm:$0xff]
        %v3214 = vld [vmem:[#allocation3 + $0x7a] sm:$0xff]
        %v3215 = vld [vmem:[#allocation3 + $0x82] sm:$0xff]
        %v3216 = vld [vmem:[#allocation3 + $0x92] sm:$0xff]
        %v3217 = vld [vmem:[#allocation3 + $0x9a] sm:$0xff]
        %v3218 = vld [vmem:[#allocation3 + $0xaa] sm:$0xff]
        %v3219 = vld [vmem:[#allocation3 + $0xb2] sm:$0xff]
        %v3220 = vld [vmem:[#allocation3 + $0xc2] sm:$0xff]
        %v3221 = vld [vmem:[#allocation3 + $0xca] sm:$0xff]
        %v3222 = vld [vmem:[#allocation3 + $0xda] sm:$0xff]
        %v3223 = vld [vmem:[#allocation3 + $0xe2] sm:$0xff]
        %v3224 = vld [vmem:[#allocation3 + $0xf2] sm:$0xff]
        %v3225 = vld [vmem:[#allocation3 + $0xfa] sm:$0xff]
        %v3226 = vld [vmem:[#allocation3 + $0x10a] sm:$0xff]
        %v3227 = vld [vmem:[#allocation3 + $0x112] sm:$0xff]
        %v3228 = vld [vmem:[#allocation3 + $0x122] sm:$0xff]
        %v3229 = vld [vmem:[#allocation3 + $0x12a] sm:$0xff]
        %v3230 = vld [vmem:[#allocation3 + $0x13a] sm:$0xff]
        %v3231 = vld [vmem:[#allocation3 + $0x142] sm:$0xff]
        %v3232 = vld [vmem:[#allocation3 + $0x152] sm:$0xff]
        %v3233 = vld [vmem:[#allocation3 + $0x15a] sm:$0xff]
        %v3234 = vld [vmem:[#allocation3 + $0x16a] sm:$0xff]
        %v3235 = vld [vmem:[#allocation3 + $0x172] sm:$0xff]
        %3268 = vrot.lane.b32.xlu0 %v3204, 44
        %v3269 = vpop.permute.xlu0 %3268
        %3270 = vrot.lane.b32.xlu0 %v3205, 44
        %v3271 = vpop.permute.xlu0 %3270
        %3272 = vrot.lane.b32.xlu0 %v3206, 44
        %v3273 = vpop.permute.xlu0 %3272
        %3274 = vrot.lane.b32.xlu0 %v3207, 44
        %v3275 = vpop.permute.xlu0 %3274
        %3276 = vrot.lane.b32.xlu0 %v3208, 44
        %v3277 = vpop.permute.xlu0 %3276
        %3278 = vrot.lane.b32.xlu0 %v3209, 44
        %v3279 = vpop.permute.xlu0 %3278
        %3280 = vrot.lane.b32.xlu0 %v3210, 44
        %v3281 = vpop.permute.xlu0 %3280
        %3282 = vrot.lane.b32.xlu0 %v3211, 44
        %v3283 = vpop.permute.xlu0 %3282
        %3284 = vrot.lane.b32.xlu0 %v3212, 44
        %v3285 = vpop.permute.xlu0 %3284
        %3286 = vrot.lane.b32.xlu0 %v3213, 44
        %v3287 = vpop.permute.xlu0 %3286
        %3288 = vrot.lane.b32.xlu0 %v3214, 44
        %v3289 = vpop.permute.xlu0 %3288
        %3290 = vrot.lane.b32.xlu0 %v3215, 44
        %v3291 = vpop.permute.xlu0 %3290
        %3292 = vrot.lane.b32.xlu0 %v3216, 44
        %v3293 = vpop.permute.xlu0 %3292
        %3294 = vrot.lane.b32.xlu0 %v3217, 44
        %v3295 = vpop.permute.xlu0 %3294
        %3296 = vrot.lane.b32.xlu0 %v3218, 44
        %v3297 = vpop.permute.xlu0 %3296
        %3298 = vrot.lane.b32.xlu0 %v3219, 44
        %v3299 = vpop.permute.xlu0 %3298
        %3300 = vrot.lane.b32.xlu0 %v3220, 44
        %v3301 = vpop.permute.xlu0 %3300
        %3302 = vrot.lane.b32.xlu0 %v3221, 44
        %v3303 = vpop.permute.xlu0 %3302
        %3304 = vrot.lane.b32.xlu0 %v3222, 44
        %v3305 = vpop.permute.xlu0 %3304
        %3306 = vrot.lane.b32.xlu0 %v3223, 44
        %v3307 = vpop.permute.xlu0 %3306
        %3308 = vrot.lane.b32.xlu0 %v3224, 44
        %v3309 = vpop.permute.xlu0 %3308
        %3310 = vrot.lane.b32.xlu0 %v3225, 44
        %v3311 = vpop.permute.xlu0 %3310
        %3312 = vrot.lane.b32.xlu0 %v3226, 44
        %v3313 = vpop.permute.xlu0 %3312
        %3314 = vrot.lane.b32.xlu0 %v3227, 44
        %v3315 = vpop.permute.xlu0 %3314
        %3316 = vrot.lane.b32.xlu0 %v3228, 44
        %v3317 = vpop.permute.xlu0 %3316
        %3318 = vrot.lane.b32.xlu0 %v3229, 44
        %v3319 = vpop.permute.xlu0 %3318
        %3320 = vrot.lane.b32.xlu0 %v3230, 44
        %v3321 = vpop.permute.xlu0 %3320
        %3322 = vrot.lane.b32.xlu0 %v3231, 44
        %v3323 = vpop.permute.xlu0 %3322
        %3324 = vrot.lane.b32.xlu0 %v3232, 44
        %v3325 = vpop.permute.xlu0 %3324
        %3326 = vrot.lane.b32.xlu0 %v3233, 44
        %v3327 = vpop.permute.xlu0 %3326
        %3328 = vrot.lane.b32.xlu0 %v3234, 44
        %v3329 = vpop.permute.xlu0 %3328
        %3330 = vrot.lane.b32.xlu0 %v3235, 44
        %v3331 = vpop.permute.xlu0 %3330
        %vm3364 = vcmask 376160
        %3365 = vst.msk [vmem:[#allocation5] sm:$0xff] %vm3364, %v3269
        %3366 = vst.msk [vmem:[#allocation5 + $0x8] sm:$0xff] %vm3364, %v3271
        %3367 = vst.msk [vmem:[#allocation5 + $0x10] sm:$0xff] %vm3364, %v3273
        %3368 = vst.msk [vmem:[#allocation5 + $0x18] sm:$0xff] %vm3364, %v3275
        %3369 = vst.msk [vmem:[#allocation5 + $0x20] sm:$0xff] %vm3364, %v3277
        %3370 = vst.msk [vmem:[#allocation5 + $0x28] sm:$0xff] %vm3364, %v3279
        %3371 = vst.msk [vmem:[#allocation5 + $0x30] sm:$0xff] %vm3364, %v3281
        %3372 = vst.msk [vmem:[#allocation5 + $0x38] sm:$0xff] %vm3364, %v3283
        %3373 = vst.msk [vmem:[#allocation5 + $0x40] sm:$0xff] %vm3364, %v3285
        %3374 = vst.msk [vmem:[#allocation5 + $0x48] sm:$0xff] %vm3364, %v3287
        %3375 = vst.msk [vmem:[#allocation5 + $0x50] sm:$0xff] %vm3364, %v3289
        %3376 = vst.msk [vmem:[#allocation5 + $0x58] sm:$0xff] %vm3364, %v3291
        %3377 = vst.msk [vmem:[#allocation5 + $0x60] sm:$0xff] %vm3364, %v3293
        %3378 = vst.msk [vmem:[#allocation5 + $0x68] sm:$0xff] %vm3364, %v3295
        %3379 = vst.msk [vmem:[#allocation5 + $0x70] sm:$0xff] %vm3364, %v3297
        %3380 = vst.msk [vmem:[#allocation5 + $0x78] sm:$0xff] %vm3364, %v3299
        %3381 = vst.msk [vmem:[#allocation5 + $0x80] sm:$0xff] %vm3364, %v3301
        %3382 = vst.msk [vmem:[#allocation5 + $0x88] sm:$0xff] %vm3364, %v3303
        %3383 = vst.msk [vmem:[#allocation5 + $0x90] sm:$0xff] %vm3364, %v3305
        %3384 = vst.msk [vmem:[#allocation5 + $0x98] sm:$0xff] %vm3364, %v3307
        %3385 = vst.msk [vmem:[#allocation5 + $0xa0] sm:$0xff] %vm3364, %v3309
        %3386 = vst.msk [vmem:[#allocation5 + $0xa8] sm:$0xff] %vm3364, %v3311
        %3387 = vst.msk [vmem:[#allocation5 + $0xb0] sm:$0xff] %vm3364, %v3313
        %3388 = vst.msk [vmem:[#allocation5 + $0xb8] sm:$0xff] %vm3364, %v3315
        %3389 = vst.msk [vmem:[#allocation5 + $0xc0] sm:$0xff] %vm3364, %v3317
        %3390 = vst.msk [vmem:[#allocation5 + $0xc8] sm:$0xff] %vm3364, %v3319
        %3391 = vst.msk [vmem:[#allocation5 + $0xd0] sm:$0xff] %vm3364, %v3321
        %3392 = vst.msk [vmem:[#allocation5 + $0xd8] sm:$0xff] %vm3364, %v3323
        %3393 = vst.msk [vmem:[#allocation5 + $0xe0] sm:$0xff] %vm3364, %v3325
        %3394 = vst.msk [vmem:[#allocation5 + $0xe8] sm:$0xff] %vm3364, %v3327
        %3395 = vst.msk [vmem:[#allocation5 + $0xf0] sm:$0xff] %vm3364, %v3329
        %3396 = vst.msk [vmem:[#allocation5 + $0xf8] sm:$0xff] %vm3364, %v3331
        %v3397 = vld [vmem:[#allocation3 + $0x3] sm:$0xff]
        %v3398 = vld [vmem:[#allocation3 + $0xb] sm:$0xff]
        %v3399 = vld [vmem:[#allocation3 + $0x1b] sm:$0xff]
        %v3400 = vld [vmem:[#allocation3 + $0x23] sm:$0xff]
        %v3401 = vld [vmem:[#allocation3 + $0x33] sm:$0xff]
        %v3402 = vld [vmem:[#allocation3 + $0x3b] sm:$0xff]
        %v3403 = vld [vmem:[#allocation3 + $0x4b] sm:$0xff]
        %v3404 = vld [vmem:[#allocation3 + $0x53] sm:$0xff]
        %v3405 = vld [vmem:[#allocation3 + $0x63] sm:$0xff]
        %v3406 = vld [vmem:[#allocation3 + $0x6b] sm:$0xff]
        %v3407 = vld [vmem:[#allocation3 + $0x7b] sm:$0xff]
        %v3408 = vld [vmem:[#allocation3 + $0x83] sm:$0xff]
        %v3409 = vld [vmem:[#allocation3 + $0x93] sm:$0xff]
        %v3410 = vld [vmem:[#allocation3 + $0x9b] sm:$0xff]
        %v3411 = vld [vmem:[#allocation3 + $0xab] sm:$0xff]
        %v3412 = vld [vmem:[#allocation3 + $0xb3] sm:$0xff]
        %v3413 = vld [vmem:[#allocation3 + $0xc3] sm:$0xff]
        %v3414 = vld [vmem:[#allocation3 + $0xcb] sm:$0xff]
        %v3415 = vld [vmem:[#allocation3 + $0xdb] sm:$0xff]
        %v3416 = vld [vmem:[#allocation3 + $0xe3] sm:$0xff]
        %v3417 = vld [vmem:[#allocation3 + $0xf3] sm:$0xff]
        %v3418 = vld [vmem:[#allocation3 + $0xfb] sm:$0xff]
        %v3419 = vld [vmem:[#allocation3 + $0x10b] sm:$0xff]
        %v3420 = vld [vmem:[#allocation3 + $0x113] sm:$0xff]
        %v3421 = vld [vmem:[#allocation3 + $0x123] sm:$0xff]
        %v3422 = vld [vmem:[#allocation3 + $0x12b] sm:$0xff]
        %v3423 = vld [vmem:[#allocation3 + $0x13b] sm:$0xff]
        %v3424 = vld [vmem:[#allocation3 + $0x143] sm:$0xff]
        %v3425 = vld [vmem:[#allocation3 + $0x153] sm:$0xff]
        %v3426 = vld [vmem:[#allocation3 + $0x15b] sm:$0xff]
        %v3427 = vld [vmem:[#allocation3 + $0x16b] sm:$0xff]
        %v3428 = vld [vmem:[#allocation3 + $0x173] sm:$0xff]
        %3461 = vrot.lane.b32.xlu0 %v3397, 46
        %v3462 = vpop.permute.xlu0 %3461
        %3463 = vrot.lane.b32.xlu0 %v3398, 46
        %v3464 = vpop.permute.xlu0 %3463
        %3465 = vrot.lane.b32.xlu0 %v3399, 46
        %v3466 = vpop.permute.xlu0 %3465
        %3467 = vrot.lane.b32.xlu0 %v3400, 46
        %v3468 = vpop.permute.xlu0 %3467
        %3469 = vrot.lane.b32.xlu0 %v3401, 46
        %v3470 = vpop.permute.xlu0 %3469
        %3471 = vrot.lane.b32.xlu0 %v3402, 46
        %v3472 = vpop.permute.xlu0 %3471
        %3473 = vrot.lane.b32.xlu0 %v3403, 46
        %v3474 = vpop.permute.xlu0 %3473
        %3475 = vrot.lane.b32.xlu0 %v3404, 46
        %v3476 = vpop.permute.xlu0 %3475
        %3477 = vrot.lane.b32.xlu0 %v3405, 46
        %v3478 = vpop.permute.xlu0 %3477
        %3479 = vrot.lane.b32.xlu0 %v3406, 46
        %v3480 = vpop.permute.xlu0 %3479
        %3481 = vrot.lane.b32.xlu0 %v3407, 46
        %v3482 = vpop.permute.xlu0 %3481
        %3483 = vrot.lane.b32.xlu0 %v3408, 46
        %v3484 = vpop.permute.xlu0 %3483
        %3485 = vrot.lane.b32.xlu0 %v3409, 46
        %v3486 = vpop.permute.xlu0 %3485
        %3487 = vrot.lane.b32.xlu0 %v3410, 46
        %v3488 = vpop.permute.xlu0 %3487
        %3489 = vrot.lane.b32.xlu0 %v3411, 46
        %v3490 = vpop.permute.xlu0 %3489
        %3491 = vrot.lane.b32.xlu0 %v3412, 46
        %v3492 = vpop.permute.xlu0 %3491
        %3493 = vrot.lane.b32.xlu0 %v3413, 46
        %v3494 = vpop.permute.xlu0 %3493
        %3495 = vrot.lane.b32.xlu0 %v3414, 46
        %v3496 = vpop.permute.xlu0 %3495
        %3497 = vrot.lane.b32.xlu0 %v3415, 46
        %v3498 = vpop.permute.xlu0 %3497
        %3499 = vrot.lane.b32.xlu0 %v3416, 46
        %v3500 = vpop.permute.xlu0 %3499
        %3501 = vrot.lane.b32.xlu0 %v3417, 46
        %v3502 = vpop.permute.xlu0 %3501
        %3503 = vrot.lane.b32.xlu0 %v3418, 46
        %v3504 = vpop.permute.xlu0 %3503
        %3505 = vrot.lane.b32.xlu0 %v3419, 46
        %v3506 = vpop.permute.xlu0 %3505
        %3507 = vrot.lane.b32.xlu0 %v3420, 46
        %v3508 = vpop.permute.xlu0 %3507
        %3509 = vrot.lane.b32.xlu0 %v3421, 46
        %v3510 = vpop.permute.xlu0 %3509
        %3511 = vrot.lane.b32.xlu0 %v3422, 46
        %v3512 = vpop.permute.xlu0 %3511
        %3513 = vrot.lane.b32.xlu0 %v3423, 46
        %v3514 = vpop.permute.xlu0 %3513
        %3515 = vrot.lane.b32.xlu0 %v3424, 46
        %v3516 = vpop.permute.xlu0 %3515
        %3517 = vrot.lane.b32.xlu0 %v3425, 46
        %v3518 = vpop.permute.xlu0 %3517
        %3519 = vrot.lane.b32.xlu0 %v3426, 46
        %v3520 = vpop.permute.xlu0 %3519
        %3521 = vrot.lane.b32.xlu0 %v3427, 46
        %v3522 = vpop.permute.xlu0 %3521
        %3523 = vrot.lane.b32.xlu0 %v3428, 46
        %v3524 = vpop.permute.xlu0 %3523
        %vm3557 = vcmask 392560
        %3558 = vst.msk [vmem:[#allocation5] sm:$0xff] %vm3557, %v3462
        %3559 = vst.msk [vmem:[#allocation5 + $0x8] sm:$0xff] %vm3557, %v3464
        %3560 = vst.msk [vmem:[#allocation5 + $0x10] sm:$0xff] %vm3557, %v3466
        %3561 = vst.msk [vmem:[#allocation5 + $0x18] sm:$0xff] %vm3557, %v3468
        %3562 = vst.msk [vmem:[#allocation5 + $0x20] sm:$0xff] %vm3557, %v3470
        %3563 = vst.msk [vmem:[#allocation5 + $0x28] sm:$0xff] %vm3557, %v3472
        %3564 = vst.msk [vmem:[#allocation5 + $0x30] sm:$0xff] %vm3557, %v3474
        %3565 = vst.msk [vmem:[#allocation5 + $0x38] sm:$0xff] %vm3557, %v3476
        %3566 = vst.msk [vmem:[#allocation5 + $0x40] sm:$0xff] %vm3557, %v3478
        %3567 = vst.msk [vmem:[#allocation5 + $0x48] sm:$0xff] %vm3557, %v3480
        %3568 = vst.msk [vmem:[#allocation5 + $0x50] sm:$0xff] %vm3557, %v3482
        %3569 = vst.msk [vmem:[#allocation5 + $0x58] sm:$0xff] %vm3557, %v3484
        %3570 = vst.msk [vmem:[#allocation5 + $0x60] sm:$0xff] %vm3557, %v3486
        %3571 = vst.msk [vmem:[#allocation5 + $0x68] sm:$0xff] %vm3557, %v3488
        %3572 = vst.msk [vmem:[#allocation5 + $0x70] sm:$0xff] %vm3557, %v3490
        %3573 = vst.msk [vmem:[#allocation5 + $0x78] sm:$0xff] %vm3557, %v3492
        %3574 = vst.msk [vmem:[#allocation5 + $0x80] sm:$0xff] %vm3557, %v3494
        %3575 = vst.msk [vmem:[#allocation5 + $0x88] sm:$0xff] %vm3557, %v3496
        %3576 = vst.msk [vmem:[#allocation5 + $0x90] sm:$0xff] %vm3557, %v3498
        %3577 = vst.msk [vmem:[#allocation5 + $0x98] sm:$0xff] %vm3557, %v3500
        %3578 = vst.msk [vmem:[#allocation5 + $0xa0] sm:$0xff] %vm3557, %v3502
        %3579 = vst.msk [vmem:[#allocation5 + $0xa8] sm:$0xff] %vm3557, %v3504
        %3580 = vst.msk [vmem:[#allocation5 + $0xb0] sm:$0xff] %vm3557, %v3506
        %3581 = vst.msk [vmem:[#allocation5 + $0xb8] sm:$0xff] %vm3557, %v3508
        %3582 = vst.msk [vmem:[#allocation5 + $0xc0] sm:$0xff] %vm3557, %v3510
        %3583 = vst.msk [vmem:[#allocation5 + $0xc8] sm:$0xff] %vm3557, %v3512
        %3584 = vst.msk [vmem:[#allocation5 + $0xd0] sm:$0xff] %vm3557, %v3514
        %3585 = vst.msk [vmem:[#allocation5 + $0xd8] sm:$0xff] %vm3557, %v3516
        %3586 = vst.msk [vmem:[#allocation5 + $0xe0] sm:$0xff] %vm3557, %v3518
        %3587 = vst.msk [vmem:[#allocation5 + $0xe8] sm:$0xff] %vm3557, %v3520
        %3588 = vst.msk [vmem:[#allocation5 + $0xf0] sm:$0xff] %vm3557, %v3522
        %3589 = vst.msk [vmem:[#allocation5 + $0xf8] sm:$0xff] %vm3557, %v3524
        %v3590 = vld [vmem:[#allocation3 + $0x4] sm:$0xff]
        %v3591 = vld [vmem:[#allocation3 + $0xc] sm:$0xff]
        %v3592 = vld [vmem:[#allocation3 + $0x1c] sm:$0xff]
        %v3593 = vld [vmem:[#allocation3 + $0x24] sm:$0xff]
        %v3594 = vld [vmem:[#allocation3 + $0x34] sm:$0xff]
        %v3595 = vld [vmem:[#allocation3 + $0x3c] sm:$0xff]
        %v3596 = vld [vmem:[#allocation3 + $0x4c] sm:$0xff]
        %v3597 = vld [vmem:[#allocation3 + $0x54] sm:$0xff]
        %v3598 = vld [vmem:[#allocation3 + $0x64] sm:$0xff]
        %v3599 = vld [vmem:[#allocation3 + $0x6c] sm:$0xff]
        %v3600 = vld [vmem:[#allocation3 + $0x7c] sm:$0xff]
        %v3601 = vld [vmem:[#allocation3 + $0x84] sm:$0xff]
        %v3602 = vld [vmem:[#allocation3 + $0x94] sm:$0xff]
        %v3603 = vld [vmem:[#allocation3 + $0x9c] sm:$0xff]
        %v3604 = vld [vmem:[#allocation3 + $0xac] sm:$0xff]
        %v3605 = vld [vmem:[#allocation3 + $0xb4] sm:$0xff]
        %v3606 = vld [vmem:[#allocation3 + $0xc4] sm:$0xff]
        %v3607 = vld [vmem:[#allocation3 + $0xcc] sm:$0xff]
        %v3608 = vld [vmem:[#allocation3 + $0xdc] sm:$0xff]
        %v3609 = vld [vmem:[#allocation3 + $0xe4] sm:$0xff]
        %v3610 = vld [vmem:[#allocation3 + $0xf4] sm:$0xff]
        %v3611 = vld [vmem:[#allocation3 + $0xfc] sm:$0xff]
        %v3612 = vld [vmem:[#allocation3 + $0x10c] sm:$0xff]
        %v3613 = vld [vmem:[#allocation3 + $0x114] sm:$0xff]
        %v3614 = vld [vmem:[#allocation3 + $0x124] sm:$0xff]
        %v3615 = vld [vmem:[#allocation3 + $0x12c] sm:$0xff]
        %v3616 = vld [vmem:[#allocation3 + $0x13c] sm:$0xff]
        %v3617 = vld [vmem:[#allocation3 + $0x144] sm:$0xff]
        %v3618 = vld [vmem:[#allocation3 + $0x154] sm:$0xff]
        %v3619 = vld [vmem:[#allocation3 + $0x15c] sm:$0xff]
        %v3620 = vld [vmem:[#allocation3 + $0x16c] sm:$0xff]
        %v3621 = vld [vmem:[#allocation3 + $0x174] sm:$0xff]
        %3654 = vrot.lane.b32.xlu0 %v3590, 48
        %v3655 = vpop.permute.xlu0 %3654
        %3656 = vrot.lane.b32.xlu0 %v3591, 48
        %v3657 = vpop.permute.xlu0 %3656
        %3658 = vrot.lane.b32.xlu0 %v3592, 48
        %v3659 = vpop.permute.xlu0 %3658
        %3660 = vrot.lane.b32.xlu0 %v3593, 48
        %v3661 = vpop.permute.xlu0 %3660
        %3662 = vrot.lane.b32.xlu0 %v3594, 48
        %v3663 = vpop.permute.xlu0 %3662
        %3664 = vrot.lane.b32.xlu0 %v3595, 48
        %v3665 = vpop.permute.xlu0 %3664
        %3666 = vrot.lane.b32.xlu0 %v3596, 48
        %v3667 = vpop.permute.xlu0 %3666
        %3668 = vrot.lane.b32.xlu0 %v3597, 48
        %v3669 = vpop.permute.xlu0 %3668
        %3670 = vrot.lane.b32.xlu0 %v3598, 48
        %v3671 = vpop.permute.xlu0 %3670
        %3672 = vrot.lane.b32.xlu0 %v3599, 48
        %v3673 = vpop.permute.xlu0 %3672
        %3674 = vrot.lane.b32.xlu0 %v3600, 48
        %v3675 = vpop.permute.xlu0 %3674
        %3676 = vrot.lane.b32.xlu0 %v3601, 48
        %v3677 = vpop.permute.xlu0 %3676
        %3678 = vrot.lane.b32.xlu0 %v3602, 48
        %v3679 = vpop.permute.xlu0 %3678
        %3680 = vrot.lane.b32.xlu0 %v3603, 48
        %v3681 = vpop.permute.xlu0 %3680
        %3682 = vrot.lane.b32.xlu0 %v3604, 48
        %v3683 = vpop.permute.xlu0 %3682
        %3684 = vrot.lane.b32.xlu0 %v3605, 48
        %v3685 = vpop.permute.xlu0 %3684
        %3686 = vrot.lane.b32.xlu0 %v3606, 48
        %v3687 = vpop.permute.xlu0 %3686
        %3688 = vrot.lane.b32.xlu0 %v3607, 48
        %v3689 = vpop.permute.xlu0 %3688
        %3690 = vrot.lane.b32.xlu0 %v3608, 48
        %v3691 = vpop.permute.xlu0 %3690
        %3692 = vrot.lane.b32.xlu0 %v3609, 48
        %v3693 = vpop.permute.xlu0 %3692
        %3694 = vrot.lane.b32.xlu0 %v3610, 48
        %v3695 = vpop.permute.xlu0 %3694
        %3696 = vrot.lane.b32.xlu0 %v3611, 48
        %v3697 = vpop.permute.xlu0 %3696
        %3698 = vrot.lane.b32.xlu0 %v3612, 48
        %v3699 = vpop.permute.xlu0 %3698
        %3700 = vrot.lane.b32.xlu0 %v3613, 48
        %v3701 = vpop.permute.xlu0 %3700
        %3702 = vrot.lane.b32.xlu0 %v3614, 48
        %v3703 = vpop.permute.xlu0 %3702
        %3704 = vrot.lane.b32.xlu0 %v3615, 48
        %v3705 = vpop.permute.xlu0 %3704
        %3706 = vrot.lane.b32.xlu0 %v3616, 48
        %v3707 = vpop.permute.xlu0 %3706
        %3708 = vrot.lane.b32.xlu0 %v3617, 48
        %v3709 = vpop.permute.xlu0 %3708
        %3710 = vrot.lane.b32.xlu0 %v3618, 48
        %v3711 = vpop.permute.xlu0 %3710
        %3712 = vrot.lane.b32.xlu0 %v3619, 48
        %v3713 = vpop.permute.xlu0 %3712
        %3714 = vrot.lane.b32.xlu0 %v3620, 48
        %v3715 = vpop.permute.xlu0 %3714
        %3716 = vrot.lane.b32.xlu0 %v3621, 48
        %v3717 = vpop.permute.xlu0 %3716
        %vm3750 = vcmask 408960
        %3751 = vst.msk [vmem:[#allocation5] sm:$0xff] %vm3750, %v3655
        %3752 = vst.msk [vmem:[#allocation5 + $0x8] sm:$0xff] %vm3750, %v3657
        %3753 = vst.msk [vmem:[#allocation5 + $0x10] sm:$0xff] %vm3750, %v3659
        %3754 = vst.msk [vmem:[#allocation5 + $0x18] sm:$0xff] %vm3750, %v3661
        %3755 = vst.msk [vmem:[#allocation5 + $0x20] sm:$0xff] %vm3750, %v3663
        %3756 = vst.msk [vmem:[#allocation5 + $0x28] sm:$0xff] %vm3750, %v3665
        %3757 = vst.msk [vmem:[#allocation5 + $0x30] sm:$0xff] %vm3750, %v3667
        %3758 = vst.msk [vmem:[#allocation5 + $0x38] sm:$0xff] %vm3750, %v3669
        %3759 = vst.msk [vmem:[#allocation5 + $0x40] sm:$0xff] %vm3750, %v3671
        %3760 = vst.msk [vmem:[#allocation5 + $0x48] sm:$0xff] %vm3750, %v3673
        %3761 = vst.msk [vmem:[#allocation5 + $0x50] sm:$0xff] %vm3750, %v3675
        %3762 = vst.msk [vmem:[#allocation5 + $0x58] sm:$0xff] %vm3750, %v3677
        %3763 = vst.msk [vmem:[#allocation5 + $0x60] sm:$0xff] %vm3750, %v3679
        %3764 = vst.msk [vmem:[#allocation5 + $0x68] sm:$0xff] %vm3750, %v3681
        %3765 = vst.msk [vmem:[#allocation5 + $0x70] sm:$0xff] %vm3750, %v3683
        %3766 = vst.msk [vmem:[#allocation5 + $0x78] sm:$0xff] %vm3750, %v3685
        %3767 = vst.msk [vmem:[#allocation5 + $0x80] sm:$0xff] %vm3750, %v3687
        %3768 = vst.msk [vmem:[#allocation5 + $0x88] sm:$0xff] %vm3750, %v3689
        %3769 = vst.msk [vmem:[#allocation5 + $0x90] sm:$0xff] %vm3750, %v3691
        %3770 = vst.msk [vmem:[#allocation5 + $0x98] sm:$0xff] %vm3750, %v3693
        %3771 = vst.msk [vmem:[#allocation5 + $0xa0] sm:$0xff] %vm3750, %v3695
        %3772 = vst.msk [vmem:[#allocation5 + $0xa8] sm:$0xff] %vm3750, %v3697
        %3773 = vst.msk [vmem:[#allocation5 + $0xb0] sm:$0xff] %vm3750, %v3699
        %3774 = vst.msk [vmem:[#allocation5 + $0xb8] sm:$0xff] %vm3750, %v3701
        %3775 = vst.msk [vmem:[#allocation5 + $0xc0] sm:$0xff] %vm3750, %v3703
        %3776 = vst.msk [vmem:[#allocation5 + $0xc8] sm:$0xff] %vm3750, %v3705
        %3777 = vst.msk [vmem:[#allocation5 + $0xd0] sm:$0xff] %vm3750, %v3707
        %3778 = vst.msk [vmem:[#allocation5 + $0xd8] sm:$0xff] %vm3750, %v3709
        %3779 = vst.msk [vmem:[#allocation5 + $0xe0] sm:$0xff] %vm3750, %v3711
        %3780 = vst.msk [vmem:[#allocation5 + $0xe8] sm:$0xff] %vm3750, %v3713
        %3781 = vst.msk [vmem:[#allocation5 + $0xf0] sm:$0xff] %vm3750, %v3715
        %3782 = vst.msk [vmem:[#allocation5 + $0xf8] sm:$0xff] %vm3750, %v3717
        %s3783 = scalar_lea.vmem [#allocation3], 24
        %v3784 = vld [vmem:[%s3783] sm:$0xff]
        %v3785 = vld [vmem:[%s3783 + $0x8] sm:$0xff]
        %v3786 = vld [vmem:[%s3783 + $0x18] sm:$0xff]
        %v3787 = vld [vmem:[%s3783 + $0x20] sm:$0xff]
        %v3788 = vld [vmem:[%s3783 + $0x30] sm:$0xff]
        %v3789 = vld [vmem:[%s3783 + $0x38] sm:$0xff]
        %v3790 = vld [vmem:[%s3783 + $0x48] sm:$0xff]
        %v3791 = vld [vmem:[%s3783 + $0x50] sm:$0xff]
        %v3792 = vld [vmem:[%s3783 + $0x60] sm:$0xff]
        %v3793 = vld [vmem:[%s3783 + $0x68] sm:$0xff]
        %v3794 = vld [vmem:[%s3783 + $0x78] sm:$0xff]
        %v3795 = vld [vmem:[%s3783 + $0x80] sm:$0xff]
        %v3796 = vld [vmem:[%s3783 + $0x90] sm:$0xff]
        %v3797 = vld [vmem:[%s3783 + $0x98] sm:$0xff]
        %v3798 = vld [vmem:[%s3783 + $0xa8] sm:$0xff]
        %v3799 = vld [vmem:[%s3783 + $0xb0] sm:$0xff]
        %v3800 = vld [vmem:[%s3783 + $0xc0] sm:$0xff]
        %v3801 = vld [vmem:[%s3783 + $0xc8] sm:$0xff]
        %v3802 = vld [vmem:[%s3783 + $0xd8] sm:$0xff]
        %v3803 = vld [vmem:[%s3783 + $0xe0] sm:$0xff]
        %v3804 = vld [vmem:[%s3783 + $0xf0] sm:$0xff]
        %v3805 = vld [vmem:[%s3783 + $0xf8] sm:$0xff]
        %v3806 = vld [vmem:[%s3783 + $0x108] sm:$0xff]
        %v3807 = vld [vmem:[%s3783 + $0x110] sm:$0xff]
        %v3808 = vld [vmem:[%s3783 + $0x120] sm:$0xff]
        %v3809 = vld [vmem:[%s3783 + $0x128] sm:$0xff]
        %v3810 = vld [vmem:[%s3783 + $0x138] sm:$0xff]
        %v3811 = vld [vmem:[%s3783 + $0x140] sm:$0xff]
        %v3812 = vld [vmem:[%s3783 + $0x150] sm:$0xff]
        %v3813 = vld [vmem:[%s3783 + $0x158] sm:$0xff]
        %v3814 = vld [vmem:[%s3783 + $0x168] sm:$0xff]
        %v3815 = vld [vmem:[%s3783 + $0x170] sm:$0xff]
        %3848 = vrot.lane.b32.xlu0 %v3784, 50
        %v3849 = vpop.permute.xlu0 %3848
        %3850 = vrot.lane.b32.xlu0 %v3785, 50
        %v3851 = vpop.permute.xlu0 %3850
        %3852 = vrot.lane.b32.xlu0 %v3786, 50
        %v3853 = vpop.permute.xlu0 %3852
        %3854 = vrot.lane.b32.xlu0 %v3787, 50
        %v3855 = vpop.permute.xlu0 %3854
        %3856 = vrot.lane.b32.xlu0 %v3788, 50
        %v3857 = vpop.permute.xlu0 %3856
        %3858 = vrot.lane.b32.xlu0 %v3789, 50
        %v3859 = vpop.permute.xlu0 %3858
        %3860 = vrot.lane.b32.xlu0 %v3790, 50
        %v3861 = vpop.permute.xlu0 %3860
        %3862 = vrot.lane.b32.xlu0 %v3791, 50
        %v3863 = vpop.permute.xlu0 %3862
        %3864 = vrot.lane.b32.xlu0 %v3792, 50
        %v3865 = vpop.permute.xlu0 %3864
        %3866 = vrot.lane.b32.xlu0 %v3793, 50
        %v3867 = vpop.permute.xlu0 %3866
        %3868 = vrot.lane.b32.xlu0 %v3794, 50
        %v3869 = vpop.permute.xlu0 %3868
        %3870 = vrot.lane.b32.xlu0 %v3795, 50
        %v3871 = vpop.permute.xlu0 %3870
        %3872 = vrot.lane.b32.xlu0 %v3796, 50
        %v3873 = vpop.permute.xlu0 %3872
        %3874 = vrot.lane.b32.xlu0 %v3797, 50
        %v3875 = vpop.permute.xlu0 %3874
        %3876 = vrot.lane.b32.xlu0 %v3798, 50
        %v3877 = vpop.permute.xlu0 %3876
        %3878 = vrot.lane.b32.xlu0 %v3799, 50
        %v3879 = vpop.permute.xlu0 %3878
        %3880 = vrot.lane.b32.xlu0 %v3800, 50
        %v3881 = vpop.permute.xlu0 %3880
        %3882 = vrot.lane.b32.xlu0 %v3801, 50
        %v3883 = vpop.permute.xlu0 %3882
        %3884 = vrot.lane.b32.xlu0 %v3802, 50
        %v3885 = vpop.permute.xlu0 %3884
        %3886 = vrot.lane.b32.xlu0 %v3803, 50
        %v3887 = vpop.permute.xlu0 %3886
        %3888 = vrot.lane.b32.xlu0 %v3804, 50
        %v3889 = vpop.permute.xlu0 %3888
        %3890 = vrot.lane.b32.xlu0 %v3805, 50
        %v3891 = vpop.permute.xlu0 %3890
        %3892 = vrot.lane.b32.xlu0 %v3806, 50
        %v3893 = vpop.permute.xlu0 %3892
        %3894 = vrot.lane.b32.xlu0 %v3807, 50
        %v3895 = vpop.permute.xlu0 %3894
        %3896 = vrot.lane.b32.xlu0 %v3808, 50
        %v3897 = vpop.permute.xlu0 %3896
        %3898 = vrot.lane.b32.xlu0 %v3809, 50
        %v3899 = vpop.permute.xlu0 %3898
        %3900 = vrot.lane.b32.xlu0 %v3810, 50
        %v3901 = vpop.permute.xlu0 %3900
        %3902 = vrot.lane.b32.xlu0 %v3811, 50
        %v3903 = vpop.permute.xlu0 %3902
        %3904 = vrot.lane.b32.xlu0 %v3812, 50
        %v3905 = vpop.permute.xlu0 %3904
        %3906 = vrot.lane.b32.xlu0 %v3813, 50
        %v3907 = vpop.permute.xlu0 %3906
        %3908 = vrot.lane.b32.xlu0 %v3814, 50
        %v3909 = vpop.permute.xlu0 %3908
        %3910 = vrot.lane.b32.xlu0 %v3815, 50
        %v3911 = vpop.permute.xlu0 %3910
        %vm3944 = vcmask 425360
        %3945 = vst.msk [vmem:[#allocation5] sm:$0xff] %vm3944, %v3849
        %3946 = vst.msk [vmem:[#allocation5 + $0x8] sm:$0xff] %vm3944, %v3851
        %3947 = vst.msk [vmem:[#allocation5 + $0x10] sm:$0xff] %vm3944, %v3853
        %3948 = vst.msk [vmem:[#allocation5 + $0x18] sm:$0xff] %vm3944, %v3855
        %3949 = vst.msk [vmem:[#allocation5 + $0x20] sm:$0xff] %vm3944, %v3857
        %3950 = vst.msk [vmem:[#allocation5 + $0x28] sm:$0xff] %vm3944, %v3859
        %3951 = vst.msk [vmem:[#allocation5 + $0x30] sm:$0xff] %vm3944, %v3861
        %3952 = vst.msk [vmem:[#allocation5 + $0x38] sm:$0xff] %vm3944, %v3863
        %3953 = vst.msk [vmem:[#allocation5 + $0x40] sm:$0xff] %vm3944, %v3865
        %3954 = vst.msk [vmem:[#allocation5 + $0x48] sm:$0xff] %vm3944, %v3867
        %3955 = vst.msk [vmem:[#allocation5 + $0x50] sm:$0xff] %vm3944, %v3869
        %3956 = vst.msk [vmem:[#allocation5 + $0x58] sm:$0xff] %vm3944, %v3871
        %3957 = vst.msk [vmem:[#allocation5 + $0x60] sm:$0xff] %vm3944, %v3873
        %3958 = vst.msk [vmem:[#allocation5 + $0x68] sm:$0xff] %vm3944, %v3875
        %3959 = vst.msk [vmem:[#allocation5 + $0x70] sm:$0xff] %vm3944, %v3877
        %3960 = vst.msk [vmem:[#allocation5 + $0x78] sm:$0xff] %vm3944, %v3879
        %3961 = vst.msk [vmem:[#allocation5 + $0x80] sm:$0xff] %vm3944, %v3881
        %3962 = vst.msk [vmem:[#allocation5 + $0x88] sm:$0xff] %vm3944, %v3883
        %3963 = vst.msk [vmem:[#allocation5 + $0x90] sm:$0xff] %vm3944, %v3885
        %3964 = vst.msk [vmem:[#allocation5 + $0x98] sm:$0xff] %vm3944, %v3887
        %3965 = vst.msk [vmem:[#allocation5 + $0xa0] sm:$0xff] %vm3944, %v3889
        %3966 = vst.msk [vmem:[#allocation5 + $0xa8] sm:$0xff] %vm3944, %v3891
        %3967 = vst.msk [vmem:[#allocation5 + $0xb0] sm:$0xff] %vm3944, %v3893
        %3968 = vst.msk [vmem:[#allocation5 + $0xb8] sm:$0xff] %vm3944, %v3895
        %3969 = vst.msk [vmem:[#allocation5 + $0xc0] sm:$0xff] %vm3944, %v3897
        %3970 = vst.msk [vmem:[#allocation5 + $0xc8] sm:$0xff] %vm3944, %v3899
        %3971 = vst.msk [vmem:[#allocation5 + $0xd0] sm:$0xff] %vm3944, %v3901
        %3972 = vst.msk [vmem:[#allocation5 + $0xd8] sm:$0xff] %vm3944, %v3903
        %3973 = vst.msk [vmem:[#allocation5 + $0xe0] sm:$0xff] %vm3944, %v3905
        %3974 = vst.msk [vmem:[#allocation5 + $0xe8] sm:$0xff] %vm3944, %v3907
        %3975 = vst.msk [vmem:[#allocation5 + $0xf0] sm:$0xff] %vm3944, %v3909
        %3976 = vst.msk [vmem:[#allocation5 + $0xf8] sm:$0xff] %vm3944, %v3911
        %v3977 = vld [vmem:[%s3783 + $0x1] sm:$0xff]
        %v3978 = vld [vmem:[%s3783 + $0x9] sm:$0xff]
        %v3979 = vld [vmem:[%s3783 + $0x19] sm:$0xff]
        %v3980 = vld [vmem:[%s3783 + $0x21] sm:$0xff]
        %v3981 = vld [vmem:[%s3783 + $0x31] sm:$0xff]
        %v3982 = vld [vmem:[%s3783 + $0x39] sm:$0xff]
        %v3983 = vld [vmem:[%s3783 + $0x49] sm:$0xff]
        %v3984 = vld [vmem:[%s3783 + $0x51] sm:$0xff]
        %v3985 = vld [vmem:[%s3783 + $0x61] sm:$0xff]
        %v3986 = vld [vmem:[%s3783 + $0x69] sm:$0xff]
        %v3987 = vld [vmem:[%s3783 + $0x79] sm:$0xff]
        %v3988 = vld [vmem:[%s3783 + $0x81] sm:$0xff]
        %v3989 = vld [vmem:[%s3783 + $0x91] sm:$0xff]
        %v3990 = vld [vmem:[%s3783 + $0x99] sm:$0xff]
        %v3991 = vld [vmem:[%s3783 + $0xa9] sm:$0xff]
        %v3992 = vld [vmem:[%s3783 + $0xb1] sm:$0xff]
        %v3993 = vld [vmem:[%s3783 + $0xc1] sm:$0xff]
        %v3994 = vld [vmem:[%s3783 + $0xc9] sm:$0xff]
        %v3995 = vld [vmem:[%s3783 + $0xd9] sm:$0xff]
        %v3996 = vld [vmem:[%s3783 + $0xe1] sm:$0xff]
        %v3997 = vld [vmem:[%s3783 + $0xf1] sm:$0xff]
        %v3998 = vld [vmem:[%s3783 + $0xf9] sm:$0xff]
        %v3999 = vld [vmem:[%s3783 + $0x109] sm:$0xff]
        %v4000 = vld [vmem:[%s3783 + $0x111] sm:$0xff]
        %v4001 = vld [vmem:[%s3783 + $0x121] sm:$0xff]
        %v4002 = vld [vmem:[%s3783 + $0x129] sm:$0xff]
        %v4003 = vld [vmem:[%s3783 + $0x139] sm:$0xff]
        %v4004 = vld [vmem:[%s3783 + $0x141] sm:$0xff]
        %v4005 = vld [vmem:[%s3783 + $0x151] sm:$0xff]
        %v4006 = vld [vmem:[%s3783 + $0x159] sm:$0xff]
        %v4007 = vld [vmem:[%s3783 + $0x169] sm:$0xff]
        %v4008 = vld [vmem:[%s3783 + $0x171] sm:$0xff]
        %4041 = vrot.lane.b32.xlu0 %v3977, 52
        %v4042 = vpop.permute.xlu0 %4041
        %4043 = vrot.lane.b32.xlu0 %v3978, 52
        %v4044 = vpop.permute.xlu0 %4043
        %4045 = vrot.lane.b32.xlu0 %v3979, 52
        %v4046 = vpop.permute.xlu0 %4045
        %4047 = vrot.lane.b32.xlu0 %v3980, 52
        %v4048 = vpop.permute.xlu0 %4047
        %4049 = vrot.lane.b32.xlu0 %v3981, 52
        %v4050 = vpop.permute.xlu0 %4049
        %4051 = vrot.lane.b32.xlu0 %v3982, 52
        %v4052 = vpop.permute.xlu0 %4051
        %4053 = vrot.lane.b32.xlu0 %v3983, 52
        %v4054 = vpop.permute.xlu0 %4053
        %4055 = vrot.lane.b32.xlu0 %v3984, 52
        %v4056 = vpop.permute.xlu0 %4055
        %4057 = vrot.lane.b32.xlu0 %v3985, 52
        %v4058 = vpop.permute.xlu0 %4057
        %4059 = vrot.lane.b32.xlu0 %v3986, 52
        %v4060 = vpop.permute.xlu0 %4059
        %4061 = vrot.lane.b32.xlu0 %v3987, 52
        %v4062 = vpop.permute.xlu0 %4061
        %4063 = vrot.lane.b32.xlu0 %v3988, 52
        %v4064 = vpop.permute.xlu0 %4063
        %4065 = vrot.lane.b32.xlu0 %v3989, 52
        %v4066 = vpop.permute.xlu0 %4065
        %4067 = vrot.lane.b32.xlu0 %v3990, 52
        %v4068 = vpop.permute.xlu0 %4067
        %4069 = vrot.lane.b32.xlu0 %v3991, 52
        %v4070 = vpop.permute.xlu0 %4069
        %4071 = vrot.lane.b32.xlu0 %v3992, 52
        %v4072 = vpop.permute.xlu0 %4071
        %4073 = vrot.lane.b32.xlu0 %v3993, 52
        %v4074 = vpop.permute.xlu0 %4073
        %4075 = vrot.lane.b32.xlu0 %v3994, 52
        %v4076 = vpop.permute.xlu0 %4075
        %4077 = vrot.lane.b32.xlu0 %v3995, 52
        %v4078 = vpop.permute.xlu0 %4077
        %4079 = vrot.lane.b32.xlu0 %v3996, 52
        %v4080 = vpop.permute.xlu0 %4079
        %4081 = vrot.lane.b32.xlu0 %v3997, 52
        %v4082 = vpop.permute.xlu0 %4081
        %4083 = vrot.lane.b32.xlu0 %v3998, 52
        %v4084 = vpop.permute.xlu0 %4083
        %4085 = vrot.lane.b32.xlu0 %v3999, 52
        %v4086 = vpop.permute.xlu0 %4085
        %4087 = vrot.lane.b32.xlu0 %v4000, 52
        %v4088 = vpop.permute.xlu0 %4087
        %4089 = vrot.lane.b32.xlu0 %v4001, 52
        %v4090 = vpop.permute.xlu0 %4089
        %4091 = vrot.lane.b32.xlu0 %v4002, 52
        %v4092 = vpop.permute.xlu0 %4091
        %4093 = vrot.lane.b32.xlu0 %v4003, 52
        %v4094 = vpop.permute.xlu0 %4093
        %4095 = vrot.lane.b32.xlu0 %v4004, 52
        %v4096 = vpop.permute.xlu0 %4095
        %4097 = vrot.lane.b32.xlu0 %v4005, 52
        %v4098 = vpop.permute.xlu0 %4097
        %4099 = vrot.lane.b32.xlu0 %v4006, 52
        %v4100 = vpop.permute.xlu0 %4099
        %4101 = vrot.lane.b32.xlu0 %v4007, 52
        %v4102 = vpop.permute.xlu0 %4101
        %4103 = vrot.lane.b32.xlu0 %v4008, 52
        %v4104 = vpop.permute.xlu0 %4103
        %vm4137 = vcmask 441760
        %4138 = vst.msk [vmem:[#allocation5] sm:$0xff] %vm4137, %v4042
        %4139 = vst.msk [vmem:[#allocation5 + $0x8] sm:$0xff] %vm4137, %v4044
        %4140 = vst.msk [vmem:[#allocation5 + $0x10] sm:$0xff] %vm4137, %v4046
        %4141 = vst.msk [vmem:[#allocation5 + $0x18] sm:$0xff] %vm4137, %v4048
        %4142 = vst.msk [vmem:[#allocation5 + $0x20] sm:$0xff] %vm4137, %v4050
        %4143 = vst.msk [vmem:[#allocation5 + $0x28] sm:$0xff] %vm4137, %v4052
        %4144 = vst.msk [vmem:[#allocation5 + $0x30] sm:$0xff] %vm4137, %v4054
        %4145 = vst.msk [vmem:[#allocation5 + $0x38] sm:$0xff] %vm4137, %v4056
        %4146 = vst.msk [vmem:[#allocation5 + $0x40] sm:$0xff] %vm4137, %v4058
        %4147 = vst.msk [vmem:[#allocation5 + $0x48] sm:$0xff] %vm4137, %v4060
        %4148 = vst.msk [vmem:[#allocation5 + $0x50] sm:$0xff] %vm4137, %v4062
        %4149 = vst.msk [vmem:[#allocation5 + $0x58] sm:$0xff] %vm4137, %v4064
        %4150 = vst.msk [vmem:[#allocation5 + $0x60] sm:$0xff] %vm4137, %v4066
        %4151 = vst.msk [vmem:[#allocation5 + $0x68] sm:$0xff] %vm4137, %v4068
        %4152 = vst.msk [vmem:[#allocation5 + $0x70] sm:$0xff] %vm4137, %v4070
        %4153 = vst.msk [vmem:[#allocation5 + $0x78] sm:$0xff] %vm4137, %v4072
        %4154 = vst.msk [vmem:[#allocation5 + $0x80] sm:$0xff] %vm4137, %v4074
        %4155 = vst.msk [vmem:[#allocation5 + $0x88] sm:$0xff] %vm4137, %v4076
        %4156 = vst.msk [vmem:[#allocation5 + $0x90] sm:$0xff] %vm4137, %v4078
        %4157 = vst.msk [vmem:[#allocation5 + $0x98] sm:$0xff] %vm4137, %v4080
        %4158 = vst.msk [vmem:[#allocation5 + $0xa0] sm:$0xff] %vm4137, %v4082
        %4159 = vst.msk [vmem:[#allocation5 + $0xa8] sm:$0xff] %vm4137, %v4084
        %4160 = vst.msk [vmem:[#allocation5 + $0xb0] sm:$0xff] %vm4137, %v4086
        %4161 = vst.msk [vmem:[#allocation5 + $0xb8] sm:$0xff] %vm4137, %v4088
        %4162 = vst.msk [vmem:[#allocation5 + $0xc0] sm:$0xff] %vm4137, %v4090
        %4163 = vst.msk [vmem:[#allocation5 + $0xc8] sm:$0xff] %vm4137, %v4092
        %4164 = vst.msk [vmem:[#allocation5 + $0xd0] sm:$0xff] %vm4137, %v4094
        %4165 = vst.msk [vmem:[#allocation5 + $0xd8] sm:$0xff] %vm4137, %v4096
        %4166 = vst.msk [vmem:[#allocation5 + $0xe0] sm:$0xff] %vm4137, %v4098
        %4167 = vst.msk [vmem:[#allocation5 + $0xe8] sm:$0xff] %vm4137, %v4100
        %4168 = vst.msk [vmem:[#allocation5 + $0xf0] sm:$0xff] %vm4137, %v4102
        %4169 = vst.msk [vmem:[#allocation5 + $0xf8] sm:$0xff] %vm4137, %v4104
        %v4170 = vld [vmem:[%s3783 + $0x2] sm:$0xff]
        %v4171 = vld [vmem:[%s3783 + $0xa] sm:$0xff]
        %v4172 = vld [vmem:[%s3783 + $0x1a] sm:$0xff]
        %v4173 = vld [vmem:[%s3783 + $0x22] sm:$0xff]
        %v4174 = vld [vmem:[%s3783 + $0x32] sm:$0xff]
        %v4175 = vld [vmem:[%s3783 + $0x3a] sm:$0xff]
        %v4176 = vld [vmem:[%s3783 + $0x4a] sm:$0xff]
        %v4177 = vld [vmem:[%s3783 + $0x52] sm:$0xff]
        %v4178 = vld [vmem:[%s3783 + $0x62] sm:$0xff]
        %v4179 = vld [vmem:[%s3783 + $0x6a] sm:$0xff]
        %v4180 = vld [vmem:[%s3783 + $0x7a] sm:$0xff]
        %v4181 = vld [vmem:[%s3783 + $0x82] sm:$0xff]
        %v4182 = vld [vmem:[%s3783 + $0x92] sm:$0xff]
        %v4183 = vld [vmem:[%s3783 + $0x9a] sm:$0xff]
        %v4184 = vld [vmem:[%s3783 + $0xaa] sm:$0xff]
        %v4185 = vld [vmem:[%s3783 + $0xb2] sm:$0xff]
        %v4186 = vld [vmem:[%s3783 + $0xc2] sm:$0xff]
        %v4187 = vld [vmem:[%s3783 + $0xca] sm:$0xff]
        %v4188 = vld [vmem:[%s3783 + $0xda] sm:$0xff]
        %v4189 = vld [vmem:[%s3783 + $0xe2] sm:$0xff]
        %v4190 = vld [vmem:[%s3783 + $0xf2] sm:$0xff]
        %v4191 = vld [vmem:[%s3783 + $0xfa] sm:$0xff]
        %v4192 = vld [vmem:[%s3783 + $0x10a] sm:$0xff]
        %v4193 = vld [vmem:[%s3783 + $0x112] sm:$0xff]
        %v4194 = vld [vmem:[%s3783 + $0x122] sm:$0xff]
        %v4195 = vld [vmem:[%s3783 + $0x12a] sm:$0xff]
        %v4196 = vld [vmem:[%s3783 + $0x13a] sm:$0xff]
        %v4197 = vld [vmem:[%s3783 + $0x142] sm:$0xff]
        %v4198 = vld [vmem:[%s3783 + $0x152] sm:$0xff]
        %v4199 = vld [vmem:[%s3783 + $0x15a] sm:$0xff]
        %v4200 = vld [vmem:[%s3783 + $0x16a] sm:$0xff]
        %v4201 = vld [vmem:[%s3783 + $0x172] sm:$0xff]
        %4234 = vrot.lane.b32.xlu0 %v4170, 54
        %v4235 = vpop.permute.xlu0 %4234
        %4236 = vrot.lane.b32.xlu0 %v4171, 54
        %v4237 = vpop.permute.xlu0 %4236
        %4238 = vrot.lane.b32.xlu0 %v4172, 54
        %v4239 = vpop.permute.xlu0 %4238
        %4240 = vrot.lane.b32.xlu0 %v4173, 54
        %v4241 = vpop.permute.xlu0 %4240
        %4242 = vrot.lane.b32.xlu0 %v4174, 54
        %v4243 = vpop.permute.xlu0 %4242
        %4244 = vrot.lane.b32.xlu0 %v4175, 54
        %v4245 = vpop.permute.xlu0 %4244
        %4246 = vrot.lane.b32.xlu0 %v4176, 54
        %v4247 = vpop.permute.xlu0 %4246
        %4248 = vrot.lane.b32.xlu0 %v4177, 54
        %v4249 = vpop.permute.xlu0 %4248
        %4250 = vrot.lane.b32.xlu0 %v4178, 54
        %v4251 = vpop.permute.xlu0 %4250
        %4252 = vrot.lane.b32.xlu0 %v4179, 54
        %v4253 = vpop.permute.xlu0 %4252
        %4254 = vrot.lane.b32.xlu0 %v4180, 54
        %v4255 = vpop.permute.xlu0 %4254
        %4256 = vrot.lane.b32.xlu0 %v4181, 54
        %v4257 = vpop.permute.xlu0 %4256
        %4258 = vrot.lane.b32.xlu0 %v4182, 54
        %v4259 = vpop.permute.xlu0 %4258
        %4260 = vrot.lane.b32.xlu0 %v4183, 54
        %v4261 = vpop.permute.xlu0 %4260
        %4262 = vrot.lane.b32.xlu0 %v4184, 54
        %v4263 = vpop.permute.xlu0 %4262
        %4264 = vrot.lane.b32.xlu0 %v4185, 54
        %v4265 = vpop.permute.xlu0 %4264
        %4266 = vrot.lane.b32.xlu0 %v4186, 54
        %v4267 = vpop.permute.xlu0 %4266
        %4268 = vrot.lane.b32.xlu0 %v4187, 54
        %v4269 = vpop.permute.xlu0 %4268
        %4270 = vrot.lane.b32.xlu0 %v4188, 54
        %v4271 = vpop.permute.xlu0 %4270
        %4272 = vrot.lane.b32.xlu0 %v4189, 54
        %v4273 = vpop.permute.xlu0 %4272
        %4274 = vrot.lane.b32.xlu0 %v4190, 54
        %v4275 = vpop.permute.xlu0 %4274
        %4276 = vrot.lane.b32.xlu0 %v4191, 54
        %v4277 = vpop.permute.xlu0 %4276
        %4278 = vrot.lane.b32.xlu0 %v4192, 54
        %v4279 = vpop.permute.xlu0 %4278
        %4280 = vrot.lane.b32.xlu0 %v4193, 54
        %v4281 = vpop.permute.xlu0 %4280
        %4282 = vrot.lane.b32.xlu0 %v4194, 54
        %v4283 = vpop.permute.xlu0 %4282
        %4284 = vrot.lane.b32.xlu0 %v4195, 54
        %v4285 = vpop.permute.xlu0 %4284
        %4286 = vrot.lane.b32.xlu0 %v4196, 54
        %v4287 = vpop.permute.xlu0 %4286
        %4288 = vrot.lane.b32.xlu0 %v4197, 54
        %v4289 = vpop.permute.xlu0 %4288
        %4290 = vrot.lane.b32.xlu0 %v4198, 54
        %v4291 = vpop.permute.xlu0 %4290
        %4292 = vrot.lane.b32.xlu0 %v4199, 54
        %v4293 = vpop.permute.xlu0 %4292
        %4294 = vrot.lane.b32.xlu0 %v4200, 54
        %v4295 = vpop.permute.xlu0 %4294
        %4296 = vrot.lane.b32.xlu0 %v4201, 54
        %v4297 = vpop.permute.xlu0 %4296
        %vm4330 = vcmask 458160
        %4331 = vst.msk [vmem:[#allocation5] sm:$0xff] %vm4330, %v4235
        %4332 = vst.msk [vmem:[#allocation5 + $0x8] sm:$0xff] %vm4330, %v4237
        %4333 = vst.msk [vmem:[#allocation5 + $0x10] sm:$0xff] %vm4330, %v4239
        %4334 = vst.msk [vmem:[#allocation5 + $0x18] sm:$0xff] %vm4330, %v4241
        %4335 = vst.msk [vmem:[#allocation5 + $0x20] sm:$0xff] %vm4330, %v4243
        %4336 = vst.msk [vmem:[#allocation5 + $0x28] sm:$0xff] %vm4330, %v4245
        %4337 = vst.msk [vmem:[#allocation5 + $0x30] sm:$0xff] %vm4330, %v4247
        %4338 = vst.msk [vmem:[#allocation5 + $0x38] sm:$0xff] %vm4330, %v4249
        %4339 = vst.msk [vmem:[#allocation5 + $0x40] sm:$0xff] %vm4330, %v4251
        %4340 = vst.msk [vmem:[#allocation5 + $0x48] sm:$0xff] %vm4330, %v4253
        %4341 = vst.msk [vmem:[#allocation5 + $0x50] sm:$0xff] %vm4330, %v4255
        %4342 = vst.msk [vmem:[#allocation5 + $0x58] sm:$0xff] %vm4330, %v4257
        %4343 = vst.msk [vmem:[#allocation5 + $0x60] sm:$0xff] %vm4330, %v4259
        %4344 = vst.msk [vmem:[#allocation5 + $0x68] sm:$0xff] %vm4330, %v4261
        %4345 = vst.msk [vmem:[#allocation5 + $0x70] sm:$0xff] %vm4330, %v4263
        %4346 = vst.msk [vmem:[#allocation5 + $0x78] sm:$0xff] %vm4330, %v4265
        %4347 = vst.msk [vmem:[#allocation5 + $0x80] sm:$0xff] %vm4330, %v4267
        %4348 = vst.msk [vmem:[#allocation5 + $0x88] sm:$0xff] %vm4330, %v4269
        %4349 = vst.msk [vmem:[#allocation5 + $0x90] sm:$0xff] %vm4330, %v4271
        %4350 = vst.msk [vmem:[#allocation5 + $0x98] sm:$0xff] %vm4330, %v4273
        %4351 = vst.msk [vmem:[#allocation5 + $0xa0] sm:$0xff] %vm4330, %v4275
        %4352 = vst.msk [vmem:[#allocation5 + $0xa8] sm:$0xff] %vm4330, %v4277
        %4353 = vst.msk [vmem:[#allocation5 + $0xb0] sm:$0xff] %vm4330, %v4279
        %4354 = vst.msk [vmem:[#allocation5 + $0xb8] sm:$0xff] %vm4330, %v4281
        %4355 = vst.msk [vmem:[#allocation5 + $0xc0] sm:$0xff] %vm4330, %v4283
        %4356 = vst.msk [vmem:[#allocation5 + $0xc8] sm:$0xff] %vm4330, %v4285
        %4357 = vst.msk [vmem:[#allocation5 + $0xd0] sm:$0xff] %vm4330, %v4287
        %4358 = vst.msk [vmem:[#allocation5 + $0xd8] sm:$0xff] %vm4330, %v4289
        %4359 = vst.msk [vmem:[#allocation5 + $0xe0] sm:$0xff] %vm4330, %v4291
        %4360 = vst.msk [vmem:[#allocation5 + $0xe8] sm:$0xff] %vm4330, %v4293
        %4361 = vst.msk [vmem:[#allocation5 + $0xf0] sm:$0xff] %vm4330, %v4295
        %4362 = vst.msk [vmem:[#allocation5 + $0xf8] sm:$0xff] %vm4330, %v4297
        %v4363 = vld [vmem:[%s3783 + $0x3] sm:$0xff]
        %v4364 = vld [vmem:[%s3783 + $0xb] sm:$0xff]
        %v4365 = vld [vmem:[%s3783 + $0x1b] sm:$0xff]
        %v4366 = vld [vmem:[%s3783 + $0x23] sm:$0xff]
        %v4367 = vld [vmem:[%s3783 + $0x33] sm:$0xff]
        %v4368 = vld [vmem:[%s3783 + $0x3b] sm:$0xff]
        %v4369 = vld [vmem:[%s3783 + $0x4b] sm:$0xff]
        %v4370 = vld [vmem:[%s3783 + $0x53] sm:$0xff]
        %v4371 = vld [vmem:[%s3783 + $0x63] sm:$0xff]
        %v4372 = vld [vmem:[%s3783 + $0x6b] sm:$0xff]
        %v4373 = vld [vmem:[%s3783 + $0x7b] sm:$0xff]
        %v4374 = vld [vmem:[%s3783 + $0x83] sm:$0xff]
        %v4375 = vld [vmem:[%s3783 + $0x93] sm:$0xff]
        %v4376 = vld [vmem:[%s3783 + $0x9b] sm:$0xff]
        %v4377 = vld [vmem:[%s3783 + $0xab] sm:$0xff]
        %v4378 = vld [vmem:[%s3783 + $0xb3] sm:$0xff]
        %v4379 = vld [vmem:[%s3783 + $0xc3] sm:$0xff]
        %v4380 = vld [vmem:[%s3783 + $0xcb] sm:$0xff]
        %v4381 = vld [vmem:[%s3783 + $0xdb] sm:$0xff]
        %v4382 = vld [vmem:[%s3783 + $0xe3] sm:$0xff]
        %v4383 = vld [vmem:[%s3783 + $0xf3] sm:$0xff]
        %v4384 = vld [vmem:[%s3783 + $0xfb] sm:$0xff]
        %v4385 = vld [vmem:[%s3783 + $0x10b] sm:$0xff]
        %v4386 = vld [vmem:[%s3783 + $0x113] sm:$0xff]
        %v4387 = vld [vmem:[%s3783 + $0x123] sm:$0xff]
        %v4388 = vld [vmem:[%s3783 + $0x12b] sm:$0xff]
        %v4389 = vld [vmem:[%s3783 + $0x13b] sm:$0xff]
        %v4390 = vld [vmem:[%s3783 + $0x143] sm:$0xff]
        %v4391 = vld [vmem:[%s3783 + $0x153] sm:$0xff]
        %v4392 = vld [vmem:[%s3783 + $0x15b] sm:$0xff]
        %v4393 = vld [vmem:[%s3783 + $0x16b] sm:$0xff]
        %v4394 = vld [vmem:[%s3783 + $0x173] sm:$0xff]
        %4427 = vrot.lane.b32.xlu0 %v4363, 56
        %v4428 = vpop.permute.xlu0 %4427
        %4429 = vrot.lane.b32.xlu0 %v4364, 56
        %v4430 = vpop.permute.xlu0 %4429
        %4431 = vrot.lane.b32.xlu0 %v4365, 56
        %v4432 = vpop.permute.xlu0 %4431
        %4433 = vrot.lane.b32.xlu0 %v4366, 56
        %v4434 = vpop.permute.xlu0 %4433
        %4435 = vrot.lane.b32.xlu0 %v4367, 56
        %v4436 = vpop.permute.xlu0 %4435
        %4437 = vrot.lane.b32.xlu0 %v4368, 56
        %v4438 = vpop.permute.xlu0 %4437
        %4439 = vrot.lane.b32.xlu0 %v4369, 56
        %v4440 = vpop.permute.xlu0 %4439
        %4441 = vrot.lane.b32.xlu0 %v4370, 56
        %v4442 = vpop.permute.xlu0 %4441
        %4443 = vrot.lane.b32.xlu0 %v4371, 56
        %v4444 = vpop.permute.xlu0 %4443
        %4445 = vrot.lane.b32.xlu0 %v4372, 56
        %v4446 = vpop.permute.xlu0 %4445
        %4447 = vrot.lane.b32.xlu0 %v4373, 56
        %v4448 = vpop.permute.xlu0 %4447
        %4449 = vrot.lane.b32.xlu0 %v4374, 56
        %v4450 = vpop.permute.xlu0 %4449
        %4451 = vrot.lane.b32.xlu0 %v4375, 56
        %v4452 = vpop.permute.xlu0 %4451
        %4453 = vrot.lane.b32.xlu0 %v4376, 56
        %v4454 = vpop.permute.xlu0 %4453
        %4455 = vrot.lane.b32.xlu0 %v4377, 56
        %v4456 = vpop.permute.xlu0 %4455
        %4457 = vrot.lane.b32.xlu0 %v4378, 56
        %v4458 = vpop.permute.xlu0 %4457
        %4459 = vrot.lane.b32.xlu0 %v4379, 56
        %v4460 = vpop.permute.xlu0 %4459
        %4461 = vrot.lane.b32.xlu0 %v4380, 56
        %v4462 = vpop.permute.xlu0 %4461
        %4463 = vrot.lane.b32.xlu0 %v4381, 56
        %v4464 = vpop.permute.xlu0 %4463
        %4465 = vrot.lane.b32.xlu0 %v4382, 56
        %v4466 = vpop.permute.xlu0 %4465
        %4467 = vrot.lane.b32.xlu0 %v4383, 56
        %v4468 = vpop.permute.xlu0 %4467
        %4469 = vrot.lane.b32.xlu0 %v4384, 56
        %v4470 = vpop.permute.xlu0 %4469
        %4471 = vrot.lane.b32.xlu0 %v4385, 56
        %v4472 = vpop.permute.xlu0 %4471
        %4473 = vrot.lane.b32.xlu0 %v4386, 56
        %v4474 = vpop.permute.xlu0 %4473
        %4475 = vrot.lane.b32.xlu0 %v4387, 56
        %v4476 = vpop.permute.xlu0 %4475
        %4477 = vrot.lane.b32.xlu0 %v4388, 56
        %v4478 = vpop.permute.xlu0 %4477
        %4479 = vrot.lane.b32.xlu0 %v4389, 56
        %v4480 = vpop.permute.xlu0 %4479
        %4481 = vrot.lane.b32.xlu0 %v4390, 56
        %v4482 = vpop.permute.xlu0 %4481
        %4483 = vrot.lane.b32.xlu0 %v4391, 56
        %v4484 = vpop.permute.xlu0 %4483
        %4485 = vrot.lane.b32.xlu0 %v4392, 56
        %v4486 = vpop.permute.xlu0 %4485
        %4487 = vrot.lane.b32.xlu0 %v4393, 56
        %v4488 = vpop.permute.xlu0 %4487
        %4489 = vrot.lane.b32.xlu0 %v4394, 56
        %v4490 = vpop.permute.xlu0 %4489
        %vm4523 = vcmask 474560
        %4524 = vst.msk [vmem:[#allocation5] sm:$0xff] %vm4523, %v4428
        %4525 = vst.msk [vmem:[#allocation5 + $0x8] sm:$0xff] %vm4523, %v4430
        %4526 = vst.msk [vmem:[#allocation5 + $0x10] sm:$0xff] %vm4523, %v4432
        %4527 = vst.msk [vmem:[#allocation5 + $0x18] sm:$0xff] %vm4523, %v4434
        %4528 = vst.msk [vmem:[#allocation5 + $0x20] sm:$0xff] %vm4523, %v4436
        %4529 = vst.msk [vmem:[#allocation5 + $0x28] sm:$0xff] %vm4523, %v4438
        %4530 = vst.msk [vmem:[#allocation5 + $0x30] sm:$0xff] %vm4523, %v4440
        %4531 = vst.msk [vmem:[#allocation5 + $0x38] sm:$0xff] %vm4523, %v4442
        %4532 = vst.msk [vmem:[#allocation5 + $0x40] sm:$0xff] %vm4523, %v4444
        %4533 = vst.msk [vmem:[#allocation5 + $0x48] sm:$0xff] %vm4523, %v4446
        %4534 = vst.msk [vmem:[#allocation5 + $0x50] sm:$0xff] %vm4523, %v4448
        %4535 = vst.msk [vmem:[#allocation5 + $0x58] sm:$0xff] %vm4523, %v4450
        %4536 = vst.msk [vmem:[#allocation5 + $0x60] sm:$0xff] %vm4523, %v4452
        %4537 = vst.msk [vmem:[#allocation5 + $0x68] sm:$0xff] %vm4523, %v4454
        %4538 = vst.msk [vmem:[#allocation5 + $0x70] sm:$0xff] %vm4523, %v4456
        %4539 = vst.msk [vmem:[#allocation5 + $0x78] sm:$0xff] %vm4523, %v4458
        %4540 = vst.msk [vmem:[#allocation5 + $0x80] sm:$0xff] %vm4523, %v4460
        %4541 = vst.msk [vmem:[#allocation5 + $0x88] sm:$0xff] %vm4523, %v4462
        %4542 = vst.msk [vmem:[#allocation5 + $0x90] sm:$0xff] %vm4523, %v4464
        %4543 = vst.msk [vmem:[#allocation5 + $0x98] sm:$0xff] %vm4523, %v4466
        %4544 = vst.msk [vmem:[#allocation5 + $0xa0] sm:$0xff] %vm4523, %v4468
        %4545 = vst.msk [vmem:[#allocation5 + $0xa8] sm:$0xff] %vm4523, %v4470
        %4546 = vst.msk [vmem:[#allocation5 + $0xb0] sm:$0xff] %vm4523, %v4472
        %4547 = vst.msk [vmem:[#allocation5 + $0xb8] sm:$0xff] %vm4523, %v4474
        %4548 = vst.msk [vmem:[#allocation5 + $0xc0] sm:$0xff] %vm4523, %v4476
        %4549 = vst.msk [vmem:[#allocation5 + $0xc8] sm:$0xff] %vm4523, %v4478
        %4550 = vst.msk [vmem:[#allocation5 + $0xd0] sm:$0xff] %vm4523, %v4480
        %4551 = vst.msk [vmem:[#allocation5 + $0xd8] sm:$0xff] %vm4523, %v4482
        %4552 = vst.msk [vmem:[#allocation5 + $0xe0] sm:$0xff] %vm4523, %v4484
        %4553 = vst.msk [vmem:[#allocation5 + $0xe8] sm:$0xff] %vm4523, %v4486
        %4554 = vst.msk [vmem:[#allocation5 + $0xf0] sm:$0xff] %vm4523, %v4488
        %4555 = vst.msk [vmem:[#allocation5 + $0xf8] sm:$0xff] %vm4523, %v4490
        %v4556 = vld [vmem:[%s3783 + $0x4] sm:$0xff]
        %v4557 = vld [vmem:[%s3783 + $0xc] sm:$0xff]
        %v4558 = vld [vmem:[%s3783 + $0x1c] sm:$0xff]
        %v4559 = vld [vmem:[%s3783 + $0x24] sm:$0xff]
        %v4560 = vld [vmem:[%s3783 + $0x34] sm:$0xff]
        %v4561 = vld [vmem:[%s3783 + $0x3c] sm:$0xff]
        %v4562 = vld [vmem:[%s3783 + $0x4c] sm:$0xff]
        %v4563 = vld [vmem:[%s3783 + $0x54] sm:$0xff]
        %v4564 = vld [vmem:[%s3783 + $0x64] sm:$0xff]
        %v4565 = vld [vmem:[%s3783 + $0x6c] sm:$0xff]
        %v4566 = vld [vmem:[%s3783 + $0x7c] sm:$0xff]
        %v4567 = vld [vmem:[%s3783 + $0x84] sm:$0xff]
        %v4568 = vld [vmem:[%s3783 + $0x94] sm:$0xff]
        %v4569 = vld [vmem:[%s3783 + $0x9c] sm:$0xff]
        %v4570 = vld [vmem:[%s3783 + $0xac] sm:$0xff]
        %v4571 = vld [vmem:[%s3783 + $0xb4] sm:$0xff]
        %v4572 = vld [vmem:[%s3783 + $0xc4] sm:$0xff]
        %v4573 = vld [vmem:[%s3783 + $0xcc] sm:$0xff]
        %v4574 = vld [vmem:[%s3783 + $0xdc] sm:$0xff]
        %v4575 = vld [vmem:[%s3783 + $0xe4] sm:$0xff]
        %v4576 = vld [vmem:[%s3783 + $0xf4] sm:$0xff]
        %v4577 = vld [vmem:[%s3783 + $0xfc] sm:$0xff]
        %v4578 = vld [vmem:[%s3783 + $0x10c] sm:$0xff]
        %v4579 = vld [vmem:[%s3783 + $0x114] sm:$0xff]
        %v4580 = vld [vmem:[%s3783 + $0x124] sm:$0xff]
        %v4581 = vld [vmem:[%s3783 + $0x12c] sm:$0xff]
        %v4582 = vld [vmem:[%s3783 + $0x13c] sm:$0xff]
        %v4583 = vld [vmem:[%s3783 + $0x144] sm:$0xff]
        %v4584 = vld [vmem:[%s3783 + $0x154] sm:$0xff]
        %v4585 = vld [vmem:[%s3783 + $0x15c] sm:$0xff]
        %v4586 = vld [vmem:[%s3783 + $0x16c] sm:$0xff]
        %v4587 = vld [vmem:[%s3783 + $0x174] sm:$0xff]
        %4620 = vrot.lane.b32.xlu0 %v4556, 58
        %v4621 = vpop.permute.xlu0 %4620
        %4622 = vrot.lane.b32.xlu0 %v4557, 58
        %v4623 = vpop.permute.xlu0 %4622
        %4624 = vrot.lane.b32.xlu0 %v4558, 58
        %v4625 = vpop.permute.xlu0 %4624
        %4626 = vrot.lane.b32.xlu0 %v4559, 58
        %v4627 = vpop.permute.xlu0 %4626
        %4628 = vrot.lane.b32.xlu0 %v4560, 58
        %v4629 = vpop.permute.xlu0 %4628
        %4630 = vrot.lane.b32.xlu0 %v4561, 58
        %v4631 = vpop.permute.xlu0 %4630
        %4632 = vrot.lane.b32.xlu0 %v4562, 58
        %v4633 = vpop.permute.xlu0 %4632
        %4634 = vrot.lane.b32.xlu0 %v4563, 58
        %v4635 = vpop.permute.xlu0 %4634
        %4636 = vrot.lane.b32.xlu0 %v4564, 58
        %v4637 = vpop.permute.xlu0 %4636
        %4638 = vrot.lane.b32.xlu0 %v4565, 58
        %v4639 = vpop.permute.xlu0 %4638
        %4640 = vrot.lane.b32.xlu0 %v4566, 58
        %v4641 = vpop.permute.xlu0 %4640
        %4642 = vrot.lane.b32.xlu0 %v4567, 58
        %v4643 = vpop.permute.xlu0 %4642
        %4644 = vrot.lane.b32.xlu0 %v4568, 58
        %v4645 = vpop.permute.xlu0 %4644
        %4646 = vrot.lane.b32.xlu0 %v4569, 58
        %v4647 = vpop.permute.xlu0 %4646
        %4648 = vrot.lane.b32.xlu0 %v4570, 58
        %v4649 = vpop.permute.xlu0 %4648
        %4650 = vrot.lane.b32.xlu0 %v4571, 58
        %v4651 = vpop.permute.xlu0 %4650
        %4652 = vrot.lane.b32.xlu0 %v4572, 58
        %v4653 = vpop.permute.xlu0 %4652
        %4654 = vrot.lane.b32.xlu0 %v4573, 58
        %v4655 = vpop.permute.xlu0 %4654
        %4656 = vrot.lane.b32.xlu0 %v4574, 58
        %v4657 = vpop.permute.xlu0 %4656
        %4658 = vrot.lane.b32.xlu0 %v4575, 58
        %v4659 = vpop.permute.xlu0 %4658
        %4660 = vrot.lane.b32.xlu0 %v4576, 58
        %v4661 = vpop.permute.xlu0 %4660
        %4662 = vrot.lane.b32.xlu0 %v4577, 58
        %v4663 = vpop.permute.xlu0 %4662
        %4664 = vrot.lane.b32.xlu0 %v4578, 58
        %v4665 = vpop.permute.xlu0 %4664
        %4666 = vrot.lane.b32.xlu0 %v4579, 58
        %v4667 = vpop.permute.xlu0 %4666
        %4668 = vrot.lane.b32.xlu0 %v4580, 58
        %v4669 = vpop.permute.xlu0 %4668
        %4670 = vrot.lane.b32.xlu0 %v4581, 58
        %v4671 = vpop.permute.xlu0 %4670
        %4672 = vrot.lane.b32.xlu0 %v4582, 58
        %v4673 = vpop.permute.xlu0 %4672
        %4674 = vrot.lane.b32.xlu0 %v4583, 58
        %v4675 = vpop.permute.xlu0 %4674
        %4676 = vrot.lane.b32.xlu0 %v4584, 58
        %v4677 = vpop.permute.xlu0 %4676
        %4678 = vrot.lane.b32.xlu0 %v4585, 58
        %v4679 = vpop.permute.xlu0 %4678
        %4680 = vrot.lane.b32.xlu0 %v4586, 58
        %v4681 = vpop.permute.xlu0 %4680
        %4682 = vrot.lane.b32.xlu0 %v4587, 58
        %v4683 = vpop.permute.xlu0 %4682
        %vm4716 = vcmask 490960
        %4717 = vst.msk [vmem:[#allocation5] sm:$0xff] %vm4716, %v4621
        %4718 = vst.msk [vmem:[#allocation5 + $0x8] sm:$0xff] %vm4716, %v4623
        %4719 = vst.msk [vmem:[#allocation5 + $0x10] sm:$0xff] %vm4716, %v4625
        %4720 = vst.msk [vmem:[#allocation5 + $0x18] sm:$0xff] %vm4716, %v4627
        %4721 = vst.msk [vmem:[#allocation5 + $0x20] sm:$0xff] %vm4716, %v4629
        %4722 = vst.msk [vmem:[#allocation5 + $0x28] sm:$0xff] %vm4716, %v4631
        %4723 = vst.msk [vmem:[#allocation5 + $0x30] sm:$0xff] %vm4716, %v4633
        %4724 = vst.msk [vmem:[#allocation5 + $0x38] sm:$0xff] %vm4716, %v4635
        %4725 = vst.msk [vmem:[#allocation5 + $0x40] sm:$0xff] %vm4716, %v4637
        %4726 = vst.msk [vmem:[#allocation5 + $0x48] sm:$0xff] %vm4716, %v4639
        %4727 = vst.msk [vmem:[#allocation5 + $0x50] sm:$0xff] %vm4716, %v4641
        %4728 = vst.msk [vmem:[#allocation5 + $0x58] sm:$0xff] %vm4716, %v4643
        %4729 = vst.msk [vmem:[#allocation5 + $0x60] sm:$0xff] %vm4716, %v4645
        %4730 = vst.msk [vmem:[#allocation5 + $0x68] sm:$0xff] %vm4716, %v4647
        %4731 = vst.msk [vmem:[#allocation5 + $0x70] sm:$0xff] %vm4716, %v4649
        %4732 = vst.msk [vmem:[#allocation5 + $0x78] sm:$0xff] %vm4716, %v4651
        %4733 = vst.msk [vmem:[#allocation5 + $0x80] sm:$0xff] %vm4716, %v4653
        %4734 = vst.msk [vmem:[#allocation5 + $0x88] sm:$0xff] %vm4716, %v4655
        %4735 = vst.msk [vmem:[#allocation5 + $0x90] sm:$0xff] %vm4716, %v4657
        %4736 = vst.msk [vmem:[#allocation5 + $0x98] sm:$0xff] %vm4716, %v4659
        %4737 = vst.msk [vmem:[#allocation5 + $0xa0] sm:$0xff] %vm4716, %v4661
        %4738 = vst.msk [vmem:[#allocation5 + $0xa8] sm:$0xff] %vm4716, %v4663
        %4739 = vst.msk [vmem:[#allocation5 + $0xb0] sm:$0xff] %vm4716, %v4665
        %4740 = vst.msk [vmem:[#allocation5 + $0xb8] sm:$0xff] %vm4716, %v4667
        %4741 = vst.msk [vmem:[#allocation5 + $0xc0] sm:$0xff] %vm4716, %v4669
        %4742 = vst.msk [vmem:[#allocation5 + $0xc8] sm:$0xff] %vm4716, %v4671
        %4743 = vst.msk [vmem:[#allocation5 + $0xd0] sm:$0xff] %vm4716, %v4673
        %4744 = vst.msk [vmem:[#allocation5 + $0xd8] sm:$0xff] %vm4716, %v4675
        %4745 = vst.msk [vmem:[#allocation5 + $0xe0] sm:$0xff] %vm4716, %v4677
        %4746 = vst.msk [vmem:[#allocation5 + $0xe8] sm:$0xff] %vm4716, %v4679
        %4747 = vst.msk [vmem:[#allocation5 + $0xf0] sm:$0xff] %vm4716, %v4681
        %4748 = vst.msk [vmem:[#allocation5 + $0xf8] sm:$0xff] %vm4716, %v4683
        %v4749 = vld [vmem:[%s981] sm:$0xff]
        %v4750 = vld [vmem:[%s981 + $0x8] sm:$0xff]
        %v4751 = vld [vmem:[%s981 + $0x18] sm:$0xff]
        %v4752 = vld [vmem:[%s981 + $0x20] sm:$0xff]
        %v4753 = vld [vmem:[%s981 + $0x30] sm:$0xff]
        %v4754 = vld [vmem:[%s981 + $0x38] sm:$0xff]
        %v4755 = vld [vmem:[%s981 + $0x48] sm:$0xff]
        %v4756 = vld [vmem:[%s981 + $0x50] sm:$0xff]
        %v4757 = vld [vmem:[%s981 + $0x60] sm:$0xff]
        %v4758 = vld [vmem:[%s981 + $0x68] sm:$0xff]
        %v4759 = vld [vmem:[%s981 + $0x78] sm:$0xff]
        %v4760 = vld [vmem:[%s981 + $0x80] sm:$0xff]
        %v4761 = vld [vmem:[%s981 + $0x90] sm:$0xff]
        %v4762 = vld [vmem:[%s981 + $0x98] sm:$0xff]
        %v4763 = vld [vmem:[%s981 + $0xa8] sm:$0xff]
        %v4764 = vld [vmem:[%s981 + $0xb0] sm:$0xff]
        %v4765 = vld [vmem:[%s981 + $0xc0] sm:$0xff]
        %v4766 = vld [vmem:[%s981 + $0xc8] sm:$0xff]
        %v4767 = vld [vmem:[%s981 + $0xd8] sm:$0xff]
        %v4768 = vld [vmem:[%s981 + $0xe0] sm:$0xff]
        %v4769 = vld [vmem:[%s981 + $0xf0] sm:$0xff]
        %v4770 = vld [vmem:[%s981 + $0xf8] sm:$0xff]
        %v4771 = vld [vmem:[%s981 + $0x108] sm:$0xff]
        %v4772 = vld [vmem:[%s981 + $0x110] sm:$0xff]
        %v4773 = vld [vmem:[%s981 + $0x120] sm:$0xff]
        %v4774 = vld [vmem:[%s981 + $0x128] sm:$0xff]
        %v4775 = vld [vmem:[%s981 + $0x138] sm:$0xff]
        %v4776 = vld [vmem:[%s981 + $0x140] sm:$0xff]
        %v4777 = vld [vmem:[%s981 + $0x150] sm:$0xff]
        %v4778 = vld [vmem:[%s981 + $0x158] sm:$0xff]
        %v4779 = vld [vmem:[%s981 + $0x168] sm:$0xff]
        %v4780 = vld [vmem:[%s981 + $0x170] sm:$0xff]
        %4813 = vrot.lane.b32.xlu0 %v4749, 60
        %v4814 = vpop.permute.xlu0 %4813
        %4815 = vrot.lane.b32.xlu0 %v4750, 60
        %v4816 = vpop.permute.xlu0 %4815
        %4817 = vrot.lane.b32.xlu0 %v4751, 60
        %v4818 = vpop.permute.xlu0 %4817
        %4819 = vrot.lane.b32.xlu0 %v4752, 60
        %v4820 = vpop.permute.xlu0 %4819
        %4821 = vrot.lane.b32.xlu0 %v4753, 60
        %v4822 = vpop.permute.xlu0 %4821
        %4823 = vrot.lane.b32.xlu0 %v4754, 60
        %v4824 = vpop.permute.xlu0 %4823
        %4825 = vrot.lane.b32.xlu0 %v4755, 60
        %v4826 = vpop.permute.xlu0 %4825
        %4827 = vrot.lane.b32.xlu0 %v4756, 60
        %v4828 = vpop.permute.xlu0 %4827
        %4829 = vrot.lane.b32.xlu0 %v4757, 60
        %v4830 = vpop.permute.xlu0 %4829
        %4831 = vrot.lane.b32.xlu0 %v4758, 60
        %v4832 = vpop.permute.xlu0 %4831
        %4833 = vrot.lane.b32.xlu0 %v4759, 60
        %v4834 = vpop.permute.xlu0 %4833
        %4835 = vrot.lane.b32.xlu0 %v4760, 60
        %v4836 = vpop.permute.xlu0 %4835
        %4837 = vrot.lane.b32.xlu0 %v4761, 60
        %v4838 = vpop.permute.xlu0 %4837
        %4839 = vrot.lane.b32.xlu0 %v4762, 60
        %v4840 = vpop.permute.xlu0 %4839
        %4841 = vrot.lane.b32.xlu0 %v4763, 60
        %v4842 = vpop.permute.xlu0 %4841
        %4843 = vrot.lane.b32.xlu0 %v4764, 60
        %v4844 = vpop.permute.xlu0 %4843
        %4845 = vrot.lane.b32.xlu0 %v4765, 60
        %v4846 = vpop.permute.xlu0 %4845
        %4847 = vrot.lane.b32.xlu0 %v4766, 60
        %v4848 = vpop.permute.xlu0 %4847
        %4849 = vrot.lane.b32.xlu0 %v4767, 60
        %v4850 = vpop.permute.xlu0 %4849
        %4851 = vrot.lane.b32.xlu0 %v4768, 60
        %v4852 = vpop.permute.xlu0 %4851
        %4853 = vrot.lane.b32.xlu0 %v4769, 60
        %v4854 = vpop.permute.xlu0 %4853
        %4855 = vrot.lane.b32.xlu0 %v4770, 60
        %v4856 = vpop.permute.xlu0 %4855
        %4857 = vrot.lane.b32.xlu0 %v4771, 60
        %v4858 = vpop.permute.xlu0 %4857
        %4859 = vrot.lane.b32.xlu0 %v4772, 60
        %v4860 = vpop.permute.xlu0 %4859
        %4861 = vrot.lane.b32.xlu0 %v4773, 60
        %v4862 = vpop.permute.xlu0 %4861
        %4863 = vrot.lane.b32.xlu0 %v4774, 60
        %v4864 = vpop.permute.xlu0 %4863
        %4865 = vrot.lane.b32.xlu0 %v4775, 60
        %v4866 = vpop.permute.xlu0 %4865
        %4867 = vrot.lane.b32.xlu0 %v4776, 60
        %v4868 = vpop.permute.xlu0 %4867
        %4869 = vrot.lane.b32.xlu0 %v4777, 60
        %v4870 = vpop.permute.xlu0 %4869
        %4871 = vrot.lane.b32.xlu0 %v4778, 60
        %v4872 = vpop.permute.xlu0 %4871
        %4873 = vrot.lane.b32.xlu0 %v4779, 60
        %v4874 = vpop.permute.xlu0 %4873
        %4875 = vrot.lane.b32.xlu0 %v4780, 60
        %v4876 = vpop.permute.xlu0 %4875
        %vm4909 = vcmask 507360
        %4910 = vst.msk [vmem:[#allocation5] sm:$0xff] %vm4909, %v4814
        %4911 = vst.msk [vmem:[#allocation5 + $0x8] sm:$0xff] %vm4909, %v4816
        %4912 = vst.msk [vmem:[#allocation5 + $0x10] sm:$0xff] %vm4909, %v4818
        %4913 = vst.msk [vmem:[#allocation5 + $0x18] sm:$0xff] %vm4909, %v4820
        %4914 = vst.msk [vmem:[#allocation5 + $0x20] sm:$0xff] %vm4909, %v4822
        %4915 = vst.msk [vmem:[#allocation5 + $0x28] sm:$0xff] %vm4909, %v4824
        %4916 = vst.msk [vmem:[#allocation5 + $0x30] sm:$0xff] %vm4909, %v4826
        %4917 = vst.msk [vmem:[#allocation5 + $0x38] sm:$0xff] %vm4909, %v4828
        %4918 = vst.msk [vmem:[#allocation5 + $0x40] sm:$0xff] %vm4909, %v4830
        %4919 = vst.msk [vmem:[#allocation5 + $0x48] sm:$0xff] %vm4909, %v4832
        %4920 = vst.msk [vmem:[#allocation5 + $0x50] sm:$0xff] %vm4909, %v4834
        %4921 = vst.msk [vmem:[#allocation5 + $0x58] sm:$0xff] %vm4909, %v4836
        %4922 = vst.msk [vmem:[#allocation5 + $0x60] sm:$0xff] %vm4909, %v4838
        %4923 = vst.msk [vmem:[#allocation5 + $0x68] sm:$0xff] %vm4909, %v4840
        %4924 = vst.msk [vmem:[#allocation5 + $0x70] sm:$0xff] %vm4909, %v4842
        %4925 = vst.msk [vmem:[#allocation5 + $0x78] sm:$0xff] %vm4909, %v4844
        %4926 = vst.msk [vmem:[#allocation5 + $0x80] sm:$0xff] %vm4909, %v4846
        %4927 = vst.msk [vmem:[#allocation5 + $0x88] sm:$0xff] %vm4909, %v4848
        %4928 = vst.msk [vmem:[#allocation5 + $0x90] sm:$0xff] %vm4909, %v4850
        %4929 = vst.msk [vmem:[#allocation5 + $0x98] sm:$0xff] %vm4909, %v4852
        %4930 = vst.msk [vmem:[#allocation5 + $0xa0] sm:$0xff] %vm4909, %v4854
        %4931 = vst.msk [vmem:[#allocation5 + $0xa8] sm:$0xff] %vm4909, %v4856
        %4932 = vst.msk [vmem:[#allocation5 + $0xb0] sm:$0xff] %vm4909, %v4858
        %4933 = vst.msk [vmem:[#allocation5 + $0xb8] sm:$0xff] %vm4909, %v4860
        %4934 = vst.msk [vmem:[#allocation5 + $0xc0] sm:$0xff] %vm4909, %v4862
        %4935 = vst.msk [vmem:[#allocation5 + $0xc8] sm:$0xff] %vm4909, %v4864
        %4936 = vst.msk [vmem:[#allocation5 + $0xd0] sm:$0xff] %vm4909, %v4866
        %4937 = vst.msk [vmem:[#allocation5 + $0xd8] sm:$0xff] %vm4909, %v4868
        %4938 = vst.msk [vmem:[#allocation5 + $0xe0] sm:$0xff] %vm4909, %v4870
        %4939 = vst.msk [vmem:[#allocation5 + $0xe8] sm:$0xff] %vm4909, %v4872
        %4940 = vst.msk [vmem:[#allocation5 + $0xf0] sm:$0xff] %vm4909, %v4874
        %4941 = vst.msk [vmem:[#allocation5 + $0xf8] sm:$0xff] %vm4909, %v4876
        %v4942 = vld [vmem:[%s981 + $0x1] sm:$0xff]
        %v4943 = vld [vmem:[%s981 + $0x9] sm:$0xff]
        %v4944 = vld [vmem:[%s981 + $0x19] sm:$0xff]
        %v4945 = vld [vmem:[%s981 + $0x21] sm:$0xff]
        %v4946 = vld [vmem:[%s981 + $0x31] sm:$0xff]
        %v4947 = vld [vmem:[%s981 + $0x39] sm:$0xff]
        %v4948 = vld [vmem:[%s981 + $0x49] sm:$0xff]
        %v4949 = vld [vmem:[%s981 + $0x51] sm:$0xff]
        %v4950 = vld [vmem:[%s981 + $0x61] sm:$0xff]
        %v4951 = vld [vmem:[%s981 + $0x69] sm:$0xff]
        %v4952 = vld [vmem:[%s981 + $0x79] sm:$0xff]
        %v4953 = vld [vmem:[%s981 + $0x81] sm:$0xff]
        %v4954 = vld [vmem:[%s981 + $0x91] sm:$0xff]
        %v4955 = vld [vmem:[%s981 + $0x99] sm:$0xff]
        %v4956 = vld [vmem:[%s981 + $0xa9] sm:$0xff]
        %v4957 = vld [vmem:[%s981 + $0xb1] sm:$0xff]
        %v4958 = vld [vmem:[%s981 + $0xc1] sm:$0xff]
        %v4959 = vld [vmem:[%s981 + $0xc9] sm:$0xff]
        %v4960 = vld [vmem:[%s981 + $0xd9] sm:$0xff]
        %v4961 = vld [vmem:[%s981 + $0xe1] sm:$0xff]
        %v4962 = vld [vmem:[%s981 + $0xf1] sm:$0xff]
        %v4963 = vld [vmem:[%s981 + $0xf9] sm:$0xff]
        %v4964 = vld [vmem:[%s981 + $0x109] sm:$0xff]
        %v4965 = vld [vmem:[%s981 + $0x111] sm:$0xff]
        %v4966 = vld [vmem:[%s981 + $0x121] sm:$0xff]
        %v4967 = vld [vmem:[%s981 + $0x129] sm:$0xff]
        %v4968 = vld [vmem:[%s981 + $0x139] sm:$0xff]
        %v4969 = vld [vmem:[%s981 + $0x141] sm:$0xff]
        %v4970 = vld [vmem:[%s981 + $0x151] sm:$0xff]
        %v4971 = vld [vmem:[%s981 + $0x159] sm:$0xff]
        %v4972 = vld [vmem:[%s981 + $0x169] sm:$0xff]
        %v4973 = vld [vmem:[%s981 + $0x171] sm:$0xff]
        %5006 = vrot.lane.b32.xlu0 %v4942, 62
        %v5007 = vpop.permute.xlu0 %5006
        %5008 = vrot.lane.b32.xlu0 %v4943, 62
        %v5009 = vpop.permute.xlu0 %5008
        %5010 = vrot.lane.b32.xlu0 %v4944, 62
        %v5011 = vpop.permute.xlu0 %5010
        %5012 = vrot.lane.b32.xlu0 %v4945, 62
        %v5013 = vpop.permute.xlu0 %5012
        %5014 = vrot.lane.b32.xlu0 %v4946, 62
        %v5015 = vpop.permute.xlu0 %5014
        %5016 = vrot.lane.b32.xlu0 %v4947, 62
        %v5017 = vpop.permute.xlu0 %5016
        %5018 = vrot.lane.b32.xlu0 %v4948, 62
        %v5019 = vpop.permute.xlu0 %5018
        %5020 = vrot.lane.b32.xlu0 %v4949, 62
        %v5021 = vpop.permute.xlu0 %5020
        %5022 = vrot.lane.b32.xlu0 %v4950, 62
        %v5023 = vpop.permute.xlu0 %5022
        %5024 = vrot.lane.b32.xlu0 %v4951, 62
        %v5025 = vpop.permute.xlu0 %5024
        %5026 = vrot.lane.b32.xlu0 %v4952, 62
        %v5027 = vpop.permute.xlu0 %5026
        %5028 = vrot.lane.b32.xlu0 %v4953, 62
        %v5029 = vpop.permute.xlu0 %5028
        %5030 = vrot.lane.b32.xlu0 %v4954, 62
        %v5031 = vpop.permute.xlu0 %5030
        %5032 = vrot.lane.b32.xlu0 %v4955, 62
        %v5033 = vpop.permute.xlu0 %5032
        %5034 = vrot.lane.b32.xlu0 %v4956, 62
        %v5035 = vpop.permute.xlu0 %5034
        %5036 = vrot.lane.b32.xlu0 %v4957, 62
        %v5037 = vpop.permute.xlu0 %5036
        %5038 = vrot.lane.b32.xlu0 %v4958, 62
        %v5039 = vpop.permute.xlu0 %5038
        %5040 = vrot.lane.b32.xlu0 %v4959, 62
        %v5041 = vpop.permute.xlu0 %5040
        %5042 = vrot.lane.b32.xlu0 %v4960, 62
        %v5043 = vpop.permute.xlu0 %5042
        %5044 = vrot.lane.b32.xlu0 %v4961, 62
        %v5045 = vpop.permute.xlu0 %5044
        %5046 = vrot.lane.b32.xlu0 %v4962, 62
        %v5047 = vpop.permute.xlu0 %5046
        %5048 = vrot.lane.b32.xlu0 %v4963, 62
        %v5049 = vpop.permute.xlu0 %5048
        %5050 = vrot.lane.b32.xlu0 %v4964, 62
        %v5051 = vpop.permute.xlu0 %5050
        %5052 = vrot.lane.b32.xlu0 %v4965, 62
        %v5053 = vpop.permute.xlu0 %5052
        %5054 = vrot.lane.b32.xlu0 %v4966, 62
        %v5055 = vpop.permute.xlu0 %5054
        %5056 = vrot.lane.b32.xlu0 %v4967, 62
        %v5057 = vpop.permute.xlu0 %5056
        %5058 = vrot.lane.b32.xlu0 %v4968, 62
        %v5059 = vpop.permute.xlu0 %5058
        %5060 = vrot.lane.b32.xlu0 %v4969, 62
        %v5061 = vpop.permute.xlu0 %5060
        %5062 = vrot.lane.b32.xlu0 %v4970, 62
        %v5063 = vpop.permute.xlu0 %5062
        %5064 = vrot.lane.b32.xlu0 %v4971, 62
        %v5065 = vpop.permute.xlu0 %5064
        %5066 = vrot.lane.b32.xlu0 %v4972, 62
        %v5067 = vpop.permute.xlu0 %5066
        %5068 = vrot.lane.b32.xlu0 %v4973, 62
        %v5069 = vpop.permute.xlu0 %5068
        %vm5102 = vcmask 523760
        %5103 = vst.msk [vmem:[#allocation5] sm:$0xff] %vm5102, %v5007
        %5104 = vst.msk [vmem:[#allocation5 + $0x8] sm:$0xff] %vm5102, %v5009
        %5105 = vst.msk [vmem:[#allocation5 + $0x10] sm:$0xff] %vm5102, %v5011
        %5106 = vst.msk [vmem:[#allocation5 + $0x18] sm:$0xff] %vm5102, %v5013
        %5107 = vst.msk [vmem:[#allocation5 + $0x20] sm:$0xff] %vm5102, %v5015
        %5108 = vst.msk [vmem:[#allocation5 + $0x28] sm:$0xff] %vm5102, %v5017
        %5109 = vst.msk [vmem:[#allocation5 + $0x30] sm:$0xff] %vm5102, %v5019
        %5110 = vst.msk [vmem:[#allocation5 + $0x38] sm:$0xff] %vm5102, %v5021
        %5111 = vst.msk [vmem:[#allocation5 + $0x40] sm:$0xff] %vm5102, %v5023
        %5112 = vst.msk [vmem:[#allocation5 + $0x48] sm:$0xff] %vm5102, %v5025
        %5113 = vst.msk [vmem:[#allocation5 + $0x50] sm:$0xff] %vm5102, %v5027
        %5114 = vst.msk [vmem:[#allocation5 + $0x58] sm:$0xff] %vm5102, %v5029
        %5115 = vst.msk [vmem:[#allocation5 + $0x60] sm:$0xff] %vm5102, %v5031
        %5116 = vst.msk [vmem:[#allocation5 + $0x68] sm:$0xff] %vm5102, %v5033
        %5117 = vst.msk [vmem:[#allocation5 + $0x70] sm:$0xff] %vm5102, %v5035
        %5118 = vst.msk [vmem:[#allocation5 + $0x78] sm:$0xff] %vm5102, %v5037
        %5119 = vst.msk [vmem:[#allocation5 + $0x80] sm:$0xff] %vm5102, %v5039
        %5120 = vst.msk [vmem:[#allocation5 + $0x88] sm:$0xff] %vm5102, %v5041
        %5121 = vst.msk [vmem:[#allocation5 + $0x90] sm:$0xff] %vm5102, %v5043
        %5122 = vst.msk [vmem:[#allocation5 + $0x98] sm:$0xff] %vm5102, %v5045
        %5123 = vst.msk [vmem:[#allocation5 + $0xa0] sm:$0xff] %vm5102, %v5047
        %5124 = vst.msk [vmem:[#allocation5 + $0xa8] sm:$0xff] %vm5102, %v5049
        %5125 = vst.msk [vmem:[#allocation5 + $0xb0] sm:$0xff] %vm5102, %v5051
        %5126 = vst.msk [vmem:[#allocation5 + $0xb8] sm:$0xff] %vm5102, %v5053
        %5127 = vst.msk [vmem:[#allocation5 + $0xc0] sm:$0xff] %vm5102, %v5055
        %5128 = vst.msk [vmem:[#allocation5 + $0xc8] sm:$0xff] %vm5102, %v5057
        %5129 = vst.msk [vmem:[#allocation5 + $0xd0] sm:$0xff] %vm5102, %v5059
        %5130 = vst.msk [vmem:[#allocation5 + $0xd8] sm:$0xff] %vm5102, %v5061
        %5131 = vst.msk [vmem:[#allocation5 + $0xe0] sm:$0xff] %vm5102, %v5063
        %5132 = vst.msk [vmem:[#allocation5 + $0xe8] sm:$0xff] %vm5102, %v5065
        %5133 = vst.msk [vmem:[#allocation5 + $0xf0] sm:$0xff] %vm5102, %v5067
        %5134 = vst.msk [vmem:[#allocation5 + $0xf8] sm:$0xff] %vm5102, %v5069
        %v5135 = vld [vmem:[%s981 + $0x2] sm:$0xff]
        %v5136 = vld [vmem:[%s981 + $0xa] sm:$0xff]
        %v5137 = vld [vmem:[%s981 + $0x1a] sm:$0xff]
        %v5138 = vld [vmem:[%s981 + $0x22] sm:$0xff]
        %v5139 = vld [vmem:[%s981 + $0x32] sm:$0xff]
        %v5140 = vld [vmem:[%s981 + $0x3a] sm:$0xff]
        %v5141 = vld [vmem:[%s981 + $0x4a] sm:$0xff]
        %v5142 = vld [vmem:[%s981 + $0x52] sm:$0xff]
        %v5143 = vld [vmem:[%s981 + $0x62] sm:$0xff]
        %v5144 = vld [vmem:[%s981 + $0x6a] sm:$0xff]
        %v5145 = vld [vmem:[%s981 + $0x7a] sm:$0xff]
        %v5146 = vld [vmem:[%s981 + $0x82] sm:$0xff]
        %v5147 = vld [vmem:[%s981 + $0x92] sm:$0xff]
        %v5148 = vld [vmem:[%s981 + $0x9a] sm:$0xff]
        %v5149 = vld [vmem:[%s981 + $0xaa] sm:$0xff]
        %v5150 = vld [vmem:[%s981 + $0xb2] sm:$0xff]
        %v5151 = vld [vmem:[%s981 + $0xc2] sm:$0xff]
        %v5152 = vld [vmem:[%s981 + $0xca] sm:$0xff]
        %v5153 = vld [vmem:[%s981 + $0xda] sm:$0xff]
        %v5154 = vld [vmem:[%s981 + $0xe2] sm:$0xff]
        %v5155 = vld [vmem:[%s981 + $0xf2] sm:$0xff]
        %v5156 = vld [vmem:[%s981 + $0xfa] sm:$0xff]
        %v5157 = vld [vmem:[%s981 + $0x10a] sm:$0xff]
        %v5158 = vld [vmem:[%s981 + $0x112] sm:$0xff]
        %v5159 = vld [vmem:[%s981 + $0x122] sm:$0xff]
        %v5160 = vld [vmem:[%s981 + $0x12a] sm:$0xff]
        %v5161 = vld [vmem:[%s981 + $0x13a] sm:$0xff]
        %v5162 = vld [vmem:[%s981 + $0x142] sm:$0xff]
        %v5163 = vld [vmem:[%s981 + $0x152] sm:$0xff]
        %v5164 = vld [vmem:[%s981 + $0x15a] sm:$0xff]
        %v5165 = vld [vmem:[%s981 + $0x16a] sm:$0xff]
        %v5166 = vld [vmem:[%s981 + $0x172] sm:$0xff]
        %5199 = vrot.lane.b32.xlu0 %v5135, 64
        %v5200 = vpop.permute.xlu0 %5199
        %5201 = vrot.lane.b32.xlu0 %v5136, 64
        %v5202 = vpop.permute.xlu0 %5201
        %5203 = vrot.lane.b32.xlu0 %v5137, 64
        %v5204 = vpop.permute.xlu0 %5203
        %5205 = vrot.lane.b32.xlu0 %v5138, 64
        %v5206 = vpop.permute.xlu0 %5205
        %5207 = vrot.lane.b32.xlu0 %v5139, 64
        %v5208 = vpop.permute.xlu0 %5207
        %5209 = vrot.lane.b32.xlu0 %v5140, 64
        %v5210 = vpop.permute.xlu0 %5209
        %5211 = vrot.lane.b32.xlu0 %v5141, 64
        %v5212 = vpop.permute.xlu0 %5211
        %5213 = vrot.lane.b32.xlu0 %v5142, 64
        %v5214 = vpop.permute.xlu0 %5213
        %5215 = vrot.lane.b32.xlu0 %v5143, 64
        %v5216 = vpop.permute.xlu0 %5215
        %5217 = vrot.lane.b32.xlu0 %v5144, 64
        %v5218 = vpop.permute.xlu0 %5217
        %5219 = vrot.lane.b32.xlu0 %v5145, 64
        %v5220 = vpop.permute.xlu0 %5219
        %5221 = vrot.lane.b32.xlu0 %v5146, 64
        %v5222 = vpop.permute.xlu0 %5221
        %5223 = vrot.lane.b32.xlu0 %v5147, 64
        %v5224 = vpop.permute.xlu0 %5223
        %5225 = vrot.lane.b32.xlu0 %v5148, 64
        %v5226 = vpop.permute.xlu0 %5225
        %5227 = vrot.lane.b32.xlu0 %v5149, 64
        %v5228 = vpop.permute.xlu0 %5227
        %5229 = vrot.lane.b32.xlu0 %v5150, 64
        %v5230 = vpop.permute.xlu0 %5229
        %5231 = vrot.lane.b32.xlu0 %v5151, 64
        %v5232 = vpop.permute.xlu0 %5231
        %5233 = vrot.lane.b32.xlu0 %v5152, 64
        %v5234 = vpop.permute.xlu0 %5233
        %5235 = vrot.lane.b32.xlu0 %v5153, 64
        %v5236 = vpop.permute.xlu0 %5235
        %5237 = vrot.lane.b32.xlu0 %v5154, 64
        %v5238 = vpop.permute.xlu0 %5237
        %5239 = vrot.lane.b32.xlu0 %v5155, 64
        %v5240 = vpop.permute.xlu0 %5239
        %5241 = vrot.lane.b32.xlu0 %v5156, 64
        %v5242 = vpop.permute.xlu0 %5241
        %5243 = vrot.lane.b32.xlu0 %v5157, 64
        %v5244 = vpop.permute.xlu0 %5243
        %5245 = vrot.lane.b32.xlu0 %v5158, 64
        %v5246 = vpop.permute.xlu0 %5245
        %5247 = vrot.lane.b32.xlu0 %v5159, 64
        %v5248 = vpop.permute.xlu0 %5247
        %5249 = vrot.lane.b32.xlu0 %v5160, 64
        %v5250 = vpop.permute.xlu0 %5249
        %5251 = vrot.lane.b32.xlu0 %v5161, 64
        %v5252 = vpop.permute.xlu0 %5251
        %5253 = vrot.lane.b32.xlu0 %v5162, 64
        %v5254 = vpop.permute.xlu0 %5253
        %5255 = vrot.lane.b32.xlu0 %v5163, 64
        %v5256 = vpop.permute.xlu0 %5255
        %5257 = vrot.lane.b32.xlu0 %v5164, 64
        %v5258 = vpop.permute.xlu0 %5257
        %5259 = vrot.lane.b32.xlu0 %v5165, 64
        %v5260 = vpop.permute.xlu0 %5259
        %5261 = vrot.lane.b32.xlu0 %v5166, 64
        %v5262 = vpop.permute.xlu0 %5261
        %vm5295 = vcmask 540160
        %5296 = vst.msk [vmem:[#allocation5] sm:$0xff] %vm5295, %v5200
        %5297 = vst.msk [vmem:[#allocation5 + $0x8] sm:$0xff] %vm5295, %v5202
        %5298 = vst.msk [vmem:[#allocation5 + $0x10] sm:$0xff] %vm5295, %v5204
        %5299 = vst.msk [vmem:[#allocation5 + $0x18] sm:$0xff] %vm5295, %v5206
        %5300 = vst.msk [vmem:[#allocation5 + $0x20] sm:$0xff] %vm5295, %v5208
        %5301 = vst.msk [vmem:[#allocation5 + $0x28] sm:$0xff] %vm5295, %v5210
        %5302 = vst.msk [vmem:[#allocation5 + $0x30] sm:$0xff] %vm5295, %v5212
        %5303 = vst.msk [vmem:[#allocation5 + $0x38] sm:$0xff] %vm5295, %v5214
        %5304 = vst.msk [vmem:[#allocation5 + $0x40] sm:$0xff] %vm5295, %v5216
        %5305 = vst.msk [vmem:[#allocation5 + $0x48] sm:$0xff] %vm5295, %v5218
        %5306 = vst.msk [vmem:[#allocation5 + $0x50] sm:$0xff] %vm5295, %v5220
        %5307 = vst.msk [vmem:[#allocation5 + $0x58] sm:$0xff] %vm5295, %v5222
        %5308 = vst.msk [vmem:[#allocation5 + $0x60] sm:$0xff] %vm5295, %v5224
        %5309 = vst.msk [vmem:[#allocation5 + $0x68] sm:$0xff] %vm5295, %v5226
        %5310 = vst.msk [vmem:[#allocation5 + $0x70] sm:$0xff] %vm5295, %v5228
        %5311 = vst.msk [vmem:[#allocation5 + $0x78] sm:$0xff] %vm5295, %v5230
        %5312 = vst.msk [vmem:[#allocation5 + $0x80] sm:$0xff] %vm5295, %v5232
        %5313 = vst.msk [vmem:[#allocation5 + $0x88] sm:$0xff] %vm5295, %v5234
        %5314 = vst.msk [vmem:[#allocation5 + $0x90] sm:$0xff] %vm5295, %v5236
        %5315 = vst.msk [vmem:[#allocation5 + $0x98] sm:$0xff] %vm5295, %v5238
        %5316 = vst.msk [vmem:[#allocation5 + $0xa0] sm:$0xff] %vm5295, %v5240
        %5317 = vst.msk [vmem:[#allocation5 + $0xa8] sm:$0xff] %vm5295, %v5242
        %5318 = vst.msk [vmem:[#allocation5 + $0xb0] sm:$0xff] %vm5295, %v5244
        %5319 = vst.msk [vmem:[#allocation5 + $0xb8] sm:$0xff] %vm5295, %v5246
        %5320 = vst.msk [vmem:[#allocation5 + $0xc0] sm:$0xff] %vm5295, %v5248
        %5321 = vst.msk [vmem:[#allocation5 + $0xc8] sm:$0xff] %vm5295, %v5250
        %5322 = vst.msk [vmem:[#allocation5 + $0xd0] sm:$0xff] %vm5295, %v5252
        %5323 = vst.msk [vmem:[#allocation5 + $0xd8] sm:$0xff] %vm5295, %v5254
        %5324 = vst.msk [vmem:[#allocation5 + $0xe0] sm:$0xff] %vm5295, %v5256
        %5325 = vst.msk [vmem:[#allocation5 + $0xe8] sm:$0xff] %vm5295, %v5258
        %5326 = vst.msk [vmem:[#allocation5 + $0xf0] sm:$0xff] %vm5295, %v5260
        %5327 = vst.msk [vmem:[#allocation5 + $0xf8] sm:$0xff] %vm5295, %v5262
        %v5328 = vld [vmem:[%s981 + $0x3] sm:$0xff]
        %v5329 = vld [vmem:[%s981 + $0xb] sm:$0xff]
        %v5330 = vld [vmem:[%s981 + $0x1b] sm:$0xff]
        %v5331 = vld [vmem:[%s981 + $0x23] sm:$0xff]
        %v5332 = vld [vmem:[%s981 + $0x33] sm:$0xff]
        %v5333 = vld [vmem:[%s981 + $0x3b] sm:$0xff]
        %v5334 = vld [vmem:[%s981 + $0x4b] sm:$0xff]
        %v5335 = vld [vmem:[%s981 + $0x53] sm:$0xff]
        %v5336 = vld [vmem:[%s981 + $0x63] sm:$0xff]
        %v5337 = vld [vmem:[%s981 + $0x6b] sm:$0xff]
        %v5338 = vld [vmem:[%s981 + $0x7b] sm:$0xff]
        %v5339 = vld [vmem:[%s981 + $0x83] sm:$0xff]
        %v5340 = vld [vmem:[%s981 + $0x93] sm:$0xff]
        %v5341 = vld [vmem:[%s981 + $0x9b] sm:$0xff]
        %v5342 = vld [vmem:[%s981 + $0xab] sm:$0xff]
        %v5343 = vld [vmem:[%s981 + $0xb3] sm:$0xff]
        %v5344 = vld [vmem:[%s981 + $0xc3] sm:$0xff]
        %v5345 = vld [vmem:[%s981 + $0xcb] sm:$0xff]
        %v5346 = vld [vmem:[%s981 + $0xdb] sm:$0xff]
        %v5347 = vld [vmem:[%s981 + $0xe3] sm:$0xff]
        %v5348 = vld [vmem:[%s981 + $0xf3] sm:$0xff]
        %v5349 = vld [vmem:[%s981 + $0xfb] sm:$0xff]
        %v5350 = vld [vmem:[%s981 + $0x10b] sm:$0xff]
        %v5351 = vld [vmem:[%s981 + $0x113] sm:$0xff]
        %v5352 = vld [vmem:[%s981 + $0x123] sm:$0xff]
        %v5353 = vld [vmem:[%s981 + $0x12b] sm:$0xff]
        %v5354 = vld [vmem:[%s981 + $0x13b] sm:$0xff]
        %v5355 = vld [vmem:[%s981 + $0x143] sm:$0xff]
        %v5356 = vld [vmem:[%s981 + $0x153] sm:$0xff]
        %v5357 = vld [vmem:[%s981 + $0x15b] sm:$0xff]
        %v5358 = vld [vmem:[%s981 + $0x16b] sm:$0xff]
        %v5359 = vld [vmem:[%s981 + $0x173] sm:$0xff]
        %5392 = vrot.lane.b32.xlu0 %v5328, 66
        %v5393 = vpop.permute.xlu0 %5392
        %5394 = vrot.lane.b32.xlu0 %v5329, 66
        %v5395 = vpop.permute.xlu0 %5394
        %5396 = vrot.lane.b32.xlu0 %v5330, 66
        %v5397 = vpop.permute.xlu0 %5396
        %5398 = vrot.lane.b32.xlu0 %v5331, 66
        %v5399 = vpop.permute.xlu0 %5398
        %5400 = vrot.lane.b32.xlu0 %v5332, 66
        %v5401 = vpop.permute.xlu0 %5400
        %5402 = vrot.lane.b32.xlu0 %v5333, 66
        %v5403 = vpop.permute.xlu0 %5402
        %5404 = vrot.lane.b32.xlu0 %v5334, 66
        %v5405 = vpop.permute.xlu0 %5404
        %5406 = vrot.lane.b32.xlu0 %v5335, 66
        %v5407 = vpop.permute.xlu0 %5406
        %5408 = vrot.lane.b32.xlu0 %v5336, 66
        %v5409 = vpop.permute.xlu0 %5408
        %5410 = vrot.lane.b32.xlu0 %v5337, 66
        %v5411 = vpop.permute.xlu0 %5410
        %5412 = vrot.lane.b32.xlu0 %v5338, 66
        %v5413 = vpop.permute.xlu0 %5412
        %5414 = vrot.lane.b32.xlu0 %v5339, 66
        %v5415 = vpop.permute.xlu0 %5414
        %5416 = vrot.lane.b32.xlu0 %v5340, 66
        %v5417 = vpop.permute.xlu0 %5416
        %5418 = vrot.lane.b32.xlu0 %v5341, 66
        %v5419 = vpop.permute.xlu0 %5418
        %5420 = vrot.lane.b32.xlu0 %v5342, 66
        %v5421 = vpop.permute.xlu0 %5420
        %5422 = vrot.lane.b32.xlu0 %v5343, 66
        %v5423 = vpop.permute.xlu0 %5422
        %5424 = vrot.lane.b32.xlu0 %v5344, 66
        %v5425 = vpop.permute.xlu0 %5424
        %5426 = vrot.lane.b32.xlu0 %v5345, 66
        %v5427 = vpop.permute.xlu0 %5426
        %5428 = vrot.lane.b32.xlu0 %v5346, 66
        %v5429 = vpop.permute.xlu0 %5428
        %5430 = vrot.lane.b32.xlu0 %v5347, 66
        %v5431 = vpop.permute.xlu0 %5430
        %5432 = vrot.lane.b32.xlu0 %v5348, 66
        %v5433 = vpop.permute.xlu0 %5432
        %5434 = vrot.lane.b32.xlu0 %v5349, 66
        %v5435 = vpop.permute.xlu0 %5434
        %5436 = vrot.lane.b32.xlu0 %v5350, 66
        %v5437 = vpop.permute.xlu0 %5436
        %5438 = vrot.lane.b32.xlu0 %v5351, 66
        %v5439 = vpop.permute.xlu0 %5438
        %5440 = vrot.lane.b32.xlu0 %v5352, 66
        %v5441 = vpop.permute.xlu0 %5440
        %5442 = vrot.lane.b32.xlu0 %v5353, 66
        %v5443 = vpop.permute.xlu0 %5442
        %5444 = vrot.lane.b32.xlu0 %v5354, 66
        %v5445 = vpop.permute.xlu0 %5444
        %5446 = vrot.lane.b32.xlu0 %v5355, 66
        %v5447 = vpop.permute.xlu0 %5446
        %5448 = vrot.lane.b32.xlu0 %v5356, 66
        %v5449 = vpop.permute.xlu0 %5448
        %5450 = vrot.lane.b32.xlu0 %v5357, 66
        %v5451 = vpop.permute.xlu0 %5450
        %5452 = vrot.lane.b32.xlu0 %v5358, 66
        %v5453 = vpop.permute.xlu0 %5452
        %5454 = vrot.lane.b32.xlu0 %v5359, 66
        %v5455 = vpop.permute.xlu0 %5454
        %vm5488 = vcmask 556560
        %5489 = vst.msk [vmem:[#allocation5] sm:$0xff] %vm5488, %v5393
        %5490 = vst.msk [vmem:[#allocation5 + $0x8] sm:$0xff] %vm5488, %v5395
        %5491 = vst.msk [vmem:[#allocation5 + $0x10] sm:$0xff] %vm5488, %v5397
        %5492 = vst.msk [vmem:[#allocation5 + $0x18] sm:$0xff] %vm5488, %v5399
        %5493 = vst.msk [vmem:[#allocation5 + $0x20] sm:$0xff] %vm5488, %v5401
        %5494 = vst.msk [vmem:[#allocation5 + $0x28] sm:$0xff] %vm5488, %v5403
        %5495 = vst.msk [vmem:[#allocation5 + $0x30] sm:$0xff] %vm5488, %v5405
        %5496 = vst.msk [vmem:[#allocation5 + $0x38] sm:$0xff] %vm5488, %v5407
        %5497 = vst.msk [vmem:[#allocation5 + $0x40] sm:$0xff] %vm5488, %v5409
        %5498 = vst.msk [vmem:[#allocation5 + $0x48] sm:$0xff] %vm5488, %v5411
        %5499 = vst.msk [vmem:[#allocation5 + $0x50] sm:$0xff] %vm5488, %v5413
        %5500 = vst.msk [vmem:[#allocation5 + $0x58] sm:$0xff] %vm5488, %v5415
        %5501 = vst.msk [vmem:[#allocation5 + $0x60] sm:$0xff] %vm5488, %v5417
        %5502 = vst.msk [vmem:[#allocation5 + $0x68] sm:$0xff] %vm5488, %v5419
        %5503 = vst.msk [vmem:[#allocation5 + $0x70] sm:$0xff] %vm5488, %v5421
        %5504 = vst.msk [vmem:[#allocation5 + $0x78] sm:$0xff] %vm5488, %v5423
        %5505 = vst.msk [vmem:[#allocation5 + $0x80] sm:$0xff] %vm5488, %v5425
        %5506 = vst.msk [vmem:[#allocation5 + $0x88] sm:$0xff] %vm5488, %v5427
        %5507 = vst.msk [vmem:[#allocation5 + $0x90] sm:$0xff] %vm5488, %v5429
        %5508 = vst.msk [vmem:[#allocation5 + $0x98] sm:$0xff] %vm5488, %v5431
        %5509 = vst.msk [vmem:[#allocation5 + $0xa0] sm:$0xff] %vm5488, %v5433
        %5510 = vst.msk [vmem:[#allocation5 + $0xa8] sm:$0xff] %vm5488, %v5435
        %5511 = vst.msk [vmem:[#allocation5 + $0xb0] sm:$0xff] %vm5488, %v5437
        %5512 = vst.msk [vmem:[#allocation5 + $0xb8] sm:$0xff] %vm5488, %v5439
        %5513 = vst.msk [vmem:[#allocation5 + $0xc0] sm:$0xff] %vm5488, %v5441
        %5514 = vst.msk [vmem:[#allocation5 + $0xc8] sm:$0xff] %vm5488, %v5443
        %5515 = vst.msk [vmem:[#allocation5 + $0xd0] sm:$0xff] %vm5488, %v5445
        %5516 = vst.msk [vmem:[#allocation5 + $0xd8] sm:$0xff] %vm5488, %v5447
        %5517 = vst.msk [vmem:[#allocation5 + $0xe0] sm:$0xff] %vm5488, %v5449
        %5518 = vst.msk [vmem:[#allocation5 + $0xe8] sm:$0xff] %vm5488, %v5451
        %5519 = vst.msk [vmem:[#allocation5 + $0xf0] sm:$0xff] %vm5488, %v5453
        %5520 = vst.msk [vmem:[#allocation5 + $0xf8] sm:$0xff] %vm5488, %v5455
        %v5521 = vld [vmem:[%s981 + $0x4] sm:$0xff]
        %v5522 = vld [vmem:[%s981 + $0xc] sm:$0xff]
        %v5523 = vld [vmem:[%s981 + $0x1c] sm:$0xff]
        %v5524 = vld [vmem:[%s981 + $0x24] sm:$0xff]
        %v5525 = vld [vmem:[%s981 + $0x34] sm:$0xff]
        %v5526 = vld [vmem:[%s981 + $0x3c] sm:$0xff]
        %v5527 = vld [vmem:[%s981 + $0x4c] sm:$0xff]
        %v5528 = vld [vmem:[%s981 + $0x54] sm:$0xff]
        %v5529 = vld [vmem:[%s981 + $0x64] sm:$0xff]
        %v5530 = vld [vmem:[%s981 + $0x6c] sm:$0xff]
        %v5531 = vld [vmem:[%s981 + $0x7c] sm:$0xff]
        %v5532 = vld [vmem:[%s981 + $0x84] sm:$0xff]
        %v5533 = vld [vmem:[%s981 + $0x94] sm:$0xff]
        %v5534 = vld [vmem:[%s981 + $0x9c] sm:$0xff]
        %v5535 = vld [vmem:[%s981 + $0xac] sm:$0xff]
        %v5536 = vld [vmem:[%s981 + $0xb4] sm:$0xff]
        %v5537 = vld [vmem:[%s981 + $0xc4] sm:$0xff]
        %v5538 = vld [vmem:[%s981 + $0xcc] sm:$0xff]
        %v5539 = vld [vmem:[%s981 + $0xdc] sm:$0xff]
        %v5540 = vld [vmem:[%s981 + $0xe4] sm:$0xff]
        %v5541 = vld [vmem:[%s981 + $0xf4] sm:$0xff]
        %v5542 = vld [vmem:[%s981 + $0xfc] sm:$0xff]
        %v5543 = vld [vmem:[%s981 + $0x10c] sm:$0xff]
        %v5544 = vld [vmem:[%s981 + $0x114] sm:$0xff]
        %v5545 = vld [vmem:[%s981 + $0x124] sm:$0xff]
        %v5546 = vld [vmem:[%s981 + $0x12c] sm:$0xff]
        %v5547 = vld [vmem:[%s981 + $0x13c] sm:$0xff]
        %v5548 = vld [vmem:[%s981 + $0x144] sm:$0xff]
        %v5549 = vld [vmem:[%s981 + $0x154] sm:$0xff]
        %v5550 = vld [vmem:[%s981 + $0x15c] sm:$0xff]
        %v5551 = vld [vmem:[%s981 + $0x16c] sm:$0xff]
        %v5552 = vld [vmem:[%s981 + $0x174] sm:$0xff]
        %5585 = vrot.lane.b32.xlu0 %v5521, 68
        %v5586 = vpop.permute.xlu0 %5585
        %5587 = vrot.lane.b32.xlu0 %v5522, 68
        %v5588 = vpop.permute.xlu0 %5587
        %5589 = vrot.lane.b32.xlu0 %v5523, 68
        %v5590 = vpop.permute.xlu0 %5589
        %5591 = vrot.lane.b32.xlu0 %v5524, 68
        %v5592 = vpop.permute.xlu0 %5591
        %5593 = vrot.lane.b32.xlu0 %v5525, 68
        %v5594 = vpop.permute.xlu0 %5593
        %5595 = vrot.lane.b32.xlu0 %v5526, 68
        %v5596 = vpop.permute.xlu0 %5595
        %5597 = vrot.lane.b32.xlu0 %v5527, 68
        %v5598 = vpop.permute.xlu0 %5597
        %5599 = vrot.lane.b32.xlu0 %v5528, 68
        %v5600 = vpop.permute.xlu0 %5599
        %5601 = vrot.lane.b32.xlu0 %v5529, 68
        %v5602 = vpop.permute.xlu0 %5601
        %5603 = vrot.lane.b32.xlu0 %v5530, 68
        %v5604 = vpop.permute.xlu0 %5603
        %5605 = vrot.lane.b32.xlu0 %v5531, 68
        %v5606 = vpop.permute.xlu0 %5605
        %5607 = vrot.lane.b32.xlu0 %v5532, 68
        %v5608 = vpop.permute.xlu0 %5607
        %5609 = vrot.lane.b32.xlu0 %v5533, 68
        %v5610 = vpop.permute.xlu0 %5609
        %5611 = vrot.lane.b32.xlu0 %v5534, 68
        %v5612 = vpop.permute.xlu0 %5611
        %5613 = vrot.lane.b32.xlu0 %v5535, 68
        %v5614 = vpop.permute.xlu0 %5613
        %5615 = vrot.lane.b32.xlu0 %v5536, 68
        %v5616 = vpop.permute.xlu0 %5615
        %5617 = vrot.lane.b32.xlu0 %v5537, 68
        %v5618 = vpop.permute.xlu0 %5617
        %5619 = vrot.lane.b32.xlu0 %v5538, 68
        %v5620 = vpop.permute.xlu0 %5619
        %5621 = vrot.lane.b32.xlu0 %v5539, 68
        %v5622 = vpop.permute.xlu0 %5621
        %5623 = vrot.lane.b32.xlu0 %v5540, 68
        %v5624 = vpop.permute.xlu0 %5623
        %5625 = vrot.lane.b32.xlu0 %v5541, 68
        %v5626 = vpop.permute.xlu0 %5625
        %5627 = vrot.lane.b32.xlu0 %v5542, 68
        %v5628 = vpop.permute.xlu0 %5627
        %5629 = vrot.lane.b32.xlu0 %v5543, 68
        %v5630 = vpop.permute.xlu0 %5629
        %5631 = vrot.lane.b32.xlu0 %v5544, 68
        %v5632 = vpop.permute.xlu0 %5631
        %5633 = vrot.lane.b32.xlu0 %v5545, 68
        %v5634 = vpop.permute.xlu0 %5633
        %5635 = vrot.lane.b32.xlu0 %v5546, 68
        %v5636 = vpop.permute.xlu0 %5635
        %5637 = vrot.lane.b32.xlu0 %v5547, 68
        %v5638 = vpop.permute.xlu0 %5637
        %5639 = vrot.lane.b32.xlu0 %v5548, 68
        %v5640 = vpop.permute.xlu0 %5639
        %5641 = vrot.lane.b32.xlu0 %v5549, 68
        %v5642 = vpop.permute.xlu0 %5641
        %5643 = vrot.lane.b32.xlu0 %v5550, 68
        %v5644 = vpop.permute.xlu0 %5643
        %5645 = vrot.lane.b32.xlu0 %v5551, 68
        %v5646 = vpop.permute.xlu0 %5645
        %5647 = vrot.lane.b32.xlu0 %v5552, 68
        %v5648 = vpop.permute.xlu0 %5647
        %vm5681 = vcmask 572960
        %5682 = vst.msk [vmem:[#allocation5] sm:$0xff] %vm5681, %v5586
        %5683 = vst.msk [vmem:[#allocation5 + $0x8] sm:$0xff] %vm5681, %v5588
        %5684 = vst.msk [vmem:[#allocation5 + $0x10] sm:$0xff] %vm5681, %v5590
        %5685 = vst.msk [vmem:[#allocation5 + $0x18] sm:$0xff] %vm5681, %v5592
        %5686 = vst.msk [vmem:[#allocation5 + $0x20] sm:$0xff] %vm5681, %v5594
        %5687 = vst.msk [vmem:[#allocation5 + $0x28] sm:$0xff] %vm5681, %v5596
        %5688 = vst.msk [vmem:[#allocation5 + $0x30] sm:$0xff] %vm5681, %v5598
        %5689 = vst.msk [vmem:[#allocation5 + $0x38] sm:$0xff] %vm5681, %v5600
        %5690 = vst.msk [vmem:[#allocation5 + $0x40] sm:$0xff] %vm5681, %v5602
        %5691 = vst.msk [vmem:[#allocation5 + $0x48] sm:$0xff] %vm5681, %v5604
        %5692 = vst.msk [vmem:[#allocation5 + $0x50] sm:$0xff] %vm5681, %v5606
        %5693 = vst.msk [vmem:[#allocation5 + $0x58] sm:$0xff] %vm5681, %v5608
        %5694 = vst.msk [vmem:[#allocation5 + $0x60] sm:$0xff] %vm5681, %v5610
        %5695 = vst.msk [vmem:[#allocation5 + $0x68] sm:$0xff] %vm5681, %v5612
        %5696 = vst.msk [vmem:[#allocation5 + $0x70] sm:$0xff] %vm5681, %v5614
        %5697 = vst.msk [vmem:[#allocation5 + $0x78] sm:$0xff] %vm5681, %v5616
        %5698 = vst.msk [vmem:[#allocation5 + $0x80] sm:$0xff] %vm5681, %v5618
        %5699 = vst.msk [vmem:[#allocation5 + $0x88] sm:$0xff] %vm5681, %v5620
        %5700 = vst.msk [vmem:[#allocation5 + $0x90] sm:$0xff] %vm5681, %v5622
        %5701 = vst.msk [vmem:[#allocation5 + $0x98] sm:$0xff] %vm5681, %v5624
        %5702 = vst.msk [vmem:[#allocation5 + $0xa0] sm:$0xff] %vm5681, %v5626
        %5703 = vst.msk [vmem:[#allocation5 + $0xa8] sm:$0xff] %vm5681, %v5628
        %5704 = vst.msk [vmem:[#allocation5 + $0xb0] sm:$0xff] %vm5681, %v5630
        %5705 = vst.msk [vmem:[#allocation5 + $0xb8] sm:$0xff] %vm5681, %v5632
        %5706 = vst.msk [vmem:[#allocation5 + $0xc0] sm:$0xff] %vm5681, %v5634
        %5707 = vst.msk [vmem:[#allocation5 + $0xc8] sm:$0xff] %vm5681, %v5636
        %5708 = vst.msk [vmem:[#allocation5 + $0xd0] sm:$0xff] %vm5681, %v5638
        %5709 = vst.msk [vmem:[#allocation5 + $0xd8] sm:$0xff] %vm5681, %v5640
        %5710 = vst.msk [vmem:[#allocation5 + $0xe0] sm:$0xff] %vm5681, %v5642
        %5711 = vst.msk [vmem:[#allocation5 + $0xe8] sm:$0xff] %vm5681, %v5644
        %5712 = vst.msk [vmem:[#allocation5 + $0xf0] sm:$0xff] %vm5681, %v5646
        %5713 = vst.msk [vmem:[#allocation5 + $0xf8] sm:$0xff] %vm5681, %v5648
        %s5714 = scalar_lea.vmem [#allocation3], 72
        %v5715 = vld [vmem:[%s5714] sm:$0xff]
        %v5716 = vld [vmem:[%s5714 + $0x8] sm:$0xff]
        %v5717 = vld [vmem:[%s5714 + $0x18] sm:$0xff]
        %v5718 = vld [vmem:[%s5714 + $0x20] sm:$0xff]
        %v5719 = vld [vmem:[%s5714 + $0x30] sm:$0xff]
        %v5720 = vld [vmem:[%s5714 + $0x38] sm:$0xff]
        %v5721 = vld [vmem:[%s5714 + $0x48] sm:$0xff]
        %v5722 = vld [vmem:[%s5714 + $0x50] sm:$0xff]
        %v5723 = vld [vmem:[%s5714 + $0x60] sm:$0xff]
        %v5724 = vld [vmem:[%s5714 + $0x68] sm:$0xff]
        %v5725 = vld [vmem:[%s5714 + $0x78] sm:$0xff]
        %v5726 = vld [vmem:[%s5714 + $0x80] sm:$0xff]
        %v5727 = vld [vmem:[%s5714 + $0x90] sm:$0xff]
        %v5728 = vld [vmem:[%s5714 + $0x98] sm:$0xff]
        %v5729 = vld [vmem:[%s5714 + $0xa8] sm:$0xff]
        %v5730 = vld [vmem:[%s5714 + $0xb0] sm:$0xff]
        %v5731 = vld [vmem:[%s5714 + $0xc0] sm:$0xff]
        %v5732 = vld [vmem:[%s5714 + $0xc8] sm:$0xff]
        %v5733 = vld [vmem:[%s5714 + $0xd8] sm:$0xff]
        %v5734 = vld [vmem:[%s5714 + $0xe0] sm:$0xff]
        %v5735 = vld [vmem:[%s5714 + $0xf0] sm:$0xff]
        %v5736 = vld [vmem:[%s5714 + $0xf8] sm:$0xff]
        %v5737 = vld [vmem:[%s5714 + $0x108] sm:$0xff]
        %v5738 = vld [vmem:[%s5714 + $0x110] sm:$0xff]
        %v5739 = vld [vmem:[%s5714 + $0x120] sm:$0xff]
        %v5740 = vld [vmem:[%s5714 + $0x128] sm:$0xff]
        %v5741 = vld [vmem:[%s5714 + $0x138] sm:$0xff]
        %v5742 = vld [vmem:[%s5714 + $0x140] sm:$0xff]
        %v5743 = vld [vmem:[%s5714 + $0x150] sm:$0xff]
        %v5744 = vld [vmem:[%s5714 + $0x158] sm:$0xff]
        %v5745 = vld [vmem:[%s5714 + $0x168] sm:$0xff]
        %v5746 = vld [vmem:[%s5714 + $0x170] sm:$0xff]
        %5779 = vrot.lane.b32.xlu0 %v5715, 70
        %v5780 = vpop.permute.xlu0 %5779
        %5781 = vrot.lane.b32.xlu0 %v5716, 70
        %v5782 = vpop.permute.xlu0 %5781
        %5783 = vrot.lane.b32.xlu0 %v5717, 70
        %v5784 = vpop.permute.xlu0 %5783
        %5785 = vrot.lane.b32.xlu0 %v5718, 70
        %v5786 = vpop.permute.xlu0 %5785
        %5787 = vrot.lane.b32.xlu0 %v5719, 70
        %v5788 = vpop.permute.xlu0 %5787
        %5789 = vrot.lane.b32.xlu0 %v5720, 70
        %v5790 = vpop.permute.xlu0 %5789
        %5791 = vrot.lane.b32.xlu0 %v5721, 70
        %v5792 = vpop.permute.xlu0 %5791
        %5793 = vrot.lane.b32.xlu0 %v5722, 70
        %v5794 = vpop.permute.xlu0 %5793
        %5795 = vrot.lane.b32.xlu0 %v5723, 70
        %v5796 = vpop.permute.xlu0 %5795
        %5797 = vrot.lane.b32.xlu0 %v5724, 70
        %v5798 = vpop.permute.xlu0 %5797
        %5799 = vrot.lane.b32.xlu0 %v5725, 70
        %v5800 = vpop.permute.xlu0 %5799
        %5801 = vrot.lane.b32.xlu0 %v5726, 70
        %v5802 = vpop.permute.xlu0 %5801
        %5803 = vrot.lane.b32.xlu0 %v5727, 70
        %v5804 = vpop.permute.xlu0 %5803
        %5805 = vrot.lane.b32.xlu0 %v5728, 70
        %v5806 = vpop.permute.xlu0 %5805
        %5807 = vrot.lane.b32.xlu0 %v5729, 70
        %v5808 = vpop.permute.xlu0 %5807
        %5809 = vrot.lane.b32.xlu0 %v5730, 70
        %v5810 = vpop.permute.xlu0 %5809
        %5811 = vrot.lane.b32.xlu0 %v5731, 70
        %v5812 = vpop.permute.xlu0 %5811
        %5813 = vrot.lane.b32.xlu0 %v5732, 70
        %v5814 = vpop.permute.xlu0 %5813
        %5815 = vrot.lane.b32.xlu0 %v5733, 70
        %v5816 = vpop.permute.xlu0 %5815
        %5817 = vrot.lane.b32.xlu0 %v5734, 70
        %v5818 = vpop.permute.xlu0 %5817
        %5819 = vrot.lane.b32.xlu0 %v5735, 70
        %v5820 = vpop.permute.xlu0 %5819
        %5821 = vrot.lane.b32.xlu0 %v5736, 70
        %v5822 = vpop.permute.xlu0 %5821
        %5823 = vrot.lane.b32.xlu0 %v5737, 70
        %v5824 = vpop.permute.xlu0 %5823
        %5825 = vrot.lane.b32.xlu0 %v5738, 70
        %v5826 = vpop.permute.xlu0 %5825
        %5827 = vrot.lane.b32.xlu0 %v5739, 70
        %v5828 = vpop.permute.xlu0 %5827
        %5829 = vrot.lane.b32.xlu0 %v5740, 70
        %v5830 = vpop.permute.xlu0 %5829
        %5831 = vrot.lane.b32.xlu0 %v5741, 70
        %v5832 = vpop.permute.xlu0 %5831
        %5833 = vrot.lane.b32.xlu0 %v5742, 70
        %v5834 = vpop.permute.xlu0 %5833
        %5835 = vrot.lane.b32.xlu0 %v5743, 70
        %v5836 = vpop.permute.xlu0 %5835
        %5837 = vrot.lane.b32.xlu0 %v5744, 70
        %v5838 = vpop.permute.xlu0 %5837
        %5839 = vrot.lane.b32.xlu0 %v5745, 70
        %v5840 = vpop.permute.xlu0 %5839
        %5841 = vrot.lane.b32.xlu0 %v5746, 70
        %v5842 = vpop.permute.xlu0 %5841
        %vm5875 = vcmask 589360
        %5876 = vst.msk [vmem:[#allocation5] sm:$0xff] %vm5875, %v5780
        %5877 = vst.msk [vmem:[#allocation5 + $0x8] sm:$0xff] %vm5875, %v5782
        %5878 = vst.msk [vmem:[#allocation5 + $0x10] sm:$0xff] %vm5875, %v5784
        %5879 = vst.msk [vmem:[#allocation5 + $0x18] sm:$0xff] %vm5875, %v5786
        %5880 = vst.msk [vmem:[#allocation5 + $0x20] sm:$0xff] %vm5875, %v5788
        %5881 = vst.msk [vmem:[#allocation5 + $0x28] sm:$0xff] %vm5875, %v5790
        %5882 = vst.msk [vmem:[#allocation5 + $0x30] sm:$0xff] %vm5875, %v5792
        %5883 = vst.msk [vmem:[#allocation5 + $0x38] sm:$0xff] %vm5875, %v5794
        %5884 = vst.msk [vmem:[#allocation5 + $0x40] sm:$0xff] %vm5875, %v5796
        %5885 = vst.msk [vmem:[#allocation5 + $0x48] sm:$0xff] %vm5875, %v5798
        %5886 = vst.msk [vmem:[#allocation5 + $0x50] sm:$0xff] %vm5875, %v5800
        %5887 = vst.msk [vmem:[#allocation5 + $0x58] sm:$0xff] %vm5875, %v5802
        %5888 = vst.msk [vmem:[#allocation5 + $0x60] sm:$0xff] %vm5875, %v5804
        %5889 = vst.msk [vmem:[#allocation5 + $0x68] sm:$0xff] %vm5875, %v5806
        %5890 = vst.msk [vmem:[#allocation5 + $0x70] sm:$0xff] %vm5875, %v5808
        %5891 = vst.msk [vmem:[#allocation5 + $0x78] sm:$0xff] %vm5875, %v5810
        %5892 = vst.msk [vmem:[#allocation5 + $0x80] sm:$0xff] %vm5875, %v5812
        %5893 = vst.msk [vmem:[#allocation5 + $0x88] sm:$0xff] %vm5875, %v5814
        %5894 = vst.msk [vmem:[#allocation5 + $0x90] sm:$0xff] %vm5875, %v5816
        %5895 = vst.msk [vmem:[#allocation5 + $0x98] sm:$0xff] %vm5875, %v5818
        %5896 = vst.msk [vmem:[#allocation5 + $0xa0] sm:$0xff] %vm5875, %v5820
        %5897 = vst.msk [vmem:[#allocation5 + $0xa8] sm:$0xff] %vm5875, %v5822
        %5898 = vst.msk [vmem:[#allocation5 + $0xb0] sm:$0xff] %vm5875, %v5824
        %5899 = vst.msk [vmem:[#allocation5 + $0xb8] sm:$0xff] %vm5875, %v5826
        %5900 = vst.msk [vmem:[#allocation5 + $0xc0] sm:$0xff] %vm5875, %v5828
        %5901 = vst.msk [vmem:[#allocation5 + $0xc8] sm:$0xff] %vm5875, %v5830
        %5902 = vst.msk [vmem:[#allocation5 + $0xd0] sm:$0xff] %vm5875, %v5832
        %5903 = vst.msk [vmem:[#allocation5 + $0xd8] sm:$0xff] %vm5875, %v5834
        %5904 = vst.msk [vmem:[#allocation5 + $0xe0] sm:$0xff] %vm5875, %v5836
        %5905 = vst.msk [vmem:[#allocation5 + $0xe8] sm:$0xff] %vm5875, %v5838
        %5906 = vst.msk [vmem:[#allocation5 + $0xf0] sm:$0xff] %vm5875, %v5840
        %5907 = vst.msk [vmem:[#allocation5 + $0xf8] sm:$0xff] %vm5875, %v5842
        %v5908 = vld [vmem:[%s5714 + $0x1] sm:$0xff]
        %v5909 = vld [vmem:[%s5714 + $0x9] sm:$0xff]
        %v5910 = vld [vmem:[%s5714 + $0x19] sm:$0xff]
        %v5911 = vld [vmem:[%s5714 + $0x21] sm:$0xff]
        %v5912 = vld [vmem:[%s5714 + $0x31] sm:$0xff]
        %v5913 = vld [vmem:[%s5714 + $0x39] sm:$0xff]
        %v5914 = vld [vmem:[%s5714 + $0x49] sm:$0xff]
        %v5915 = vld [vmem:[%s5714 + $0x51] sm:$0xff]
        %v5916 = vld [vmem:[%s5714 + $0x61] sm:$0xff]
        %v5917 = vld [vmem:[%s5714 + $0x69] sm:$0xff]
        %v5918 = vld [vmem:[%s5714 + $0x79] sm:$0xff]
        %v5919 = vld [vmem:[%s5714 + $0x81] sm:$0xff]
        %v5920 = vld [vmem:[%s5714 + $0x91] sm:$0xff]
        %v5921 = vld [vmem:[%s5714 + $0x99] sm:$0xff]
        %v5922 = vld [vmem:[%s5714 + $0xa9] sm:$0xff]
        %v5923 = vld [vmem:[%s5714 + $0xb1] sm:$0xff]
        %v5924 = vld [vmem:[%s5714 + $0xc1] sm:$0xff]
        %v5925 = vld [vmem:[%s5714 + $0xc9] sm:$0xff]
        %v5926 = vld [vmem:[%s5714 + $0xd9] sm:$0xff]
        %v5927 = vld [vmem:[%s5714 + $0xe1] sm:$0xff]
        %v5928 = vld [vmem:[%s5714 + $0xf1] sm:$0xff]
        %v5929 = vld [vmem:[%s5714 + $0xf9] sm:$0xff]
        %v5930 = vld [vmem:[%s5714 + $0x109] sm:$0xff]
        %v5931 = vld [vmem:[%s5714 + $0x111] sm:$0xff]
        %v5932 = vld [vmem:[%s5714 + $0x121] sm:$0xff]
        %v5933 = vld [vmem:[%s5714 + $0x129] sm:$0xff]
        %v5934 = vld [vmem:[%s5714 + $0x139] sm:$0xff]
        %v5935 = vld [vmem:[%s5714 + $0x141] sm:$0xff]
        %v5936 = vld [vmem:[%s5714 + $0x151] sm:$0xff]
        %v5937 = vld [vmem:[%s5714 + $0x159] sm:$0xff]
        %v5938 = vld [vmem:[%s5714 + $0x169] sm:$0xff]
        %v5939 = vld [vmem:[%s5714 + $0x171] sm:$0xff]
        %5972 = vrot.lane.b32.xlu0 %v5908, 72
        %v5973 = vpop.permute.xlu0 %5972
        %5974 = vrot.lane.b32.xlu0 %v5909, 72
        %v5975 = vpop.permute.xlu0 %5974
        %5976 = vrot.lane.b32.xlu0 %v5910, 72
        %v5977 = vpop.permute.xlu0 %5976
        %5978 = vrot.lane.b32.xlu0 %v5911, 72
        %v5979 = vpop.permute.xlu0 %5978
        %5980 = vrot.lane.b32.xlu0 %v5912, 72
        %v5981 = vpop.permute.xlu0 %5980
        %5982 = vrot.lane.b32.xlu0 %v5913, 72
        %v5983 = vpop.permute.xlu0 %5982
        %5984 = vrot.lane.b32.xlu0 %v5914, 72
        %v5985 = vpop.permute.xlu0 %5984
        %5986 = vrot.lane.b32.xlu0 %v5915, 72
        %v5987 = vpop.permute.xlu0 %5986
        %5988 = vrot.lane.b32.xlu0 %v5916, 72
        %v5989 = vpop.permute.xlu0 %5988
        %5990 = vrot.lane.b32.xlu0 %v5917, 72
        %v5991 = vpop.permute.xlu0 %5990
        %5992 = vrot.lane.b32.xlu0 %v5918, 72
        %v5993 = vpop.permute.xlu0 %5992
        %5994 = vrot.lane.b32.xlu0 %v5919, 72
        %v5995 = vpop.permute.xlu0 %5994
        %5996 = vrot.lane.b32.xlu0 %v5920, 72
        %v5997 = vpop.permute.xlu0 %5996
        %5998 = vrot.lane.b32.xlu0 %v5921, 72
        %v5999 = vpop.permute.xlu0 %5998
        %6000 = vrot.lane.b32.xlu0 %v5922, 72
        %v6001 = vpop.permute.xlu0 %6000
        %6002 = vrot.lane.b32.xlu0 %v5923, 72
        %v6003 = vpop.permute.xlu0 %6002
        %6004 = vrot.lane.b32.xlu0 %v5924, 72
        %v6005 = vpop.permute.xlu0 %6004
        %6006 = vrot.lane.b32.xlu0 %v5925, 72
        %v6007 = vpop.permute.xlu0 %6006
        %6008 = vrot.lane.b32.xlu0 %v5926, 72
        %v6009 = vpop.permute.xlu0 %6008
        %6010 = vrot.lane.b32.xlu0 %v5927, 72
        %v6011 = vpop.permute.xlu0 %6010
        %6012 = vrot.lane.b32.xlu0 %v5928, 72
        %v6013 = vpop.permute.xlu0 %6012
        %6014 = vrot.lane.b32.xlu0 %v5929, 72
        %v6015 = vpop.permute.xlu0 %6014
        %6016 = vrot.lane.b32.xlu0 %v5930, 72
        %v6017 = vpop.permute.xlu0 %6016
        %6018 = vrot.lane.b32.xlu0 %v5931, 72
        %v6019 = vpop.permute.xlu0 %6018
        %6020 = vrot.lane.b32.xlu0 %v5932, 72
        %v6021 = vpop.permute.xlu0 %6020
        %6022 = vrot.lane.b32.xlu0 %v5933, 72
        %v6023 = vpop.permute.xlu0 %6022
        %6024 = vrot.lane.b32.xlu0 %v5934, 72
        %v6025 = vpop.permute.xlu0 %6024
        %6026 = vrot.lane.b32.xlu0 %v5935, 72
        %v6027 = vpop.permute.xlu0 %6026
        %6028 = vrot.lane.b32.xlu0 %v5936, 72
        %v6029 = vpop.permute.xlu0 %6028
        %6030 = vrot.lane.b32.xlu0 %v5937, 72
        %v6031 = vpop.permute.xlu0 %6030
        %6032 = vrot.lane.b32.xlu0 %v5938, 72
        %v6033 = vpop.permute.xlu0 %6032
        %6034 = vrot.lane.b32.xlu0 %v5939, 72
        %v6035 = vpop.permute.xlu0 %6034
        %vm6068 = vcmask 605760
        %6069 = vst.msk [vmem:[#allocation5] sm:$0xff] %vm6068, %v5973
        %6070 = vst.msk [vmem:[#allocation5 + $0x8] sm:$0xff] %vm6068, %v5975
        %6071 = vst.msk [vmem:[#allocation5 + $0x10] sm:$0xff] %vm6068, %v5977
        %6072 = vst.msk [vmem:[#allocation5 + $0x18] sm:$0xff] %vm6068, %v5979
        %6073 = vst.msk [vmem:[#allocation5 + $0x20] sm:$0xff] %vm6068, %v5981
        %6074 = vst.msk [vmem:[#allocation5 + $0x28] sm:$0xff] %vm6068, %v5983
        %6075 = vst.msk [vmem:[#allocation5 + $0x30] sm:$0xff] %vm6068, %v5985
        %6076 = vst.msk [vmem:[#allocation5 + $0x38] sm:$0xff] %vm6068, %v5987
        %6077 = vst.msk [vmem:[#allocation5 + $0x40] sm:$0xff] %vm6068, %v5989
        %6078 = vst.msk [vmem:[#allocation5 + $0x48] sm:$0xff] %vm6068, %v5991
        %6079 = vst.msk [vmem:[#allocation5 + $0x50] sm:$0xff] %vm6068, %v5993
        %6080 = vst.msk [vmem:[#allocation5 + $0x58] sm:$0xff] %vm6068, %v5995
        %6081 = vst.msk [vmem:[#allocation5 + $0x60] sm:$0xff] %vm6068, %v5997
        %6082 = vst.msk [vmem:[#allocation5 + $0x68] sm:$0xff] %vm6068, %v5999
        %6083 = vst.msk [vmem:[#allocation5 + $0x70] sm:$0xff] %vm6068, %v6001
        %6084 = vst.msk [vmem:[#allocation5 + $0x78] sm:$0xff] %vm6068, %v6003
        %6085 = vst.msk [vmem:[#allocation5 + $0x80] sm:$0xff] %vm6068, %v6005
        %6086 = vst.msk [vmem:[#allocation5 + $0x88] sm:$0xff] %vm6068, %v6007
        %6087 = vst.msk [vmem:[#allocation5 + $0x90] sm:$0xff] %vm6068, %v6009
        %6088 = vst.msk [vmem:[#allocation5 + $0x98] sm:$0xff] %vm6068, %v6011
        %6089 = vst.msk [vmem:[#allocation5 + $0xa0] sm:$0xff] %vm6068, %v6013
        %6090 = vst.msk [vmem:[#allocation5 + $0xa8] sm:$0xff] %vm6068, %v6015
        %6091 = vst.msk [vmem:[#allocation5 + $0xb0] sm:$0xff] %vm6068, %v6017
        %6092 = vst.msk [vmem:[#allocation5 + $0xb8] sm:$0xff] %vm6068, %v6019
        %6093 = vst.msk [vmem:[#allocation5 + $0xc0] sm:$0xff] %vm6068, %v6021
        %6094 = vst.msk [vmem:[#allocation5 + $0xc8] sm:$0xff] %vm6068, %v6023
        %6095 = vst.msk [vmem:[#allocation5 + $0xd0] sm:$0xff] %vm6068, %v6025
        %6096 = vst.msk [vmem:[#allocation5 + $0xd8] sm:$0xff] %vm6068, %v6027
        %6097 = vst.msk [vmem:[#allocation5 + $0xe0] sm:$0xff] %vm6068, %v6029
        %6098 = vst.msk [vmem:[#allocation5 + $0xe8] sm:$0xff] %vm6068, %v6031
        %6099 = vst.msk [vmem:[#allocation5 + $0xf0] sm:$0xff] %vm6068, %v6033
        %6100 = vst.msk [vmem:[#allocation5 + $0xf8] sm:$0xff] %vm6068, %v6035
        %v6101 = vld [vmem:[%s5714 + $0x2] sm:$0xff]
        %v6102 = vld [vmem:[%s5714 + $0xa] sm:$0xff]
        %v6103 = vld [vmem:[%s5714 + $0x1a] sm:$0xff]
        %v6104 = vld [vmem:[%s5714 + $0x22] sm:$0xff]
        %v6105 = vld [vmem:[%s5714 + $0x32] sm:$0xff]
        %v6106 = vld [vmem:[%s5714 + $0x3a] sm:$0xff]
        %v6107 = vld [vmem:[%s5714 + $0x4a] sm:$0xff]
        %v6108 = vld [vmem:[%s5714 + $0x52] sm:$0xff]
        %v6109 = vld [vmem:[%s5714 + $0x62] sm:$0xff]
        %v6110 = vld [vmem:[%s5714 + $0x6a] sm:$0xff]
        %v6111 = vld [vmem:[%s5714 + $0x7a] sm:$0xff]
        %v6112 = vld [vmem:[%s5714 + $0x82] sm:$0xff]
        %v6113 = vld [vmem:[%s5714 + $0x92] sm:$0xff]
        %v6114 = vld [vmem:[%s5714 + $0x9a] sm:$0xff]
        %v6115 = vld [vmem:[%s5714 + $0xaa] sm:$0xff]
        %v6116 = vld [vmem:[%s5714 + $0xb2] sm:$0xff]
        %v6117 = vld [vmem:[%s5714 + $0xc2] sm:$0xff]
        %v6118 = vld [vmem:[%s5714 + $0xca] sm:$0xff]
        %v6119 = vld [vmem:[%s5714 + $0xda] sm:$0xff]
        %v6120 = vld [vmem:[%s5714 + $0xe2] sm:$0xff]
        %v6121 = vld [vmem:[%s5714 + $0xf2] sm:$0xff]
        %v6122 = vld [vmem:[%s5714 + $0xfa] sm:$0xff]
        %v6123 = vld [vmem:[%s5714 + $0x10a] sm:$0xff]
        %v6124 = vld [vmem:[%s5714 + $0x112] sm:$0xff]
        %v6125 = vld [vmem:[%s5714 + $0x122] sm:$0xff]
        %v6126 = vld [vmem:[%s5714 + $0x12a] sm:$0xff]
        %v6127 = vld [vmem:[%s5714 + $0x13a] sm:$0xff]
        %v6128 = vld [vmem:[%s5714 + $0x142] sm:$0xff]
        %v6129 = vld [vmem:[%s5714 + $0x152] sm:$0xff]
        %v6130 = vld [vmem:[%s5714 + $0x15a] sm:$0xff]
        %v6131 = vld [vmem:[%s5714 + $0x16a] sm:$0xff]
        %v6132 = vld [vmem:[%s5714 + $0x172] sm:$0xff]
        %6165 = vrot.lane.b32.xlu0 %v6101, 74
        %v6166 = vpop.permute.xlu0 %6165
        %6167 = vrot.lane.b32.xlu0 %v6102, 74
        %v6168 = vpop.permute.xlu0 %6167
        %6169 = vrot.lane.b32.xlu0 %v6103, 74
        %v6170 = vpop.permute.xlu0 %6169
        %6171 = vrot.lane.b32.xlu0 %v6104, 74
        %v6172 = vpop.permute.xlu0 %6171
        %6173 = vrot.lane.b32.xlu0 %v6105, 74
        %v6174 = vpop.permute.xlu0 %6173
        %6175 = vrot.lane.b32.xlu0 %v6106, 74
        %v6176 = vpop.permute.xlu0 %6175
        %6177 = vrot.lane.b32.xlu0 %v6107, 74
        %v6178 = vpop.permute.xlu0 %6177
        %6179 = vrot.lane.b32.xlu0 %v6108, 74
        %v6180 = vpop.permute.xlu0 %6179
        %6181 = vrot.lane.b32.xlu0 %v6109, 74
        %v6182 = vpop.permute.xlu0 %6181
        %6183 = vrot.lane.b32.xlu0 %v6110, 74
        %v6184 = vpop.permute.xlu0 %6183
        %6185 = vrot.lane.b32.xlu0 %v6111, 74
        %v6186 = vpop.permute.xlu0 %6185
        %6187 = vrot.lane.b32.xlu0 %v6112, 74
        %v6188 = vpop.permute.xlu0 %6187
        %6189 = vrot.lane.b32.xlu0 %v6113, 74
        %v6190 = vpop.permute.xlu0 %6189
        %6191 = vrot.lane.b32.xlu0 %v6114, 74
        %v6192 = vpop.permute.xlu0 %6191
        %6193 = vrot.lane.b32.xlu0 %v6115, 74
        %v6194 = vpop.permute.xlu0 %6193
        %6195 = vrot.lane.b32.xlu0 %v6116, 74
        %v6196 = vpop.permute.xlu0 %6195
        %6197 = vrot.lane.b32.xlu0 %v6117, 74
        %v6198 = vpop.permute.xlu0 %6197
        %6199 = vrot.lane.b32.xlu0 %v6118, 74
        %v6200 = vpop.permute.xlu0 %6199
        %6201 = vrot.lane.b32.xlu0 %v6119, 74
        %v6202 = vpop.permute.xlu0 %6201
        %6203 = vrot.lane.b32.xlu0 %v6120, 74
        %v6204 = vpop.permute.xlu0 %6203
        %6205 = vrot.lane.b32.xlu0 %v6121, 74
        %v6206 = vpop.permute.xlu0 %6205
        %6207 = vrot.lane.b32.xlu0 %v6122, 74
        %v6208 = vpop.permute.xlu0 %6207
        %6209 = vrot.lane.b32.xlu0 %v6123, 74
        %v6210 = vpop.permute.xlu0 %6209
        %6211 = vrot.lane.b32.xlu0 %v6124, 74
        %v6212 = vpop.permute.xlu0 %6211
        %6213 = vrot.lane.b32.xlu0 %v6125, 74
        %v6214 = vpop.permute.xlu0 %6213
        %6215 = vrot.lane.b32.xlu0 %v6126, 74
        %v6216 = vpop.permute.xlu0 %6215
        %6217 = vrot.lane.b32.xlu0 %v6127, 74
        %v6218 = vpop.permute.xlu0 %6217
        %6219 = vrot.lane.b32.xlu0 %v6128, 74
        %v6220 = vpop.permute.xlu0 %6219
        %6221 = vrot.lane.b32.xlu0 %v6129, 74
        %v6222 = vpop.permute.xlu0 %6221
        %6223 = vrot.lane.b32.xlu0 %v6130, 74
        %v6224 = vpop.permute.xlu0 %6223
        %6225 = vrot.lane.b32.xlu0 %v6131, 74
        %v6226 = vpop.permute.xlu0 %6225
        %6227 = vrot.lane.b32.xlu0 %v6132, 74
        %v6228 = vpop.permute.xlu0 %6227
        %vm6261 = vcmask 622160
        %6262 = vst.msk [vmem:[#allocation5] sm:$0xff] %vm6261, %v6166
        %6263 = vst.msk [vmem:[#allocation5 + $0x8] sm:$0xff] %vm6261, %v6168
        %6264 = vst.msk [vmem:[#allocation5 + $0x10] sm:$0xff] %vm6261, %v6170
        %6265 = vst.msk [vmem:[#allocation5 + $0x18] sm:$0xff] %vm6261, %v6172
        %6266 = vst.msk [vmem:[#allocation5 + $0x20] sm:$0xff] %vm6261, %v6174
        %6267 = vst.msk [vmem:[#allocation5 + $0x28] sm:$0xff] %vm6261, %v6176
        %6268 = vst.msk [vmem:[#allocation5 + $0x30] sm:$0xff] %vm6261, %v6178
        %6269 = vst.msk [vmem:[#allocation5 + $0x38] sm:$0xff] %vm6261, %v6180
        %6270 = vst.msk [vmem:[#allocation5 + $0x40] sm:$0xff] %vm6261, %v6182
        %6271 = vst.msk [vmem:[#allocation5 + $0x48] sm:$0xff] %vm6261, %v6184
        %6272 = vst.msk [vmem:[#allocation5 + $0x50] sm:$0xff] %vm6261, %v6186
        %6273 = vst.msk [vmem:[#allocation5 + $0x58] sm:$0xff] %vm6261, %v6188
        %6274 = vst.msk [vmem:[#allocation5 + $0x60] sm:$0xff] %vm6261, %v6190
        %6275 = vst.msk [vmem:[#allocation5 + $0x68] sm:$0xff] %vm6261, %v6192
        %6276 = vst.msk [vmem:[#allocation5 + $0x70] sm:$0xff] %vm6261, %v6194
        %6277 = vst.msk [vmem:[#allocation5 + $0x78] sm:$0xff] %vm6261, %v6196
        %6278 = vst.msk [vmem:[#allocation5 + $0x80] sm:$0xff] %vm6261, %v6198
        %6279 = vst.msk [vmem:[#allocation5 + $0x88] sm:$0xff] %vm6261, %v6200
        %6280 = vst.msk [vmem:[#allocation5 + $0x90] sm:$0xff] %vm6261, %v6202
        %6281 = vst.msk [vmem:[#allocation5 + $0x98] sm:$0xff] %vm6261, %v6204
        %6282 = vst.msk [vmem:[#allocation5 + $0xa0] sm:$0xff] %vm6261, %v6206
        %6283 = vst.msk [vmem:[#allocation5 + $0xa8] sm:$0xff] %vm6261, %v6208
        %6284 = vst.msk [vmem:[#allocation5 + $0xb0] sm:$0xff] %vm6261, %v6210
        %6285 = vst.msk [vmem:[#allocation5 + $0xb8] sm:$0xff] %vm6261, %v6212
        %6286 = vst.msk [vmem:[#allocation5 + $0xc0] sm:$0xff] %vm6261, %v6214
        %6287 = vst.msk [vmem:[#allocation5 + $0xc8] sm:$0xff] %vm6261, %v6216
        %6288 = vst.msk [vmem:[#allocation5 + $0xd0] sm:$0xff] %vm6261, %v6218
        %6289 = vst.msk [vmem:[#allocation5 + $0xd8] sm:$0xff] %vm6261, %v6220
        %6290 = vst.msk [vmem:[#allocation5 + $0xe0] sm:$0xff] %vm6261, %v6222
        %6291 = vst.msk [vmem:[#allocation5 + $0xe8] sm:$0xff] %vm6261, %v6224
        %6292 = vst.msk [vmem:[#allocation5 + $0xf0] sm:$0xff] %vm6261, %v6226
        %6293 = vst.msk [vmem:[#allocation5 + $0xf8] sm:$0xff] %vm6261, %v6228
        %v6294 = vld [vmem:[%s5714 + $0x3] sm:$0xff]
        %v6295 = vld [vmem:[%s5714 + $0xb] sm:$0xff]
        %v6296 = vld [vmem:[%s5714 + $0x1b] sm:$0xff]
        %v6297 = vld [vmem:[%s5714 + $0x23] sm:$0xff]
        %v6298 = vld [vmem:[%s5714 + $0x33] sm:$0xff]
        %v6299 = vld [vmem:[%s5714 + $0x3b] sm:$0xff]
        %v6300 = vld [vmem:[%s5714 + $0x4b] sm:$0xff]
        %v6301 = vld [vmem:[%s5714 + $0x53] sm:$0xff]
        %v6302 = vld [vmem:[%s5714 + $0x63] sm:$0xff]
        %v6303 = vld [vmem:[%s5714 + $0x6b] sm:$0xff]
        %v6304 = vld [vmem:[%s5714 + $0x7b] sm:$0xff]
        %v6305 = vld [vmem:[%s5714 + $0x83] sm:$0xff]
        %v6306 = vld [vmem:[%s5714 + $0x93] sm:$0xff]
        %v6307 = vld [vmem:[%s5714 + $0x9b] sm:$0xff]
        %v6308 = vld [vmem:[%s5714 + $0xab] sm:$0xff]
        %v6309 = vld [vmem:[%s5714 + $0xb3] sm:$0xff]
        %v6310 = vld [vmem:[%s5714 + $0xc3] sm:$0xff]
        %v6311 = vld [vmem:[%s5714 + $0xcb] sm:$0xff]
        %v6312 = vld [vmem:[%s5714 + $0xdb] sm:$0xff]
        %v6313 = vld [vmem:[%s5714 + $0xe3] sm:$0xff]
        %v6314 = vld [vmem:[%s5714 + $0xf3] sm:$0xff]
        %v6315 = vld [vmem:[%s5714 + $0xfb] sm:$0xff]
        %v6316 = vld [vmem:[%s5714 + $0x10b] sm:$0xff]
        %v6317 = vld [vmem:[%s5714 + $0x113] sm:$0xff]
        %v6318 = vld [vmem:[%s5714 + $0x123] sm:$0xff]
        %v6319 = vld [vmem:[%s5714 + $0x12b] sm:$0xff]
        %v6320 = vld [vmem:[%s5714 + $0x13b] sm:$0xff]
        %v6321 = vld [vmem:[%s5714 + $0x143] sm:$0xff]
        %v6322 = vld [vmem:[%s5714 + $0x153] sm:$0xff]
        %v6323 = vld [vmem:[%s5714 + $0x15b] sm:$0xff]
        %v6324 = vld [vmem:[%s5714 + $0x16b] sm:$0xff]
        %v6325 = vld [vmem:[%s5714 + $0x173] sm:$0xff]
        %6358 = vrot.lane.b32.xlu0 %v6294, 76
        %v6359 = vpop.permute.xlu0 %6358
        %6360 = vrot.lane.b32.xlu0 %v6295, 76
        %v6361 = vpop.permute.xlu0 %6360
        %6362 = vrot.lane.b32.xlu0 %v6296, 76
        %v6363 = vpop.permute.xlu0 %6362
        %6364 = vrot.lane.b32.xlu0 %v6297, 76
        %v6365 = vpop.permute.xlu0 %6364
        %6366 = vrot.lane.b32.xlu0 %v6298, 76
        %v6367 = vpop.permute.xlu0 %6366
        %6368 = vrot.lane.b32.xlu0 %v6299, 76
        %v6369 = vpop.permute.xlu0 %6368
        %6370 = vrot.lane.b32.xlu0 %v6300, 76
        %v6371 = vpop.permute.xlu0 %6370
        %6372 = vrot.lane.b32.xlu0 %v6301, 76
        %v6373 = vpop.permute.xlu0 %6372
        %6374 = vrot.lane.b32.xlu0 %v6302, 76
        %v6375 = vpop.permute.xlu0 %6374
        %6376 = vrot.lane.b32.xlu0 %v6303, 76
        %v6377 = vpop.permute.xlu0 %6376
        %6378 = vrot.lane.b32.xlu0 %v6304, 76
        %v6379 = vpop.permute.xlu0 %6378
        %6380 = vrot.lane.b32.xlu0 %v6305, 76
        %v6381 = vpop.permute.xlu0 %6380
        %6382 = vrot.lane.b32.xlu0 %v6306, 76
        %v6383 = vpop.permute.xlu0 %6382
        %6384 = vrot.lane.b32.xlu0 %v6307, 76
        %v6385 = vpop.permute.xlu0 %6384
        %6386 = vrot.lane.b32.xlu0 %v6308, 76
        %v6387 = vpop.permute.xlu0 %6386
        %6388 = vrot.lane.b32.xlu0 %v6309, 76
        %v6389 = vpop.permute.xlu0 %6388
        %6390 = vrot.lane.b32.xlu0 %v6310, 76
        %v6391 = vpop.permute.xlu0 %6390
        %6392 = vrot.lane.b32.xlu0 %v6311, 76
        %v6393 = vpop.permute.xlu0 %6392
        %6394 = vrot.lane.b32.xlu0 %v6312, 76
        %v6395 = vpop.permute.xlu0 %6394
        %6396 = vrot.lane.b32.xlu0 %v6313, 76
        %v6397 = vpop.permute.xlu0 %6396
        %6398 = vrot.lane.b32.xlu0 %v6314, 76
        %v6399 = vpop.permute.xlu0 %6398
        %6400 = vrot.lane.b32.xlu0 %v6315, 76
        %v6401 = vpop.permute.xlu0 %6400
        %6402 = vrot.lane.b32.xlu0 %v6316, 76
        %v6403 = vpop.permute.xlu0 %6402
        %6404 = vrot.lane.b32.xlu0 %v6317, 76
        %v6405 = vpop.permute.xlu0 %6404
        %6406 = vrot.lane.b32.xlu0 %v6318, 76
        %v6407 = vpop.permute.xlu0 %6406
        %6408 = vrot.lane.b32.xlu0 %v6319, 76
        %v6409 = vpop.permute.xlu0 %6408
        %6410 = vrot.lane.b32.xlu0 %v6320, 76
        %v6411 = vpop.permute.xlu0 %6410
        %6412 = vrot.lane.b32.xlu0 %v6321, 76
        %v6413 = vpop.permute.xlu0 %6412
        %6414 = vrot.lane.b32.xlu0 %v6322, 76
        %v6415 = vpop.permute.xlu0 %6414
        %6416 = vrot.lane.b32.xlu0 %v6323, 76
        %v6417 = vpop.permute.xlu0 %6416
        %6418 = vrot.lane.b32.xlu0 %v6324, 76
        %v6419 = vpop.permute.xlu0 %6418
        %6420 = vrot.lane.b32.xlu0 %v6325, 76
        %v6421 = vpop.permute.xlu0 %6420
        %vm6454 = vcmask 638560
        %6455 = vst.msk [vmem:[#allocation5] sm:$0xff] %vm6454, %v6359
        %6456 = vst.msk [vmem:[#allocation5 + $0x8] sm:$0xff] %vm6454, %v6361
        %6457 = vst.msk [vmem:[#allocation5 + $0x10] sm:$0xff] %vm6454, %v6363
        %6458 = vst.msk [vmem:[#allocation5 + $0x18] sm:$0xff] %vm6454, %v6365
        %6459 = vst.msk [vmem:[#allocation5 + $0x20] sm:$0xff] %vm6454, %v6367
        %6460 = vst.msk [vmem:[#allocation5 + $0x28] sm:$0xff] %vm6454, %v6369
        %6461 = vst.msk [vmem:[#allocation5 + $0x30] sm:$0xff] %vm6454, %v6371
        %6462 = vst.msk [vmem:[#allocation5 + $0x38] sm:$0xff] %vm6454, %v6373
        %6463 = vst.msk [vmem:[#allocation5 + $0x40] sm:$0xff] %vm6454, %v6375
        %6464 = vst.msk [vmem:[#allocation5 + $0x48] sm:$0xff] %vm6454, %v6377
        %6465 = vst.msk [vmem:[#allocation5 + $0x50] sm:$0xff] %vm6454, %v6379
        %6466 = vst.msk [vmem:[#allocation5 + $0x58] sm:$0xff] %vm6454, %v6381
        %6467 = vst.msk [vmem:[#allocation5 + $0x60] sm:$0xff] %vm6454, %v6383
        %6468 = vst.msk [vmem:[#allocation5 + $0x68] sm:$0xff] %vm6454, %v6385
        %6469 = vst.msk [vmem:[#allocation5 + $0x70] sm:$0xff] %vm6454, %v6387
        %6470 = vst.msk [vmem:[#allocation5 + $0x78] sm:$0xff] %vm6454, %v6389
        %6471 = vst.msk [vmem:[#allocation5 + $0x80] sm:$0xff] %vm6454, %v6391
        %6472 = vst.msk [vmem:[#allocation5 + $0x88] sm:$0xff] %vm6454, %v6393
        %6473 = vst.msk [vmem:[#allocation5 + $0x90] sm:$0xff] %vm6454, %v6395
        %6474 = vst.msk [vmem:[#allocation5 + $0x98] sm:$0xff] %vm6454, %v6397
        %6475 = vst.msk [vmem:[#allocation5 + $0xa0] sm:$0xff] %vm6454, %v6399
        %6476 = vst.msk [vmem:[#allocation5 + $0xa8] sm:$0xff] %vm6454, %v6401
        %6477 = vst.msk [vmem:[#allocation5 + $0xb0] sm:$0xff] %vm6454, %v6403
        %6478 = vst.msk [vmem:[#allocation5 + $0xb8] sm:$0xff] %vm6454, %v6405
        %6479 = vst.msk [vmem:[#allocation5 + $0xc0] sm:$0xff] %vm6454, %v6407
        %6480 = vst.msk [vmem:[#allocation5 + $0xc8] sm:$0xff] %vm6454, %v6409
        %6481 = vst.msk [vmem:[#allocation5 + $0xd0] sm:$0xff] %vm6454, %v6411
        %6482 = vst.msk [vmem:[#allocation5 + $0xd8] sm:$0xff] %vm6454, %v6413
        %6483 = vst.msk [vmem:[#allocation5 + $0xe0] sm:$0xff] %vm6454, %v6415
        %6484 = vst.msk [vmem:[#allocation5 + $0xe8] sm:$0xff] %vm6454, %v6417
        %6485 = vst.msk [vmem:[#allocation5 + $0xf0] sm:$0xff] %vm6454, %v6419
        %6486 = vst.msk [vmem:[#allocation5 + $0xf8] sm:$0xff] %vm6454, %v6421
        %v6487 = vld [vmem:[%s5714 + $0x4] sm:$0xff]
        %v6488 = vld [vmem:[%s5714 + $0xc] sm:$0xff]
        %v6489 = vld [vmem:[%s5714 + $0x1c] sm:$0xff]
        %v6490 = vld [vmem:[%s5714 + $0x24] sm:$0xff]
        %v6491 = vld [vmem:[%s5714 + $0x34] sm:$0xff]
        %v6492 = vld [vmem:[%s5714 + $0x3c] sm:$0xff]
        %v6493 = vld [vmem:[%s5714 + $0x4c] sm:$0xff]
        %v6494 = vld [vmem:[%s5714 + $0x54] sm:$0xff]
        %v6495 = vld [vmem:[%s5714 + $0x64] sm:$0xff]
        %v6496 = vld [vmem:[%s5714 + $0x6c] sm:$0xff]
        %v6497 = vld [vmem:[%s5714 + $0x7c] sm:$0xff]
        %v6498 = vld [vmem:[%s5714 + $0x84] sm:$0xff]
        %v6499 = vld [vmem:[%s5714 + $0x94] sm:$0xff]
        %v6500 = vld [vmem:[%s5714 + $0x9c] sm:$0xff]
        %v6501 = vld [vmem:[%s5714 + $0xac] sm:$0xff]
        %v6502 = vld [vmem:[%s5714 + $0xb4] sm:$0xff]
        %v6503 = vld [vmem:[%s5714 + $0xc4] sm:$0xff]
        %v6504 = vld [vmem:[%s5714 + $0xcc] sm:$0xff]
        %v6505 = vld [vmem:[%s5714 + $0xdc] sm:$0xff]
        %v6506 = vld [vmem:[%s5714 + $0xe4] sm:$0xff]
        %v6507 = vld [vmem:[%s5714 + $0xf4] sm:$0xff]
        %v6508 = vld [vmem:[%s5714 + $0xfc] sm:$0xff]
        %v6509 = vld [vmem:[%s5714 + $0x10c] sm:$0xff]
        %v6510 = vld [vmem:[%s5714 + $0x114] sm:$0xff]
        %v6511 = vld [vmem:[%s5714 + $0x124] sm:$0xff]
        %v6512 = vld [vmem:[%s5714 + $0x12c] sm:$0xff]
        %v6513 = vld [vmem:[%s5714 + $0x13c] sm:$0xff]
        %v6514 = vld [vmem:[%s5714 + $0x144] sm:$0xff]
        %v6515 = vld [vmem:[%s5714 + $0x154] sm:$0xff]
        %v6516 = vld [vmem:[%s5714 + $0x15c] sm:$0xff]
        %v6517 = vld [vmem:[%s5714 + $0x16c] sm:$0xff]
        %v6518 = vld [vmem:[%s5714 + $0x174] sm:$0xff]
        %6551 = vrot.lane.b32.xlu0 %v6487, 78
        %v6552 = vpop.permute.xlu0 %6551
        %6553 = vrot.lane.b32.xlu0 %v6488, 78
        %v6554 = vpop.permute.xlu0 %6553
        %6555 = vrot.lane.b32.xlu0 %v6489, 78
        %v6556 = vpop.permute.xlu0 %6555
        %6557 = vrot.lane.b32.xlu0 %v6490, 78
        %v6558 = vpop.permute.xlu0 %6557
        %6559 = vrot.lane.b32.xlu0 %v6491, 78
        %v6560 = vpop.permute.xlu0 %6559
        %6561 = vrot.lane.b32.xlu0 %v6492, 78
        %v6562 = vpop.permute.xlu0 %6561
        %6563 = vrot.lane.b32.xlu0 %v6493, 78
        %v6564 = vpop.permute.xlu0 %6563
        %6565 = vrot.lane.b32.xlu0 %v6494, 78
        %v6566 = vpop.permute.xlu0 %6565
        %6567 = vrot.lane.b32.xlu0 %v6495, 78
        %v6568 = vpop.permute.xlu0 %6567
        %6569 = vrot.lane.b32.xlu0 %v6496, 78
        %v6570 = vpop.permute.xlu0 %6569
        %6571 = vrot.lane.b32.xlu0 %v6497, 78
        %v6572 = vpop.permute.xlu0 %6571
        %6573 = vrot.lane.b32.xlu0 %v6498, 78
        %v6574 = vpop.permute.xlu0 %6573
        %6575 = vrot.lane.b32.xlu0 %v6499, 78
        %v6576 = vpop.permute.xlu0 %6575
        %6577 = vrot.lane.b32.xlu0 %v6500, 78
        %v6578 = vpop.permute.xlu0 %6577
        %6579 = vrot.lane.b32.xlu0 %v6501, 78
        %v6580 = vpop.permute.xlu0 %6579
        %6581 = vrot.lane.b32.xlu0 %v6502, 78
        %v6582 = vpop.permute.xlu0 %6581
        %6583 = vrot.lane.b32.xlu0 %v6503, 78
        %v6584 = vpop.permute.xlu0 %6583
        %6585 = vrot.lane.b32.xlu0 %v6504, 78
        %v6586 = vpop.permute.xlu0 %6585
        %6587 = vrot.lane.b32.xlu0 %v6505, 78
        %v6588 = vpop.permute.xlu0 %6587
        %6589 = vrot.lane.b32.xlu0 %v6506, 78
        %v6590 = vpop.permute.xlu0 %6589
        %6591 = vrot.lane.b32.xlu0 %v6507, 78
        %v6592 = vpop.permute.xlu0 %6591
        %6593 = vrot.lane.b32.xlu0 %v6508, 78
        %v6594 = vpop.permute.xlu0 %6593
        %6595 = vrot.lane.b32.xlu0 %v6509, 78
        %v6596 = vpop.permute.xlu0 %6595
        %6597 = vrot.lane.b32.xlu0 %v6510, 78
        %v6598 = vpop.permute.xlu0 %6597
        %6599 = vrot.lane.b32.xlu0 %v6511, 78
        %v6600 = vpop.permute.xlu0 %6599
        %6601 = vrot.lane.b32.xlu0 %v6512, 78
        %v6602 = vpop.permute.xlu0 %6601
        %6603 = vrot.lane.b32.xlu0 %v6513, 78
        %v6604 = vpop.permute.xlu0 %6603
        %6605 = vrot.lane.b32.xlu0 %v6514, 78
        %v6606 = vpop.permute.xlu0 %6605
        %6607 = vrot.lane.b32.xlu0 %v6515, 78
        %v6608 = vpop.permute.xlu0 %6607
        %6609 = vrot.lane.b32.xlu0 %v6516, 78
        %v6610 = vpop.permute.xlu0 %6609
        %6611 = vrot.lane.b32.xlu0 %v6517, 78
        %v6612 = vpop.permute.xlu0 %6611
        %6613 = vrot.lane.b32.xlu0 %v6518, 78
        %v6614 = vpop.permute.xlu0 %6613
        %vm6647 = vcmask 654960
        %6648 = vst.msk [vmem:[#allocation5] sm:$0xff] %vm6647, %v6552
        %6649 = vst.msk [vmem:[#allocation5 + $0x8] sm:$0xff] %vm6647, %v6554
        %6650 = vst.msk [vmem:[#allocation5 + $0x10] sm:$0xff] %vm6647, %v6556
        %6651 = vst.msk [vmem:[#allocation5 + $0x18] sm:$0xff] %vm6647, %v6558
        %6652 = vst.msk [vmem:[#allocation5 + $0x20] sm:$0xff] %vm6647, %v6560
        %6653 = vst.msk [vmem:[#allocation5 + $0x28] sm:$0xff] %vm6647, %v6562
        %6654 = vst.msk [vmem:[#allocation5 + $0x30] sm:$0xff] %vm6647, %v6564
        %6655 = vst.msk [vmem:[#allocation5 + $0x38] sm:$0xff] %vm6647, %v6566
        %6656 = vst.msk [vmem:[#allocation5 + $0x40] sm:$0xff] %vm6647, %v6568
        %6657 = vst.msk [vmem:[#allocation5 + $0x48] sm:$0xff] %vm6647, %v6570
        %6658 = vst.msk [vmem:[#allocation5 + $0x50] sm:$0xff] %vm6647, %v6572
        %6659 = vst.msk [vmem:[#allocation5 + $0x58] sm:$0xff] %vm6647, %v6574
        %6660 = vst.msk [vmem:[#allocation5 + $0x60] sm:$0xff] %vm6647, %v6576
        %6661 = vst.msk [vmem:[#allocation5 + $0x68] sm:$0xff] %vm6647, %v6578
        %6662 = vst.msk [vmem:[#allocation5 + $0x70] sm:$0xff] %vm6647, %v6580
        %6663 = vst.msk [vmem:[#allocation5 + $0x78] sm:$0xff] %vm6647, %v6582
        %6664 = vst.msk [vmem:[#allocation5 + $0x80] sm:$0xff] %vm6647, %v6584
        %6665 = vst.msk [vmem:[#allocation5 + $0x88] sm:$0xff] %vm6647, %v6586
        %6666 = vst.msk [vmem:[#allocation5 + $0x90] sm:$0xff] %vm6647, %v6588
        %6667 = vst.msk [vmem:[#allocation5 + $0x98] sm:$0xff] %vm6647, %v6590
        %6668 = vst.msk [vmem:[#allocation5 + $0xa0] sm:$0xff] %vm6647, %v6592
        %6669 = vst.msk [vmem:[#allocation5 + $0xa8] sm:$0xff] %vm6647, %v6594
        %6670 = vst.msk [vmem:[#allocation5 + $0xb0] sm:$0xff] %vm6647, %v6596
        %6671 = vst.msk [vmem:[#allocation5 + $0xb8] sm:$0xff] %vm6647, %v6598
        %6672 = vst.msk [vmem:[#allocation5 + $0xc0] sm:$0xff] %vm6647, %v6600
        %6673 = vst.msk [vmem:[#allocation5 + $0xc8] sm:$0xff] %vm6647, %v6602
        %6674 = vst.msk [vmem:[#allocation5 + $0xd0] sm:$0xff] %vm6647, %v6604
        %6675 = vst.msk [vmem:[#allocation5 + $0xd8] sm:$0xff] %vm6647, %v6606
        %6676 = vst.msk [vmem:[#allocation5 + $0xe0] sm:$0xff] %vm6647, %v6608
        %6677 = vst.msk [vmem:[#allocation5 + $0xe8] sm:$0xff] %vm6647, %v6610
        %6678 = vst.msk [vmem:[#allocation5 + $0xf0] sm:$0xff] %vm6647, %v6612
        %6679 = vst.msk [vmem:[#allocation5 + $0xf8] sm:$0xff] %vm6647, %v6614
        %s6680 = scalar_lea.vmem [#allocation3], 96
        %v6681 = vld [vmem:[%s6680] sm:$0xff]
        %v6682 = vld [vmem:[%s6680 + $0x8] sm:$0xff]
        %v6683 = vld [vmem:[%s6680 + $0x18] sm:$0xff]
        %v6684 = vld [vmem:[%s6680 + $0x20] sm:$0xff]
        %v6685 = vld [vmem:[%s6680 + $0x30] sm:$0xff]
        %v6686 = vld [vmem:[%s6680 + $0x38] sm:$0xff]
        %v6687 = vld [vmem:[%s6680 + $0x48] sm:$0xff]
        %v6688 = vld [vmem:[%s6680 + $0x50] sm:$0xff]
        %v6689 = vld [vmem:[%s6680 + $0x60] sm:$0xff]
        %v6690 = vld [vmem:[%s6680 + $0x68] sm:$0xff]
        %v6691 = vld [vmem:[%s6680 + $0x78] sm:$0xff]
        %v6692 = vld [vmem:[%s6680 + $0x80] sm:$0xff]
        %v6693 = vld [vmem:[%s6680 + $0x90] sm:$0xff]
        %v6694 = vld [vmem:[%s6680 + $0x98] sm:$0xff]
        %v6695 = vld [vmem:[%s6680 + $0xa8] sm:$0xff]
        %v6696 = vld [vmem:[%s6680 + $0xb0] sm:$0xff]
        %v6697 = vld [vmem:[%s6680 + $0xc0] sm:$0xff]
        %v6698 = vld [vmem:[%s6680 + $0xc8] sm:$0xff]
        %v6699 = vld [vmem:[%s6680 + $0xd8] sm:$0xff]
        %v6700 = vld [vmem:[%s6680 + $0xe0] sm:$0xff]
        %v6701 = vld [vmem:[%s6680 + $0xf0] sm:$0xff]
        %v6702 = vld [vmem:[%s6680 + $0xf8] sm:$0xff]
        %v6703 = vld [vmem:[%s6680 + $0x108] sm:$0xff]
        %v6704 = vld [vmem:[%s6680 + $0x110] sm:$0xff]
        %v6705 = vld [vmem:[%s6680 + $0x120] sm:$0xff]
        %v6706 = vld [vmem:[%s6680 + $0x128] sm:$0xff]
        %v6707 = vld [vmem:[%s6680 + $0x138] sm:$0xff]
        %v6708 = vld [vmem:[%s6680 + $0x140] sm:$0xff]
        %v6709 = vld [vmem:[%s6680 + $0x150] sm:$0xff]
        %v6710 = vld [vmem:[%s6680 + $0x158] sm:$0xff]
        %v6711 = vld [vmem:[%s6680 + $0x168] sm:$0xff]
        %v6712 = vld [vmem:[%s6680 + $0x170] sm:$0xff]
        %6745 = vrot.lane.b32.xlu0 %v6681, 80
        %v6746 = vpop.permute.xlu0 %6745
        %6747 = vrot.lane.b32.xlu0 %v6682, 80
        %v6748 = vpop.permute.xlu0 %6747
        %6749 = vrot.lane.b32.xlu0 %v6683, 80
        %v6750 = vpop.permute.xlu0 %6749
        %6751 = vrot.lane.b32.xlu0 %v6684, 80
        %v6752 = vpop.permute.xlu0 %6751
        %6753 = vrot.lane.b32.xlu0 %v6685, 80
        %v6754 = vpop.permute.xlu0 %6753
        %6755 = vrot.lane.b32.xlu0 %v6686, 80
        %v6756 = vpop.permute.xlu0 %6755
        %6757 = vrot.lane.b32.xlu0 %v6687, 80
        %v6758 = vpop.permute.xlu0 %6757
        %6759 = vrot.lane.b32.xlu0 %v6688, 80
        %v6760 = vpop.permute.xlu0 %6759
        %6761 = vrot.lane.b32.xlu0 %v6689, 80
        %v6762 = vpop.permute.xlu0 %6761
        %6763 = vrot.lane.b32.xlu0 %v6690, 80
        %v6764 = vpop.permute.xlu0 %6763
        %6765 = vrot.lane.b32.xlu0 %v6691, 80
        %v6766 = vpop.permute.xlu0 %6765
        %6767 = vrot.lane.b32.xlu0 %v6692, 80
        %v6768 = vpop.permute.xlu0 %6767
        %6769 = vrot.lane.b32.xlu0 %v6693, 80
        %v6770 = vpop.permute.xlu0 %6769
        %6771 = vrot.lane.b32.xlu0 %v6694, 80
        %v6772 = vpop.permute.xlu0 %6771
        %6773 = vrot.lane.b32.xlu0 %v6695, 80
        %v6774 = vpop.permute.xlu0 %6773
        %6775 = vrot.lane.b32.xlu0 %v6696, 80
        %v6776 = vpop.permute.xlu0 %6775
        %6777 = vrot.lane.b32.xlu0 %v6697, 80
        %v6778 = vpop.permute.xlu0 %6777
        %6779 = vrot.lane.b32.xlu0 %v6698, 80
        %v6780 = vpop.permute.xlu0 %6779
        %6781 = vrot.lane.b32.xlu0 %v6699, 80
        %v6782 = vpop.permute.xlu0 %6781
        %6783 = vrot.lane.b32.xlu0 %v6700, 80
        %v6784 = vpop.permute.xlu0 %6783
        %6785 = vrot.lane.b32.xlu0 %v6701, 80
        %v6786 = vpop.permute.xlu0 %6785
        %6787 = vrot.lane.b32.xlu0 %v6702, 80
        %v6788 = vpop.permute.xlu0 %6787
        %6789 = vrot.lane.b32.xlu0 %v6703, 80
        %v6790 = vpop.permute.xlu0 %6789
        %6791 = vrot.lane.b32.xlu0 %v6704, 80
        %v6792 = vpop.permute.xlu0 %6791
        %6793 = vrot.lane.b32.xlu0 %v6705, 80
        %v6794 = vpop.permute.xlu0 %6793
        %6795 = vrot.lane.b32.xlu0 %v6706, 80
        %v6796 = vpop.permute.xlu0 %6795
        %6797 = vrot.lane.b32.xlu0 %v6707, 80
        %v6798 = vpop.permute.xlu0 %6797
        %6799 = vrot.lane.b32.xlu0 %v6708, 80
        %v6800 = vpop.permute.xlu0 %6799
        %6801 = vrot.lane.b32.xlu0 %v6709, 80
        %v6802 = vpop.permute.xlu0 %6801
        %6803 = vrot.lane.b32.xlu0 %v6710, 80
        %v6804 = vpop.permute.xlu0 %6803
        %6805 = vrot.lane.b32.xlu0 %v6711, 80
        %v6806 = vpop.permute.xlu0 %6805
        %6807 = vrot.lane.b32.xlu0 %v6712, 80
        %v6808 = vpop.permute.xlu0 %6807
        %vm6841 = vcmask 671360
        %6842 = vst.msk [vmem:[#allocation5] sm:$0xff] %vm6841, %v6746
        %6843 = vst.msk [vmem:[#allocation5 + $0x8] sm:$0xff] %vm6841, %v6748
        %6844 = vst.msk [vmem:[#allocation5 + $0x10] sm:$0xff] %vm6841, %v6750
        %6845 = vst.msk [vmem:[#allocation5 + $0x18] sm:$0xff] %vm6841, %v6752
        %6846 = vst.msk [vmem:[#allocation5 + $0x20] sm:$0xff] %vm6841, %v6754
        %6847 = vst.msk [vmem:[#allocation5 + $0x28] sm:$0xff] %vm6841, %v6756
        %6848 = vst.msk [vmem:[#allocation5 + $0x30] sm:$0xff] %vm6841, %v6758
        %6849 = vst.msk [vmem:[#allocation5 + $0x38] sm:$0xff] %vm6841, %v6760
        %6850 = vst.msk [vmem:[#allocation5 + $0x40] sm:$0xff] %vm6841, %v6762
        %6851 = vst.msk [vmem:[#allocation5 + $0x48] sm:$0xff] %vm6841, %v6764
        %6852 = vst.msk [vmem:[#allocation5 + $0x50] sm:$0xff] %vm6841, %v6766
        %6853 = vst.msk [vmem:[#allocation5 + $0x58] sm:$0xff] %vm6841, %v6768
        %6854 = vst.msk [vmem:[#allocation5 + $0x60] sm:$0xff] %vm6841, %v6770
        %6855 = vst.msk [vmem:[#allocation5 + $0x68] sm:$0xff] %vm6841, %v6772
        %6856 = vst.msk [vmem:[#allocation5 + $0x70] sm:$0xff] %vm6841, %v6774
        %6857 = vst.msk [vmem:[#allocation5 + $0x78] sm:$0xff] %vm6841, %v6776
        %6858 = vst.msk [vmem:[#allocation5 + $0x80] sm:$0xff] %vm6841, %v6778
        %6859 = vst.msk [vmem:[#allocation5 + $0x88] sm:$0xff] %vm6841, %v6780
        %6860 = vst.msk [vmem:[#allocation5 + $0x90] sm:$0xff] %vm6841, %v6782
        %6861 = vst.msk [vmem:[#allocation5 + $0x98] sm:$0xff] %vm6841, %v6784
        %6862 = vst.msk [vmem:[#allocation5 + $0xa0] sm:$0xff] %vm6841, %v6786
        %6863 = vst.msk [vmem:[#allocation5 + $0xa8] sm:$0xff] %vm6841, %v6788
        %6864 = vst.msk [vmem:[#allocation5 + $0xb0] sm:$0xff] %vm6841, %v6790
        %6865 = vst.msk [vmem:[#allocation5 + $0xb8] sm:$0xff] %vm6841, %v6792
        %6866 = vst.msk [vmem:[#allocation5 + $0xc0] sm:$0xff] %vm6841, %v6794
        %6867 = vst.msk [vmem:[#allocation5 + $0xc8] sm:$0xff] %vm6841, %v6796
        %6868 = vst.msk [vmem:[#allocation5 + $0xd0] sm:$0xff] %vm6841, %v6798
        %6869 = vst.msk [vmem:[#allocation5 + $0xd8] sm:$0xff] %vm6841, %v6800
        %6870 = vst.msk [vmem:[#allocation5 + $0xe0] sm:$0xff] %vm6841, %v6802
        %6871 = vst.msk [vmem:[#allocation5 + $0xe8] sm:$0xff] %vm6841, %v6804
        %6872 = vst.msk [vmem:[#allocation5 + $0xf0] sm:$0xff] %vm6841, %v6806
        %6873 = vst.msk [vmem:[#allocation5 + $0xf8] sm:$0xff] %vm6841, %v6808
        %v6874 = vld [vmem:[%s6680 + $0x1] sm:$0xff]
        %v6875 = vld [vmem:[%s6680 + $0x9] sm:$0xff]
        %v6876 = vld [vmem:[%s6680 + $0x19] sm:$0xff]
        %v6877 = vld [vmem:[%s6680 + $0x21] sm:$0xff]
        %v6878 = vld [vmem:[%s6680 + $0x31] sm:$0xff]
        %v6879 = vld [vmem:[%s6680 + $0x39] sm:$0xff]
        %v6880 = vld [vmem:[%s6680 + $0x49] sm:$0xff]
        %v6881 = vld [vmem:[%s6680 + $0x51] sm:$0xff]
        %v6882 = vld [vmem:[%s6680 + $0x61] sm:$0xff]
        %v6883 = vld [vmem:[%s6680 + $0x69] sm:$0xff]
        %v6884 = vld [vmem:[%s6680 + $0x79] sm:$0xff]
        %v6885 = vld [vmem:[%s6680 + $0x81] sm:$0xff]
        %v6886 = vld [vmem:[%s6680 + $0x91] sm:$0xff]
        %v6887 = vld [vmem:[%s6680 + $0x99] sm:$0xff]
        %v6888 = vld [vmem:[%s6680 + $0xa9] sm:$0xff]
        %v6889 = vld [vmem:[%s6680 + $0xb1] sm:$0xff]
        %v6890 = vld [vmem:[%s6680 + $0xc1] sm:$0xff]
        %v6891 = vld [vmem:[%s6680 + $0xc9] sm:$0xff]
        %v6892 = vld [vmem:[%s6680 + $0xd9] sm:$0xff]
        %v6893 = vld [vmem:[%s6680 + $0xe1] sm:$0xff]
        %v6894 = vld [vmem:[%s6680 + $0xf1] sm:$0xff]
        %v6895 = vld [vmem:[%s6680 + $0xf9] sm:$0xff]
        %v6896 = vld [vmem:[%s6680 + $0x109] sm:$0xff]
        %v6897 = vld [vmem:[%s6680 + $0x111] sm:$0xff]
        %v6898 = vld [vmem:[%s6680 + $0x121] sm:$0xff]
        %v6899 = vld [vmem:[%s6680 + $0x129] sm:$0xff]
        %v6900 = vld [vmem:[%s6680 + $0x139] sm:$0xff]
        %v6901 = vld [vmem:[%s6680 + $0x141] sm:$0xff]
        %v6902 = vld [vmem:[%s6680 + $0x151] sm:$0xff]
        %v6903 = vld [vmem:[%s6680 + $0x159] sm:$0xff]
        %v6904 = vld [vmem:[%s6680 + $0x169] sm:$0xff]
        %v6905 = vld [vmem:[%s6680 + $0x171] sm:$0xff]
        %6938 = vrot.lane.b32.xlu0 %v6874, 82
        %v6939 = vpop.permute.xlu0 %6938
        %6940 = vrot.lane.b32.xlu0 %v6875, 82
        %v6941 = vpop.permute.xlu0 %6940
        %6942 = vrot.lane.b32.xlu0 %v6876, 82
        %v6943 = vpop.permute.xlu0 %6942
        %6944 = vrot.lane.b32.xlu0 %v6877, 82
        %v6945 = vpop.permute.xlu0 %6944
        %6946 = vrot.lane.b32.xlu0 %v6878, 82
        %v6947 = vpop.permute.xlu0 %6946
        %6948 = vrot.lane.b32.xlu0 %v6879, 82
        %v6949 = vpop.permute.xlu0 %6948
        %6950 = vrot.lane.b32.xlu0 %v6880, 82
        %v6951 = vpop.permute.xlu0 %6950
        %6952 = vrot.lane.b32.xlu0 %v6881, 82
        %v6953 = vpop.permute.xlu0 %6952
        %6954 = vrot.lane.b32.xlu0 %v6882, 82
        %v6955 = vpop.permute.xlu0 %6954
        %6956 = vrot.lane.b32.xlu0 %v6883, 82
        %v6957 = vpop.permute.xlu0 %6956
        %6958 = vrot.lane.b32.xlu0 %v6884, 82
        %v6959 = vpop.permute.xlu0 %6958
        %6960 = vrot.lane.b32.xlu0 %v6885, 82
        %v6961 = vpop.permute.xlu0 %6960
        %6962 = vrot.lane.b32.xlu0 %v6886, 82
        %v6963 = vpop.permute.xlu0 %6962
        %6964 = vrot.lane.b32.xlu0 %v6887, 82
        %v6965 = vpop.permute.xlu0 %6964
        %6966 = vrot.lane.b32.xlu0 %v6888, 82
        %v6967 = vpop.permute.xlu0 %6966
        %6968 = vrot.lane.b32.xlu0 %v6889, 82
        %v6969 = vpop.permute.xlu0 %6968
        %6970 = vrot.lane.b32.xlu0 %v6890, 82
        %v6971 = vpop.permute.xlu0 %6970
        %6972 = vrot.lane.b32.xlu0 %v6891, 82
        %v6973 = vpop.permute.xlu0 %6972
        %6974 = vrot.lane.b32.xlu0 %v6892, 82
        %v6975 = vpop.permute.xlu0 %6974
        %6976 = vrot.lane.b32.xlu0 %v6893, 82
        %v6977 = vpop.permute.xlu0 %6976
        %6978 = vrot.lane.b32.xlu0 %v6894, 82
        %v6979 = vpop.permute.xlu0 %6978
        %6980 = vrot.lane.b32.xlu0 %v6895, 82
        %v6981 = vpop.permute.xlu0 %6980
        %6982 = vrot.lane.b32.xlu0 %v6896, 82
        %v6983 = vpop.permute.xlu0 %6982
        %6984 = vrot.lane.b32.xlu0 %v6897, 82
        %v6985 = vpop.permute.xlu0 %6984
        %6986 = vrot.lane.b32.xlu0 %v6898, 82
        %v6987 = vpop.permute.xlu0 %6986
        %6988 = vrot.lane.b32.xlu0 %v6899, 82
        %v6989 = vpop.permute.xlu0 %6988
        %6990 = vrot.lane.b32.xlu0 %v6900, 82
        %v6991 = vpop.permute.xlu0 %6990
        %6992 = vrot.lane.b32.xlu0 %v6901, 82
        %v6993 = vpop.permute.xlu0 %6992
        %6994 = vrot.lane.b32.xlu0 %v6902, 82
        %v6995 = vpop.permute.xlu0 %6994
        %6996 = vrot.lane.b32.xlu0 %v6903, 82
        %v6997 = vpop.permute.xlu0 %6996
        %6998 = vrot.lane.b32.xlu0 %v6904, 82
        %v6999 = vpop.permute.xlu0 %6998
        %7000 = vrot.lane.b32.xlu0 %v6905, 82
        %v7001 = vpop.permute.xlu0 %7000
        %vm7034 = vcmask 687760
        %7035 = vst.msk [vmem:[#allocation5] sm:$0xff] %vm7034, %v6939
        %7036 = vst.msk [vmem:[#allocation5 + $0x8] sm:$0xff] %vm7034, %v6941
        %7037 = vst.msk [vmem:[#allocation5 + $0x10] sm:$0xff] %vm7034, %v6943
        %7038 = vst.msk [vmem:[#allocation5 + $0x18] sm:$0xff] %vm7034, %v6945
        %7039 = vst.msk [vmem:[#allocation5 + $0x20] sm:$0xff] %vm7034, %v6947
        %7040 = vst.msk [vmem:[#allocation5 + $0x28] sm:$0xff] %vm7034, %v6949
        %7041 = vst.msk [vmem:[#allocation5 + $0x30] sm:$0xff] %vm7034, %v6951
        %7042 = vst.msk [vmem:[#allocation5 + $0x38] sm:$0xff] %vm7034, %v6953
        %7043 = vst.msk [vmem:[#allocation5 + $0x40] sm:$0xff] %vm7034, %v6955
        %7044 = vst.msk [vmem:[#allocation5 + $0x48] sm:$0xff] %vm7034, %v6957
        %7045 = vst.msk [vmem:[#allocation5 + $0x50] sm:$0xff] %vm7034, %v6959
        %7046 = vst.msk [vmem:[#allocation5 + $0x58] sm:$0xff] %vm7034, %v6961
        %7047 = vst.msk [vmem:[#allocation5 + $0x60] sm:$0xff] %vm7034, %v6963
        %7048 = vst.msk [vmem:[#allocation5 + $0x68] sm:$0xff] %vm7034, %v6965
        %7049 = vst.msk [vmem:[#allocation5 + $0x70] sm:$0xff] %vm7034, %v6967
        %7050 = vst.msk [vmem:[#allocation5 + $0x78] sm:$0xff] %vm7034, %v6969
        %7051 = vst.msk [vmem:[#allocation5 + $0x80] sm:$0xff] %vm7034, %v6971
        %7052 = vst.msk [vmem:[#allocation5 + $0x88] sm:$0xff] %vm7034, %v6973
        %7053 = vst.msk [vmem:[#allocation5 + $0x90] sm:$0xff] %vm7034, %v6975
        %7054 = vst.msk [vmem:[#allocation5 + $0x98] sm:$0xff] %vm7034, %v6977
        %7055 = vst.msk [vmem:[#allocation5 + $0xa0] sm:$0xff] %vm7034, %v6979
        %7056 = vst.msk [vmem:[#allocation5 + $0xa8] sm:$0xff] %vm7034, %v6981
        %7057 = vst.msk [vmem:[#allocation5 + $0xb0] sm:$0xff] %vm7034, %v6983
        %7058 = vst.msk [vmem:[#allocation5 + $0xb8] sm:$0xff] %vm7034, %v6985
        %7059 = vst.msk [vmem:[#allocation5 + $0xc0] sm:$0xff] %vm7034, %v6987
        %7060 = vst.msk [vmem:[#allocation5 + $0xc8] sm:$0xff] %vm7034, %v6989
        %7061 = vst.msk [vmem:[#allocation5 + $0xd0] sm:$0xff] %vm7034, %v6991
        %7062 = vst.msk [vmem:[#allocation5 + $0xd8] sm:$0xff] %vm7034, %v6993
        %7063 = vst.msk [vmem:[#allocation5 + $0xe0] sm:$0xff] %vm7034, %v6995
        %7064 = vst.msk [vmem:[#allocation5 + $0xe8] sm:$0xff] %vm7034, %v6997
        %7065 = vst.msk [vmem:[#allocation5 + $0xf0] sm:$0xff] %vm7034, %v6999
        %7066 = vst.msk [vmem:[#allocation5 + $0xf8] sm:$0xff] %vm7034, %v7001
        %v7067 = vld [vmem:[%s6680 + $0x2] sm:$0xff]
        %v7068 = vld [vmem:[%s6680 + $0xa] sm:$0xff]
        %v7069 = vld [vmem:[%s6680 + $0x1a] sm:$0xff]
        %v7070 = vld [vmem:[%s6680 + $0x22] sm:$0xff]
        %v7071 = vld [vmem:[%s6680 + $0x32] sm:$0xff]
        %v7072 = vld [vmem:[%s6680 + $0x3a] sm:$0xff]
        %v7073 = vld [vmem:[%s6680 + $0x4a] sm:$0xff]
        %v7074 = vld [vmem:[%s6680 + $0x52] sm:$0xff]
        %v7075 = vld [vmem:[%s6680 + $0x62] sm:$0xff]
        %v7076 = vld [vmem:[%s6680 + $0x6a] sm:$0xff]
        %v7077 = vld [vmem:[%s6680 + $0x7a] sm:$0xff]
        %v7078 = vld [vmem:[%s6680 + $0x82] sm:$0xff]
        %v7079 = vld [vmem:[%s6680 + $0x92] sm:$0xff]
        %v7080 = vld [vmem:[%s6680 + $0x9a] sm:$0xff]
        %v7081 = vld [vmem:[%s6680 + $0xaa] sm:$0xff]
        %v7082 = vld [vmem:[%s6680 + $0xb2] sm:$0xff]
        %v7083 = vld [vmem:[%s6680 + $0xc2] sm:$0xff]
        %v7084 = vld [vmem:[%s6680 + $0xca] sm:$0xff]
        %v7085 = vld [vmem:[%s6680 + $0xda] sm:$0xff]
        %v7086 = vld [vmem:[%s6680 + $0xe2] sm:$0xff]
        %v7087 = vld [vmem:[%s6680 + $0xf2] sm:$0xff]
        %v7088 = vld [vmem:[%s6680 + $0xfa] sm:$0xff]
        %v7089 = vld [vmem:[%s6680 + $0x10a] sm:$0xff]
        %v7090 = vld [vmem:[%s6680 + $0x112] sm:$0xff]
        %v7091 = vld [vmem:[%s6680 + $0x122] sm:$0xff]
        %v7092 = vld [vmem:[%s6680 + $0x12a] sm:$0xff]
        %v7093 = vld [vmem:[%s6680 + $0x13a] sm:$0xff]
        %v7094 = vld [vmem:[%s6680 + $0x142] sm:$0xff]
        %v7095 = vld [vmem:[%s6680 + $0x152] sm:$0xff]
        %v7096 = vld [vmem:[%s6680 + $0x15a] sm:$0xff]
        %v7097 = vld [vmem:[%s6680 + $0x16a] sm:$0xff]
        %v7098 = vld [vmem:[%s6680 + $0x172] sm:$0xff]
        %7131 = vrot.lane.b32.xlu0 %v7067, 84
        %v7132 = vpop.permute.xlu0 %7131
        %7133 = vrot.lane.b32.xlu0 %v7068, 84
        %v7134 = vpop.permute.xlu0 %7133
        %7135 = vrot.lane.b32.xlu0 %v7069, 84
        %v7136 = vpop.permute.xlu0 %7135
        %7137 = vrot.lane.b32.xlu0 %v7070, 84
        %v7138 = vpop.permute.xlu0 %7137
        %7139 = vrot.lane.b32.xlu0 %v7071, 84
        %v7140 = vpop.permute.xlu0 %7139
        %7141 = vrot.lane.b32.xlu0 %v7072, 84
        %v7142 = vpop.permute.xlu0 %7141
        %7143 = vrot.lane.b32.xlu0 %v7073, 84
        %v7144 = vpop.permute.xlu0 %7143
        %7145 = vrot.lane.b32.xlu0 %v7074, 84
        %v7146 = vpop.permute.xlu0 %7145
        %7147 = vrot.lane.b32.xlu0 %v7075, 84
        %v7148 = vpop.permute.xlu0 %7147
        %7149 = vrot.lane.b32.xlu0 %v7076, 84
        %v7150 = vpop.permute.xlu0 %7149
        %7151 = vrot.lane.b32.xlu0 %v7077, 84
        %v7152 = vpop.permute.xlu0 %7151
        %7153 = vrot.lane.b32.xlu0 %v7078, 84
        %v7154 = vpop.permute.xlu0 %7153
        %7155 = vrot.lane.b32.xlu0 %v7079, 84
        %v7156 = vpop.permute.xlu0 %7155
        %7157 = vrot.lane.b32.xlu0 %v7080, 84
        %v7158 = vpop.permute.xlu0 %7157
        %7159 = vrot.lane.b32.xlu0 %v7081, 84
        %v7160 = vpop.permute.xlu0 %7159
        %7161 = vrot.lane.b32.xlu0 %v7082, 84
        %v7162 = vpop.permute.xlu0 %7161
        %7163 = vrot.lane.b32.xlu0 %v7083, 84
        %v7164 = vpop.permute.xlu0 %7163
        %7165 = vrot.lane.b32.xlu0 %v7084, 84
        %v7166 = vpop.permute.xlu0 %7165
        %7167 = vrot.lane.b32.xlu0 %v7085, 84
        %v7168 = vpop.permute.xlu0 %7167
        %7169 = vrot.lane.b32.xlu0 %v7086, 84
        %v7170 = vpop.permute.xlu0 %7169
        %7171 = vrot.lane.b32.xlu0 %v7087, 84
        %v7172 = vpop.permute.xlu0 %7171
        %7173 = vrot.lane.b32.xlu0 %v7088, 84
        %v7174 = vpop.permute.xlu0 %7173
        %7175 = vrot.lane.b32.xlu0 %v7089, 84
        %v7176 = vpop.permute.xlu0 %7175
        %7177 = vrot.lane.b32.xlu0 %v7090, 84
        %v7178 = vpop.permute.xlu0 %7177
        %7179 = vrot.lane.b32.xlu0 %v7091, 84
        %v7180 = vpop.permute.xlu0 %7179
        %7181 = vrot.lane.b32.xlu0 %v7092, 84
        %v7182 = vpop.permute.xlu0 %7181
        %7183 = vrot.lane.b32.xlu0 %v7093, 84
        %v7184 = vpop.permute.xlu0 %7183
        %7185 = vrot.lane.b32.xlu0 %v7094, 84
        %v7186 = vpop.permute.xlu0 %7185
        %7187 = vrot.lane.b32.xlu0 %v7095, 84
        %v7188 = vpop.permute.xlu0 %7187
        %7189 = vrot.lane.b32.xlu0 %v7096, 84
        %v7190 = vpop.permute.xlu0 %7189
        %7191 = vrot.lane.b32.xlu0 %v7097, 84
        %v7192 = vpop.permute.xlu0 %7191
        %7193 = vrot.lane.b32.xlu0 %v7098, 84
        %v7194 = vpop.permute.xlu0 %7193
        %vm7227 = vcmask 704160
        %7228 = vst.msk [vmem:[#allocation5] sm:$0xff] %vm7227, %v7132
        %7229 = vst.msk [vmem:[#allocation5 + $0x8] sm:$0xff] %vm7227, %v7134
        %7230 = vst.msk [vmem:[#allocation5 + $0x10] sm:$0xff] %vm7227, %v7136
        %7231 = vst.msk [vmem:[#allocation5 + $0x18] sm:$0xff] %vm7227, %v7138
        %7232 = vst.msk [vmem:[#allocation5 + $0x20] sm:$0xff] %vm7227, %v7140
        %7233 = vst.msk [vmem:[#allocation5 + $0x28] sm:$0xff] %vm7227, %v7142
        %7234 = vst.msk [vmem:[#allocation5 + $0x30] sm:$0xff] %vm7227, %v7144
        %7235 = vst.msk [vmem:[#allocation5 + $0x38] sm:$0xff] %vm7227, %v7146
        %7236 = vst.msk [vmem:[#allocation5 + $0x40] sm:$0xff] %vm7227, %v7148
        %7237 = vst.msk [vmem:[#allocation5 + $0x48] sm:$0xff] %vm7227, %v7150
        %7238 = vst.msk [vmem:[#allocation5 + $0x50] sm:$0xff] %vm7227, %v7152
        %7239 = vst.msk [vmem:[#allocation5 + $0x58] sm:$0xff] %vm7227, %v7154
        %7240 = vst.msk [vmem:[#allocation5 + $0x60] sm:$0xff] %vm7227, %v7156
        %7241 = vst.msk [vmem:[#allocation5 + $0x68] sm:$0xff] %vm7227, %v7158
        %7242 = vst.msk [vmem:[#allocation5 + $0x70] sm:$0xff] %vm7227, %v7160
        %7243 = vst.msk [vmem:[#allocation5 + $0x78] sm:$0xff] %vm7227, %v7162
        %7244 = vst.msk [vmem:[#allocation5 + $0x80] sm:$0xff] %vm7227, %v7164
        %7245 = vst.msk [vmem:[#allocation5 + $0x88] sm:$0xff] %vm7227, %v7166
        %7246 = vst.msk [vmem:[#allocation5 + $0x90] sm:$0xff] %vm7227, %v7168
        %7247 = vst.msk [vmem:[#allocation5 + $0x98] sm:$0xff] %vm7227, %v7170
        %7248 = vst.msk [vmem:[#allocation5 + $0xa0] sm:$0xff] %vm7227, %v7172
        %7249 = vst.msk [vmem:[#allocation5 + $0xa8] sm:$0xff] %vm7227, %v7174
        %7250 = vst.msk [vmem:[#allocation5 + $0xb0] sm:$0xff] %vm7227, %v7176
        %7251 = vst.msk [vmem:[#allocation5 + $0xb8] sm:$0xff] %vm7227, %v7178
        %7252 = vst.msk [vmem:[#allocation5 + $0xc0] sm:$0xff] %vm7227, %v7180
        %7253 = vst.msk [vmem:[#allocation5 + $0xc8] sm:$0xff] %vm7227, %v7182
        %7254 = vst.msk [vmem:[#allocation5 + $0xd0] sm:$0xff] %vm7227, %v7184
        %7255 = vst.msk [vmem:[#allocation5 + $0xd8] sm:$0xff] %vm7227, %v7186
        %7256 = vst.msk [vmem:[#allocation5 + $0xe0] sm:$0xff] %vm7227, %v7188
        %7257 = vst.msk [vmem:[#allocation5 + $0xe8] sm:$0xff] %vm7227, %v7190
        %7258 = vst.msk [vmem:[#allocation5 + $0xf0] sm:$0xff] %vm7227, %v7192
        %7259 = vst.msk [vmem:[#allocation5 + $0xf8] sm:$0xff] %vm7227, %v7194
        %v7260 = vld [vmem:[%s6680 + $0x3] sm:$0xff]
        %v7261 = vld [vmem:[%s6680 + $0xb] sm:$0xff]
        %v7262 = vld [vmem:[%s6680 + $0x1b] sm:$0xff]
        %v7263 = vld [vmem:[%s6680 + $0x23] sm:$0xff]
        %v7264 = vld [vmem:[%s6680 + $0x33] sm:$0xff]
        %v7265 = vld [vmem:[%s6680 + $0x3b] sm:$0xff]
        %v7266 = vld [vmem:[%s6680 + $0x4b] sm:$0xff]
        %v7267 = vld [vmem:[%s6680 + $0x53] sm:$0xff]
        %v7268 = vld [vmem:[%s6680 + $0x63] sm:$0xff]
        %v7269 = vld [vmem:[%s6680 + $0x6b] sm:$0xff]
        %v7270 = vld [vmem:[%s6680 + $0x7b] sm:$0xff]
        %v7271 = vld [vmem:[%s6680 + $0x83] sm:$0xff]
        %v7272 = vld [vmem:[%s6680 + $0x93] sm:$0xff]
        %v7273 = vld [vmem:[%s6680 + $0x9b] sm:$0xff]
        %v7274 = vld [vmem:[%s6680 + $0xab] sm:$0xff]
        %v7275 = vld [vmem:[%s6680 + $0xb3] sm:$0xff]
        %v7276 = vld [vmem:[%s6680 + $0xc3] sm:$0xff]
        %v7277 = vld [vmem:[%s6680 + $0xcb] sm:$0xff]
        %v7278 = vld [vmem:[%s6680 + $0xdb] sm:$0xff]
        %v7279 = vld [vmem:[%s6680 + $0xe3] sm:$0xff]
        %v7280 = vld [vmem:[%s6680 + $0xf3] sm:$0xff]
        %v7281 = vld [vmem:[%s6680 + $0xfb] sm:$0xff]
        %v7282 = vld [vmem:[%s6680 + $0x10b] sm:$0xff]
        %v7283 = vld [vmem:[%s6680 + $0x113] sm:$0xff]
        %v7284 = vld [vmem:[%s6680 + $0x123] sm:$0xff]
        %v7285 = vld [vmem:[%s6680 + $0x12b] sm:$0xff]
        %v7286 = vld [vmem:[%s6680 + $0x13b] sm:$0xff]
        %v7287 = vld [vmem:[%s6680 + $0x143] sm:$0xff]
        %v7288 = vld [vmem:[%s6680 + $0x153] sm:$0xff]
        %v7289 = vld [vmem:[%s6680 + $0x15b] sm:$0xff]
        %v7290 = vld [vmem:[%s6680 + $0x16b] sm:$0xff]
        %v7291 = vld [vmem:[%s6680 + $0x173] sm:$0xff]
        %7324 = vrot.lane.b32.xlu0 %v7260, 86
        %v7325 = vpop.permute.xlu0 %7324
        %7326 = vrot.lane.b32.xlu0 %v7261, 86
        %v7327 = vpop.permute.xlu0 %7326
        %7328 = vrot.lane.b32.xlu0 %v7262, 86
        %v7329 = vpop.permute.xlu0 %7328
        %7330 = vrot.lane.b32.xlu0 %v7263, 86
        %v7331 = vpop.permute.xlu0 %7330
        %7332 = vrot.lane.b32.xlu0 %v7264, 86
        %v7333 = vpop.permute.xlu0 %7332
        %7334 = vrot.lane.b32.xlu0 %v7265, 86
        %v7335 = vpop.permute.xlu0 %7334
        %7336 = vrot.lane.b32.xlu0 %v7266, 86
        %v7337 = vpop.permute.xlu0 %7336
        %7338 = vrot.lane.b32.xlu0 %v7267, 86
        %v7339 = vpop.permute.xlu0 %7338
        %7340 = vrot.lane.b32.xlu0 %v7268, 86
        %v7341 = vpop.permute.xlu0 %7340
        %7342 = vrot.lane.b32.xlu0 %v7269, 86
        %v7343 = vpop.permute.xlu0 %7342
        %7344 = vrot.lane.b32.xlu0 %v7270, 86
        %v7345 = vpop.permute.xlu0 %7344
        %7346 = vrot.lane.b32.xlu0 %v7271, 86
        %v7347 = vpop.permute.xlu0 %7346
        %7348 = vrot.lane.b32.xlu0 %v7272, 86
        %v7349 = vpop.permute.xlu0 %7348
        %7350 = vrot.lane.b32.xlu0 %v7273, 86
        %v7351 = vpop.permute.xlu0 %7350
        %7352 = vrot.lane.b32.xlu0 %v7274, 86
        %v7353 = vpop.permute.xlu0 %7352
        %7354 = vrot.lane.b32.xlu0 %v7275, 86
        %v7355 = vpop.permute.xlu0 %7354
        %7356 = vrot.lane.b32.xlu0 %v7276, 86
        %v7357 = vpop.permute.xlu0 %7356
        %7358 = vrot.lane.b32.xlu0 %v7277, 86
        %v7359 = vpop.permute.xlu0 %7358
        %7360 = vrot.lane.b32.xlu0 %v7278, 86
        %v7361 = vpop.permute.xlu0 %7360
        %7362 = vrot.lane.b32.xlu0 %v7279, 86
        %v7363 = vpop.permute.xlu0 %7362
        %7364 = vrot.lane.b32.xlu0 %v7280, 86
        %v7365 = vpop.permute.xlu0 %7364
        %7366 = vrot.lane.b32.xlu0 %v7281, 86
        %v7367 = vpop.permute.xlu0 %7366
        %7368 = vrot.lane.b32.xlu0 %v7282, 86
        %v7369 = vpop.permute.xlu0 %7368
        %7370 = vrot.lane.b32.xlu0 %v7283, 86
        %v7371 = vpop.permute.xlu0 %7370
        %7372 = vrot.lane.b32.xlu0 %v7284, 86
        %v7373 = vpop.permute.xlu0 %7372
        %7374 = vrot.lane.b32.xlu0 %v7285, 86
        %v7375 = vpop.permute.xlu0 %7374
        %7376 = vrot.lane.b32.xlu0 %v7286, 86
        %v7377 = vpop.permute.xlu0 %7376
        %7378 = vrot.lane.b32.xlu0 %v7287, 86
        %v7379 = vpop.permute.xlu0 %7378
        %7380 = vrot.lane.b32.xlu0 %v7288, 86
        %v7381 = vpop.permute.xlu0 %7380
        %7382 = vrot.lane.b32.xlu0 %v7289, 86
        %v7383 = vpop.permute.xlu0 %7382
        %7384 = vrot.lane.b32.xlu0 %v7290, 86
        %v7385 = vpop.permute.xlu0 %7384
        %7386 = vrot.lane.b32.xlu0 %v7291, 86
        %v7387 = vpop.permute.xlu0 %7386
        %vm7420 = vcmask 720560
        %7421 = vst.msk [vmem:[#allocation5] sm:$0xff] %vm7420, %v7325
        %7422 = vst.msk [vmem:[#allocation5 + $0x8] sm:$0xff] %vm7420, %v7327
        %7423 = vst.msk [vmem:[#allocation5 + $0x10] sm:$0xff] %vm7420, %v7329
        %7424 = vst.msk [vmem:[#allocation5 + $0x18] sm:$0xff] %vm7420, %v7331
        %7425 = vst.msk [vmem:[#allocation5 + $0x20] sm:$0xff] %vm7420, %v7333
        %7426 = vst.msk [vmem:[#allocation5 + $0x28] sm:$0xff] %vm7420, %v7335
        %7427 = vst.msk [vmem:[#allocation5 + $0x30] sm:$0xff] %vm7420, %v7337
        %7428 = vst.msk [vmem:[#allocation5 + $0x38] sm:$0xff] %vm7420, %v7339
        %7429 = vst.msk [vmem:[#allocation5 + $0x40] sm:$0xff] %vm7420, %v7341
        %7430 = vst.msk [vmem:[#allocation5 + $0x48] sm:$0xff] %vm7420, %v7343
        %7431 = vst.msk [vmem:[#allocation5 + $0x50] sm:$0xff] %vm7420, %v7345
        %7432 = vst.msk [vmem:[#allocation5 + $0x58] sm:$0xff] %vm7420, %v7347
        %7433 = vst.msk [vmem:[#allocation5 + $0x60] sm:$0xff] %vm7420, %v7349
        %7434 = vst.msk [vmem:[#allocation5 + $0x68] sm:$0xff] %vm7420, %v7351
        %7435 = vst.msk [vmem:[#allocation5 + $0x70] sm:$0xff] %vm7420, %v7353
        %7436 = vst.msk [vmem:[#allocation5 + $0x78] sm:$0xff] %vm7420, %v7355
        %7437 = vst.msk [vmem:[#allocation5 + $0x80] sm:$0xff] %vm7420, %v7357
        %7438 = vst.msk [vmem:[#allocation5 + $0x88] sm:$0xff] %vm7420, %v7359
        %7439 = vst.msk [vmem:[#allocation5 + $0x90] sm:$0xff] %vm7420, %v7361
        %7440 = vst.msk [vmem:[#allocation5 + $0x98] sm:$0xff] %vm7420, %v7363
        %7441 = vst.msk [vmem:[#allocation5 + $0xa0] sm:$0xff] %vm7420, %v7365
        %7442 = vst.msk [vmem:[#allocation5 + $0xa8] sm:$0xff] %vm7420, %v7367
        %7443 = vst.msk [vmem:[#allocation5 + $0xb0] sm:$0xff] %vm7420, %v7369
        %7444 = vst.msk [vmem:[#allocation5 + $0xb8] sm:$0xff] %vm7420, %v7371
        %7445 = vst.msk [vmem:[#allocation5 + $0xc0] sm:$0xff] %vm7420, %v7373
        %7446 = vst.msk [vmem:[#allocation5 + $0xc8] sm:$0xff] %vm7420, %v7375
        %7447 = vst.msk [vmem:[#allocation5 + $0xd0] sm:$0xff] %vm7420, %v7377
        %7448 = vst.msk [vmem:[#allocation5 + $0xd8] sm:$0xff] %vm7420, %v7379
        %7449 = vst.msk [vmem:[#allocation5 + $0xe0] sm:$0xff] %vm7420, %v7381
        %7450 = vst.msk [vmem:[#allocation5 + $0xe8] sm:$0xff] %vm7420, %v7383
        %7451 = vst.msk [vmem:[#allocation5 + $0xf0] sm:$0xff] %vm7420, %v7385
        %7452 = vst.msk [vmem:[#allocation5 + $0xf8] sm:$0xff] %vm7420, %v7387
        %v7453 = vld [vmem:[%s6680 + $0x4] sm:$0xff]
        %v7454 = vld [vmem:[%s6680 + $0xc] sm:$0xff]
        %v7455 = vld [vmem:[%s6680 + $0x1c] sm:$0xff]
        %v7456 = vld [vmem:[%s6680 + $0x24] sm:$0xff]
        %v7457 = vld [vmem:[%s6680 + $0x34] sm:$0xff]
        %v7458 = vld [vmem:[%s6680 + $0x3c] sm:$0xff]
        %v7459 = vld [vmem:[%s6680 + $0x4c] sm:$0xff]
        %v7460 = vld [vmem:[%s6680 + $0x54] sm:$0xff]
        %v7461 = vld [vmem:[%s6680 + $0x64] sm:$0xff]
        %v7462 = vld [vmem:[%s6680 + $0x6c] sm:$0xff]
        %v7463 = vld [vmem:[%s6680 + $0x7c] sm:$0xff]
        %v7464 = vld [vmem:[%s6680 + $0x84] sm:$0xff]
        %v7465 = vld [vmem:[%s6680 + $0x94] sm:$0xff]
        %v7466 = vld [vmem:[%s6680 + $0x9c] sm:$0xff]
        %v7467 = vld [vmem:[%s6680 + $0xac] sm:$0xff]
        %v7468 = vld [vmem:[%s6680 + $0xb4] sm:$0xff]
        %v7469 = vld [vmem:[%s6680 + $0xc4] sm:$0xff]
        %v7470 = vld [vmem:[%s6680 + $0xcc] sm:$0xff]
        %v7471 = vld [vmem:[%s6680 + $0xdc] sm:$0xff]
        %v7472 = vld [vmem:[%s6680 + $0xe4] sm:$0xff]
        %v7473 = vld [vmem:[%s6680 + $0xf4] sm:$0xff]
        %v7474 = vld [vmem:[%s6680 + $0xfc] sm:$0xff]
        %v7475 = vld [vmem:[%s6680 + $0x10c] sm:$0xff]
        %v7476 = vld [vmem:[%s6680 + $0x114] sm:$0xff]
        %v7477 = vld [vmem:[%s6680 + $0x124] sm:$0xff]
        %v7478 = vld [vmem:[%s6680 + $0x12c] sm:$0xff]
        %v7479 = vld [vmem:[%s6680 + $0x13c] sm:$0xff]
        %v7480 = vld [vmem:[%s6680 + $0x144] sm:$0xff]
        %v7481 = vld [vmem:[%s6680 + $0x154] sm:$0xff]
        %v7482 = vld [vmem:[%s6680 + $0x15c] sm:$0xff]
        %v7483 = vld [vmem:[%s6680 + $0x16c] sm:$0xff]
        %v7484 = vld [vmem:[%s6680 + $0x174] sm:$0xff]
        %7517 = vrot.lane.b32.xlu0 %v7453, 88
        %v7518 = vpop.permute.xlu0 %7517
        %7519 = vrot.lane.b32.xlu0 %v7454, 88
        %v7520 = vpop.permute.xlu0 %7519
        %7521 = vrot.lane.b32.xlu0 %v7455, 88
        %v7522 = vpop.permute.xlu0 %7521
        %7523 = vrot.lane.b32.xlu0 %v7456, 88
        %v7524 = vpop.permute.xlu0 %7523
        %7525 = vrot.lane.b32.xlu0 %v7457, 88
        %v7526 = vpop.permute.xlu0 %7525
        %7527 = vrot.lane.b32.xlu0 %v7458, 88
        %v7528 = vpop.permute.xlu0 %7527
        %7529 = vrot.lane.b32.xlu0 %v7459, 88
        %v7530 = vpop.permute.xlu0 %7529
        %7531 = vrot.lane.b32.xlu0 %v7460, 88
        %v7532 = vpop.permute.xlu0 %7531
        %7533 = vrot.lane.b32.xlu0 %v7461, 88
        %v7534 = vpop.permute.xlu0 %7533
        %7535 = vrot.lane.b32.xlu0 %v7462, 88
        %v7536 = vpop.permute.xlu0 %7535
        %7537 = vrot.lane.b32.xlu0 %v7463, 88
        %v7538 = vpop.permute.xlu0 %7537
        %7539 = vrot.lane.b32.xlu0 %v7464, 88
        %v7540 = vpop.permute.xlu0 %7539
        %7541 = vrot.lane.b32.xlu0 %v7465, 88
        %v7542 = vpop.permute.xlu0 %7541
        %7543 = vrot.lane.b32.xlu0 %v7466, 88
        %v7544 = vpop.permute.xlu0 %7543
        %7545 = vrot.lane.b32.xlu0 %v7467, 88
        %v7546 = vpop.permute.xlu0 %7545
        %7547 = vrot.lane.b32.xlu0 %v7468, 88
        %v7548 = vpop.permute.xlu0 %7547
        %7549 = vrot.lane.b32.xlu0 %v7469, 88
        %v7550 = vpop.permute.xlu0 %7549
        %7551 = vrot.lane.b32.xlu0 %v7470, 88
        %v7552 = vpop.permute.xlu0 %7551
        %7553 = vrot.lane.b32.xlu0 %v7471, 88
        %v7554 = vpop.permute.xlu0 %7553
        %7555 = vrot.lane.b32.xlu0 %v7472, 88
        %v7556 = vpop.permute.xlu0 %7555
        %7557 = vrot.lane.b32.xlu0 %v7473, 88
        %v7558 = vpop.permute.xlu0 %7557
        %7559 = vrot.lane.b32.xlu0 %v7474, 88
        %v7560 = vpop.permute.xlu0 %7559
        %7561 = vrot.lane.b32.xlu0 %v7475, 88
        %v7562 = vpop.permute.xlu0 %7561
        %7563 = vrot.lane.b32.xlu0 %v7476, 88
        %v7564 = vpop.permute.xlu0 %7563
        %7565 = vrot.lane.b32.xlu0 %v7477, 88
        %v7566 = vpop.permute.xlu0 %7565
        %7567 = vrot.lane.b32.xlu0 %v7478, 88
        %v7568 = vpop.permute.xlu0 %7567
        %7569 = vrot.lane.b32.xlu0 %v7479, 88
        %v7570 = vpop.permute.xlu0 %7569
        %7571 = vrot.lane.b32.xlu0 %v7480, 88
        %v7572 = vpop.permute.xlu0 %7571
        %7573 = vrot.lane.b32.xlu0 %v7481, 88
        %v7574 = vpop.permute.xlu0 %7573
        %7575 = vrot.lane.b32.xlu0 %v7482, 88
        %v7576 = vpop.permute.xlu0 %7575
        %7577 = vrot.lane.b32.xlu0 %v7483, 88
        %v7578 = vpop.permute.xlu0 %7577
        %7579 = vrot.lane.b32.xlu0 %v7484, 88
        %v7580 = vpop.permute.xlu0 %7579
        %vm7613 = vcmask 736960
        %7614 = vst.msk [vmem:[#allocation5] sm:$0xff] %vm7613, %v7518
        %7615 = vst.msk [vmem:[#allocation5 + $0x8] sm:$0xff] %vm7613, %v7520
        %7616 = vst.msk [vmem:[#allocation5 + $0x10] sm:$0xff] %vm7613, %v7522
        %7617 = vst.msk [vmem:[#allocation5 + $0x18] sm:$0xff] %vm7613, %v7524
        %7618 = vst.msk [vmem:[#allocation5 + $0x20] sm:$0xff] %vm7613, %v7526
        %7619 = vst.msk [vmem:[#allocation5 + $0x28] sm:$0xff] %vm7613, %v7528
        %7620 = vst.msk [vmem:[#allocation5 + $0x30] sm:$0xff] %vm7613, %v7530
        %7621 = vst.msk [vmem:[#allocation5 + $0x38] sm:$0xff] %vm7613, %v7532
        %7622 = vst.msk [vmem:[#allocation5 + $0x40] sm:$0xff] %vm7613, %v7534
        %7623 = vst.msk [vmem:[#allocation5 + $0x48] sm:$0xff] %vm7613, %v7536
        %7624 = vst.msk [vmem:[#allocation5 + $0x50] sm:$0xff] %vm7613, %v7538
        %7625 = vst.msk [vmem:[#allocation5 + $0x58] sm:$0xff] %vm7613, %v7540
        %7626 = vst.msk [vmem:[#allocation5 + $0x60] sm:$0xff] %vm7613, %v7542
        %7627 = vst.msk [vmem:[#allocation5 + $0x68] sm:$0xff] %vm7613, %v7544
        %7628 = vst.msk [vmem:[#allocation5 + $0x70] sm:$0xff] %vm7613, %v7546
        %7629 = vst.msk [vmem:[#allocation5 + $0x78] sm:$0xff] %vm7613, %v7548
        %7630 = vst.msk [vmem:[#allocation5 + $0x80] sm:$0xff] %vm7613, %v7550
        %7631 = vst.msk [vmem:[#allocation5 + $0x88] sm:$0xff] %vm7613, %v7552
        %7632 = vst.msk [vmem:[#allocation5 + $0x90] sm:$0xff] %vm7613, %v7554
        %7633 = vst.msk [vmem:[#allocation5 + $0x98] sm:$0xff] %vm7613, %v7556
        %7634 = vst.msk [vmem:[#allocation5 + $0xa0] sm:$0xff] %vm7613, %v7558
        %7635 = vst.msk [vmem:[#allocation5 + $0xa8] sm:$0xff] %vm7613, %v7560
        %7636 = vst.msk [vmem:[#allocation5 + $0xb0] sm:$0xff] %vm7613, %v7562
        %7637 = vst.msk [vmem:[#allocation5 + $0xb8] sm:$0xff] %vm7613, %v7564
        %7638 = vst.msk [vmem:[#allocation5 + $0xc0] sm:$0xff] %vm7613, %v7566
        %7639 = vst.msk [vmem:[#allocation5 + $0xc8] sm:$0xff] %vm7613, %v7568
        %7640 = vst.msk [vmem:[#allocation5 + $0xd0] sm:$0xff] %vm7613, %v7570
        %7641 = vst.msk [vmem:[#allocation5 + $0xd8] sm:$0xff] %vm7613, %v7572
        %7642 = vst.msk [vmem:[#allocation5 + $0xe0] sm:$0xff] %vm7613, %v7574
        %7643 = vst.msk [vmem:[#allocation5 + $0xe8] sm:$0xff] %vm7613, %v7576
        %7644 = vst.msk [vmem:[#allocation5 + $0xf0] sm:$0xff] %vm7613, %v7578
        %7645 = vst.msk [vmem:[#allocation5 + $0xf8] sm:$0xff] %vm7613, %v7580
        %v7646 = vld [vmem:[#allocation4] sm:$0xff]
        %v7647 = vld [vmem:[#allocation4 + $0x8] sm:$0xff]
        %v7648 = vld [vmem:[#allocation4 + $0x18] sm:$0xff]
        %v7649 = vld [vmem:[#allocation4 + $0x20] sm:$0xff]
        %v7650 = vld [vmem:[#allocation4 + $0x30] sm:$0xff]
        %v7651 = vld [vmem:[#allocation4 + $0x38] sm:$0xff]
        %v7652 = vld [vmem:[#allocation4 + $0x48] sm:$0xff]
        %v7653 = vld [vmem:[#allocation4 + $0x50] sm:$0xff]
        %v7654 = vld [vmem:[#allocation4 + $0x60] sm:$0xff]
        %v7655 = vld [vmem:[#allocation4 + $0x68] sm:$0xff]
        %v7656 = vld [vmem:[#allocation4 + $0x78] sm:$0xff]
        %v7657 = vld [vmem:[#allocation4 + $0x80] sm:$0xff]
        %v7658 = vld [vmem:[#allocation4 + $0x90] sm:$0xff]
        %v7659 = vld [vmem:[#allocation4 + $0x98] sm:$0xff]
        %v7660 = vld [vmem:[#allocation4 + $0xa8] sm:$0xff]
        %v7661 = vld [vmem:[#allocation4 + $0xb0] sm:$0xff]
        %v7662 = vld [vmem:[#allocation4 + $0xc0] sm:$0xff]
        %v7663 = vld [vmem:[#allocation4 + $0xc8] sm:$0xff]
        %v7664 = vld [vmem:[#allocation4 + $0xd8] sm:$0xff]
        %v7665 = vld [vmem:[#allocation4 + $0xe0] sm:$0xff]
        %v7666 = vld [vmem:[#allocation4 + $0xf0] sm:$0xff]
        %v7667 = vld [vmem:[#allocation4 + $0xf8] sm:$0xff]
        %v7668 = vld [vmem:[#allocation4 + $0x108] sm:$0xff]
        %v7669 = vld [vmem:[#allocation4 + $0x110] sm:$0xff]
        %v7670 = vld [vmem:[#allocation4 + $0x120] sm:$0xff]
        %v7671 = vld [vmem:[#allocation4 + $0x128] sm:$0xff]
        %v7672 = vld [vmem:[#allocation4 + $0x138] sm:$0xff]
        %v7673 = vld [vmem:[#allocation4 + $0x140] sm:$0xff]
        %v7674 = vld [vmem:[#allocation4 + $0x150] sm:$0xff]
        %v7675 = vld [vmem:[#allocation4 + $0x158] sm:$0xff]
        %v7676 = vld [vmem:[#allocation4 + $0x168] sm:$0xff]
        %v7677 = vld [vmem:[#allocation4 + $0x170] sm:$0xff]
        %v7678 = vld [vmem:[#allocation4 + $0x1] sm:$0xff]
        %v7679 = vld [vmem:[#allocation4 + $0x9] sm:$0xff]
        %v7680 = vld [vmem:[#allocation4 + $0x19] sm:$0xff]
        %v7681 = vld [vmem:[#allocation4 + $0x21] sm:$0xff]
        %v7682 = vld [vmem:[#allocation4 + $0x31] sm:$0xff]
        %v7683 = vld [vmem:[#allocation4 + $0x39] sm:$0xff]
        %v7684 = vld [vmem:[#allocation4 + $0x49] sm:$0xff]
        %v7685 = vld [vmem:[#allocation4 + $0x51] sm:$0xff]
        %v7686 = vld [vmem:[#allocation4 + $0x61] sm:$0xff]
        %v7687 = vld [vmem:[#allocation4 + $0x69] sm:$0xff]
        %v7688 = vld [vmem:[#allocation4 + $0x79] sm:$0xff]
        %v7689 = vld [vmem:[#allocation4 + $0x81] sm:$0xff]
        %v7690 = vld [vmem:[#allocation4 + $0x91] sm:$0xff]
        %v7691 = vld [vmem:[#allocation4 + $0x99] sm:$0xff]
        %v7692 = vld [vmem:[#allocation4 + $0xa9] sm:$0xff]
        %v7693 = vld [vmem:[#allocation4 + $0xb1] sm:$0xff]
        %v7694 = vld [vmem:[#allocation4 + $0xc1] sm:$0xff]
        %v7695 = vld [vmem:[#allocation4 + $0xc9] sm:$0xff]
        %v7696 = vld [vmem:[#allocation4 + $0xd9] sm:$0xff]
        %v7697 = vld [vmem:[#allocation4 + $0xe1] sm:$0xff]
        %v7698 = vld [vmem:[#allocation4 + $0xf1] sm:$0xff]
        %v7699 = vld [vmem:[#allocation4 + $0xf9] sm:$0xff]
        %v7700 = vld [vmem:[#allocation4 + $0x109] sm:$0xff]
        %v7701 = vld [vmem:[#allocation4 + $0x111] sm:$0xff]
        %v7702 = vld [vmem:[#allocation4 + $0x121] sm:$0xff]
        %v7703 = vld [vmem:[#allocation4 + $0x129] sm:$0xff]
        %v7704 = vld [vmem:[#allocation4 + $0x139] sm:$0xff]
        %v7705 = vld [vmem:[#allocation4 + $0x141] sm:$0xff]
        %v7706 = vld [vmem:[#allocation4 + $0x151] sm:$0xff]
        %v7707 = vld [vmem:[#allocation4 + $0x159] sm:$0xff]
        %v7708 = vld [vmem:[#allocation4 + $0x169] sm:$0xff]
        %v7709 = vld [vmem:[#allocation4 + $0x171] sm:$0xff]
        %v7710 = vmax.f32 %v7646, %v7678
        %v7711 = vmax.f32 %v7647, %v7679
        %v7712 = vmax.f32 %v7648, %v7680
        %v7713 = vmax.f32 %v7649, %v7681
        %v7714 = vmax.f32 %v7650, %v7682
        %v7715 = vmax.f32 %v7651, %v7683
        %v7716 = vmax.f32 %v7652, %v7684
        %v7717 = vmax.f32 %v7653, %v7685
        %v7718 = vmax.f32 %v7654, %v7686
        %v7719 = vmax.f32 %v7655, %v7687
        %v7720 = vmax.f32 %v7656, %v7688
        %v7721 = vmax.f32 %v7657, %v7689
        %v7722 = vmax.f32 %v7658, %v7690
        %v7723 = vmax.f32 %v7659, %v7691
        %v7724 = vmax.f32 %v7660, %v7692
        %v7725 = vmax.f32 %v7661, %v7693
        %v7726 = vmax.f32 %v7662, %v7694
        %v7727 = vmax.f32 %v7663, %v7695
        %v7728 = vmax.f32 %v7664, %v7696
        %v7729 = vmax.f32 %v7665, %v7697
        %v7730 = vmax.f32 %v7666, %v7698
        %v7731 = vmax.f32 %v7667, %v7699
        %v7732 = vmax.f32 %v7668, %v7700
        %v7733 = vmax.f32 %v7669, %v7701
        %v7734 = vmax.f32 %v7670, %v7702
        %v7735 = vmax.f32 %v7671, %v7703
        %v7736 = vmax.f32 %v7672, %v7704
        %v7737 = vmax.f32 %v7673, %v7705
        %v7738 = vmax.f32 %v7674, %v7706
        %v7739 = vmax.f32 %v7675, %v7707
        %v7740 = vmax.f32 %v7676, %v7708
        %v7741 = vmax.f32 %v7677, %v7709
        %v7742 = vld [vmem:[#allocation4 + $0x2] sm:$0xff]
        %v7743 = vld [vmem:[#allocation4 + $0xa] sm:$0xff]
        %v7744 = vld [vmem:[#allocation4 + $0x1a] sm:$0xff]
        %v7745 = vld [vmem:[#allocation4 + $0x22] sm:$0xff]
        %v7746 = vld [vmem:[#allocation4 + $0x32] sm:$0xff]
        %v7747 = vld [vmem:[#allocation4 + $0x3a] sm:$0xff]
        %v7748 = vld [vmem:[#allocation4 + $0x4a] sm:$0xff]
        %v7749 = vld [vmem:[#allocation4 + $0x52] sm:$0xff]
        %v7750 = vld [vmem:[#allocation4 + $0x62] sm:$0xff]
        %v7751 = vld [vmem:[#allocation4 + $0x6a] sm:$0xff]
        %v7752 = vld [vmem:[#allocation4 + $0x7a] sm:$0xff]
        %v7753 = vld [vmem:[#allocation4 + $0x82] sm:$0xff]
        %v7754 = vld [vmem:[#allocation4 + $0x92] sm:$0xff]
        %v7755 = vld [vmem:[#allocation4 + $0x9a] sm:$0xff]
        %v7756 = vld [vmem:[#allocation4 + $0xaa] sm:$0xff]
        %v7757 = vld [vmem:[#allocation4 + $0xb2] sm:$0xff]
        %v7758 = vld [vmem:[#allocation4 + $0xc2] sm:$0xff]
        %v7759 = vld [vmem:[#allocation4 + $0xca] sm:$0xff]
        %v7760 = vld [vmem:[#allocation4 + $0xda] sm:$0xff]
        %v7761 = vld [vmem:[#allocation4 + $0xe2] sm:$0xff]
        %v7762 = vld [vmem:[#allocation4 + $0xf2] sm:$0xff]
        %v7763 = vld [vmem:[#allocation4 + $0xfa] sm:$0xff]
        %v7764 = vld [vmem:[#allocation4 + $0x10a] sm:$0xff]
        %v7765 = vld [vmem:[#allocation4 + $0x112] sm:$0xff]
        %v7766 = vld [vmem:[#allocation4 + $0x122] sm:$0xff]
        %v7767 = vld [vmem:[#allocation4 + $0x12a] sm:$0xff]
        %v7768 = vld [vmem:[#allocation4 + $0x13a] sm:$0xff]
        %v7769 = vld [vmem:[#allocation4 + $0x142] sm:$0xff]
        %v7770 = vld [vmem:[#allocation4 + $0x152] sm:$0xff]
        %v7771 = vld [vmem:[#allocation4 + $0x15a] sm:$0xff]
        %v7772 = vld [vmem:[#allocation4 + $0x16a] sm:$0xff]
        %v7773 = vld [vmem:[#allocation4 + $0x172] sm:$0xff]
        %v7774 = vmax.f32 %v7710, %v7742
        %v7775 = vmax.f32 %v7711, %v7743
        %v7776 = vmax.f32 %v7712, %v7744
        %v7777 = vmax.f32 %v7713, %v7745
        %v7778 = vmax.f32 %v7714, %v7746
        %v7779 = vmax.f32 %v7715, %v7747
        %v7780 = vmax.f32 %v7716, %v7748
        %v7781 = vmax.f32 %v7717, %v7749
        %v7782 = vmax.f32 %v7718, %v7750
        %v7783 = vmax.f32 %v7719, %v7751
        %v7784 = vmax.f32 %v7720, %v7752
        %v7785 = vmax.f32 %v7721, %v7753
        %v7786 = vmax.f32 %v7722, %v7754
        %v7787 = vmax.f32 %v7723, %v7755
        %v7788 = vmax.f32 %v7724, %v7756
        %v7789 = vmax.f32 %v7725, %v7757
        %v7790 = vmax.f32 %v7726, %v7758
        %v7791 = vmax.f32 %v7727, %v7759
        %v7792 = vmax.f32 %v7728, %v7760
        %v7793 = vmax.f32 %v7729, %v7761
        %v7794 = vmax.f32 %v7730, %v7762
        %v7795 = vmax.f32 %v7731, %v7763
        %v7796 = vmax.f32 %v7732, %v7764
        %v7797 = vmax.f32 %v7733, %v7765
        %v7798 = vmax.f32 %v7734, %v7766
        %v7799 = vmax.f32 %v7735, %v7767
        %v7800 = vmax.f32 %v7736, %v7768
        %v7801 = vmax.f32 %v7737, %v7769
        %v7802 = vmax.f32 %v7738, %v7770
        %v7803 = vmax.f32 %v7739, %v7771
        %v7804 = vmax.f32 %v7740, %v7772
        %v7805 = vmax.f32 %v7741, %v7773
        %v7806 = vld [vmem:[%s1015] sm:$0xff]
        %v7807 = vld [vmem:[%s1015 + $0x8] sm:$0xff]
        %v7808 = vld [vmem:[%s1015 + $0x18] sm:$0xff]
        %v7809 = vld [vmem:[%s1015 + $0x20] sm:$0xff]
        %v7810 = vld [vmem:[%s1015 + $0x30] sm:$0xff]
        %v7811 = vld [vmem:[%s1015 + $0x38] sm:$0xff]
        %v7812 = vld [vmem:[%s1015 + $0x48] sm:$0xff]
        %v7813 = vld [vmem:[%s1015 + $0x50] sm:$0xff]
        %v7814 = vld [vmem:[%s1015 + $0x60] sm:$0xff]
        %v7815 = vld [vmem:[%s1015 + $0x68] sm:$0xff]
        %v7816 = vld [vmem:[%s1015 + $0x78] sm:$0xff]
        %v7817 = vld [vmem:[%s1015 + $0x80] sm:$0xff]
        %v7818 = vld [vmem:[%s1015 + $0x90] sm:$0xff]
        %v7819 = vld [vmem:[%s1015 + $0x98] sm:$0xff]
        %v7820 = vld [vmem:[%s1015 + $0xa8] sm:$0xff]
        %v7821 = vld [vmem:[%s1015 + $0xb0] sm:$0xff]
        %v7822 = vld [vmem:[%s1015 + $0xc0] sm:$0xff]
        %v7823 = vld [vmem:[%s1015 + $0xc8] sm:$0xff]
        %v7824 = vld [vmem:[%s1015 + $0xd8] sm:$0xff]
        %v7825 = vld [vmem:[%s1015 + $0xe0] sm:$0xff]
        %v7826 = vld [vmem:[%s1015 + $0xf0] sm:$0xff]
        %v7827 = vld [vmem:[%s1015 + $0xf8] sm:$0xff]
        %v7828 = vld [vmem:[%s1015 + $0x108] sm:$0xff]
        %v7829 = vld [vmem:[%s1015 + $0x110] sm:$0xff]
        %v7830 = vld [vmem:[%s1015 + $0x120] sm:$0xff]
        %v7831 = vld [vmem:[%s1015 + $0x128] sm:$0xff]
        %v7832 = vld [vmem:[%s1015 + $0x138] sm:$0xff]
        %v7833 = vld [vmem:[%s1015 + $0x140] sm:$0xff]
        %v7834 = vld [vmem:[%s1015 + $0x150] sm:$0xff]
        %v7835 = vld [vmem:[%s1015 + $0x158] sm:$0xff]
        %v7836 = vld [vmem:[%s1015 + $0x168] sm:$0xff]
        %v7837 = vld [vmem:[%s1015 + $0x170] sm:$0xff]
        %v7838 = vmax.f32 %v7774, %v7806
        %v7839 = vmax.f32 %v7775, %v7807
        %v7840 = vmax.f32 %v7776, %v7808
        %v7841 = vmax.f32 %v7777, %v7809
        %v7842 = vmax.f32 %v7778, %v7810
        %v7843 = vmax.f32 %v7779, %v7811
        %v7844 = vmax.f32 %v7780, %v7812
        %v7845 = vmax.f32 %v7781, %v7813
        %v7846 = vmax.f32 %v7782, %v7814
        %v7847 = vmax.f32 %v7783, %v7815
        %v7848 = vmax.f32 %v7784, %v7816
        %v7849 = vmax.f32 %v7785, %v7817
        %v7850 = vmax.f32 %v7786, %v7818
        %v7851 = vmax.f32 %v7787, %v7819
        %v7852 = vmax.f32 %v7788, %v7820
        %v7853 = vmax.f32 %v7789, %v7821
        %v7854 = vmax.f32 %v7790, %v7822
        %v7855 = vmax.f32 %v7791, %v7823
        %v7856 = vmax.f32 %v7792, %v7824
        %v7857 = vmax.f32 %v7793, %v7825
        %v7858 = vmax.f32 %v7794, %v7826
        %v7859 = vmax.f32 %v7795, %v7827
        %v7860 = vmax.f32 %v7796, %v7828
        %v7861 = vmax.f32 %v7797, %v7829
        %v7862 = vmax.f32 %v7798, %v7830
        %v7863 = vmax.f32 %v7799, %v7831
        %v7864 = vmax.f32 %v7800, %v7832
        %v7865 = vmax.f32 %v7801, %v7833
        %v7866 = vmax.f32 %v7802, %v7834
        %v7867 = vmax.f32 %v7803, %v7835
        %v7868 = vmax.f32 %v7804, %v7836
        %v7869 = vmax.f32 %v7805, %v7837
        %v7870 = vld [vmem:[%s1015 + $0x1] sm:$0xff]
        %v7871 = vld [vmem:[%s1015 + $0x9] sm:$0xff]
        %v7872 = vld [vmem:[%s1015 + $0x19] sm:$0xff]
        %v7873 = vld [vmem:[%s1015 + $0x21] sm:$0xff]
        %v7874 = vld [vmem:[%s1015 + $0x31] sm:$0xff]
        %v7875 = vld [vmem:[%s1015 + $0x39] sm:$0xff]
        %v7876 = vld [vmem:[%s1015 + $0x49] sm:$0xff]
        %v7877 = vld [vmem:[%s1015 + $0x51] sm:$0xff]
        %v7878 = vld [vmem:[%s1015 + $0x61] sm:$0xff]
        %v7879 = vld [vmem:[%s1015 + $0x69] sm:$0xff]
        %v7880 = vld [vmem:[%s1015 + $0x79] sm:$0xff]
        %v7881 = vld [vmem:[%s1015 + $0x81] sm:$0xff]
        %v7882 = vld [vmem:[%s1015 + $0x91] sm:$0xff]
        %v7883 = vld [vmem:[%s1015 + $0x99] sm:$0xff]
        %v7884 = vld [vmem:[%s1015 + $0xa9] sm:$0xff]
        %v7885 = vld [vmem:[%s1015 + $0xb1] sm:$0xff]
        %v7886 = vld [vmem:[%s1015 + $0xc1] sm:$0xff]
        %v7887 = vld [vmem:[%s1015 + $0xc9] sm:$0xff]
        %v7888 = vld [vmem:[%s1015 + $0xd9] sm:$0xff]
        %v7889 = vld [vmem:[%s1015 + $0xe1] sm:$0xff]
        %v7890 = vld [vmem:[%s1015 + $0xf1] sm:$0xff]
        %v7891 = vld [vmem:[%s1015 + $0xf9] sm:$0xff]
        %v7892 = vld [vmem:[%s1015 + $0x109] sm:$0xff]
        %v7893 = vld [vmem:[%s1015 + $0x111] sm:$0xff]
        %v7894 = vld [vmem:[%s1015 + $0x121] sm:$0xff]
        %v7895 = vld [vmem:[%s1015 + $0x129] sm:$0xff]
        %v7896 = vld [vmem:[%s1015 + $0x139] sm:$0xff]
        %v7897 = vld [vmem:[%s1015 + $0x141] sm:$0xff]
        %v7898 = vld [vmem:[%s1015 + $0x151] sm:$0xff]
        %v7899 = vld [vmem:[%s1015 + $0x159] sm:$0xff]
        %v7900 = vld [vmem:[%s1015 + $0x169] sm:$0xff]
        %v7901 = vld [vmem:[%s1015 + $0x171] sm:$0xff]
        %v7902 = vmax.f32 %v7838, %v7870
        %v7903 = vmax.f32 %v7839, %v7871
        %v7904 = vmax.f32 %v7840, %v7872
        %v7905 = vmax.f32 %v7841, %v7873
        %v7906 = vmax.f32 %v7842, %v7874
        %v7907 = vmax.f32 %v7843, %v7875
        %v7908 = vmax.f32 %v7844, %v7876
        %v7909 = vmax.f32 %v7845, %v7877
        %v7910 = vmax.f32 %v7846, %v7878
        %v7911 = vmax.f32 %v7847, %v7879
        %v7912 = vmax.f32 %v7848, %v7880
        %v7913 = vmax.f32 %v7849, %v7881
        %v7914 = vmax.f32 %v7850, %v7882
        %v7915 = vmax.f32 %v7851, %v7883
        %v7916 = vmax.f32 %v7852, %v7884
        %v7917 = vmax.f32 %v7853, %v7885
        %v7918 = vmax.f32 %v7854, %v7886
        %v7919 = vmax.f32 %v7855, %v7887
        %v7920 = vmax.f32 %v7856, %v7888
        %v7921 = vmax.f32 %v7857, %v7889
        %v7922 = vmax.f32 %v7858, %v7890
        %v7923 = vmax.f32 %v7859, %v7891
        %v7924 = vmax.f32 %v7860, %v7892
        %v7925 = vmax.f32 %v7861, %v7893
        %v7926 = vmax.f32 %v7862, %v7894
        %v7927 = vmax.f32 %v7863, %v7895
        %v7928 = vmax.f32 %v7864, %v7896
        %v7929 = vmax.f32 %v7865, %v7897
        %v7930 = vmax.f32 %v7866, %v7898
        %v7931 = vmax.f32 %v7867, %v7899
        %v7932 = vmax.f32 %v7868, %v7900
        %v7933 = vmax.f32 %v7869, %v7901
        %v7934 = vld [vmem:[%s1015 + $0x2] sm:$0xff]
        %v7935 = vld [vmem:[%s1015 + $0xa] sm:$0xff]
        %v7936 = vld [vmem:[%s1015 + $0x1a] sm:$0xff]
        %v7937 = vld [vmem:[%s1015 + $0x22] sm:$0xff]
        %v7938 = vld [vmem:[%s1015 + $0x32] sm:$0xff]
        %v7939 = vld [vmem:[%s1015 + $0x3a] sm:$0xff]
        %v7940 = vld [vmem:[%s1015 + $0x4a] sm:$0xff]
        %v7941 = vld [vmem:[%s1015 + $0x52] sm:$0xff]
        %v7942 = vld [vmem:[%s1015 + $0x62] sm:$0xff]
        %v7943 = vld [vmem:[%s1015 + $0x6a] sm:$0xff]
        %v7944 = vld [vmem:[%s1015 + $0x7a] sm:$0xff]
        %v7945 = vld [vmem:[%s1015 + $0x82] sm:$0xff]
        %v7946 = vld [vmem:[%s1015 + $0x92] sm:$0xff]
        %v7947 = vld [vmem:[%s1015 + $0x9a] sm:$0xff]
        %v7948 = vld [vmem:[%s1015 + $0xaa] sm:$0xff]
        %v7949 = vld [vmem:[%s1015 + $0xb2] sm:$0xff]
        %v7950 = vld [vmem:[%s1015 + $0xc2] sm:$0xff]
        %v7951 = vld [vmem:[%s1015 + $0xca] sm:$0xff]
        %v7952 = vld [vmem:[%s1015 + $0xda] sm:$0xff]
        %v7953 = vld [vmem:[%s1015 + $0xe2] sm:$0xff]
        %v7954 = vld [vmem:[%s1015 + $0xf2] sm:$0xff]
        %v7955 = vld [vmem:[%s1015 + $0xfa] sm:$0xff]
        %v7956 = vld [vmem:[%s1015 + $0x10a] sm:$0xff]
        %v7957 = vld [vmem:[%s1015 + $0x112] sm:$0xff]
        %v7958 = vld [vmem:[%s1015 + $0x122] sm:$0xff]
        %v7959 = vld [vmem:[%s1015 + $0x12a] sm:$0xff]
        %v7960 = vld [vmem:[%s1015 + $0x13a] sm:$0xff]
        %v7961 = vld [vmem:[%s1015 + $0x142] sm:$0xff]
        %v7962 = vld [vmem:[%s1015 + $0x152] sm:$0xff]
        %v7963 = vld [vmem:[%s1015 + $0x15a] sm:$0xff]
        %v7964 = vld [vmem:[%s1015 + $0x16a] sm:$0xff]
        %v7965 = vld [vmem:[%s1015 + $0x172] sm:$0xff]
        %v7966 = vmax.f32 %v7902, %v7934
        %v7967 = vmax.f32 %v7903, %v7935
        %v7968 = vmax.f32 %v7904, %v7936
        %v7969 = vmax.f32 %v7905, %v7937
        %v7970 = vmax.f32 %v7906, %v7938
        %v7971 = vmax.f32 %v7907, %v7939
        %v7972 = vmax.f32 %v7908, %v7940
        %v7973 = vmax.f32 %v7909, %v7941
        %v7974 = vmax.f32 %v7910, %v7942
        %v7975 = vmax.f32 %v7911, %v7943
        %v7976 = vmax.f32 %v7912, %v7944
        %v7977 = vmax.f32 %v7913, %v7945
        %v7978 = vmax.f32 %v7914, %v7946
        %v7979 = vmax.f32 %v7915, %v7947
        %v7980 = vmax.f32 %v7916, %v7948
        %v7981 = vmax.f32 %v7917, %v7949
        %v7982 = vmax.f32 %v7918, %v7950
        %v7983 = vmax.f32 %v7919, %v7951
        %v7984 = vmax.f32 %v7920, %v7952
        %v7985 = vmax.f32 %v7921, %v7953
        %v7986 = vmax.f32 %v7922, %v7954
        %v7987 = vmax.f32 %v7923, %v7955
        %v7988 = vmax.f32 %v7924, %v7956
        %v7989 = vmax.f32 %v7925, %v7957
        %v7990 = vmax.f32 %v7926, %v7958
        %v7991 = vmax.f32 %v7927, %v7959
        %v7992 = vmax.f32 %v7928, %v7960
        %v7993 = vmax.f32 %v7929, %v7961
        %v7994 = vmax.f32 %v7930, %v7962
        %v7995 = vmax.f32 %v7931, %v7963
        %v7996 = vmax.f32 %v7932, %v7964
        %v7997 = vmax.f32 %v7933, %v7965
        %s7998 = scalar_lea.vmem [#allocation4], 48
        %v7999 = vld [vmem:[%s7998] sm:$0xff]
        %v8000 = vld [vmem:[%s7998 + $0x8] sm:$0xff]
        %v8001 = vld [vmem:[%s7998 + $0x18] sm:$0xff]
        %v8002 = vld [vmem:[%s7998 + $0x20] sm:$0xff]
        %v8003 = vld [vmem:[%s7998 + $0x30] sm:$0xff]
        %v8004 = vld [vmem:[%s7998 + $0x38] sm:$0xff]
        %v8005 = vld [vmem:[%s7998 + $0x48] sm:$0xff]
        %v8006 = vld [vmem:[%s7998 + $0x50] sm:$0xff]
        %v8007 = vld [vmem:[%s7998 + $0x60] sm:$0xff]
        %v8008 = vld [vmem:[%s7998 + $0x68] sm:$0xff]
        %v8009 = vld [vmem:[%s7998 + $0x78] sm:$0xff]
        %v8010 = vld [vmem:[%s7998 + $0x80] sm:$0xff]
        %v8011 = vld [vmem:[%s7998 + $0x90] sm:$0xff]
        %v8012 = vld [vmem:[%s7998 + $0x98] sm:$0xff]
        %v8013 = vld [vmem:[%s7998 + $0xa8] sm:$0xff]
        %v8014 = vld [vmem:[%s7998 + $0xb0] sm:$0xff]
        %v8015 = vld [vmem:[%s7998 + $0xc0] sm:$0xff]
        %v8016 = vld [vmem:[%s7998 + $0xc8] sm:$0xff]
        %v8017 = vld [vmem:[%s7998 + $0xd8] sm:$0xff]
        %v8018 = vld [vmem:[%s7998 + $0xe0] sm:$0xff]
        %v8019 = vld [vmem:[%s7998 + $0xf0] sm:$0xff]
        %v8020 = vld [vmem:[%s7998 + $0xf8] sm:$0xff]
        %v8021 = vld [vmem:[%s7998 + $0x108] sm:$0xff]
        %v8022 = vld [vmem:[%s7998 + $0x110] sm:$0xff]
        %v8023 = vld [vmem:[%s7998 + $0x120] sm:$0xff]
        %v8024 = vld [vmem:[%s7998 + $0x128] sm:$0xff]
        %v8025 = vld [vmem:[%s7998 + $0x138] sm:$0xff]
        %v8026 = vld [vmem:[%s7998 + $0x140] sm:$0xff]
        %v8027 = vld [vmem:[%s7998 + $0x150] sm:$0xff]
        %v8028 = vld [vmem:[%s7998 + $0x158] sm:$0xff]
        %v8029 = vld [vmem:[%s7998 + $0x168] sm:$0xff]
        %v8030 = vld [vmem:[%s7998 + $0x170] sm:$0xff]
        %v8031 = vmax.f32 %v7966, %v7999
        %v8032 = vmax.f32 %v7967, %v8000
        %v8033 = vmax.f32 %v7968, %v8001
        %v8034 = vmax.f32 %v7969, %v8002
        %v8035 = vmax.f32 %v7970, %v8003
        %v8036 = vmax.f32 %v7971, %v8004
        %v8037 = vmax.f32 %v7972, %v8005
        %v8038 = vmax.f32 %v7973, %v8006
        %v8039 = vmax.f32 %v7974, %v8007
        %v8040 = vmax.f32 %v7975, %v8008
        %v8041 = vmax.f32 %v7976, %v8009
        %v8042 = vmax.f32 %v7977, %v8010
        %v8043 = vmax.f32 %v7978, %v8011
        %v8044 = vmax.f32 %v7979, %v8012
        %v8045 = vmax.f32 %v7980, %v8013
        %v8046 = vmax.f32 %v7981, %v8014
        %v8047 = vmax.f32 %v7982, %v8015
        %v8048 = vmax.f32 %v7983, %v8016
        %v8049 = vmax.f32 %v7984, %v8017
        %v8050 = vmax.f32 %v7985, %v8018
        %v8051 = vmax.f32 %v7986, %v8019
        %v8052 = vmax.f32 %v7987, %v8020
        %v8053 = vmax.f32 %v7988, %v8021
        %v8054 = vmax.f32 %v7989, %v8022
        %v8055 = vmax.f32 %v7990, %v8023
        %v8056 = vmax.f32 %v7991, %v8024
        %v8057 = vmax.f32 %v7992, %v8025
        %v8058 = vmax.f32 %v7993, %v8026
        %v8059 = vmax.f32 %v7994, %v8027
        %v8060 = vmax.f32 %v7995, %v8028
        %v8061 = vmax.f32 %v7996, %v8029
        %v8062 = vmax.f32 %v7997, %v8030
        %v8063 = vld [vmem:[%s7998 + $0x1] sm:$0xff]
        %v8064 = vld [vmem:[%s7998 + $0x9] sm:$0xff]
        %v8065 = vld [vmem:[%s7998 + $0x19] sm:$0xff]
        %v8066 = vld [vmem:[%s7998 + $0x21] sm:$0xff]
        %v8067 = vld [vmem:[%s7998 + $0x31] sm:$0xff]
        %v8068 = vld [vmem:[%s7998 + $0x39] sm:$0xff]
        %v8069 = vld [vmem:[%s7998 + $0x49] sm:$0xff]
        %v8070 = vld [vmem:[%s7998 + $0x51] sm:$0xff]
        %v8071 = vld [vmem:[%s7998 + $0x61] sm:$0xff]
        %v8072 = vld [vmem:[%s7998 + $0x69] sm:$0xff]
        %v8073 = vld [vmem:[%s7998 + $0x79] sm:$0xff]
        %v8074 = vld [vmem:[%s7998 + $0x81] sm:$0xff]
        %v8075 = vld [vmem:[%s7998 + $0x91] sm:$0xff]
        %v8076 = vld [vmem:[%s7998 + $0x99] sm:$0xff]
        %v8077 = vld [vmem:[%s7998 + $0xa9] sm:$0xff]
        %v8078 = vld [vmem:[%s7998 + $0xb1] sm:$0xff]
        %v8079 = vld [vmem:[%s7998 + $0xc1] sm:$0xff]
        %v8080 = vld [vmem:[%s7998 + $0xc9] sm:$0xff]
        %v8081 = vld [vmem:[%s7998 + $0xd9] sm:$0xff]
        %v8082 = vld [vmem:[%s7998 + $0xe1] sm:$0xff]
        %v8083 = vld [vmem:[%s7998 + $0xf1] sm:$0xff]
        %v8084 = vld [vmem:[%s7998 + $0xf9] sm:$0xff]
        %v8085 = vld [vmem:[%s7998 + $0x109] sm:$0xff]
        %v8086 = vld [vmem:[%s7998 + $0x111] sm:$0xff]
        %v8087 = vld [vmem:[%s7998 + $0x121] sm:$0xff]
        %v8088 = vld [vmem:[%s7998 + $0x129] sm:$0xff]
        %v8089 = vld [vmem:[%s7998 + $0x139] sm:$0xff]
        %v8090 = vld [vmem:[%s7998 + $0x141] sm:$0xff]
        %v8091 = vld [vmem:[%s7998 + $0x151] sm:$0xff]
        %v8092 = vld [vmem:[%s7998 + $0x159] sm:$0xff]
        %v8093 = vld [vmem:[%s7998 + $0x169] sm:$0xff]
        %v8094 = vld [vmem:[%s7998 + $0x171] sm:$0xff]
        %v8095 = vmax.f32 %v8031, %v8063
        %v8096 = vmax.f32 %v8032, %v8064
        %v8097 = vmax.f32 %v8033, %v8065
        %v8098 = vmax.f32 %v8034, %v8066
        %v8099 = vmax.f32 %v8035, %v8067
        %v8100 = vmax.f32 %v8036, %v8068
        %v8101 = vmax.f32 %v8037, %v8069
        %v8102 = vmax.f32 %v8038, %v8070
        %v8103 = vmax.f32 %v8039, %v8071
        %v8104 = vmax.f32 %v8040, %v8072
        %v8105 = vmax.f32 %v8041, %v8073
        %v8106 = vmax.f32 %v8042, %v8074
        %v8107 = vmax.f32 %v8043, %v8075
        %v8108 = vmax.f32 %v8044, %v8076
        %v8109 = vmax.f32 %v8045, %v8077
        %v8110 = vmax.f32 %v8046, %v8078
        %v8111 = vmax.f32 %v8047, %v8079
        %v8112 = vmax.f32 %v8048, %v8080
        %v8113 = vmax.f32 %v8049, %v8081
        %v8114 = vmax.f32 %v8050, %v8082
        %v8115 = vmax.f32 %v8051, %v8083
        %v8116 = vmax.f32 %v8052, %v8084
        %v8117 = vmax.f32 %v8053, %v8085
        %v8118 = vmax.f32 %v8054, %v8086
        %v8119 = vmax.f32 %v8055, %v8087
        %v8120 = vmax.f32 %v8056, %v8088
        %v8121 = vmax.f32 %v8057, %v8089
        %v8122 = vmax.f32 %v8058, %v8090
        %v8123 = vmax.f32 %v8059, %v8091
        %v8124 = vmax.f32 %v8060, %v8092
        %v8125 = vmax.f32 %v8061, %v8093
        %v8126 = vmax.f32 %v8062, %v8094
        %v8127 = vld [vmem:[%s7998 + $0x2] sm:$0xff]
        %v8128 = vld [vmem:[%s7998 + $0xa] sm:$0xff]
        %v8129 = vld [vmem:[%s7998 + $0x1a] sm:$0xff]
        %v8130 = vld [vmem:[%s7998 + $0x22] sm:$0xff]
        %v8131 = vld [vmem:[%s7998 + $0x32] sm:$0xff]
        %v8132 = vld [vmem:[%s7998 + $0x3a] sm:$0xff]
        %v8133 = vld [vmem:[%s7998 + $0x4a] sm:$0xff]
        %v8134 = vld [vmem:[%s7998 + $0x52] sm:$0xff]
        %v8135 = vld [vmem:[%s7998 + $0x62] sm:$0xff]
        %v8136 = vld [vmem:[%s7998 + $0x6a] sm:$0xff]
        %v8137 = vld [vmem:[%s7998 + $0x7a] sm:$0xff]
        %v8138 = vld [vmem:[%s7998 + $0x82] sm:$0xff]
        %v8139 = vld [vmem:[%s7998 + $0x92] sm:$0xff]
        %v8140 = vld [vmem:[%s7998 + $0x9a] sm:$0xff]
        %v8141 = vld [vmem:[%s7998 + $0xaa] sm:$0xff]
        %v8142 = vld [vmem:[%s7998 + $0xb2] sm:$0xff]
        %v8143 = vld [vmem:[%s7998 + $0xc2] sm:$0xff]
        %v8144 = vld [vmem:[%s7998 + $0xca] sm:$0xff]
        %v8145 = vld [vmem:[%s7998 + $0xda] sm:$0xff]
        %v8146 = vld [vmem:[%s7998 + $0xe2] sm:$0xff]
        %v8147 = vld [vmem:[%s7998 + $0xf2] sm:$0xff]
        %v8148 = vld [vmem:[%s7998 + $0xfa] sm:$0xff]
        %v8149 = vld [vmem:[%s7998 + $0x10a] sm:$0xff]
        %v8150 = vld [vmem:[%s7998 + $0x112] sm:$0xff]
        %v8151 = vld [vmem:[%s7998 + $0x122] sm:$0xff]
        %v8152 = vld [vmem:[%s7998 + $0x12a] sm:$0xff]
        %v8153 = vld [vmem:[%s7998 + $0x13a] sm:$0xff]
        %v8154 = vld [vmem:[%s7998 + $0x142] sm:$0xff]
        %v8155 = vld [vmem:[%s7998 + $0x152] sm:$0xff]
        %v8156 = vld [vmem:[%s7998 + $0x15a] sm:$0xff]
        %v8157 = vld [vmem:[%s7998 + $0x16a] sm:$0xff]
        %v8158 = vld [vmem:[%s7998 + $0x172] sm:$0xff]
        %v8159 = vmax.f32 %v8095, %v8127
        %v8160 = vmax.f32 %v8096, %v8128
        %v8161 = vmax.f32 %v8097, %v8129
        %v8162 = vmax.f32 %v8098, %v8130
        %v8163 = vmax.f32 %v8099, %v8131
        %v8164 = vmax.f32 %v8100, %v8132
        %v8165 = vmax.f32 %v8101, %v8133
        %v8166 = vmax.f32 %v8102, %v8134
        %v8167 = vmax.f32 %v8103, %v8135
        %v8168 = vmax.f32 %v8104, %v8136
        %v8169 = vmax.f32 %v8105, %v8137
        %v8170 = vmax.f32 %v8106, %v8138
        %v8171 = vmax.f32 %v8107, %v8139
        %v8172 = vmax.f32 %v8108, %v8140
        %v8173 = vmax.f32 %v8109, %v8141
        %v8174 = vmax.f32 %v8110, %v8142
        %v8175 = vmax.f32 %v8111, %v8143
        %v8176 = vmax.f32 %v8112, %v8144
        %v8177 = vmax.f32 %v8113, %v8145
        %v8178 = vmax.f32 %v8114, %v8146
        %v8179 = vmax.f32 %v8115, %v8147
        %v8180 = vmax.f32 %v8116, %v8148
        %v8181 = vmax.f32 %v8117, %v8149
        %v8182 = vmax.f32 %v8118, %v8150
        %v8183 = vmax.f32 %v8119, %v8151
        %v8184 = vmax.f32 %v8120, %v8152
        %v8185 = vmax.f32 %v8121, %v8153
        %v8186 = vmax.f32 %v8122, %v8154
        %v8187 = vmax.f32 %v8123, %v8155
        %v8188 = vmax.f32 %v8124, %v8156
        %v8189 = vmax.f32 %v8125, %v8157
        %v8190 = vmax.f32 %v8126, %v8158
        %8223 = vrot.lane.b32.xlu0 %v8159, 90
        %v8224 = vpop.permute.xlu0 %8223
        %8225 = vrot.lane.b32.xlu0 %v8160, 90
        %v8226 = vpop.permute.xlu0 %8225
        %8227 = vrot.lane.b32.xlu0 %v8161, 90
        %v8228 = vpop.permute.xlu0 %8227
        %8229 = vrot.lane.b32.xlu0 %v8162, 90
        %v8230 = vpop.permute.xlu0 %8229
        %8231 = vrot.lane.b32.xlu0 %v8163, 90
        %v8232 = vpop.permute.xlu0 %8231
        %8233 = vrot.lane.b32.xlu0 %v8164, 90
        %v8234 = vpop.permute.xlu0 %8233
        %8235 = vrot.lane.b32.xlu0 %v8165, 90
        %v8236 = vpop.permute.xlu0 %8235
        %8237 = vrot.lane.b32.xlu0 %v8166, 90
        %v8238 = vpop.permute.xlu0 %8237
        %8239 = vrot.lane.b32.xlu0 %v8167, 90
        %v8240 = vpop.permute.xlu0 %8239
        %8241 = vrot.lane.b32.xlu0 %v8168, 90
        %v8242 = vpop.permute.xlu0 %8241
        %8243 = vrot.lane.b32.xlu0 %v8169, 90
        %v8244 = vpop.permute.xlu0 %8243
        %8245 = vrot.lane.b32.xlu0 %v8170, 90
        %v8246 = vpop.permute.xlu0 %8245
        %8247 = vrot.lane.b32.xlu0 %v8171, 90
        %v8248 = vpop.permute.xlu0 %8247
        %8249 = vrot.lane.b32.xlu0 %v8172, 90
        %v8250 = vpop.permute.xlu0 %8249
        %8251 = vrot.lane.b32.xlu0 %v8173, 90
        %v8252 = vpop.permute.xlu0 %8251
        %8253 = vrot.lane.b32.xlu0 %v8174, 90
        %v8254 = vpop.permute.xlu0 %8253
        %8255 = vrot.lane.b32.xlu0 %v8175, 90
        %v8256 = vpop.permute.xlu0 %8255
        %8257 = vrot.lane.b32.xlu0 %v8176, 90
        %v8258 = vpop.permute.xlu0 %8257
        %8259 = vrot.lane.b32.xlu0 %v8177, 90
        %v8260 = vpop.permute.xlu0 %8259
        %8261 = vrot.lane.b32.xlu0 %v8178, 90
        %v8262 = vpop.permute.xlu0 %8261
        %8263 = vrot.lane.b32.xlu0 %v8179, 90
        %v8264 = vpop.permute.xlu0 %8263
        %8265 = vrot.lane.b32.xlu0 %v8180, 90
        %v8266 = vpop.permute.xlu0 %8265
        %8267 = vrot.lane.b32.xlu0 %v8181, 90
        %v8268 = vpop.permute.xlu0 %8267
        %8269 = vrot.lane.b32.xlu0 %v8182, 90
        %v8270 = vpop.permute.xlu0 %8269
        %8271 = vrot.lane.b32.xlu0 %v8183, 90
        %v8272 = vpop.permute.xlu0 %8271
        %8273 = vrot.lane.b32.xlu0 %v8184, 90
        %v8274 = vpop.permute.xlu0 %8273
        %8275 = vrot.lane.b32.xlu0 %v8185, 90
        %v8276 = vpop.permute.xlu0 %8275
        %8277 = vrot.lane.b32.xlu0 %v8186, 90
        %v8278 = vpop.permute.xlu0 %8277
        %8279 = vrot.lane.b32.xlu0 %v8187, 90
        %v8280 = vpop.permute.xlu0 %8279
        %8281 = vrot.lane.b32.xlu0 %v8188, 90
        %v8282 = vpop.permute.xlu0 %8281
        %8283 = vrot.lane.b32.xlu0 %v8189, 90
        %v8284 = vpop.permute.xlu0 %8283
        %8285 = vrot.lane.b32.xlu0 %v8190, 90
        %v8286 = vpop.permute.xlu0 %8285
        %vm8319 = vcmask 769744
        %8320 = vst.msk [vmem:[#allocation5] sm:$0xff] %vm8319, %v8224
        %8321 = vst.msk [vmem:[#allocation5 + $0x8] sm:$0xff] %vm8319, %v8226
        %8322 = vst.msk [vmem:[#allocation5 + $0x10] sm:$0xff] %vm8319, %v8228
        %8323 = vst.msk [vmem:[#allocation5 + $0x18] sm:$0xff] %vm8319, %v8230
        %8324 = vst.msk [vmem:[#allocation5 + $0x20] sm:$0xff] %vm8319, %v8232
        %8325 = vst.msk [vmem:[#allocation5 + $0x28] sm:$0xff] %vm8319, %v8234
        %8326 = vst.msk [vmem:[#allocation5 + $0x30] sm:$0xff] %vm8319, %v8236
        %8327 = vst.msk [vmem:[#allocation5 + $0x38] sm:$0xff] %vm8319, %v8238
        %8328 = vst.msk [vmem:[#allocation5 + $0x40] sm:$0xff] %vm8319, %v8240
        %8329 = vst.msk [vmem:[#allocation5 + $0x48] sm:$0xff] %vm8319, %v8242
        %8330 = vst.msk [vmem:[#allocation5 + $0x50] sm:$0xff] %vm8319, %v8244
        %8331 = vst.msk [vmem:[#allocation5 + $0x58] sm:$0xff] %vm8319, %v8246
        %8332 = vst.msk [vmem:[#allocation5 + $0x60] sm:$0xff] %vm8319, %v8248
        %8333 = vst.msk [vmem:[#allocation5 + $0x68] sm:$0xff] %vm8319, %v8250
        %8334 = vst.msk [vmem:[#allocation5 + $0x70] sm:$0xff] %vm8319, %v8252
        %8335 = vst.msk [vmem:[#allocation5 + $0x78] sm:$0xff] %vm8319, %v8254
        %8336 = vst.msk [vmem:[#allocation5 + $0x80] sm:$0xff] %vm8319, %v8256
        %8337 = vst.msk [vmem:[#allocation5 + $0x88] sm:$0xff] %vm8319, %v8258
        %8338 = vst.msk [vmem:[#allocation5 + $0x90] sm:$0xff] %vm8319, %v8260
        %8339 = vst.msk [vmem:[#allocation5 + $0x98] sm:$0xff] %vm8319, %v8262
        %8340 = vst.msk [vmem:[#allocation5 + $0xa0] sm:$0xff] %vm8319, %v8264
        %8341 = vst.msk [vmem:[#allocation5 + $0xa8] sm:$0xff] %vm8319, %v8266
        %8342 = vst.msk [vmem:[#allocation5 + $0xb0] sm:$0xff] %vm8319, %v8268
        %8343 = vst.msk [vmem:[#allocation5 + $0xb8] sm:$0xff] %vm8319, %v8270
        %8344 = vst.msk [vmem:[#allocation5 + $0xc0] sm:$0xff] %vm8319, %v8272
        %8345 = vst.msk [vmem:[#allocation5 + $0xc8] sm:$0xff] %vm8319, %v8274
        %8346 = vst.msk [vmem:[#allocation5 + $0xd0] sm:$0xff] %vm8319, %v8276
        %8347 = vst.msk [vmem:[#allocation5 + $0xd8] sm:$0xff] %vm8319, %v8278
        %8348 = vst.msk [vmem:[#allocation5 + $0xe0] sm:$0xff] %vm8319, %v8280
        %8349 = vst.msk [vmem:[#allocation5 + $0xe8] sm:$0xff] %vm8319, %v8282
        %8350 = vst.msk [vmem:[#allocation5 + $0xf0] sm:$0xff] %vm8319, %v8284
        %8351 = vst.msk [vmem:[#allocation5 + $0xf8] sm:$0xff] %vm8319, %v8286
        %v8352 = vld [vmem:[#allocation5] sm:$0xff]
        %v8353 = vld [vmem:[#allocation5 + $0x8] sm:$0xff]
        %v8354 = vld [vmem:[#allocation5 + $0x10] sm:$0xff]
        %v8355 = vld [vmem:[#allocation5 + $0x18] sm:$0xff]
        %v8356 = vld [vmem:[#allocation5 + $0x20] sm:$0xff]
        %v8357 = vld [vmem:[#allocation5 + $0x28] sm:$0xff]
        %v8358 = vld [vmem:[#allocation5 + $0x30] sm:$0xff]
        %v8359 = vld [vmem:[#allocation5 + $0x38] sm:$0xff]
        %v8360 = vld [vmem:[#allocation5 + $0x40] sm:$0xff]
        %v8361 = vld [vmem:[#allocation5 + $0x48] sm:$0xff]
        %v8362 = vld [vmem:[#allocation5 + $0x50] sm:$0xff]
        %v8363 = vld [vmem:[#allocation5 + $0x58] sm:$0xff]
        %v8364 = vld [vmem:[#allocation5 + $0x60] sm:$0xff]
        %v8365 = vld [vmem:[#allocation5 + $0x68] sm:$0xff]
        %v8366 = vld [vmem:[#allocation5 + $0x70] sm:$0xff]
        %v8367 = vld [vmem:[#allocation5 + $0x78] sm:$0xff]
        %v8368 = vld [vmem:[#allocation5 + $0x80] sm:$0xff]
        %v8369 = vld [vmem:[#allocation5 + $0x88] sm:$0xff]
        %v8370 = vld [vmem:[#allocation5 + $0x90] sm:$0xff]
        %v8371 = vld [vmem:[#allocation5 + $0x98] sm:$0xff]
        %v8372 = vld [vmem:[#allocation5 + $0xa0] sm:$0xff]
        %v8373 = vld [vmem:[#allocation5 + $0xa8] sm:$0xff]
        %v8374 = vld [vmem:[#allocation5 + $0xb0] sm:$0xff]
        %v8375 = vld [vmem:[#allocation5 + $0xb8] sm:$0xff]
        %v8376 = vld [vmem:[#allocation5 + $0xc0] sm:$0xff]
        %v8377 = vld [vmem:[#allocation5 + $0xc8] sm:$0xff]
        %v8378 = vld [vmem:[#allocation5 + $0xd0] sm:$0xff]
        %v8379 = vld [vmem:[#allocation5 + $0xd8] sm:$0xff]
        %v8380 = vld [vmem:[#allocation5 + $0xe0] sm:$0xff]
        %v8381 = vld [vmem:[#allocation5 + $0xe8] sm:$0xff]
        %v8382 = vld [vmem:[#allocation5 + $0xf0] sm:$0xff]
        %v8383 = vld [vmem:[#allocation5 + $0xf8] sm:$0xff]
        %v8384 = vld [vmem:[%s3] sm:$0xff]
        %v8385 = vld [vmem:[%s3 + $0x8] sm:$0xff]
        %v8386 = vld [vmem:[%s3 + $0x10] sm:$0xff]
        %v8387 = vld [vmem:[%s3 + $0x18] sm:$0xff]
        %v8388 = vld [vmem:[%s3 + $0x20] sm:$0xff]
        %v8389 = vld [vmem:[%s3 + $0x28] sm:$0xff]
        %v8390 = vld [vmem:[%s3 + $0x30] sm:$0xff]
        %v8391 = vld [vmem:[%s3 + $0x38] sm:$0xff]
        %v8392 = vld [vmem:[%s3 + $0x40] sm:$0xff]
        %v8393 = vld [vmem:[%s3 + $0x48] sm:$0xff]
        %v8394 = vld [vmem:[%s3 + $0x50] sm:$0xff]
        %v8395 = vld [vmem:[%s3 + $0x58] sm:$0x3f]
        %v8396 = vld [vmem:[%s4] sm:$0x1]
        %v8398 = vlaneseq
        %v8399 = vshrl.u32 %v8398, 7
        %v8400 = vsub.s32 0, %v8399
        %v8401 = vrot.slane %v8396, %v8400
        %vm8403 = vcmask 769024
        %v8405 = vsel %vm8403, %v8352, 0
        %v8408 = vsel %vm8403, %v8353, 0
        %v8411 = vsel %vm8403, %v8354, 0
        %v8414 = vsel %vm8403, %v8355, 0
        %v8417 = vsel %vm8403, %v8356, 0
        %v8420 = vsel %vm8403, %v8357, 0
        %v8423 = vsel %vm8403, %v8358, 0
        %v8426 = vsel %vm8403, %v8359, 0
        %v8429 = vsel %vm8403, %v8360, 0
        %v8432 = vsel %vm8403, %v8361, 0
        %v8435 = vsel %vm8403, %v8362, 0
        %v8438 = vsel %vm8403, %v8363, 0
        %v8441 = vsel %vm8403, %v8364, 0
        %v8444 = vsel %vm8403, %v8365, 0
        %v8447 = vsel %vm8403, %v8366, 0
        %v8450 = vsel %vm8403, %v8367, 0
        %v8453 = vsel %vm8403, %v8368, 0
        %v8456 = vsel %vm8403, %v8369, 0
        %v8459 = vsel %vm8403, %v8370, 0
        %v8462 = vsel %vm8403, %v8371, 0
        %v8465 = vsel %vm8403, %v8372, 0
        %v8468 = vsel %vm8403, %v8373, 0
        %v8471 = vsel %vm8403, %v8374, 0
        %v8474 = vsel %vm8403, %v8375, 0
        %v8477 = vsel %vm8403, %v8376, 0
        %v8480 = vsel %vm8403, %v8377, 0
        %v8483 = vsel %vm8403, %v8378, 0
        %v8486 = vsel %vm8403, %v8379, 0
        %v8489 = vsel %vm8403, %v8380, 0
        %v8492 = vsel %vm8403, %v8381, 0
        %v8495 = vsel %vm8403, %v8382, 0
        %v8498 = vsel %vm8403, %v8383, 0
        %vm8500 = vcmask 1045504
        %v8502 = vsel %vm8500, %v8395, 0
        %8504 = vmatprep.subr.mxu0 0.0
        %8505 = vmatpush1.msra.mxu0 %v8384
        %8506 = vmatprep.subr.mxu0 0.0
        %8507 = vmatpush1.msra.mxu0 %v8385
        %8508 = vmatprep.subr.mxu0 0.0
        %8509 = vmatpush1.msra.mxu0 %v8386
        %8510 = vmatprep.subr.mxu0 0.0
        %8511 = vmatpush1.msra.mxu0 %v8387
        %8512 = vmatprep.subr.mxu0 0.0
        %8513 = vmatpush1.msra.mxu0 %v8388
        %8514 = vmatprep.subr.mxu0 0.0
        %8515 = vmatpush1.msra.mxu0 %v8389
        %8516 = vmatprep.subr.mxu0 0.0
        %8517 = vmatpush1.msra.mxu0 %v8390
        %8518 = vmatprep.subr.mxu0 0.0
        %8519 = vmatpush1.msra.mxu0 %v8391
        %8520 = vmatprep.subr.mxu0 0.0
        %8521 = vmatpush1.msra.mxu0 %v8392
        %8522 = vmatprep.subr.mxu0 0.0
        %8523 = vmatpush1.msra.mxu0 %v8393
        %8524 = vmatprep.subr.mxu0 0.0
        %8525 = vmatpush1.msra.mxu0 %v8394
        %8526 = vmatprep.subr.mxu0 0.0
        %8527 = vmatpush1.msra.mxu0 %v8502
        %8528 = vmatprep.subr.mxu0 0.0
        %8529 = vmatpush1.msra.mxu0 0.0
        %8530 = vmatprep.subr.mxu0 0.0
        %8531 = vmatpush1.msra.mxu0 0.0
        %8532 = vmatprep.subr.mxu0 0.0
        %8533 = vmatpush1.msra.mxu0 0.0
        %8534 = vmatprep.subr.mxu0 0.0
        %8535 = vmatpush1.msra.mxu0 0.0
        %8536 = vmatprep.subr.mxu0 0.0
        %8537 = vmatpush1.msra.mxu0 0.0
        %8538 = vmatprep.subr.mxu0 0.0
        %8539 = vmatpush1.msra.mxu0 0.0
        %8540 = vmatprep.subr.mxu0 0.0
        %8541 = vmatpush1.msra.mxu0 0.0
        %8542 = vmatprep.subr.mxu0 0.0
        %8543 = vmatpush1.msra.mxu0 0.0
        %8544 = vmatprep.subr.mxu0 0.0
        %8545 = vmatpush1.msra.mxu0 0.0
        %8546 = vmatprep.subr.mxu0 0.0
        %8547 = vmatpush1.msra.mxu0 0.0
        %8548 = vmatprep.subr.mxu0 0.0
        %8549 = vmatpush1.msra.mxu0 0.0
        %8550 = vmatprep.subr.mxu0 0.0
        %8551 = vmatpush1.msra.mxu0 0.0
        %8552 = vmatprep.subr.mxu0 0.0
        %8553 = vmatpush1.msra.mxu0 0.0
        %8554 = vmatprep.subr.mxu0 0.0
        %8555 = vmatpush1.msra.mxu0 0.0
        %8556 = vmatprep.subr.mxu0 0.0
        %8557 = vmatpush1.msra.mxu0 0.0
        %8558 = vmatprep.subr.mxu0 0.0
        %8559 = vmatpush1.msra.mxu0 0.0
        %8560 = vmatprep.subr.mxu0 0.0
        %8561 = vmatpush1.msra.mxu0 0.0
        %8562 = vmatprep.subr.mxu0 0.0
        %8563 = vmatpush1.msra.mxu0 0.0
        %8564 = vmatprep.subr.mxu0 0.0
        %8565 = vmatpush1.msra.mxu0 0.0
        %8566 = vmatprep.subr.mxu0 0.0
        %8567 = vmatpush1.msra.mxu0 0.0
        %8568 = vmatprep.mubr.f32.mxu0 0.0
        %8569 = vmatmul.mubr.f32.gmra.mrb[0].mxu0 %v8405
        %v8570 = vpop.f32.mrb[0].mxu0
        %v8571 = vadd.f32 %v8401, %v8570
        %v8572 = vpop.f32.mrb[0].mxu0
        %8573 = vmatprep.mubr.f32.mxu0 0.0
        %8574 = vmatmul.mubr.f32.gmra.mrb[0].mxu0 %v8408
        %v8575 = vpop.f32.mrb[0].mxu0
        %v8576 = vadd.f32 %v8401, %v8575
        %v8577 = vpop.f32.mrb[0].mxu0
        %8578 = vmatprep.mubr.f32.mxu0 0.0
        %8579 = vmatmul.mubr.f32.gmra.mrb[0].mxu0 %v8411
        %v8580 = vpop.f32.mrb[0].mxu0
        %v8581 = vadd.f32 %v8401, %v8580
        %v8582 = vpop.f32.mrb[0].mxu0
        %8583 = vmatprep.mubr.f32.mxu0 0.0
        %8584 = vmatmul.mubr.f32.gmra.mrb[0].mxu0 %v8414
        %v8585 = vpop.f32.mrb[0].mxu0
        %v8586 = vadd.f32 %v8401, %v8585
        %v8587 = vpop.f32.mrb[0].mxu0
        %8588 = vmatprep.mubr.f32.mxu0 0.0
        %8589 = vmatmul.mubr.f32.gmra.mrb[0].mxu0 %v8417
        %v8590 = vpop.f32.mrb[0].mxu0
        %v8591 = vadd.f32 %v8401, %v8590
        %v8592 = vpop.f32.mrb[0].mxu0
        %8593 = vmatprep.mubr.f32.mxu0 0.0
        %8594 = vmatmul.mubr.f32.gmra.mrb[0].mxu0 %v8420
        %v8595 = vpop.f32.mrb[0].mxu0
        %v8596 = vadd.f32 %v8401, %v8595
        %v8597 = vpop.f32.mrb[0].mxu0
        %8598 = vmatprep.mubr.f32.mxu0 0.0
        %8599 = vmatmul.mubr.f32.gmra.mrb[0].mxu0 %v8423
        %v8600 = vpop.f32.mrb[0].mxu0
        %v8601 = vadd.f32 %v8401, %v8600
        %v8602 = vpop.f32.mrb[0].mxu0
        %8603 = vmatprep.mubr.f32.mxu0 0.0
        %8604 = vmatmul.mubr.f32.gmra.mrb[0].mxu0 %v8426
        %v8605 = vpop.f32.mrb[0].mxu0
        %v8606 = vadd.f32 %v8401, %v8605
        %v8607 = vpop.f32.mrb[0].mxu0
        %8608 = vmatprep.mubr.f32.mxu0 0.0
        %8609 = vmatmul.mubr.f32.gmra.mrb[0].mxu0 %v8429
        %v8610 = vpop.f32.mrb[0].mxu0
        %v8611 = vadd.f32 %v8401, %v8610
        %v8612 = vpop.f32.mrb[0].mxu0
        %8613 = vmatprep.mubr.f32.mxu0 0.0
        %8614 = vmatmul.mubr.f32.gmra.mrb[0].mxu0 %v8432
        %v8615 = vpop.f32.mrb[0].mxu0
        %v8616 = vadd.f32 %v8401, %v8615
        %v8617 = vpop.f32.mrb[0].mxu0
        %8618 = vmatprep.mubr.f32.mxu0 0.0
        %8619 = vmatmul.mubr.f32.gmra.mrb[0].mxu0 %v8435
        %v8620 = vpop.f32.mrb[0].mxu0
        %v8621 = vadd.f32 %v8401, %v8620
        %v8622 = vpop.f32.mrb[0].mxu0
        %8623 = vmatprep.mubr.f32.mxu0 0.0
        %8624 = vmatmul.mubr.f32.gmra.mrb[0].mxu0 %v8438
        %v8625 = vpop.f32.mrb[0].mxu0
        %v8626 = vadd.f32 %v8401, %v8625
        %v8627 = vpop.f32.mrb[0].mxu0
        %8628 = vmatprep.mubr.f32.mxu0 0.0
        %8629 = vmatmul.mubr.f32.gmra.mrb[0].mxu0 %v8441
        %v8630 = vpop.f32.mrb[0].mxu0
        %v8631 = vadd.f32 %v8401, %v8630
        %v8632 = vpop.f32.mrb[0].mxu0
        %8633 = vmatprep.mubr.f32.mxu0 0.0
        %8634 = vmatmul.mubr.f32.gmra.mrb[0].mxu0 %v8444
        %v8635 = vpop.f32.mrb[0].mxu0
        %v8636 = vadd.f32 %v8401, %v8635
        %v8637 = vpop.f32.mrb[0].mxu0
        %8638 = vmatprep.mubr.f32.mxu0 0.0
        %8639 = vmatmul.mubr.f32.gmra.mrb[0].mxu0 %v8447
        %v8640 = vpop.f32.mrb[0].mxu0
        %v8641 = vadd.f32 %v8401, %v8640
        %v8642 = vpop.f32.mrb[0].mxu0
        %8643 = vmatprep.mubr.f32.mxu0 0.0
        %8644 = vmatmul.mubr.f32.gmra.mrb[0].mxu0 %v8450
        %v8645 = vpop.f32.mrb[0].mxu0
        %v8646 = vadd.f32 %v8401, %v8645
        %v8647 = vpop.f32.mrb[0].mxu0
        %8648 = vmatprep.mubr.f32.mxu0 0.0
        %8649 = vmatmul.mubr.f32.gmra.mrb[0].mxu0 %v8453
        %v8650 = vpop.f32.mrb[0].mxu0
        %v8651 = vadd.f32 %v8401, %v8650
        %v8652 = vpop.f32.mrb[0].mxu0
        %8653 = vmatprep.mubr.f32.mxu0 0.0
        %8654 = vmatmul.mubr.f32.gmra.mrb[0].mxu0 %v8456
        %v8655 = vpop.f32.mrb[0].mxu0
        %v8656 = vadd.f32 %v8401, %v8655
        %v8657 = vpop.f32.mrb[0].mxu0
        %8658 = vmatprep.mubr.f32.mxu0 0.0
        %8659 = vmatmul.mubr.f32.gmra.mrb[0].mxu0 %v8459
        %v8660 = vpop.f32.mrb[0].mxu0
        %v8661 = vadd.f32 %v8401, %v8660
        %v8662 = vpop.f32.mrb[0].mxu0
        %8663 = vmatprep.mubr.f32.mxu0 0.0
        %8664 = vmatmul.mubr.f32.gmra.mrb[0].mxu0 %v8462
        %v8665 = vpop.f32.mrb[0].mxu0
        %v8666 = vadd.f32 %v8401, %v8665
        %v8667 = vpop.f32.mrb[0].mxu0
        %8668 = vmatprep.mubr.f32.mxu0 0.0
        %8669 = vmatmul.mubr.f32.gmra.mrb[0].mxu0 %v8465
        %v8670 = vpop.f32.mrb[0].mxu0
        %v8671 = vadd.f32 %v8401, %v8670
        %v8672 = vpop.f32.mrb[0].mxu0
        %8673 = vmatprep.mubr.f32.mxu0 0.0
        %8674 = vmatmul.mubr.f32.gmra.mrb[0].mxu0 %v8468
        %v8675 = vpop.f32.mrb[0].mxu0
        %v8676 = vadd.f32 %v8401, %v8675
        %v8677 = vpop.f32.mrb[0].mxu0
        %8678 = vmatprep.mubr.f32.mxu0 0.0
        %8679 = vmatmul.mubr.f32.gmra.mrb[0].mxu0 %v8471
        %v8680 = vpop.f32.mrb[0].mxu0
        %v8681 = vadd.f32 %v8401, %v8680
        %v8682 = vpop.f32.mrb[0].mxu0
        %8683 = vmatprep.mubr.f32.mxu0 0.0
        %8684 = vmatmul.mubr.f32.gmra.mrb[0].mxu0 %v8474
        %v8685 = vpop.f32.mrb[0].mxu0
        %v8686 = vadd.f32 %v8401, %v8685
        %v8687 = vpop.f32.mrb[0].mxu0
        %8688 = vmatprep.mubr.f32.mxu0 0.0
        %8689 = vmatmul.mubr.f32.gmra.mrb[0].mxu0 %v8477
        %v8690 = vpop.f32.mrb[0].mxu0
        %v8691 = vadd.f32 %v8401, %v8690
        %v8692 = vpop.f32.mrb[0].mxu0
        %8693 = vmatprep.mubr.f32.mxu0 0.0
        %8694 = vmatmul.mubr.f32.gmra.mrb[0].mxu0 %v8480
        %v8695 = vpop.f32.mrb[0].mxu0
        %v8696 = vadd.f32 %v8401, %v8695
        %v8697 = vpop.f32.mrb[0].mxu0
        %8698 = vmatprep.mubr.f32.mxu0 0.0
        %8699 = vmatmul.mubr.f32.gmra.mrb[0].mxu0 %v8483
        %v8700 = vpop.f32.mrb[0].mxu0
        %v8701 = vadd.f32 %v8401, %v8700
        %v8702 = vpop.f32.mrb[0].mxu0
        %8703 = vmatprep.mubr.f32.mxu0 0.0
        %8704 = vmatmul.mubr.f32.gmra.mrb[0].mxu0 %v8486
        %v8705 = vpop.f32.mrb[0].mxu0
        %v8706 = vadd.f32 %v8401, %v8705
        %v8707 = vpop.f32.mrb[0].mxu0
        %8708 = vmatprep.mubr.f32.mxu0 0.0
        %8709 = vmatmul.mubr.f32.gmra.mrb[0].mxu0 %v8489
        %v8710 = vpop.f32.mrb[0].mxu0
        %v8711 = vadd.f32 %v8401, %v8710
        %v8712 = vpop.f32.mrb[0].mxu0
        %8713 = vmatprep.mubr.f32.mxu0 0.0
        %8714 = vmatmul.mubr.f32.gmra.mrb[0].mxu0 %v8492
        %v8715 = vpop.f32.mrb[0].mxu0
        %v8716 = vadd.f32 %v8401, %v8715
        %v8717 = vpop.f32.mrb[0].mxu0
        %8718 = vmatprep.mubr.f32.mxu0 0.0
        %8719 = vmatmul.mubr.f32.gmra.mrb[0].mxu0 %v8495
        %v8720 = vpop.f32.mrb[0].mxu0
        %v8721 = vadd.f32 %v8401, %v8720
        %v8722 = vpop.f32.mrb[0].mxu0
        %8723 = vmatprep.mubr.f32.mxu0 0.0
        %8724 = vmatmul.mubr.f32.gmra.mrb[0].mxu0 %v8498
        %v8725 = vpop.f32.mrb[0].mxu0
        %v8726 = vadd.f32 %v8401, %v8725
        %v8727 = vpop.f32.mrb[0].mxu0
        %8728 = vdwg.mxu0
        %v8729 = vmax.f32 %v8571, 0.0
        %v8730 = vmax.f32 %v8576, 0.0
        %v8731 = vmax.f32 %v8581, 0.0
        %v8732 = vmax.f32 %v8586, 0.0
        %v8733 = vmax.f32 %v8591, 0.0
        %v8734 = vmax.f32 %v8596, 0.0
        %v8735 = vmax.f32 %v8601, 0.0
        %v8736 = vmax.f32 %v8606, 0.0
        %v8737 = vmax.f32 %v8611, 0.0
        %v8738 = vmax.f32 %v8616, 0.0
        %v8739 = vmax.f32 %v8621, 0.0
        %v8740 = vmax.f32 %v8626, 0.0
        %v8741 = vmax.f32 %v8631, 0.0
        %v8742 = vmax.f32 %v8636, 0.0
        %v8743 = vmax.f32 %v8641, 0.0
        %v8744 = vmax.f32 %v8646, 0.0
        %v8745 = vmax.f32 %v8651, 0.0
        %v8746 = vmax.f32 %v8656, 0.0
        %v8747 = vmax.f32 %v8661, 0.0
        %v8748 = vmax.f32 %v8666, 0.0
        %v8749 = vmax.f32 %v8671, 0.0
        %v8750 = vmax.f32 %v8676, 0.0
        %v8751 = vmax.f32 %v8681, 0.0
        %v8752 = vmax.f32 %v8686, 0.0
        %v8753 = vmax.f32 %v8691, 0.0
        %v8754 = vmax.f32 %v8696, 0.0
        %v8755 = vmax.f32 %v8701, 0.0
        %v8756 = vmax.f32 %v8706, 0.0
        %v8757 = vmax.f32 %v8711, 0.0
        %v8758 = vmax.f32 %v8716, 0.0
        %v8759 = vmax.f32 %v8721, 0.0
        %v8760 = vmax.f32 %v8726, 0.0
        %vm8761 = vcmask 162816
        %8762 = vst.msk [vmem:[%s236] sm:$0xff] %vm8761, %v8729
        %8763 = vst.msk [vmem:[%s236 + $0x8] sm:$0xff] %vm8761, %v8730
        %8764 = vst.msk [vmem:[%s236 + $0x10] sm:$0xff] %vm8761, %v8731
        %8765 = vst.msk [vmem:[%s236 + $0x18] sm:$0xff] %vm8761, %v8732
        %8766 = vst.msk [vmem:[%s236 + $0x20] sm:$0xff] %vm8761, %v8733
        %8767 = vst.msk [vmem:[%s236 + $0x28] sm:$0xff] %vm8761, %v8734
        %8768 = vst.msk [vmem:[%s236 + $0x30] sm:$0xff] %vm8761, %v8735
        %8769 = vst.msk [vmem:[%s236 + $0x38] sm:$0xff] %vm8761, %v8736
        %8770 = vst.msk [vmem:[%s236 + $0x40] sm:$0xff] %vm8761, %v8737
        %8771 = vst.msk [vmem:[%s236 + $0x48] sm:$0xff] %vm8761, %v8738
        %8772 = vst.msk [vmem:[%s236 + $0x50] sm:$0xff] %vm8761, %v8739
        %8773 = vst.msk [vmem:[%s236 + $0x58] sm:$0xff] %vm8761, %v8740
        %8774 = vst.msk [vmem:[%s236 + $0x60] sm:$0xff] %vm8761, %v8741
        %8775 = vst.msk [vmem:[%s236 + $0x68] sm:$0xff] %vm8761, %v8742
        %8776 = vst.msk [vmem:[%s236 + $0x70] sm:$0xff] %vm8761, %v8743
        %8777 = vst.msk [vmem:[%s236 + $0x78] sm:$0xff] %vm8761, %v8744
        %8778 = vst.msk [vmem:[%s236 + $0x80] sm:$0xff] %vm8761, %v8745
        %8779 = vst.msk [vmem:[%s236 + $0x88] sm:$0xff] %vm8761, %v8746
        %8780 = vst.msk [vmem:[%s236 + $0x90] sm:$0xff] %vm8761, %v8747
        %8781 = vst.msk [vmem:[%s236 + $0x98] sm:$0xff] %vm8761, %v8748
        %8782 = vst.msk [vmem:[%s236 + $0xa0] sm:$0xff] %vm8761, %v8749
        %8783 = vst.msk [vmem:[%s236 + $0xa8] sm:$0xff] %vm8761, %v8750
        %8784 = vst.msk [vmem:[%s236 + $0xb0] sm:$0xff] %vm8761, %v8751
        %8785 = vst.msk [vmem:[%s236 + $0xb8] sm:$0xff] %vm8761, %v8752
        %8786 = vst.msk [vmem:[%s236 + $0xc0] sm:$0xff] %vm8761, %v8753
        %8787 = vst.msk [vmem:[%s236 + $0xc8] sm:$0xff] %vm8761, %v8754
        %8788 = vst.msk [vmem:[%s236 + $0xd0] sm:$0xff] %vm8761, %v8755
        %8789 = vst.msk [vmem:[%s236 + $0xd8] sm:$0xff] %vm8761, %v8756
        %8790 = vst.msk [vmem:[%s236 + $0xe0] sm:$0xff] %vm8761, %v8757
        %8791 = vst.msk [vmem:[%s236 + $0xe8] sm:$0xff] %vm8761, %v8758
        %8792 = vst.msk [vmem:[%s236 + $0xf0] sm:$0xff] %vm8761, %v8759
        %8793 = vst.msk [vmem:[%s236 + $0xf8] sm:$0xff] %vm8761, %v8760
        %s8794 = sand.u32 %s153, 1
        %s8795 = scalar_lea.sflag [#allocation7], %s8794
        %s8796 = sand.u32 %s153, 1
        %s8797 = smul.addr %s8796, 256
        %s8798 = scalar_lea.vmem [#allocation6], %s8797
        // Predicated region
        $region45: #{inception_block.1} parent=39 // pred_check
          %p8799 = pneg %p163
        $region46: #{inception_block.1} parent=39 // pred_check_branch
          %8801 = sbr.rel (%p8799) target = $region48
        $region47: #{inception_block.1} parent=39 // pred_region
          %s8802 = sadd.s32 %s23, %s24
          %s8803 = smul.u32 32, %s8802
          %s8805 = ssub.s32 4096, 4096
          %8806 = vsyncadd %s8795, %s8805
          %s8807 = smul.addr %s8803, 128
          %s8808 = scalar_lea.hbm %s5, %s8807
          %s8809 = sshll.u32 %s8798, 4
          %s8810 = int_to_ptr.vmem [resolvable:$true] %s8809
          %8815 = dma.vmem_to_hbm [thread:$0]  %s8810, 4096, %s8808, %s8795, 128, 128, 8
        $region48: #{inception_block.1} parent=39 // pred_fallthru
          _
      $region40: #{inception_block.1} parent=5 // pred_fallthru
        _
      %p8816 = scmp.le.s32.totalorder 2, %s14
      // Predicated region
      $region49: #{inception_block.1} parent=5 // pred_check
        %p8817 = pneg %p8816
      $region50: #{inception_block.1} parent=5 // pred_check_branch
        %8819 = sbr.rel (%p8817) target = $region52
      $region51: #{inception_block.1} parent=5 // pred_region
        %s8820 = ssub.s32 %s14, 2
        // Predicated region
        $region53: #{inception_block.1} parent=51 // pred_check
          %p8821 = pneg %p169
        $region54: #{inception_block.1} parent=51 // pred_check_branch
          %8823 = sbr.rel (%p8821) target = $region56
        $region55: #{inception_block.1} parent=51 // pred_region
          %s8824 = sand.u32 %s154, 1
          %s8825 = scalar_lea.sflag [#allocation7], %s8824
          %s8826 = sand.u32 %s154, 1
          %s8827 = smul.addr %s8826, 256
          %s8828 = scalar_lea.vmem [#allocation6], %s8827
          %8829 = dma.done %s8825, 4096
        $region56: #{inception_block.1} parent=51 // pred_fallthru
          _
      $region52: #{inception_block.1} parent=5 // pred_fallthru
        _
    $region6: #{inception_block.1} parent=1 // loop_footer
      %s18 = sadd.s32 1, %s14
    $region7: #{inception_block.1} parent=1 // loop_footer_branch
      %13 = sbr.rel target = $region3
    $region8: #{inception_block.1} parent=1 // loop_exit
      _
    %8830 = vsyncpa [#allocation7], 1
    %s8831 = scalar_lea.sflag [#allocation7], 1
    %8832 = vsyncpa %s8831, 1

</llo_original>
